<compile_context>
chip_gen: v5e
topology: v5e:2x2
jax: 0.10.0
libtpu: 0.0.40
codegen_flags: <defaults>
</compile_context>

<pallas_src>
import jax
import jax.numpy as jnp
from jax.experimental import pallas as pl
from jax.experimental.pallas import tpu as pltpu


# ----------------------------------------------------------------------------
# In-kernel helpers.  Activations are values of shape (NB*L, C), batch-major
# rows g = b*L + l, channels on lanes.
# ----------------------------------------------------------------------------
def _shift_down(x):
  """y[g] = x[g-1]; y[0] = 0 (global zero pad)."""
  return jnp.concatenate([jnp.zeros_like(x[0:1]), x[:-1]], axis=0)


def _shift_up(x):
  """y[g] = x[g+1]; y[M-1] = 0 (global zero pad)."""
  return jnp.concatenate([x[1:], jnp.zeros_like(x[0:1])], axis=0)


def _segment_masks(nb, seg_len):
  """Row masks marking l == 0 and l == L-1 inside each sample's segment."""
  pos = jax.lax.broadcasted_iota(jnp.int32, (nb, seg_len, 1), 1)
  pos = pos.reshape(nb * seg_len, 1)          # layout-preserving merge (L % 8 == 0)
  return pos == 0, pos == seg_len - 1


def _conv1_first(x, w, t, nb, seg_len):
  """Conv1d(1->8, k3, 'same') + folded BN + ReLU on the VPU.

  Contraction depth is 1, so three broadcast FMAs beat a degenerate matmul.
  x: (NB*L, 1) f32; w: (3, 8) f32 (BN scale folded); t: (1, 8) f32.
  """
  first, last = _segment_masks(nb, seg_len)
  x_prev = jnp.where(first, 0.0, _shift_down(x))
  x_next = jnp.where(last, 0.0, _shift_up(x))
  acc = x_prev * w[0:1, :] + x * w[1:2, :] + x_next * w[2:3, :]
  return jnp.maximum(acc + t, 0.0)


def _conv_layer(x, w_stacked, t, nb, seg_len):
  """Conv1d(k3, 'same') + folded BN + ReLU as ONE MXU matmul (stacked taps).

  x: (NB*L, Cin) f32.
  w_stacked: (3*Cin, Cout) bf16, rows ordered [tap -1 | tap 0 | tap +1],
             BN scale folded in.
  t: (1, Cout) f32 folded shift (conv bias + BN).
  """
  first, last = _segment_masks(nb, seg_len)
  x_prev = jnp.where(first, 0.0, _shift_down(x))
  x_next = jnp.where(last, 0.0, _shift_up(x))
  lhs = jnp.concatenate([x_prev, x, x_next], axis=1).astype(jnp.bfloat16)
  acc = jnp.dot(lhs, w_stacked, preferred_element_type=jnp.float32)
  return jnp.maximum(acc + t, 0.0)


def _max_pool2(x):
  """MaxPool1d(kernel=2, stride=2) along rows (pairs never cross a sample)."""
  m, c = x.shape
  return jnp.max(x.reshape(m // 2, 2, c), axis=1)


def _flatten_lc(z, nb, seg_len):
  """(NB*L, C) -> (NB, L*C) with feature order (l, c).

  The PyTorch channel-major flatten is folded into fc1's row permutation at
  init, so this cheap (l, c) ordering is exactly what fc1 expects.
  """
  per_sample = []
  for b in range(nb):
    zb = z[b * seg_len:(b + 1) * seg_len, :]
    per_sample.append(
        jnp.concatenate([zb[l:l + 1, :] for l in range(seg_len)], axis=1))
  return jnp.concatenate(per_sample, axis=0)


# ----------------------------------------------------------------------------
# Fused kernel: conv1 + conv2 + conv3 + fc1, one grid step per batch chunk.
# ----------------------------------------------------------------------------
def _medium_cnn_kernel(x_ref,
                       w1a_ref, t1a_ref, w1b_ref, t1b_ref,
                       w2a_ref, t2a_ref, w2b_ref, t2b_ref,
                       w3a_ref, t3a_ref, w3b_ref, t3b_ref,
                       wf1_ref, bf1_ref, wf2_ref, bf2_ref,
                       o_ref):
  nb = o_ref.shape[0]
  l0 = x_ref.shape[0] // nb                     # 160

  x = x_ref[...]                                # (NB*160, 1) f32

  # conv block 1: (NB*160, 1) -> (NB*80, 8)
  z = _conv1_first(x, w1a_ref[...], t1a_ref[...], nb, l0)
  z = _conv_layer(z, w1b_ref[...], t1b_ref[...], nb, l0)
  z = _max_pool2(z)

  # conv block 2: (NB*80, 8) -> (NB*40, 16)
  l1 = l0 // 2
  z = _conv_layer(z, w2a_ref[...], t2a_ref[...], nb, l1)
  z = _conv_layer(z, w2b_ref[...], t2b_ref[...], nb, l1)
  z = _max_pool2(z)

  # conv block 3: (NB*40, 16) -> (NB*20, 32)
  l2 = l1 // 2
  z = _conv_layer(z, w3a_ref[...], t3a_ref[...], nb, l2)
  z = _conv_layer(z, w3b_ref[...], t3b_ref[...], nb, l2)
  z = _max_pool2(z)

  # fc1: Linear(640->64) + ReLU + Dropout(identity) + Linear(64->8)
  l3 = l2 // 2                                  # 20
  feats = _flatten_lc(z, nb, l3)                # (NB, 640) f32
  h = jnp.dot(feats.astype(jnp.bfloat16), wf1_ref[...],
              preferred_element_type=jnp.float32) + bf1_ref[...]
  h = jnp.maximum(h, 0.0)
  # TODO(synk): Dropout1d(0.2) is identity here (eval mode); training-mode
  #             stochastic masking is not implemented.
  o_ref[...] = jnp.dot(h.astype(jnp.bfloat16), wf2_ref[...],
                       preferred_element_type=jnp.float32) + bf2_ref[...]


# ----------------------------------------------------------------------------
# Wrapper around pallas_call
# ----------------------------------------------------------------------------
def _batch_block(n):
  # One batch chunk per grid step; chunks of 8 for larger batches so the
  # "parallel" grid axis can shard work across TensorCores (v7x megacore).
  if n <= 8 or n % 8 != 0:
    return n
  return 8


@jax.jit
def medium_cnn_forward(x_ncl, params):
  """x_ncl: (N, 1, 160) float32 -> (N, 8) float32."""
  n, c_in, length = x_ncl.shape
  assert c_in == 1 and length == 160, "MediumCNN expects (N, 1, 160) input"
  nb = _batch_block(n)

  # C_in == 1, so NCL -> (N*L, 1) batch-major rows is a pure (free) reshape.
  x_flat = x_ncl.astype(jnp.float32).reshape(n * length, 1)

  weights = [
      params["c1a_w"], params["c1a_t"], params["c1b_w"], params["c1b_t"],
      params["c2a_w"], params["c2a_t"], params["c2b_w"], params["c2b_t"],
      params["c3a_w"], params["c3a_t"], params["c3b_w"], params["c3b_t"],
      params["fc1_w"], params["fc1_b"], params["fc2_w"], params["fc2_b"],
  ]
  w_specs = [pl.BlockSpec(tuple(w.shape), lambda i: (0, 0)) for w in weights]

  grid_spec = pltpu.PrefetchScalarGridSpec(
      num_scalar_prefetch=0,
      grid=(n // nb,),
      in_specs=[pl.BlockSpec((nb * length, 1), lambda i: (i, 0))] + w_specs,
      out_specs=pl.BlockSpec((nb, 8), lambda i: (i, 0)),
  )
  return pl.pallas_call(
      _medium_cnn_kernel,
      out_shape=jax.ShapeDtypeStruct((n, 8), jnp.float32),
      grid_spec=grid_spec,
      compiler_params=pltpu.CompilerParams(
          dimension_semantics=("parallel",)),
  )(x_flat, *weights)


# ----------------------------------------------------------------------------
# Deterministic parameter construction (PyTorch-shaped, then folded/stacked)
# ----------------------------------------------------------------------------
def _conv_bn_params(key, c_in, c_out, eps=1e-5):
  ks = jax.random.split(key, 6)
  # PyTorch Conv1d weight is (Cout, Cin, K=3).
  w_pt = jax.random.normal(ks[0], (c_out, c_in, 3), jnp.float32)
  w_pt = w_pt * (1.0 / jnp.sqrt(3.0 * c_in))
  bias = 0.05 * jax.random.normal(ks[1], (c_out,), jnp.float32)
  gamma = 1.0 + 0.1 * jax.random.normal(ks[2], (c_out,), jnp.float32)
  beta = 0.05 * jax.random.normal(ks[3], (c_out,), jnp.float32)
  r_mean = 0.05 * jax.random.normal(ks[4], (c_out,), jnp.float32)
  r_var = 0.5 + jax.random.uniform(ks[5], (c_out,), jnp.float32)
  # Fold conv bias + BatchNorm (eval mode): y = conv_nobias(x)*scale + shift.
  scale = gamma / jnp.sqrt(r_var + eps)
  shift = (bias - r_mean) * scale + beta
  # Fold the BN scale straight into the conv weights and stack the 3 taps
  # row-wise: (K, Cin, Cout) -> (3*Cin, Cout), rows ordered [k=0 | k=1 | k=2].
  w_eff = jnp.transpose(w_pt, (2, 1, 0)) * scale              # (3, Cin, Cout)
  if c_in == 1:
    w_k = w_eff.reshape(3, c_out)                             # f32, VPU path
  else:
    w_k = w_eff.reshape(3 * c_in, c_out).astype(jnp.bfloat16)  # MXU path
  return w_k, shift.reshape(1, c_out).astype(jnp.float32)


def _fc_params(key, c_feat=32, l_feat=20, f_hid=64, f_out=8):
  ks = jax.random.split(key, 4)
  f_in = c_feat * l_feat
  w1_pt = jax.random.normal(ks[0], (f_hid, f_in), jnp.float32) / jnp.sqrt(1.0 * f_in)
  b1 = 0.05 * jax.random.normal(ks[1], (f_hid,), jnp.float32)
  w2_pt = jax.random.normal(ks[2], (f_out, f_hid), jnp.float32) / jnp.sqrt(1.0 * f_hid)
  b2 = 0.05 * jax.random.normal(ks[3], (f_out,), jnp.float32)
  # PyTorch flattens (N, C=32, L=20) channel-major (feature f = c*20 + l); the
  # kernel produces (l, c)-ordered features, so permute fc1's rows once here.
  w1p = jnp.transpose(w1_pt.reshape(f_hid, c_feat, l_feat), (2, 1, 0))
  w1p = w1p.reshape(f_in, f_hid)
  return (w1p.astype(jnp.bfloat16), b1.reshape(1, f_hid).astype(jnp.float32),
          jnp.transpose(w2_pt).astype(jnp.bfloat16),
          b2.reshape(1, f_out).astype(jnp.float32))


def init_params(key):
  ks = jax.random.split(key, 7)
  w1a, t1a = _conv_bn_params(ks[0], 1, 8)
  w1b, t1b = _conv_bn_params(ks[1], 8, 8)
  w2a, t2a = _conv_bn_params(ks[2], 8, 16)
  w2b, t2b = _conv_bn_params(ks[3], 16, 16)
  w3a, t3a = _conv_bn_params(ks[4], 16, 32)
  w3b, t3b = _conv_bn_params(ks[5], 32, 32)
  wf1, bf1, wf2, bf2 = _fc_params(ks[6])
  return {
      "c1a_w": w1a, "c1a_t": t1a, "c1b_w": w1b, "c1b_t": t1b,
      "c2a_w": w2a, "c2a_t": t2a, "c2b_w": w2b, "c2b_t": t2b,
      "c3a_w": w3a, "c3a_t": t3a, "c3b_w": w3b, "c3b_t": t3b,
      "fc1_w": wf1, "fc1_b": bf1, "fc2_w": wf2, "fc2_b": bf2,
  }


if __name__ == "__main__":
  key = jax.random.PRNGKey(0)
  k_in, k_params = jax.random.split(key)
  # Batch=2, 1 input channel, length 160 (so the flatten yields 32*20 = 640).
  x = jax.random.normal(k_in, (2, 1, 160), jnp.float32)
  params = init_params(k_params)

  out = jax.block_until_ready(medium_cnn_forward(x, params))
  assert out.shape == (2, 8) and out.dtype == jnp.float32
  print("KERNEL_OK")
</pallas_src>

<mosaic_0001>
module attributes {stable_mosaic.version = 11 : i64} {
  func.func @_medium_cnn_kernel(%arg0: i32, %arg1: memref<320x1xf32, #tpu.memory_space<vmem>>, %arg2: memref<3x8xf32, #tpu.memory_space<vmem>>, %arg3: memref<1x8xf32, #tpu.memory_space<vmem>>, %arg4: memref<24x8xbf16, #tpu.memory_space<vmem>>, %arg5: memref<1x8xf32, #tpu.memory_space<vmem>>, %arg6: memref<24x16xbf16, #tpu.memory_space<vmem>>, %arg7: memref<1x16xf32, #tpu.memory_space<vmem>>, %arg8: memref<48x16xbf16, #tpu.memory_space<vmem>>, %arg9: memref<1x16xf32, #tpu.memory_space<vmem>>, %arg10: memref<48x32xbf16, #tpu.memory_space<vmem>>, %arg11: memref<1x32xf32, #tpu.memory_space<vmem>>, %arg12: memref<96x32xbf16, #tpu.memory_space<vmem>>, %arg13: memref<1x32xf32, #tpu.memory_space<vmem>>, %arg14: memref<640x64xbf16, #tpu.memory_space<vmem>>, %arg15: memref<1x64xf32, #tpu.memory_space<vmem>>, %arg16: memref<64x8xbf16, #tpu.memory_space<vmem>>, %arg17: memref<1x8xf32, #tpu.memory_space<vmem>>, %arg18: memref<2x8xf32, #tpu.memory_space<vmem>>) attributes {dimension_semantics = [#tpu.dimension_semantics<parallel>], iteration_bounds = array<i64: 1>, scalar_prefetch = 0 : i64, scratch_operands = 0 : i64, tpu.core_type = #tpu.core_type<tc>, window_params = [{transform_indices = @transform_0, window_bounds = array<i64: 320, 1>}, {pipeline_mode = #tpu.pipeline_mode<synchronous>, transform_indices = @transform_1, window_bounds = array<i64: 3, 8>}, {pipeline_mode = #tpu.pipeline_mode<synchronous>, transform_indices = @transform_2, window_bounds = array<i64: 1, 8>}, {pipeline_mode = #tpu.pipeline_mode<synchronous>, transform_indices = @transform_3, window_bounds = array<i64: 24, 8>}, {pipeline_mode = #tpu.pipeline_mode<synchronous>, transform_indices = @transform_4, window_bounds = array<i64: 1, 8>}, {pipeline_mode = #tpu.pipeline_mode<synchronous>, transform_indices = @transform_5, window_bounds = array<i64: 24, 16>}, {pipeline_mode = #tpu.pipeline_mode<synchronous>, transform_indices = @transform_6, window_bounds = array<i64: 1, 16>}, {pipeline_mode = #tpu.pipeline_mode<synchronous>, transform_indices = @transform_7, window_bounds = array<i64: 48, 16>}, {pipeline_mode = #tpu.pipeline_mode<synchronous>, transform_indices = @transform_8, window_bounds = array<i64: 1, 16>}, {pipeline_mode = #tpu.pipeline_mode<synchronous>, transform_indices = @transform_9, window_bounds = array<i64: 48, 32>}, {pipeline_mode = #tpu.pipeline_mode<synchronous>, transform_indices = @transform_10, window_bounds = array<i64: 1, 32>}, {pipeline_mode = #tpu.pipeline_mode<synchronous>, transform_indices = @transform_11, window_bounds = array<i64: 96, 32>}, {pipeline_mode = #tpu.pipeline_mode<synchronous>, transform_indices = @transform_12, window_bounds = array<i64: 1, 32>}, {pipeline_mode = #tpu.pipeline_mode<synchronous>, transform_indices = @transform_13, window_bounds = array<i64: 640, 64>}, {pipeline_mode = #tpu.pipeline_mode<synchronous>, transform_indices = @transform_14, window_bounds = array<i64: 1, 64>}, {pipeline_mode = #tpu.pipeline_mode<synchronous>, transform_indices = @transform_15, window_bounds = array<i64: 64, 8>}, {pipeline_mode = #tpu.pipeline_mode<synchronous>, transform_indices = @transform_16, window_bounds = array<i64: 1, 8>}, {transform_indices = @transform_17, window_bounds = array<i64: 2, 8>}]} {
    %c0 = arith.constant 0 : index
    %c0_0 = arith.constant 0 : index
    %0 = vector.load %arg1[%c0, %c0_0] : memref<320x1xf32, #tpu.memory_space<vmem>>, vector<320x1xf32>
    %c0_1 = arith.constant 0 : index
    %c0_2 = arith.constant 0 : index
    %1 = vector.load %arg2[%c0_1, %c0_2] : memref<3x8xf32, #tpu.memory_space<vmem>>, vector<3x8xf32>
    %c0_3 = arith.constant 0 : index
    %c0_4 = arith.constant 0 : index
    %2 = vector.load %arg3[%c0_3, %c0_4] : memref<1x8xf32, #tpu.memory_space<vmem>>, vector<1x8xf32>
    %3 = tpu.iota {dimensions = array<i32: 1>} : vector<2x160x1xi32>
    %4 = vector.shape_cast %3 : vector<2x160x1xi32> to vector<320x1xi32>
    %c0_i32 = arith.constant 0 : i32
    %5 = vector.broadcast %c0_i32 : i32 to vector<320x1xi32>
    %6 = arith.cmpi eq, %4, %5 : vector<320x1xi32>
    %c159_i32 = arith.constant 159 : i32
    %7 = vector.broadcast %c159_i32 : i32 to vector<320x1xi32>
    %8 = arith.cmpi eq, %4, %7 : vector<320x1xi32>
    %cst = arith.constant 0.000000e+00 : f32
    %9 = vector.broadcast %cst : f32 to vector<1x1xf32>
    %10 = vector.extract_strided_slice %0 {offsets = [0, 0], sizes = [319, 1], strides = [1, 1]} : vector<320x1xf32> to vector<319x1xf32>
    %11 = tpu.concatenate %9, %10 in 0 : vector<1x1xf32>, vector<319x1xf32> -> vector<320x1xf32>
    %cst_5 = arith.constant 0.000000e+00 : f32
    %12 = vector.broadcast %cst_5 : f32 to vector<320x1xf32>
    %13 = arith.select %6, %12, %11 : vector<320x1xi1>, vector<320x1xf32>
    %14 = vector.extract_strided_slice %0 {offsets = [1, 0], sizes = [319, 1], strides = [1, 1]} : vector<320x1xf32> to vector<319x1xf32>
    %cst_6 = arith.constant 0.000000e+00 : f32
    %15 = vector.broadcast %cst_6 : f32 to vector<1x1xf32>
    %16 = tpu.concatenate %14, %15 in 0 : vector<319x1xf32>, vector<1x1xf32> -> vector<320x1xf32>
    %cst_7 = arith.constant 0.000000e+00 : f32
    %17 = vector.broadcast %cst_7 : f32 to vector<320x1xf32>
    %18 = arith.select %8, %17, %16 : vector<320x1xi1>, vector<320x1xf32>
    %19 = vector.extract_strided_slice %1 {offsets = [0, 0], sizes = [1, 8], strides = [1, 1]} : vector<3x8xf32> to vector<1x8xf32>
    %20 = vector.broadcast %13 : vector<320x1xf32> to vector<320x8xf32>
    %21 = vector.broadcast %19 : vector<1x8xf32> to vector<320x8xf32>
    %22 = arith.mulf %20, %21 : vector<320x8xf32>
    %23 = vector.extract_strided_slice %1 {offsets = [1, 0], sizes = [1, 8], strides = [1, 1]} : vector<3x8xf32> to vector<1x8xf32>
    %24 = vector.broadcast %0 : vector<320x1xf32> to vector<320x8xf32>
    %25 = vector.broadcast %23 : vector<1x8xf32> to vector<320x8xf32>
    %26 = arith.mulf %24, %25 : vector<320x8xf32>
    %27 = arith.addf %22, %26 : vector<320x8xf32>
    %28 = vector.extract_strided_slice %1 {offsets = [2, 0], sizes = [1, 8], strides = [1, 1]} : vector<3x8xf32> to vector<1x8xf32>
    %29 = vector.broadcast %18 : vector<320x1xf32> to vector<320x8xf32>
    %30 = vector.broadcast %28 : vector<1x8xf32> to vector<320x8xf32>
    %31 = arith.mulf %29, %30 : vector<320x8xf32>
    %32 = arith.addf %27, %31 : vector<320x8xf32>
    %33 = vector.broadcast %2 : vector<1x8xf32> to vector<320x8xf32>
    %34 = arith.addf %32, %33 : vector<320x8xf32>
    %cst_8 = arith.constant 0.000000e+00 : f32
    %35 = vector.broadcast %cst_8 : f32 to vector<320x8xf32>
    %36 = arith.maximumf %34, %35 : vector<320x8xf32>
    %c0_9 = arith.constant 0 : index
    %c0_10 = arith.constant 0 : index
    %37 = vector.load %arg4[%c0_9, %c0_10] : memref<24x8xbf16, #tpu.memory_space<vmem>>, vector<24x8xbf16>
    %c0_11 = arith.constant 0 : index
    %c0_12 = arith.constant 0 : index
    %38 = vector.load %arg5[%c0_11, %c0_12] : memref<1x8xf32, #tpu.memory_space<vmem>>, vector<1x8xf32>
    %39 = tpu.iota {dimensions = array<i32: 1>} : vector<2x160x1xi32>
    %40 = vector.shape_cast %39 : vector<2x160x1xi32> to vector<320x1xi32>
    %c0_i32_13 = arith.constant 0 : i32
    %41 = vector.broadcast %c0_i32_13 : i32 to vector<320x1xi32>
    %42 = arith.cmpi eq, %40, %41 : vector<320x1xi32>
    %c159_i32_14 = arith.constant 159 : i32
    %43 = vector.broadcast %c159_i32_14 : i32 to vector<320x1xi32>
    %44 = arith.cmpi eq, %40, %43 : vector<320x1xi32>
    %cst_15 = arith.constant 0.000000e+00 : f32
    %45 = vector.broadcast %cst_15 : f32 to vector<1x8xf32>
    %46 = vector.extract_strided_slice %36 {offsets = [0, 0], sizes = [319, 8], strides = [1, 1]} : vector<320x8xf32> to vector<319x8xf32>
    %47 = tpu.concatenate %45, %46 in 0 : vector<1x8xf32>, vector<319x8xf32> -> vector<320x8xf32>
    %cst_16 = arith.constant 0.000000e+00 : f32
    %48 = vector.shape_cast %42 : vector<320x1xi1> to vector<320x1xi1>
    %49 = vector.broadcast %48 : vector<320x1xi1> to vector<320x8xi1>
    %50 = vector.broadcast %cst_16 : f32 to vector<320x8xf32>
    %51 = arith.select %49, %50, %47 : vector<320x8xi1>, vector<320x8xf32>
    %52 = vector.extract_strided_slice %36 {offsets = [1, 0], sizes = [319, 8], strides = [1, 1]} : vector<320x8xf32> to vector<319x8xf32>
    %cst_17 = arith.constant 0.000000e+00 : f32
    %53 = vector.broadcast %cst_17 : f32 to vector<1x8xf32>
    %54 = tpu.concatenate %52, %53 in 0 : vector<319x8xf32>, vector<1x8xf32> -> vector<320x8xf32>
    %cst_18 = arith.constant 0.000000e+00 : f32
    %55 = vector.shape_cast %44 : vector<320x1xi1> to vector<320x1xi1>
    %56 = vector.broadcast %55 : vector<320x1xi1> to vector<320x8xi1>
    %57 = vector.broadcast %cst_18 : f32 to vector<320x8xf32>
    %58 = arith.select %56, %57, %54 : vector<320x8xi1>, vector<320x8xf32>
    %59 = tpu.concatenate %51, %36, %58 in 1 : vector<320x8xf32>, vector<320x8xf32>, vector<320x8xf32> -> vector<320x24xf32>
    %60 = arith.truncf %59 : vector<320x24xf32> to vector<320x24xbf16>
    %cst_19 = arith.constant dense<0.000000e+00> : vector<320x8xf32>
    %61 = tpu.matmul %60, %37, %cst_19 {dimension_numbers = #tpu.dot_dimension_numbers<[1], [0], [0], [1], [0, 0, 1, 1], [], []>} : vector<320x24xbf16>, vector<24x8xbf16>, vector<320x8xf32> -> vector<320x8xf32>
    %62 = vector.broadcast %38 : vector<1x8xf32> to vector<320x8xf32>
    %63 = arith.addf %61, %62 : vector<320x8xf32>
    %cst_20 = arith.constant 0.000000e+00 : f32
    %64 = vector.broadcast %cst_20 : f32 to vector<320x8xf32>
    %65 = arith.maximumf %63, %64 : vector<320x8xf32>
    %66 = vector.shape_cast %65 : vector<320x8xf32> to vector<160x2x8xf32>
    %cst_21 = arith.constant dense<0xFF800000> : vector<160x8xf32>
    %67 = vector.multi_reduction <maximumf>, %66, %cst_21 [1] : vector<160x2x8xf32> to vector<160x8xf32>
    %c0_22 = arith.constant 0 : index
    %c0_23 = arith.constant 0 : index
    %68 = vector.load %arg6[%c0_22, %c0_23] : memref<24x16xbf16, #tpu.memory_space<vmem>>, vector<24x16xbf16>
    %c0_24 = arith.constant 0 : index
    %c0_25 = arith.constant 0 : index
    %69 = vector.load %arg7[%c0_24, %c0_25] : memref<1x16xf32, #tpu.memory_space<vmem>>, vector<1x16xf32>
    %70 = tpu.iota {dimensions = array<i32: 1>} : vector<2x80x1xi32>
    %71 = vector.shape_cast %70 : vector<2x80x1xi32> to vector<160x1xi32>
    %c0_i32_26 = arith.constant 0 : i32
    %72 = vector.broadcast %c0_i32_26 : i32 to vector<160x1xi32>
    %73 = arith.cmpi eq, %71, %72 : vector<160x1xi32>
    %c79_i32 = arith.constant 79 : i32
    %74 = vector.broadcast %c79_i32 : i32 to vector<160x1xi32>
    %75 = arith.cmpi eq, %71, %74 : vector<160x1xi32>
    %cst_27 = arith.constant 0.000000e+00 : f32
    %76 = vector.broadcast %cst_27 : f32 to vector<1x8xf32>
    %77 = vector.extract_strided_slice %67 {offsets = [0, 0], sizes = [159, 8], strides = [1, 1]} : vector<160x8xf32> to vector<159x8xf32>
    %78 = tpu.concatenate %76, %77 in 0 : vector<1x8xf32>, vector<159x8xf32> -> vector<160x8xf32>
    %cst_28 = arith.constant 0.000000e+00 : f32
    %79 = vector.shape_cast %73 : vector<160x1xi1> to vector<160x1xi1>
    %80 = vector.broadcast %79 : vector<160x1xi1> to vector<160x8xi1>
    %81 = vector.broadcast %cst_28 : f32 to vector<160x8xf32>
    %82 = arith.select %80, %81, %78 : vector<160x8xi1>, vector<160x8xf32>
    %83 = vector.extract_strided_slice %67 {offsets = [1, 0], sizes = [159, 8], strides = [1, 1]} : vector<160x8xf32> to vector<159x8xf32>
    %cst_29 = arith.constant 0.000000e+00 : f32
    %84 = vector.broadcast %cst_29 : f32 to vector<1x8xf32>
    %85 = tpu.concatenate %83, %84 in 0 : vector<159x8xf32>, vector<1x8xf32> -> vector<160x8xf32>
    %cst_30 = arith.constant 0.000000e+00 : f32
    %86 = vector.shape_cast %75 : vector<160x1xi1> to vector<160x1xi1>
    %87 = vector.broadcast %86 : vector<160x1xi1> to vector<160x8xi1>
    %88 = vector.broadcast %cst_30 : f32 to vector<160x8xf32>
    %89 = arith.select %87, %88, %85 : vector<160x8xi1>, vector<160x8xf32>
    %90 = tpu.concatenate %82, %67, %89 in 1 : vector<160x8xf32>, vector<160x8xf32>, vector<160x8xf32> -> vector<160x24xf32>
    %91 = arith.truncf %90 : vector<160x24xf32> to vector<160x24xbf16>
    %cst_31 = arith.constant dense<0.000000e+00> : vector<160x16xf32>
    %92 = tpu.matmul %91, %68, %cst_31 {dimension_numbers = #tpu.dot_dimension_numbers<[1], [0], [0], [1], [0, 0, 1, 1], [], []>} : vector<160x24xbf16>, vector<24x16xbf16>, vector<160x16xf32> -> vector<160x16xf32>
    %93 = vector.broadcast %69 : vector<1x16xf32> to vector<160x16xf32>
    %94 = arith.addf %92, %93 : vector<160x16xf32>
    %cst_32 = arith.constant 0.000000e+00 : f32
    %95 = vector.broadcast %cst_32 : f32 to vector<160x16xf32>
    %96 = arith.maximumf %94, %95 : vector<160x16xf32>
    %c0_33 = arith.constant 0 : index
    %c0_34 = arith.constant 0 : index
    %97 = vector.load %arg8[%c0_33, %c0_34] : memref<48x16xbf16, #tpu.memory_space<vmem>>, vector<48x16xbf16>
    %c0_35 = arith.constant 0 : index
    %c0_36 = arith.constant 0 : index
    %98 = vector.load %arg9[%c0_35, %c0_36] : memref<1x16xf32, #tpu.memory_space<vmem>>, vector<1x16xf32>
    %99 = tpu.iota {dimensions = array<i32: 1>} : vector<2x80x1xi32>
    %100 = vector.shape_cast %99 : vector<2x80x1xi32> to vector<160x1xi32>
    %c0_i32_37 = arith.constant 0 : i32
    %101 = vector.broadcast %c0_i32_37 : i32 to vector<160x1xi32>
    %102 = arith.cmpi eq, %100, %101 : vector<160x1xi32>
    %c79_i32_38 = arith.constant 79 : i32
    %103 = vector.broadcast %c79_i32_38 : i32 to vector<160x1xi32>
    %104 = arith.cmpi eq, %100, %103 : vector<160x1xi32>
    %cst_39 = arith.constant 0.000000e+00 : f32
    %105 = vector.broadcast %cst_39 : f32 to vector<1x16xf32>
    %106 = vector.extract_strided_slice %96 {offsets = [0, 0], sizes = [159, 16], strides = [1, 1]} : vector<160x16xf32> to vector<159x16xf32>
    %107 = tpu.concatenate %105, %106 in 0 : vector<1x16xf32>, vector<159x16xf32> -> vector<160x16xf32>
    %cst_40 = arith.constant 0.000000e+00 : f32
    %108 = vector.shape_cast %102 : vector<160x1xi1> to vector<160x1xi1>
    %109 = vector.broadcast %108 : vector<160x1xi1> to vector<160x16xi1>
    %110 = vector.broadcast %cst_40 : f32 to vector<160x16xf32>
    %111 = arith.select %109, %110, %107 : vector<160x16xi1>, vector<160x16xf32>
    %112 = vector.extract_strided_slice %96 {offsets = [1, 0], sizes = [159, 16], strides = [1, 1]} : vector<160x16xf32> to vector<159x16xf32>
    %cst_41 = arith.constant 0.000000e+00 : f32
    %113 = vector.broadcast %cst_41 : f32 to vector<1x16xf32>
    %114 = tpu.concatenate %112, %113 in 0 : vector<159x16xf32>, vector<1x16xf32> -> vector<160x16xf32>
    %cst_42 = arith.constant 0.000000e+00 : f32
    %115 = vector.shape_cast %104 : vector<160x1xi1> to vector<160x1xi1>
    %116 = vector.broadcast %115 : vector<160x1xi1> to vector<160x16xi1>
    %117 = vector.broadcast %cst_42 : f32 to vector<160x16xf32>
    %118 = arith.select %116, %117, %114 : vector<160x16xi1>, vector<160x16xf32>
    %119 = tpu.concatenate %111, %96, %118 in 1 : vector<160x16xf32>, vector<160x16xf32>, vector<160x16xf32> -> vector<160x48xf32>
    %120 = arith.truncf %119 : vector<160x48xf32> to vector<160x48xbf16>
    %cst_43 = arith.constant dense<0.000000e+00> : vector<160x16xf32>
    %121 = tpu.matmul %120, %97, %cst_43 {dimension_numbers = #tpu.dot_dimension_numbers<[1], [0], [0], [1], [0, 0, 1, 1], [], []>} : vector<160x48xbf16>, vector<48x16xbf16>, vector<160x16xf32> -> vector<160x16xf32>
    %122 = vector.broadcast %98 : vector<1x16xf32> to vector<160x16xf32>
    %123 = arith.addf %121, %122 : vector<160x16xf32>
    %cst_44 = arith.constant 0.000000e+00 : f32
    %124 = vector.broadcast %cst_44 : f32 to vector<160x16xf32>
    %125 = arith.maximumf %123, %124 : vector<160x16xf32>
    %126 = vector.shape_cast %125 : vector<160x16xf32> to vector<80x2x16xf32>
    %cst_45 = arith.constant dense<0xFF800000> : vector<80x16xf32>
    %127 = vector.multi_reduction <maximumf>, %126, %cst_45 [1] : vector<80x2x16xf32> to vector<80x16xf32>
    %c0_46 = arith.constant 0 : index
    %c0_47 = arith.constant 0 : index
    %128 = vector.load %arg10[%c0_46, %c0_47] : memref<48x32xbf16, #tpu.memory_space<vmem>>, vector<48x32xbf16>
    %c0_48 = arith.constant 0 : index
    %c0_49 = arith.constant 0 : index
    %129 = vector.load %arg11[%c0_48, %c0_49] : memref<1x32xf32, #tpu.memory_space<vmem>>, vector<1x32xf32>
    %130 = tpu.iota {dimensions = array<i32: 1>} : vector<2x40x1xi32>
    %131 = vector.shape_cast %130 : vector<2x40x1xi32> to vector<80x1xi32>
    %c0_i32_50 = arith.constant 0 : i32
    %132 = vector.broadcast %c0_i32_50 : i32 to vector<80x1xi32>
    %133 = arith.cmpi eq, %131, %132 : vector<80x1xi32>
    %c39_i32 = arith.constant 39 : i32
    %134 = vector.broadcast %c39_i32 : i32 to vector<80x1xi32>
    %135 = arith.cmpi eq, %131, %134 : vector<80x1xi32>
    %cst_51 = arith.constant 0.000000e+00 : f32
    %136 = vector.broadcast %cst_51 : f32 to vector<1x16xf32>
    %137 = vector.extract_strided_slice %127 {offsets = [0, 0], sizes = [79, 16], strides = [1, 1]} : vector<80x16xf32> to vector<79x16xf32>
    %138 = tpu.concatenate %136, %137 in 0 : vector<1x16xf32>, vector<79x16xf32> -> vector<80x16xf32>
    %cst_52 = arith.constant 0.000000e+00 : f32
    %139 = vector.shape_cast %133 : vector<80x1xi1> to vector<80x1xi1>
    %140 = vector.broadcast %139 : vector<80x1xi1> to vector<80x16xi1>
    %141 = vector.broadcast %cst_52 : f32 to vector<80x16xf32>
    %142 = arith.select %140, %141, %138 : vector<80x16xi1>, vector<80x16xf32>
    %143 = vector.extract_strided_slice %127 {offsets = [1, 0], sizes = [79, 16], strides = [1, 1]} : vector<80x16xf32> to vector<79x16xf32>
    %cst_53 = arith.constant 0.000000e+00 : f32
    %144 = vector.broadcast %cst_53 : f32 to vector<1x16xf32>
    %145 = tpu.concatenate %143, %144 in 0 : vector<79x16xf32>, vector<1x16xf32> -> vector<80x16xf32>
    %cst_54 = arith.constant 0.000000e+00 : f32
    %146 = vector.shape_cast %135 : vector<80x1xi1> to vector<80x1xi1>
    %147 = vector.broadcast %146 : vector<80x1xi1> to vector<80x16xi1>
    %148 = vector.broadcast %cst_54 : f32 to vector<80x16xf32>
    %149 = arith.select %147, %148, %145 : vector<80x16xi1>, vector<80x16xf32>
    %150 = tpu.concatenate %142, %127, %149 in 1 : vector<80x16xf32>, vector<80x16xf32>, vector<80x16xf32> -> vector<80x48xf32>
    %151 = arith.truncf %150 : vector<80x48xf32> to vector<80x48xbf16>
    %cst_55 = arith.constant dense<0.000000e+00> : vector<80x32xf32>
    %152 = tpu.matmul %151, %128, %cst_55 {dimension_numbers = #tpu.dot_dimension_numbers<[1], [0], [0], [1], [0, 0, 1, 1], [], []>} : vector<80x48xbf16>, vector<48x32xbf16>, vector<80x32xf32> -> vector<80x32xf32>
    %153 = vector.broadcast %129 : vector<1x32xf32> to vector<80x32xf32>
    %154 = arith.addf %152, %153 : vector<80x32xf32>
    %cst_56 = arith.constant 0.000000e+00 : f32
    %155 = vector.broadcast %cst_56 : f32 to vector<80x32xf32>
    %156 = arith.maximumf %154, %155 : vector<80x32xf32>
    %c0_57 = arith.constant 0 : index
    %c0_58 = arith.constant 0 : index
    %157 = vector.load %arg12[%c0_57, %c0_58] : memref<96x32xbf16, #tpu.memory_space<vmem>>, vector<96x32xbf16>
    %c0_59 = arith.constant 0 : index
    %c0_60 = arith.constant 0 : index
    %158 = vector.load %arg13[%c0_59, %c0_60] : memref<1x32xf32, #tpu.memory_space<vmem>>, vector<1x32xf32>
    %159 = tpu.iota {dimensions = array<i32: 1>} : vector<2x40x1xi32>
    %160 = vector.shape_cast %159 : vector<2x40x1xi32> to vector<80x1xi32>
    %c0_i32_61 = arith.constant 0 : i32
    %161 = vector.broadcast %c0_i32_61 : i32 to vector<80x1xi32>
    %162 = arith.cmpi eq, %160, %161 : vector<80x1xi32>
    %c39_i32_62 = arith.constant 39 : i32
    %163 = vector.broadcast %c39_i32_62 : i32 to vector<80x1xi32>
    %164 = arith.cmpi eq, %160, %163 : vector<80x1xi32>
    %cst_63 = arith.constant 0.000000e+00 : f32
    %165 = vector.broadcast %cst_63 : f32 to vector<1x32xf32>
    %166 = vector.extract_strided_slice %156 {offsets = [0, 0], sizes = [79, 32], strides = [1, 1]} : vector<80x32xf32> to vector<79x32xf32>
    %167 = tpu.concatenate %165, %166 in 0 : vector<1x32xf32>, vector<79x32xf32> -> vector<80x32xf32>
    %cst_64 = arith.constant 0.000000e+00 : f32
    %168 = vector.shape_cast %162 : vector<80x1xi1> to vector<80x1xi1>
    %169 = vector.broadcast %168 : vector<80x1xi1> to vector<80x32xi1>
    %170 = vector.broadcast %cst_64 : f32 to vector<80x32xf32>
    %171 = arith.select %169, %170, %167 : vector<80x32xi1>, vector<80x32xf32>
    %172 = vector.extract_strided_slice %156 {offsets = [1, 0], sizes = [79, 32], strides = [1, 1]} : vector<80x32xf32> to vector<79x32xf32>
    %cst_65 = arith.constant 0.000000e+00 : f32
    %173 = vector.broadcast %cst_65 : f32 to vector<1x32xf32>
    %174 = tpu.concatenate %172, %173 in 0 : vector<79x32xf32>, vector<1x32xf32> -> vector<80x32xf32>
    %cst_66 = arith.constant 0.000000e+00 : f32
    %175 = vector.shape_cast %164 : vector<80x1xi1> to vector<80x1xi1>
    %176 = vector.broadcast %175 : vector<80x1xi1> to vector<80x32xi1>
    %177 = vector.broadcast %cst_66 : f32 to vector<80x32xf32>
    %178 = arith.select %176, %177, %174 : vector<80x32xi1>, vector<80x32xf32>
    %179 = tpu.concatenate %171, %156, %178 in 1 : vector<80x32xf32>, vector<80x32xf32>, vector<80x32xf32> -> vector<80x96xf32>
    %180 = arith.truncf %179 : vector<80x96xf32> to vector<80x96xbf16>
    %cst_67 = arith.constant dense<0.000000e+00> : vector<80x32xf32>
    %181 = tpu.matmul %180, %157, %cst_67 {dimension_numbers = #tpu.dot_dimension_numbers<[1], [0], [0], [1], [0, 0, 1, 1], [], []>} : vector<80x96xbf16>, vector<96x32xbf16>, vector<80x32xf32> -> vector<80x32xf32>
    %182 = vector.broadcast %158 : vector<1x32xf32> to vector<80x32xf32>
    %183 = arith.addf %181, %182 : vector<80x32xf32>
    %cst_68 = arith.constant 0.000000e+00 : f32
    %184 = vector.broadcast %cst_68 : f32 to vector<80x32xf32>
    %185 = arith.maximumf %183, %184 : vector<80x32xf32>
    %186 = vector.shape_cast %185 : vector<80x32xf32> to vector<40x2x32xf32>
    %cst_69 = arith.constant dense<0xFF800000> : vector<40x32xf32>
    %187 = vector.multi_reduction <maximumf>, %186, %cst_69 [1] : vector<40x2x32xf32> to vector<40x32xf32>
    %188 = vector.extract_strided_slice %187 {offsets = [0, 0], sizes = [20, 32], strides = [1, 1]} : vector<40x32xf32> to vector<20x32xf32>
    %189 = vector.extract_strided_slice %188 {offsets = [0, 0], sizes = [1, 32], strides = [1, 1]} : vector<20x32xf32> to vector<1x32xf32>
    %190 = vector.extract_strided_slice %188 {offsets = [1, 0], sizes = [1, 32], strides = [1, 1]} : vector<20x32xf32> to vector<1x32xf32>
    %191 = vector.extract_strided_slice %188 {offsets = [2, 0], sizes = [1, 32], strides = [1, 1]} : vector<20x32xf32> to vector<1x32xf32>
    %192 = vector.extract_strided_slice %188 {offsets = [3, 0], sizes = [1, 32], strides = [1, 1]} : vector<20x32xf32> to vector<1x32xf32>
    %193 = vector.extract_strided_slice %188 {offsets = [4, 0], sizes = [1, 32], strides = [1, 1]} : vector<20x32xf32> to vector<1x32xf32>
    %194 = vector.extract_strided_slice %188 {offsets = [5, 0], sizes = [1, 32], strides = [1, 1]} : vector<20x32xf32> to vector<1x32xf32>
    %195 = vector.extract_strided_slice %188 {offsets = [6, 0], sizes = [1, 32], strides = [1, 1]} : vector<20x32xf32> to vector<1x32xf32>
    %196 = vector.extract_strided_slice %188 {offsets = [7, 0], sizes = [1, 32], strides = [1, 1]} : vector<20x32xf32> to vector<1x32xf32>
    %197 = vector.extract_strided_slice %188 {offsets = [8, 0], sizes = [1, 32], strides = [1, 1]} : vector<20x32xf32> to vector<1x32xf32>
    %198 = vector.extract_strided_slice %188 {offsets = [9, 0], sizes = [1, 32], strides = [1, 1]} : vector<20x32xf32> to vector<1x32xf32>
    %199 = vector.extract_strided_slice %188 {offsets = [10, 0], sizes = [1, 32], strides = [1, 1]} : vector<20x32xf32> to vector<1x32xf32>
    %200 = vector.extract_strided_slice %188 {offsets = [11, 0], sizes = [1, 32], strides = [1, 1]} : vector<20x32xf32> to vector<1x32xf32>
    %201 = vector.extract_strided_slice %188 {offsets = [12, 0], sizes = [1, 32], strides = [1, 1]} : vector<20x32xf32> to vector<1x32xf32>
    %202 = vector.extract_strided_slice %188 {offsets = [13, 0], sizes = [1, 32], strides = [1, 1]} : vector<20x32xf32> to vector<1x32xf32>
    %203 = vector.extract_strided_slice %188 {offsets = [14, 0], sizes = [1, 32], strides = [1, 1]} : vector<20x32xf32> to vector<1x32xf32>
    %204 = vector.extract_strided_slice %188 {offsets = [15, 0], sizes = [1, 32], strides = [1, 1]} : vector<20x32xf32> to vector<1x32xf32>
    %205 = vector.extract_strided_slice %188 {offsets = [16, 0], sizes = [1, 32], strides = [1, 1]} : vector<20x32xf32> to vector<1x32xf32>
    %206 = vector.extract_strided_slice %188 {offsets = [17, 0], sizes = [1, 32], strides = [1, 1]} : vector<20x32xf32> to vector<1x32xf32>
    %207 = vector.extract_strided_slice %188 {offsets = [18, 0], sizes = [1, 32], strides = [1, 1]} : vector<20x32xf32> to vector<1x32xf32>
    %208 = vector.extract_strided_slice %188 {offsets = [19, 0], sizes = [1, 32], strides = [1, 1]} : vector<20x32xf32> to vector<1x32xf32>
    %209 = tpu.concatenate %189, %190, %191, %192, %193, %194, %195, %196, %197, %198, %199, %200, %201, %202, %203, %204 in 1 : vector<1x32xf32>, vector<1x32xf32>, vector<1x32xf32>, vector<1x32xf32>, vector<1x32xf32>, vector<1x32xf32>, vector<1x32xf32>, vector<1x32xf32>, vector<1x32xf32>, vector<1x32xf32>, vector<1x32xf32>, vector<1x32xf32>, vector<1x32xf32>, vector<1x32xf32>, vector<1x32xf32>, vector<1x32xf32> -> vector<1x512xf32>
    %210 = tpu.concatenate %205, %206, %207, %208 in 1 : vector<1x32xf32>, vector<1x32xf32>, vector<1x32xf32>, vector<1x32xf32> -> vector<1x128xf32>
    %211 = tpu.concatenate %209, %210 in 1 : vector<1x512xf32>, vector<1x128xf32> -> vector<1x640xf32>
    %212 = vector.extract_strided_slice %187 {offsets = [20, 0], sizes = [20, 32], strides = [1, 1]} : vector<40x32xf32> to vector<20x32xf32>
    %213 = vector.extract_strided_slice %212 {offsets = [0, 0], sizes = [1, 32], strides = [1, 1]} : vector<20x32xf32> to vector<1x32xf32>
    %214 = vector.extract_strided_slice %212 {offsets = [1, 0], sizes = [1, 32], strides = [1, 1]} : vector<20x32xf32> to vector<1x32xf32>
    %215 = vector.extract_strided_slice %212 {offsets = [2, 0], sizes = [1, 32], strides = [1, 1]} : vector<20x32xf32> to vector<1x32xf32>
    %216 = vector.extract_strided_slice %212 {offsets = [3, 0], sizes = [1, 32], strides = [1, 1]} : vector<20x32xf32> to vector<1x32xf32>
    %217 = vector.extract_strided_slice %212 {offsets = [4, 0], sizes = [1, 32], strides = [1, 1]} : vector<20x32xf32> to vector<1x32xf32>
    %218 = vector.extract_strided_slice %212 {offsets = [5, 0], sizes = [1, 32], strides = [1, 1]} : vector<20x32xf32> to vector<1x32xf32>
    %219 = vector.extract_strided_slice %212 {offsets = [6, 0], sizes = [1, 32], strides = [1, 1]} : vector<20x32xf32> to vector<1x32xf32>
    %220 = vector.extract_strided_slice %212 {offsets = [7, 0], sizes = [1, 32], strides = [1, 1]} : vector<20x32xf32> to vector<1x32xf32>
    %221 = vector.extract_strided_slice %212 {offsets = [8, 0], sizes = [1, 32], strides = [1, 1]} : vector<20x32xf32> to vector<1x32xf32>
    %222 = vector.extract_strided_slice %212 {offsets = [9, 0], sizes = [1, 32], strides = [1, 1]} : vector<20x32xf32> to vector<1x32xf32>
    %223 = vector.extract_strided_slice %212 {offsets = [10, 0], sizes = [1, 32], strides = [1, 1]} : vector<20x32xf32> to vector<1x32xf32>
    %224 = vector.extract_strided_slice %212 {offsets = [11, 0], sizes = [1, 32], strides = [1, 1]} : vector<20x32xf32> to vector<1x32xf32>
    %225 = vector.extract_strided_slice %212 {offsets = [12, 0], sizes = [1, 32], strides = [1, 1]} : vector<20x32xf32> to vector<1x32xf32>
    %226 = vector.extract_strided_slice %212 {offsets = [13, 0], sizes = [1, 32], strides = [1, 1]} : vector<20x32xf32> to vector<1x32xf32>
    %227 = vector.extract_strided_slice %212 {offsets = [14, 0], sizes = [1, 32], strides = [1, 1]} : vector<20x32xf32> to vector<1x32xf32>
    %228 = vector.extract_strided_slice %212 {offsets = [15, 0], sizes = [1, 32], strides = [1, 1]} : vector<20x32xf32> to vector<1x32xf32>
    %229 = vector.extract_strided_slice %212 {offsets = [16, 0], sizes = [1, 32], strides = [1, 1]} : vector<20x32xf32> to vector<1x32xf32>
    %230 = vector.extract_strided_slice %212 {offsets = [17, 0], sizes = [1, 32], strides = [1, 1]} : vector<20x32xf32> to vector<1x32xf32>
    %231 = vector.extract_strided_slice %212 {offsets = [18, 0], sizes = [1, 32], strides = [1, 1]} : vector<20x32xf32> to vector<1x32xf32>
    %232 = vector.extract_strided_slice %212 {offsets = [19, 0], sizes = [1, 32], strides = [1, 1]} : vector<20x32xf32> to vector<1x32xf32>
    %233 = tpu.concatenate %213, %214, %215, %216, %217, %218, %219, %220, %221, %222, %223, %224, %225, %226, %227, %228 in 1 : vector<1x32xf32>, vector<1x32xf32>, vector<1x32xf32>, vector<1x32xf32>, vector<1x32xf32>, vector<1x32xf32>, vector<1x32xf32>, vector<1x32xf32>, vector<1x32xf32>, vector<1x32xf32>, vector<1x32xf32>, vector<1x32xf32>, vector<1x32xf32>, vector<1x32xf32>, vector<1x32xf32>, vector<1x32xf32> -> vector<1x512xf32>
    %234 = tpu.concatenate %229, %230, %231, %232 in 1 : vector<1x32xf32>, vector<1x32xf32>, vector<1x32xf32>, vector<1x32xf32> -> vector<1x128xf32>
    %235 = tpu.concatenate %233, %234 in 1 : vector<1x512xf32>, vector<1x128xf32> -> vector<1x640xf32>
    %236 = tpu.concatenate %211, %235 in 0 : vector<1x640xf32>, vector<1x640xf32> -> vector<2x640xf32>
    %237 = arith.truncf %236 : vector<2x640xf32> to vector<2x640xbf16>
    %c0_70 = arith.constant 0 : index
    %c0_71 = arith.constant 0 : index
    %238 = vector.load %arg14[%c0_70, %c0_71] : memref<640x64xbf16, #tpu.memory_space<vmem>>, vector<640x64xbf16>
    %cst_72 = arith.constant dense<0.000000e+00> : vector<2x64xf32>
    %239 = tpu.matmul %237, %238, %cst_72 {dimension_numbers = #tpu.dot_dimension_numbers<[1], [0], [0], [1], [0, 0, 1, 1], [], []>} : vector<2x640xbf16>, vector<640x64xbf16>, vector<2x64xf32> -> vector<2x64xf32>
    %c0_73 = arith.constant 0 : index
    %c0_74 = arith.constant 0 : index
    %240 = vector.load %arg15[%c0_73, %c0_74] : memref<1x64xf32, #tpu.memory_space<vmem>>, vector<1x64xf32>
    %241 = vector.broadcast %240 : vector<1x64xf32> to vector<2x64xf32>
    %242 = arith.addf %239, %241 : vector<2x64xf32>
    %cst_75 = arith.constant 0.000000e+00 : f32
    %243 = vector.broadcast %cst_75 : f32 to vector<2x64xf32>
    %244 = arith.maximumf %242, %243 : vector<2x64xf32>
    %245 = arith.truncf %244 : vector<2x64xf32> to vector<2x64xbf16>
    %c0_76 = arith.constant 0 : index
    %c0_77 = arith.constant 0 : index
    %246 = vector.load %arg16[%c0_76, %c0_77] : memref<64x8xbf16, #tpu.memory_space<vmem>>, vector<64x8xbf16>
    %cst_78 = arith.constant dense<0.000000e+00> : vector<2x8xf32>
    %247 = tpu.matmul %245, %246, %cst_78 {dimension_numbers = #tpu.dot_dimension_numbers<[1], [0], [0], [1], [0, 0, 1, 1], [], []>} : vector<2x64xbf16>, vector<64x8xbf16>, vector<2x8xf32> -> vector<2x8xf32>
    %c0_79 = arith.constant 0 : index
    %c0_80 = arith.constant 0 : index
    %248 = vector.load %arg17[%c0_79, %c0_80] : memref<1x8xf32, #tpu.memory_space<vmem>>, vector<1x8xf32>
    %249 = vector.broadcast %248 : vector<1x8xf32> to vector<2x8xf32>
    %250 = arith.addf %247, %249 : vector<2x8xf32>
    %c0_81 = arith.constant 0 : index
    %c0_82 = arith.constant 0 : index
    %251 = vector.load %arg18[%c0_81, %c0_82] : memref<2x8xf32, #tpu.memory_space<vmem>>, vector<2x8xf32>
    tpu.vector_store %arg18[%c0_81, %c0_82], %250 {strides = array<i32>} : memref<2x8xf32, #tpu.memory_space<vmem>>, vector<2x8xf32>,
    return
  }
  func.func @transform_0(%arg0: i32) -> (i32, i32) {
    %c0_i32 = arith.constant 0 : i32
    %c0_i32_0 = arith.constant 0 : i32
    return %arg0, %c0_i32 : i32, i32
  }
  func.func @transform_1(%arg0: i32) -> (i32, i32) {
    %c0_i32 = arith.constant 0 : i32
    %c0_i32_0 = arith.constant 0 : i32
    %c0_i32_1 = arith.constant 0 : i32
    return %c0_i32, %c0_i32_0 : i32, i32
  }
  func.func @transform_2(%arg0: i32) -> (i32, i32) {
    %c0_i32 = arith.constant 0 : i32
    %c0_i32_0 = arith.constant 0 : i32
    %c0_i32_1 = arith.constant 0 : i32
    return %c0_i32, %c0_i32_0 : i32, i32
  }
  func.func @transform_3(%arg0: i32) -> (i32, i32) {
    %c0_i32 = arith.constant 0 : i32
    %c0_i32_0 = arith.constant 0 : i32
    %c0_i32_1 = arith.constant 0 : i32
    return %c0_i32, %c0_i32_0 : i32, i32
  }
  func.func @transform_4(%arg0: i32) -> (i32, i32) {
    %c0_i32 = arith.constant 0 : i32
    %c0_i32_0 = arith.constant 0 : i32
    %c0_i32_1 = arith.constant 0 : i32
    return %c0_i32, %c0_i32_0 : i32, i32
  }
  func.func @transform_5(%arg0: i32) -> (i32, i32) {
    %c0_i32 = arith.constant 0 : i32
    %c0_i32_0 = arith.constant 0 : i32
    %c0_i32_1 = arith.constant 0 : i32
    return %c0_i32, %c0_i32_0 : i32, i32
  }
  func.func @transform_6(%arg0: i32) -> (i32, i32) {
    %c0_i32 = arith.constant 0 : i32
    %c0_i32_0 = arith.constant 0 : i32
    %c0_i32_1 = arith.constant 0 : i32
    return %c0_i32, %c0_i32_0 : i32, i32
  }
  func.func @transform_7(%arg0: i32) -> (i32, i32) {
    %c0_i32 = arith.constant 0 : i32
    %c0_i32_0 = arith.constant 0 : i32
    %c0_i32_1 = arith.constant 0 : i32
    return %c0_i32, %c0_i32_0 : i32, i32
  }
  func.func @transform_8(%arg0: i32) -> (i32, i32) {
    %c0_i32 = arith.constant 0 : i32
    %c0_i32_0 = arith.constant 0 : i32
    %c0_i32_1 = arith.constant 0 : i32
    return %c0_i32, %c0_i32_0 : i32, i32
  }
  func.func @transform_9(%arg0: i32) -> (i32, i32) {
    %c0_i32 = arith.constant 0 : i32
    %c0_i32_0 = arith.constant 0 : i32
    %c0_i32_1 = arith.constant 0 : i32
    return %c0_i32, %c0_i32_0 : i32, i32
  }
  func.func @transform_10(%arg0: i32) -> (i32, i32) {
    %c0_i32 = arith.constant 0 : i32
    %c0_i32_0 = arith.constant 0 : i32
    %c0_i32_1 = arith.constant 0 : i32
    return %c0_i32, %c0_i32_0 : i32, i32
  }
  func.func @transform_11(%arg0: i32) -> (i32, i32) {
    %c0_i32 = arith.constant 0 : i32
    %c0_i32_0 = arith.constant 0 : i32
    %c0_i32_1 = arith.constant 0 : i32
    return %c0_i32, %c0_i32_0 : i32, i32
  }
  func.func @transform_12(%arg0: i32) -> (i32, i32) {
    %c0_i32 = arith.constant 0 : i32
    %c0_i32_0 = arith.constant 0 : i32
    %c0_i32_1 = arith.constant 0 : i32
    return %c0_i32, %c0_i32_0 : i32, i32
  }
  func.func @transform_13(%arg0: i32) -> (i32, i32) {
    %c0_i32 = arith.constant 0 : i32
    %c0_i32_0 = arith.constant 0 : i32
    %c0_i32_1 = arith.constant 0 : i32
    return %c0_i32, %c0_i32_0 : i32, i32
  }
  func.func @transform_14(%arg0: i32) -> (i32, i32) {
    %c0_i32 = arith.constant 0 : i32
    %c0_i32_0 = arith.constant 0 : i32
    %c0_i32_1 = arith.constant 0 : i32
    return %c0_i32, %c0_i32_0 : i32, i32
  }
  func.func @transform_15(%arg0: i32) -> (i32, i32) {
    %c0_i32 = arith.constant 0 : i32
    %c0_i32_0 = arith.constant 0 : i32
    %c0_i32_1 = arith.constant 0 : i32
    return %c0_i32, %c0_i32_0 : i32, i32
  }
  func.func @transform_16(%arg0: i32) -> (i32, i32) {
    %c0_i32 = arith.constant 0 : i32
    %c0_i32_0 = arith.constant 0 : i32
    %c0_i32_1 = arith.constant 0 : i32
    return %c0_i32, %c0_i32_0 : i32, i32
  }
  func.func @transform_17(%arg0: i32) -> (i32, i32) {
    %c0_i32 = arith.constant 0 : i32
    %c0_i32_0 = arith.constant 0 : i32
    return %arg0, %c0_i32 : i32, i32
  }
}

</mosaic_0001>

<llo_original>
// kernel: medium_cnn_forward.1
$region0: #{medium_cnn_forward.1}
  #allocation0 [shape = 'u32[]', space=smem, size = 0x4, offset = 0x4, fixed_abs, tag = 'smem constant byte address 0x4 - core index']
  #allocation1 [shape = 'u32[72,128]{1,0:T(1,128)}', space=vmem, size = 0x9000, scoped, tag = 'internal scratch']
  %s0 = inlined_call_operand.vmem [shape: f32[320,1], index: 0, kind: input, shape index: {}]
  %s1 = inlined_call_operand.vmem [shape: f32[3,8], index: 1, kind: input, shape index: {}]
  %s2 = inlined_call_operand.vmem [shape: f32[1,8], index: 2, kind: input, shape index: {}]
  %s3 = inlined_call_operand.vmem [shape: bf16[24,8], index: 3, kind: input, shape index: {}]
  %s4 = inlined_call_operand.vmem [shape: f32[1,8], index: 4, kind: input, shape index: {}]
  %s5 = inlined_call_operand.vmem [shape: bf16[24,16], index: 5, kind: input, shape index: {}]
  %s6 = inlined_call_operand.vmem [shape: f32[1,16], index: 6, kind: input, shape index: {}]
  %s7 = inlined_call_operand.vmem [shape: bf16[48,16], index: 7, kind: input, shape index: {}]
  %s8 = inlined_call_operand.vmem [shape: f32[1,16], index: 8, kind: input, shape index: {}]
  %s9 = inlined_call_operand.vmem [shape: bf16[48,32], index: 9, kind: input, shape index: {}]
  %s10 = inlined_call_operand.vmem [shape: f32[1,32], index: 10, kind: input, shape index: {}]
  %s11 = inlined_call_operand.vmem [shape: bf16[96,32], index: 11, kind: input, shape index: {}]
  %s12 = inlined_call_operand.vmem [shape: f32[1,32], index: 12, kind: input, shape index: {}]
  %s13 = inlined_call_operand.vmem [shape: bf16[640,64], index: 13, kind: input, shape index: {}]
  %s14 = inlined_call_operand.vmem [shape: f32[1,64], index: 14, kind: input, shape index: {}]
  %s15 = inlined_call_operand.vmem [shape: bf16[64,8], index: 15, kind: input, shape index: {}]
  %s16 = inlined_call_operand.vmem [shape: f32[1,8], index: 16, kind: input, shape index: {}]
  %s17 = inlined_call_operand.hbm [shape: f32[2,8], index: 17, kind: output, shape index: {}]
  %s18 = sld [smem:[#allocation0]]
  $region78: #{medium_cnn_forward.1} parent=0
    _
  %s20 = ssub.s32 1, %s18
  %s21 = scalar_select 0, %s20, %s18
  $region1: #{medium_cnn_forward.1} parent=0
    #allocation2 [shape = 'u8[1024]{0}', space=vmem, size = 0x400, scoped, tag = 'output window, operand 0, single buffered']
    #allocation3 [shape = 's32[1]{0}', space=sflag, size = 0x4, scoped, tag = 'scoped memory for medium_cnn_forward.1']
    %22 = vsyncpa [#allocation3], 0
    // Predicated region
    $region2: #{medium_cnn_forward.1} parent=1 // pred_check
      _
    $region3: #{medium_cnn_forward.1} parent=1 // pred_check_branch
      %24 = sbr.rel (0) target = $region5
    $region4: #{medium_cnn_forward.1} parent=1 // pred_region
      _
    $region5: #{medium_cnn_forward.1} parent=1 // pred_fallthru
      _
    // Predicated region
    $region6: #{medium_cnn_forward.1} parent=1 // pred_check
      _
    $region7: #{medium_cnn_forward.1} parent=1 // pred_check_branch
      %26 = sbr.rel (0) target = $region9
    $region8: #{medium_cnn_forward.1} parent=1 // pred_region
      _
    $region9: #{medium_cnn_forward.1} parent=1 // pred_fallthru
      _
    // Predicated region
    $region10: #{medium_cnn_forward.1} parent=1 // pred_check
      _
    $region11: #{medium_cnn_forward.1} parent=1 // pred_check_branch
      %28 = sbr.rel (0) target = $region13
    $region12: #{medium_cnn_forward.1} parent=1 // pred_region
      _
    $region13: #{medium_cnn_forward.1} parent=1 // pred_fallthru
      _
    // Predicated region
    $region14: #{medium_cnn_forward.1} parent=1 // pred_check
      _
    $region15: #{medium_cnn_forward.1} parent=1 // pred_check_branch
      %30 = sbr.rel (0) target = $region17
    $region16: #{medium_cnn_forward.1} parent=1 // pred_region
      _
    $region17: #{medium_cnn_forward.1} parent=1 // pred_fallthru
      _
    // Predicated region
    $region18: #{medium_cnn_forward.1} parent=1 // pred_check
      _
    $region19: #{medium_cnn_forward.1} parent=1 // pred_check_branch
      %32 = sbr.rel (0) target = $region21
    $region20: #{medium_cnn_forward.1} parent=1 // pred_region
      _
    $region21: #{medium_cnn_forward.1} parent=1 // pred_fallthru
      _
    // Predicated region
    $region22: #{medium_cnn_forward.1} parent=1 // pred_check
      _
    $region23: #{medium_cnn_forward.1} parent=1 // pred_check_branch
      %34 = sbr.rel (0) target = $region25
    $region24: #{medium_cnn_forward.1} parent=1 // pred_region
      _
    $region25: #{medium_cnn_forward.1} parent=1 // pred_fallthru
      _
    // Predicated region
    $region26: #{medium_cnn_forward.1} parent=1 // pred_check
      _
    $region27: #{medium_cnn_forward.1} parent=1 // pred_check_branch
      %36 = sbr.rel (0) target = $region29
    $region28: #{medium_cnn_forward.1} parent=1 // pred_region
      _
    $region29: #{medium_cnn_forward.1} parent=1 // pred_fallthru
      _
    // Predicated region
    $region30: #{medium_cnn_forward.1} parent=1 // pred_check
      _
    $region31: #{medium_cnn_forward.1} parent=1 // pred_check_branch
      %38 = sbr.rel (0) target = $region33
    $region32: #{medium_cnn_forward.1} parent=1 // pred_region
      _
    $region33: #{medium_cnn_forward.1} parent=1 // pred_fallthru
      _
    // Predicated region
    $region34: #{medium_cnn_forward.1} parent=1 // pred_check
      _
    $region35: #{medium_cnn_forward.1} parent=1 // pred_check_branch
      %40 = sbr.rel (0) target = $region37
    $region36: #{medium_cnn_forward.1} parent=1 // pred_region
      _
    $region37: #{medium_cnn_forward.1} parent=1 // pred_fallthru
      _
    // Predicated region
    $region38: #{medium_cnn_forward.1} parent=1 // pred_check
      _
    $region39: #{medium_cnn_forward.1} parent=1 // pred_check_branch
      %42 = sbr.rel (0) target = $region41
    $region40: #{medium_cnn_forward.1} parent=1 // pred_region
      _
    $region41: #{medium_cnn_forward.1} parent=1 // pred_fallthru
      _
    // Predicated region
    $region42: #{medium_cnn_forward.1} parent=1 // pred_check
      _
    $region43: #{medium_cnn_forward.1} parent=1 // pred_check_branch
      %44 = sbr.rel (0) target = $region45
    $region44: #{medium_cnn_forward.1} parent=1 // pred_region
      _
    $region45: #{medium_cnn_forward.1} parent=1 // pred_fallthru
      _
    // Predicated region
    $region46: #{medium_cnn_forward.1} parent=1 // pred_check
      _
    $region47: #{medium_cnn_forward.1} parent=1 // pred_check_branch
      %46 = sbr.rel (0) target = $region49
    $region48: #{medium_cnn_forward.1} parent=1 // pred_region
      _
    $region49: #{medium_cnn_forward.1} parent=1 // pred_fallthru
      _
    // Predicated region
    $region50: #{medium_cnn_forward.1} parent=1 // pred_check
      _
    $region51: #{medium_cnn_forward.1} parent=1 // pred_check_branch
      %48 = sbr.rel (0) target = $region53
    $region52: #{medium_cnn_forward.1} parent=1 // pred_region
      _
    $region53: #{medium_cnn_forward.1} parent=1 // pred_fallthru
      _
    // Predicated region
    $region54: #{medium_cnn_forward.1} parent=1 // pred_check
      _
    $region55: #{medium_cnn_forward.1} parent=1 // pred_check_branch
      %50 = sbr.rel (0) target = $region57
    $region56: #{medium_cnn_forward.1} parent=1 // pred_region
      _
    $region57: #{medium_cnn_forward.1} parent=1 // pred_fallthru
      _
    // Predicated region
    $region58: #{medium_cnn_forward.1} parent=1 // pred_check
      _
    $region59: #{medium_cnn_forward.1} parent=1 // pred_check_branch
      %52 = sbr.rel (0) target = $region61
    $region60: #{medium_cnn_forward.1} parent=1 // pred_region
      _
    $region61: #{medium_cnn_forward.1} parent=1 // pred_fallthru
      _
    // Predicated region
    $region62: #{medium_cnn_forward.1} parent=1 // pred_check
      _
    $region63: #{medium_cnn_forward.1} parent=1 // pred_check_branch
      %54 = sbr.rel (0) target = $region65
    $region64: #{medium_cnn_forward.1} parent=1 // pred_region
      _
    $region65: #{medium_cnn_forward.1} parent=1 // pred_fallthru
      _
    // Predicated region
    $region66: #{medium_cnn_forward.1} parent=1 // pred_check
      _
    $region67: #{medium_cnn_forward.1} parent=1 // pred_check_branch
      %56 = sbr.rel (0) target = $region69
    $region68: #{medium_cnn_forward.1} parent=1 // pred_region
      _
    $region69: #{medium_cnn_forward.1} parent=1 // pred_fallthru
      _
    %v58 = vld [vmem:[%s0] sm:$0xff]
    %v59 = vld [vmem:[%s0 + $0x8] sm:$0xff]
    %v60 = vld [vmem:[%s0 + $0x10] sm:$0xff]
    %v61 = vld [vmem:[%s0 + $0x18] sm:$0xff]
    %v62 = vld [vmem:[%s0 + $0x20] sm:$0xff]
    %v63 = vld [vmem:[%s0 + $0x28] sm:$0xff]
    %v64 = vld [vmem:[%s0 + $0x30] sm:$0xff]
    %v65 = vld [vmem:[%s0 + $0x38] sm:$0xff]
    %v66 = vld [vmem:[%s0 + $0x40] sm:$0xff]
    %v67 = vld [vmem:[%s0 + $0x48] sm:$0xff]
    %v68 = vld [vmem:[%s0 + $0x50] sm:$0xff]
    %v69 = vld [vmem:[%s0 + $0x58] sm:$0xff]
    %v70 = vld [vmem:[%s0 + $0x60] sm:$0xff]
    %v71 = vld [vmem:[%s0 + $0x68] sm:$0xff]
    %v72 = vld [vmem:[%s0 + $0x70] sm:$0xff]
    %v73 = vld [vmem:[%s0 + $0x78] sm:$0xff]
    %v74 = vld [vmem:[%s0 + $0x80] sm:$0xff]
    %v75 = vld [vmem:[%s0 + $0x88] sm:$0xff]
    %v76 = vld [vmem:[%s0 + $0x90] sm:$0xff]
    %v77 = vld [vmem:[%s0 + $0x98] sm:$0xff]
    %v78 = vld [vmem:[%s0 + $0xa0] sm:$0xff]
    %v79 = vld [vmem:[%s0 + $0xa8] sm:$0xff]
    %v80 = vld [vmem:[%s0 + $0xb0] sm:$0xff]
    %v81 = vld [vmem:[%s0 + $0xb8] sm:$0xff]
    %v82 = vld [vmem:[%s0 + $0xc0] sm:$0xff]
    %v83 = vld [vmem:[%s0 + $0xc8] sm:$0xff]
    %v84 = vld [vmem:[%s0 + $0xd0] sm:$0xff]
    %v85 = vld [vmem:[%s0 + $0xd8] sm:$0xff]
    %v86 = vld [vmem:[%s0 + $0xe0] sm:$0xff]
    %v87 = vld [vmem:[%s0 + $0xe8] sm:$0xff]
    %v88 = vld [vmem:[%s0 + $0xf0] sm:$0xff]
    %v89 = vld [vmem:[%s0 + $0xf8] sm:$0xff]
    %v90 = vld [vmem:[%s0 + $0x100] sm:$0xff]
    %v91 = vld [vmem:[%s0 + $0x108] sm:$0xff]
    %v92 = vld [vmem:[%s0 + $0x110] sm:$0xff]
    %v93 = vld [vmem:[%s0 + $0x118] sm:$0xff]
    %v94 = vld [vmem:[%s0 + $0x120] sm:$0xff]
    %v95 = vld [vmem:[%s0 + $0x128] sm:$0xff]
    %v96 = vld [vmem:[%s0 + $0x130] sm:$0xff]
    %v97 = vld [vmem:[%s0 + $0x138] sm:$0xff]
    %v98 = vld [vmem:[%s1] sm:$0x7]
    %v99 = vld [vmem:[%s2] sm:$0x1]
    %v100 = vlaneseq
    %v101 = vshrl.u32 %v100, 7
    %v102 = vadd.s32 %v101, 8
    %v103 = vadd.s32 %v101, 16
    %v104 = vadd.s32 %v101, 24
    %v105 = vadd.s32 %v101, 32
    %v106 = vadd.s32 %v101, 40
    %v107 = vadd.s32 %v101, 48
    %v108 = vadd.s32 %v101, 56
    %v109 = vadd.s32 %v101, 64
    %v110 = vadd.s32 %v101, 72
    %v111 = vadd.s32 %v101, 80
    %v112 = vadd.s32 %v101, 88
    %v113 = vadd.s32 %v101, 96
    %v114 = vadd.s32 %v101, 104
    %v115 = vadd.s32 %v101, 112
    %v116 = vadd.s32 %v101, 120
    %v117 = vadd.s32 %v101, 128
    %v118 = vadd.s32 %v101, 136
    %v119 = vadd.s32 %v101, 144
    %v120 = vadd.s32 %v101, 152
    %vm121 = vcmp.eq.s32.totalorder %v101, 0
    %vm122 = vcmp.eq.s32.totalorder %v102, 0
    %vm123 = vcmp.eq.s32.totalorder %v103, 0
    %vm124 = vcmp.eq.s32.totalorder %v104, 0
    %vm125 = vcmp.eq.s32.totalorder %v105, 0
    %vm126 = vcmp.eq.s32.totalorder %v106, 0
    %vm127 = vcmp.eq.s32.totalorder %v107, 0
    %vm128 = vcmp.eq.s32.totalorder %v108, 0
    %vm129 = vcmp.eq.s32.totalorder %v109, 0
    %vm130 = vcmp.eq.s32.totalorder %v110, 0
    %vm131 = vcmp.eq.s32.totalorder %v111, 0
    %vm132 = vcmp.eq.s32.totalorder %v112, 0
    %vm133 = vcmp.eq.s32.totalorder %v113, 0
    %vm134 = vcmp.eq.s32.totalorder %v114, 0
    %vm135 = vcmp.eq.s32.totalorder %v115, 0
    %vm136 = vcmp.eq.s32.totalorder %v116, 0
    %vm137 = vcmp.eq.s32.totalorder %v117, 0
    %vm138 = vcmp.eq.s32.totalorder %v118, 0
    %vm139 = vcmp.eq.s32.totalorder %v119, 0
    %vm140 = vcmp.eq.s32.totalorder %v120, 0
    %vm141 = vcmp.eq.s32.totalorder %v101, 159
    %vm142 = vcmp.eq.s32.totalorder %v102, 159
    %vm143 = vcmp.eq.s32.totalorder %v103, 159
    %vm144 = vcmp.eq.s32.totalorder %v104, 159
    %vm145 = vcmp.eq.s32.totalorder %v105, 159
    %vm146 = vcmp.eq.s32.totalorder %v106, 159
    %vm147 = vcmp.eq.s32.totalorder %v107, 159
    %vm148 = vcmp.eq.s32.totalorder %v108, 159
    %vm149 = vcmp.eq.s32.totalorder %v109, 159
    %vm150 = vcmp.eq.s32.totalorder %v110, 159
    %vm151 = vcmp.eq.s32.totalorder %v111, 159
    %vm152 = vcmp.eq.s32.totalorder %v112, 159
    %vm153 = vcmp.eq.s32.totalorder %v113, 159
    %vm154 = vcmp.eq.s32.totalorder %v114, 159
    %vm155 = vcmp.eq.s32.totalorder %v115, 159
    %vm156 = vcmp.eq.s32.totalorder %v116, 159
    %vm157 = vcmp.eq.s32.totalorder %v117, 159
    %vm158 = vcmp.eq.s32.totalorder %v118, 159
    %vm159 = vcmp.eq.s32.totalorder %v119, 159
    %vm160 = vcmp.eq.s32.totalorder %v120, 159
    %vm201 = vcmask 1040384
    %v202 = vrot.slane %v58, 7
    %v203 = vrot.slane %v59, 7
    %v204 = vsel %vm201, %v202, %v203
    %v205 = vrot.slane %v60, 7
    %v206 = vsel %vm201, %v203, %v205
    %v207 = vrot.slane %v61, 7
    %v208 = vsel %vm201, %v205, %v207
    %v209 = vrot.slane %v62, 7
    %v210 = vsel %vm201, %v207, %v209
    %v211 = vrot.slane %v63, 7
    %v212 = vsel %vm201, %v209, %v211
    %v213 = vrot.slane %v64, 7
    %v214 = vsel %vm201, %v211, %v213
    %v215 = vrot.slane %v65, 7
    %v216 = vsel %vm201, %v213, %v215
    %v217 = vrot.slane %v66, 7
    %v218 = vsel %vm201, %v215, %v217
    %v219 = vrot.slane %v67, 7
    %v220 = vsel %vm201, %v217, %v219
    %v221 = vrot.slane %v68, 7
    %v222 = vsel %vm201, %v219, %v221
    %v223 = vrot.slane %v69, 7
    %v224 = vsel %vm201, %v221, %v223
    %v225 = vrot.slane %v70, 7
    %v226 = vsel %vm201, %v223, %v225
    %v227 = vrot.slane %v71, 7
    %v228 = vsel %vm201, %v225, %v227
    %v229 = vrot.slane %v72, 7
    %v230 = vsel %vm201, %v227, %v229
    %v231 = vrot.slane %v73, 7
    %v232 = vsel %vm201, %v229, %v231
    %v233 = vrot.slane %v74, 7
    %v234 = vsel %vm201, %v231, %v233
    %v235 = vrot.slane %v75, 7
    %v236 = vsel %vm201, %v233, %v235
    %v237 = vrot.slane %v76, 7
    %v238 = vsel %vm201, %v235, %v237
    %v239 = vrot.slane %v77, 7
    %v240 = vsel %vm201, %v237, %v239
    %v241 = vrot.slane %v78, 7
    %v242 = vsel %vm201, %v239, %v241
    %v243 = vrot.slane %v79, 7
    %v244 = vsel %vm201, %v241, %v243
    %v245 = vrot.slane %v80, 7
    %v246 = vsel %vm201, %v243, %v245
    %v247 = vrot.slane %v81, 7
    %v248 = vsel %vm201, %v245, %v247
    %v249 = vrot.slane %v82, 7
    %v250 = vsel %vm201, %v247, %v249
    %v251 = vrot.slane %v83, 7
    %v252 = vsel %vm201, %v249, %v251
    %v253 = vrot.slane %v84, 7
    %v254 = vsel %vm201, %v251, %v253
    %v255 = vrot.slane %v85, 7
    %v256 = vsel %vm201, %v253, %v255
    %v257 = vrot.slane %v86, 7
    %v258 = vsel %vm201, %v255, %v257
    %v259 = vrot.slane %v87, 7
    %v260 = vsel %vm201, %v257, %v259
    %v261 = vrot.slane %v88, 7
    %v262 = vsel %vm201, %v259, %v261
    %v263 = vrot.slane %v89, 7
    %v264 = vsel %vm201, %v261, %v263
    %v265 = vrot.slane %v90, 7
    %v266 = vsel %vm201, %v263, %v265
    %v267 = vrot.slane %v91, 7
    %v268 = vsel %vm201, %v265, %v267
    %v269 = vrot.slane %v92, 7
    %v270 = vsel %vm201, %v267, %v269
    %v271 = vrot.slane %v93, 7
    %v272 = vsel %vm201, %v269, %v271
    %v273 = vrot.slane %v94, 7
    %v274 = vsel %vm201, %v271, %v273
    %v275 = vrot.slane %v95, 7
    %v276 = vsel %vm201, %v273, %v275
    %v277 = vrot.slane %v96, 7
    %v278 = vsel %vm201, %v275, %v277
    %v279 = vrot.slane %v97, 7
    %v280 = vsel %vm201, %v277, %v279
    %v321 = vsel %vm201, 0.0, %v202
    %v322 = vsel %vm121, 0.0, %v321
    %v323 = vsel %vm122, 0.0, %v204
    %v324 = vsel %vm123, 0.0, %v206
    %v325 = vsel %vm124, 0.0, %v208
    %v326 = vsel %vm125, 0.0, %v210
    %v327 = vsel %vm126, 0.0, %v212
    %v328 = vsel %vm127, 0.0, %v214
    %v329 = vsel %vm128, 0.0, %v216
    %v330 = vsel %vm129, 0.0, %v218
    %v331 = vsel %vm130, 0.0, %v220
    %v332 = vsel %vm131, 0.0, %v222
    %v333 = vsel %vm132, 0.0, %v224
    %v334 = vsel %vm133, 0.0, %v226
    %v335 = vsel %vm134, 0.0, %v228
    %v336 = vsel %vm135, 0.0, %v230
    %v337 = vsel %vm136, 0.0, %v232
    %v338 = vsel %vm137, 0.0, %v234
    %v339 = vsel %vm138, 0.0, %v236
    %v340 = vsel %vm139, 0.0, %v238
    %v341 = vsel %vm140, 0.0, %v240
    %v342 = vsel %vm121, 0.0, %v242
    %v343 = vsel %vm122, 0.0, %v244
    %v344 = vsel %vm123, 0.0, %v246
    %v345 = vsel %vm124, 0.0, %v248
    %v346 = vsel %vm125, 0.0, %v250
    %v347 = vsel %vm126, 0.0, %v252
    %v348 = vsel %vm127, 0.0, %v254
    %v349 = vsel %vm128, 0.0, %v256
    %v350 = vsel %vm129, 0.0, %v258
    %v351 = vsel %vm130, 0.0, %v260
    %v352 = vsel %vm131, 0.0, %v262
    %v353 = vsel %vm132, 0.0, %v264
    %v354 = vsel %vm133, 0.0, %v266
    %v355 = vsel %vm134, 0.0, %v268
    %v356 = vsel %vm135, 0.0, %v270
    %v357 = vsel %vm136, 0.0, %v272
    %v358 = vsel %vm137, 0.0, %v274
    %v359 = vsel %vm138, 0.0, %v276
    %v360 = vsel %vm139, 0.0, %v278
    %v361 = vsel %vm140, 0.0, %v280
    %vm362 = vcmask 1046528
    %v363 = vrot.slane %v58, 1
    %v364 = vrot.slane %v59, 1
    %v365 = vsel %vm362, %v363, %v364
    %v366 = vrot.slane %v60, 1
    %v367 = vsel %vm362, %v364, %v366
    %v368 = vrot.slane %v61, 1
    %v369 = vsel %vm362, %v366, %v368
    %v370 = vrot.slane %v62, 1
    %v371 = vsel %vm362, %v368, %v370
    %v372 = vrot.slane %v63, 1
    %v373 = vsel %vm362, %v370, %v372
    %v374 = vrot.slane %v64, 1
    %v375 = vsel %vm362, %v372, %v374
    %v376 = vrot.slane %v65, 1
    %v377 = vsel %vm362, %v374, %v376
    %v378 = vrot.slane %v66, 1
    %v379 = vsel %vm362, %v376, %v378
    %v380 = vrot.slane %v67, 1
    %v381 = vsel %vm362, %v378, %v380
    %v382 = vrot.slane %v68, 1
    %v383 = vsel %vm362, %v380, %v382
    %v384 = vrot.slane %v69, 1
    %v385 = vsel %vm362, %v382, %v384
    %v386 = vrot.slane %v70, 1
    %v387 = vsel %vm362, %v384, %v386
    %v388 = vrot.slane %v71, 1
    %v389 = vsel %vm362, %v386, %v388
    %v390 = vrot.slane %v72, 1
    %v391 = vsel %vm362, %v388, %v390
    %v392 = vrot.slane %v73, 1
    %v393 = vsel %vm362, %v390, %v392
    %v394 = vrot.slane %v74, 1
    %v395 = vsel %vm362, %v392, %v394
    %v396 = vrot.slane %v75, 1
    %v397 = vsel %vm362, %v394, %v396
    %v398 = vrot.slane %v76, 1
    %v399 = vsel %vm362, %v396, %v398
    %v400 = vrot.slane %v77, 1
    %v401 = vsel %vm362, %v398, %v400
    %v402 = vrot.slane %v78, 1
    %v403 = vsel %vm362, %v400, %v402
    %v404 = vrot.slane %v79, 1
    %v405 = vsel %vm362, %v402, %v404
    %v406 = vrot.slane %v80, 1
    %v407 = vsel %vm362, %v404, %v406
    %v408 = vrot.slane %v81, 1
    %v409 = vsel %vm362, %v406, %v408
    %v410 = vrot.slane %v82, 1
    %v411 = vsel %vm362, %v408, %v410
    %v412 = vrot.slane %v83, 1
    %v413 = vsel %vm362, %v410, %v412
    %v414 = vrot.slane %v84, 1
    %v415 = vsel %vm362, %v412, %v414
    %v416 = vrot.slane %v85, 1
    %v417 = vsel %vm362, %v414, %v416
    %v418 = vrot.slane %v86, 1
    %v419 = vsel %vm362, %v416, %v418
    %v420 = vrot.slane %v87, 1
    %v421 = vsel %vm362, %v418, %v420
    %v422 = vrot.slane %v88, 1
    %v423 = vsel %vm362, %v420, %v422
    %v424 = vrot.slane %v89, 1
    %v425 = vsel %vm362, %v422, %v424
    %v426 = vrot.slane %v90, 1
    %v427 = vsel %vm362, %v424, %v426
    %v428 = vrot.slane %v91, 1
    %v429 = vsel %vm362, %v426, %v428
    %v430 = vrot.slane %v92, 1
    %v431 = vsel %vm362, %v428, %v430
    %v432 = vrot.slane %v93, 1
    %v433 = vsel %vm362, %v430, %v432
    %v434 = vrot.slane %v94, 1
    %v435 = vsel %vm362, %v432, %v434
    %v436 = vrot.slane %v95, 1
    %v437 = vsel %vm362, %v434, %v436
    %v438 = vrot.slane %v96, 1
    %v439 = vsel %vm362, %v436, %v438
    %v440 = vrot.slane %v97, 1
    %v441 = vsel %vm362, %v438, %v440
    %v482 = vsel %vm362, %v440, 0.0
    %v483 = vsel %vm141, 0.0, %v365
    %v484 = vsel %vm142, 0.0, %v367
    %v485 = vsel %vm143, 0.0, %v369
    %v486 = vsel %vm144, 0.0, %v371
    %v487 = vsel %vm145, 0.0, %v373
    %v488 = vsel %vm146, 0.0, %v375
    %v489 = vsel %vm147, 0.0, %v377
    %v490 = vsel %vm148, 0.0, %v379
    %v491 = vsel %vm149, 0.0, %v381
    %v492 = vsel %vm150, 0.0, %v383
    %v493 = vsel %vm151, 0.0, %v385
    %v494 = vsel %vm152, 0.0, %v387
    %v495 = vsel %vm153, 0.0, %v389
    %v496 = vsel %vm154, 0.0, %v391
    %v497 = vsel %vm155, 0.0, %v393
    %v498 = vsel %vm156, 0.0, %v395
    %v499 = vsel %vm157, 0.0, %v397
    %v500 = vsel %vm158, 0.0, %v399
    %v501 = vsel %vm159, 0.0, %v401
    %v502 = vsel %vm160, 0.0, %v403
    %v503 = vsel %vm141, 0.0, %v405
    %v504 = vsel %vm142, 0.0, %v407
    %v505 = vsel %vm143, 0.0, %v409
    %v506 = vsel %vm144, 0.0, %v411
    %v507 = vsel %vm145, 0.0, %v413
    %v508 = vsel %vm146, 0.0, %v415
    %v509 = vsel %vm147, 0.0, %v417
    %v510 = vsel %vm148, 0.0, %v419
    %v511 = vsel %vm149, 0.0, %v421
    %v512 = vsel %vm150, 0.0, %v423
    %v513 = vsel %vm151, 0.0, %v425
    %v514 = vsel %vm152, 0.0, %v427
    %v515 = vsel %vm153, 0.0, %v429
    %v516 = vsel %vm154, 0.0, %v431
    %v517 = vsel %vm155, 0.0, %v433
    %v518 = vsel %vm156, 0.0, %v435
    %v519 = vsel %vm157, 0.0, %v437
    %v520 = vsel %vm158, 0.0, %v439
    %v521 = vsel %vm159, 0.0, %v441
    %v522 = vsel %vm160, 0.0, %v482
    %524 = vset.pattern.permute.xlu0 0
    %525 = vperm.xlu0 %524, %v322
    %v526 = vpop.permute.xlu0 %525
    %529 = vset.pattern.permute.xlu0 0
    %530 = vperm.xlu0 %529, %v323
    %v531 = vpop.permute.xlu0 %530
    %534 = vset.pattern.permute.xlu0 0
    %535 = vperm.xlu0 %534, %v324
    %v536 = vpop.permute.xlu0 %535
    %539 = vset.pattern.permute.xlu0 0
    %540 = vperm.xlu0 %539, %v325
    %v541 = vpop.permute.xlu0 %540
    %544 = vset.pattern.permute.xlu0 0
    %545 = vperm.xlu0 %544, %v326
    %v546 = vpop.permute.xlu0 %545
    %549 = vset.pattern.permute.xlu0 0
    %550 = vperm.xlu0 %549, %v327
    %v551 = vpop.permute.xlu0 %550
    %554 = vset.pattern.permute.xlu0 0
    %555 = vperm.xlu0 %554, %v328
    %v556 = vpop.permute.xlu0 %555
    %559 = vset.pattern.permute.xlu0 0
    %560 = vperm.xlu0 %559, %v329
    %v561 = vpop.permute.xlu0 %560
    %564 = vset.pattern.permute.xlu0 0
    %565 = vperm.xlu0 %564, %v330
    %v566 = vpop.permute.xlu0 %565
    %569 = vset.pattern.permute.xlu0 0
    %570 = vperm.xlu0 %569, %v331
    %v571 = vpop.permute.xlu0 %570
    %574 = vset.pattern.permute.xlu0 0
    %575 = vperm.xlu0 %574, %v332
    %v576 = vpop.permute.xlu0 %575
    %579 = vset.pattern.permute.xlu0 0
    %580 = vperm.xlu0 %579, %v333
    %v581 = vpop.permute.xlu0 %580
    %584 = vset.pattern.permute.xlu0 0
    %585 = vperm.xlu0 %584, %v334
    %v586 = vpop.permute.xlu0 %585
    %589 = vset.pattern.permute.xlu0 0
    %590 = vperm.xlu0 %589, %v335
    %v591 = vpop.permute.xlu0 %590
    %594 = vset.pattern.permute.xlu0 0
    %595 = vperm.xlu0 %594, %v336
    %v596 = vpop.permute.xlu0 %595
    %599 = vset.pattern.permute.xlu0 0
    %600 = vperm.xlu0 %599, %v337
    %v601 = vpop.permute.xlu0 %600
    %604 = vset.pattern.permute.xlu0 0
    %605 = vperm.xlu0 %604, %v338
    %v606 = vpop.permute.xlu0 %605
    %609 = vset.pattern.permute.xlu0 0
    %610 = vperm.xlu0 %609, %v339
    %v611 = vpop.permute.xlu0 %610
    %614 = vset.pattern.permute.xlu0 0
    %615 = vperm.xlu0 %614, %v340
    %v616 = vpop.permute.xlu0 %615
    %619 = vset.pattern.permute.xlu0 0
    %620 = vperm.xlu0 %619, %v341
    %v621 = vpop.permute.xlu0 %620
    %624 = vset.pattern.permute.xlu0 0
    %625 = vperm.xlu0 %624, %v342
    %v626 = vpop.permute.xlu0 %625
    %629 = vset.pattern.permute.xlu0 0
    %630 = vperm.xlu0 %629, %v343
    %v631 = vpop.permute.xlu0 %630
    %634 = vset.pattern.permute.xlu0 0
    %635 = vperm.xlu0 %634, %v344
    %v636 = vpop.permute.xlu0 %635
    %639 = vset.pattern.permute.xlu0 0
    %640 = vperm.xlu0 %639, %v345
    %v641 = vpop.permute.xlu0 %640
    %644 = vset.pattern.permute.xlu0 0
    %645 = vperm.xlu0 %644, %v346
    %v646 = vpop.permute.xlu0 %645
    %649 = vset.pattern.permute.xlu0 0
    %650 = vperm.xlu0 %649, %v347
    %v651 = vpop.permute.xlu0 %650
    %654 = vset.pattern.permute.xlu0 0
    %655 = vperm.xlu0 %654, %v348
    %v656 = vpop.permute.xlu0 %655
    %659 = vset.pattern.permute.xlu0 0
    %660 = vperm.xlu0 %659, %v349
    %v661 = vpop.permute.xlu0 %660
    %664 = vset.pattern.permute.xlu0 0
    %665 = vperm.xlu0 %664, %v350
    %v666 = vpop.permute.xlu0 %665
    %669 = vset.pattern.permute.xlu0 0
    %670 = vperm.xlu0 %669, %v351
    %v671 = vpop.permute.xlu0 %670
    %674 = vset.pattern.permute.xlu0 0
    %675 = vperm.xlu0 %674, %v352
    %v676 = vpop.permute.xlu0 %675
    %679 = vset.pattern.permute.xlu0 0
    %680 = vperm.xlu0 %679, %v353
    %v681 = vpop.permute.xlu0 %680
    %684 = vset.pattern.permute.xlu0 0
    %685 = vperm.xlu0 %684, %v354
    %v686 = vpop.permute.xlu0 %685
    %689 = vset.pattern.permute.xlu0 0
    %690 = vperm.xlu0 %689, %v355
    %v691 = vpop.permute.xlu0 %690
    %694 = vset.pattern.permute.xlu0 0
    %695 = vperm.xlu0 %694, %v356
    %v696 = vpop.permute.xlu0 %695
    %699 = vset.pattern.permute.xlu0 0
    %700 = vperm.xlu0 %699, %v357
    %v701 = vpop.permute.xlu0 %700
    %704 = vset.pattern.permute.xlu0 0
    %705 = vperm.xlu0 %704, %v358
    %v706 = vpop.permute.xlu0 %705
    %709 = vset.pattern.permute.xlu0 0
    %710 = vperm.xlu0 %709, %v359
    %v711 = vpop.permute.xlu0 %710
    %714 = vset.pattern.permute.xlu0 0
    %715 = vperm.xlu0 %714, %v360
    %v716 = vpop.permute.xlu0 %715
    %719 = vset.pattern.permute.xlu0 0
    %720 = vperm.xlu0 %719, %v361
    %v721 = vpop.permute.xlu0 %720
    %v723 = vperm.slane %v98, 0
    %v724 = vmul.f32 %v526, %v723
    %v725 = vmul.f32 %v531, %v723
    %v726 = vmul.f32 %v536, %v723
    %v727 = vmul.f32 %v541, %v723
    %v728 = vmul.f32 %v546, %v723
    %v729 = vmul.f32 %v551, %v723
    %v730 = vmul.f32 %v556, %v723
    %v731 = vmul.f32 %v561, %v723
    %v732 = vmul.f32 %v566, %v723
    %v733 = vmul.f32 %v571, %v723
    %v734 = vmul.f32 %v576, %v723
    %v735 = vmul.f32 %v581, %v723
    %v736 = vmul.f32 %v586, %v723
    %v737 = vmul.f32 %v591, %v723
    %v738 = vmul.f32 %v596, %v723
    %v739 = vmul.f32 %v601, %v723
    %v740 = vmul.f32 %v606, %v723
    %v741 = vmul.f32 %v611, %v723
    %v742 = vmul.f32 %v616, %v723
    %v743 = vmul.f32 %v621, %v723
    %v744 = vmul.f32 %v626, %v723
    %v745 = vmul.f32 %v631, %v723
    %v746 = vmul.f32 %v636, %v723
    %v747 = vmul.f32 %v641, %v723
    %v748 = vmul.f32 %v646, %v723
    %v749 = vmul.f32 %v651, %v723
    %v750 = vmul.f32 %v656, %v723
    %v751 = vmul.f32 %v661, %v723
    %v752 = vmul.f32 %v666, %v723
    %v753 = vmul.f32 %v671, %v723
    %v754 = vmul.f32 %v676, %v723
    %v755 = vmul.f32 %v681, %v723
    %v756 = vmul.f32 %v686, %v723
    %v757 = vmul.f32 %v691, %v723
    %v758 = vmul.f32 %v696, %v723
    %v759 = vmul.f32 %v701, %v723
    %v760 = vmul.f32 %v706, %v723
    %v761 = vmul.f32 %v711, %v723
    %v762 = vmul.f32 %v716, %v723
    %v763 = vmul.f32 %v721, %v723
    %764 = vset.pattern.permute.xlu0 0
    %765 = vperm.xlu0 %764, %v58
    %v766 = vpop.permute.xlu0 %765
    %768 = vset.pattern.permute.xlu0 0
    %769 = vperm.xlu0 %768, %v59
    %v770 = vpop.permute.xlu0 %769
    %772 = vset.pattern.permute.xlu0 0
    %773 = vperm.xlu0 %772, %v60
    %v774 = vpop.permute.xlu0 %773
    %776 = vset.pattern.permute.xlu0 0
    %777 = vperm.xlu0 %776, %v61
    %v778 = vpop.permute.xlu0 %777
    %780 = vset.pattern.permute.xlu0 0
    %781 = vperm.xlu0 %780, %v62
    %v782 = vpop.permute.xlu0 %781
    %784 = vset.pattern.permute.xlu0 0
    %785 = vperm.xlu0 %784, %v63
    %v786 = vpop.permute.xlu0 %785
    %788 = vset.pattern.permute.xlu0 0
    %789 = vperm.xlu0 %788, %v64
    %v790 = vpop.permute.xlu0 %789
    %792 = vset.pattern.permute.xlu0 0
    %793 = vperm.xlu0 %792, %v65
    %v794 = vpop.permute.xlu0 %793
    %796 = vset.pattern.permute.xlu0 0
    %797 = vperm.xlu0 %796, %v66
    %v798 = vpop.permute.xlu0 %797
    %800 = vset.pattern.permute.xlu0 0
    %801 = vperm.xlu0 %800, %v67
    %v802 = vpop.permute.xlu0 %801
    %804 = vset.pattern.permute.xlu0 0
    %805 = vperm.xlu0 %804, %v68
    %v806 = vpop.permute.xlu0 %805
    %808 = vset.pattern.permute.xlu0 0
    %809 = vperm.xlu0 %808, %v69
    %v810 = vpop.permute.xlu0 %809
    %812 = vset.pattern.permute.xlu0 0
    %813 = vperm.xlu0 %812, %v70
    %v814 = vpop.permute.xlu0 %813
    %816 = vset.pattern.permute.xlu0 0
    %817 = vperm.xlu0 %816, %v71
    %v818 = vpop.permute.xlu0 %817
    %820 = vset.pattern.permute.xlu0 0
    %821 = vperm.xlu0 %820, %v72
    %v822 = vpop.permute.xlu0 %821
    %824 = vset.pattern.permute.xlu0 0
    %825 = vperm.xlu0 %824, %v73
    %v826 = vpop.permute.xlu0 %825
    %828 = vset.pattern.permute.xlu0 0
    %829 = vperm.xlu0 %828, %v74
    %v830 = vpop.permute.xlu0 %829
    %832 = vset.pattern.permute.xlu0 0
    %833 = vperm.xlu0 %832, %v75
    %v834 = vpop.permute.xlu0 %833
    %836 = vset.pattern.permute.xlu0 0
    %837 = vperm.xlu0 %836, %v76
    %v838 = vpop.permute.xlu0 %837
    %840 = vset.pattern.permute.xlu0 0
    %841 = vperm.xlu0 %840, %v77
    %v842 = vpop.permute.xlu0 %841
    %844 = vset.pattern.permute.xlu0 0
    %845 = vperm.xlu0 %844, %v78
    %v846 = vpop.permute.xlu0 %845
    %848 = vset.pattern.permute.xlu0 0
    %849 = vperm.xlu0 %848, %v79
    %v850 = vpop.permute.xlu0 %849
    %852 = vset.pattern.permute.xlu0 0
    %853 = vperm.xlu0 %852, %v80
    %v854 = vpop.permute.xlu0 %853
    %856 = vset.pattern.permute.xlu0 0
    %857 = vperm.xlu0 %856, %v81
    %v858 = vpop.permute.xlu0 %857
    %860 = vset.pattern.permute.xlu0 0
    %861 = vperm.xlu0 %860, %v82
    %v862 = vpop.permute.xlu0 %861
    %864 = vset.pattern.permute.xlu0 0
    %865 = vperm.xlu0 %864, %v83
    %v866 = vpop.permute.xlu0 %865
    %868 = vset.pattern.permute.xlu0 0
    %869 = vperm.xlu0 %868, %v84
    %v870 = vpop.permute.xlu0 %869
    %872 = vset.pattern.permute.xlu0 0
    %873 = vperm.xlu0 %872, %v85
    %v874 = vpop.permute.xlu0 %873
    %876 = vset.pattern.permute.xlu0 0
    %877 = vperm.xlu0 %876, %v86
    %v878 = vpop.permute.xlu0 %877
    %880 = vset.pattern.permute.xlu0 0
    %881 = vperm.xlu0 %880, %v87
    %v882 = vpop.permute.xlu0 %881
    %884 = vset.pattern.permute.xlu0 0
    %885 = vperm.xlu0 %884, %v88
    %v886 = vpop.permute.xlu0 %885
    %888 = vset.pattern.permute.xlu0 0
    %889 = vperm.xlu0 %888, %v89
    %v890 = vpop.permute.xlu0 %889
    %892 = vset.pattern.permute.xlu0 0
    %893 = vperm.xlu0 %892, %v90
    %v894 = vpop.permute.xlu0 %893
    %896 = vset.pattern.permute.xlu0 0
    %897 = vperm.xlu0 %896, %v91
    %v898 = vpop.permute.xlu0 %897
    %900 = vset.pattern.permute.xlu0 0
    %901 = vperm.xlu0 %900, %v92
    %v902 = vpop.permute.xlu0 %901
    %904 = vset.pattern.permute.xlu0 0
    %905 = vperm.xlu0 %904, %v93
    %v906 = vpop.permute.xlu0 %905
    %908 = vset.pattern.permute.xlu0 0
    %909 = vperm.xlu0 %908, %v94
    %v910 = vpop.permute.xlu0 %909
    %912 = vset.pattern.permute.xlu0 0
    %913 = vperm.xlu0 %912, %v95
    %v914 = vpop.permute.xlu0 %913
    %916 = vset.pattern.permute.xlu0 0
    %917 = vperm.xlu0 %916, %v96
    %v918 = vpop.permute.xlu0 %917
    %920 = vset.pattern.permute.xlu0 0
    %921 = vperm.xlu0 %920, %v97
    %v922 = vpop.permute.xlu0 %921
    %v924 = vperm.slane %v98, 1
    %v925 = vmul.f32 %v766, %v924
    %v926 = vmul.f32 %v770, %v924
    %v927 = vmul.f32 %v774, %v924
    %v928 = vmul.f32 %v778, %v924
    %v929 = vmul.f32 %v782, %v924
    %v930 = vmul.f32 %v786, %v924
    %v931 = vmul.f32 %v790, %v924
    %v932 = vmul.f32 %v794, %v924
    %v933 = vmul.f32 %v798, %v924
    %v934 = vmul.f32 %v802, %v924
    %v935 = vmul.f32 %v806, %v924
    %v936 = vmul.f32 %v810, %v924
    %v937 = vmul.f32 %v814, %v924
    %v938 = vmul.f32 %v818, %v924
    %v939 = vmul.f32 %v822, %v924
    %v940 = vmul.f32 %v826, %v924
    %v941 = vmul.f32 %v830, %v924
    %v942 = vmul.f32 %v834, %v924
    %v943 = vmul.f32 %v838, %v924
    %v944 = vmul.f32 %v842, %v924
    %v945 = vmul.f32 %v846, %v924
    %v946 = vmul.f32 %v850, %v924
    %v947 = vmul.f32 %v854, %v924
    %v948 = vmul.f32 %v858, %v924
    %v949 = vmul.f32 %v862, %v924
    %v950 = vmul.f32 %v866, %v924
    %v951 = vmul.f32 %v870, %v924
    %v952 = vmul.f32 %v874, %v924
    %v953 = vmul.f32 %v878, %v924
    %v954 = vmul.f32 %v882, %v924
    %v955 = vmul.f32 %v886, %v924
    %v956 = vmul.f32 %v890, %v924
    %v957 = vmul.f32 %v894, %v924
    %v958 = vmul.f32 %v898, %v924
    %v959 = vmul.f32 %v902, %v924
    %v960 = vmul.f32 %v906, %v924
    %v961 = vmul.f32 %v910, %v924
    %v962 = vmul.f32 %v914, %v924
    %v963 = vmul.f32 %v918, %v924
    %v964 = vmul.f32 %v922, %v924
    %v965 = vadd.f32 %v724, %v925
    %v966 = vadd.f32 %v725, %v926
    %v967 = vadd.f32 %v726, %v927
    %v968 = vadd.f32 %v727, %v928
    %v969 = vadd.f32 %v728, %v929
    %v970 = vadd.f32 %v729, %v930
    %v971 = vadd.f32 %v730, %v931
    %v972 = vadd.f32 %v731, %v932
    %v973 = vadd.f32 %v732, %v933
    %v974 = vadd.f32 %v733, %v934
    %v975 = vadd.f32 %v734, %v935
    %v976 = vadd.f32 %v735, %v936
    %v977 = vadd.f32 %v736, %v937
    %v978 = vadd.f32 %v737, %v938
    %v979 = vadd.f32 %v738, %v939
    %v980 = vadd.f32 %v739, %v940
    %v981 = vadd.f32 %v740, %v941
    %v982 = vadd.f32 %v741, %v942
    %v983 = vadd.f32 %v742, %v943
    %v984 = vadd.f32 %v743, %v944
    %v985 = vadd.f32 %v744, %v945
    %v986 = vadd.f32 %v745, %v946
    %v987 = vadd.f32 %v746, %v947
    %v988 = vadd.f32 %v747, %v948
    %v989 = vadd.f32 %v748, %v949
    %v990 = vadd.f32 %v749, %v950
    %v991 = vadd.f32 %v750, %v951
    %v992 = vadd.f32 %v751, %v952
    %v993 = vadd.f32 %v752, %v953
    %v994 = vadd.f32 %v753, %v954
    %v995 = vadd.f32 %v754, %v955
    %v996 = vadd.f32 %v755, %v956
    %v997 = vadd.f32 %v756, %v957
    %v998 = vadd.f32 %v757, %v958
    %v999 = vadd.f32 %v758, %v959
    %v1000 = vadd.f32 %v759, %v960
    %v1001 = vadd.f32 %v760, %v961
    %v1002 = vadd.f32 %v761, %v962
    %v1003 = vadd.f32 %v762, %v963
    %v1004 = vadd.f32 %v763, %v964
    %1006 = vset.pattern.permute.xlu0 0
    %1007 = vperm.xlu0 %1006, %v483
    %v1008 = vpop.permute.xlu0 %1007
    %1011 = vset.pattern.permute.xlu0 0
    %1012 = vperm.xlu0 %1011, %v484
    %v1013 = vpop.permute.xlu0 %1012
    %1016 = vset.pattern.permute.xlu0 0
    %1017 = vperm.xlu0 %1016, %v485
    %v1018 = vpop.permute.xlu0 %1017
    %1021 = vset.pattern.permute.xlu0 0
    %1022 = vperm.xlu0 %1021, %v486
    %v1023 = vpop.permute.xlu0 %1022
    %1026 = vset.pattern.permute.xlu0 0
    %1027 = vperm.xlu0 %1026, %v487
    %v1028 = vpop.permute.xlu0 %1027
    %1031 = vset.pattern.permute.xlu0 0
    %1032 = vperm.xlu0 %1031, %v488
    %v1033 = vpop.permute.xlu0 %1032
    %1036 = vset.pattern.permute.xlu0 0
    %1037 = vperm.xlu0 %1036, %v489
    %v1038 = vpop.permute.xlu0 %1037
    %1041 = vset.pattern.permute.xlu0 0
    %1042 = vperm.xlu0 %1041, %v490
    %v1043 = vpop.permute.xlu0 %1042
    %1046 = vset.pattern.permute.xlu0 0
    %1047 = vperm.xlu0 %1046, %v491
    %v1048 = vpop.permute.xlu0 %1047
    %1051 = vset.pattern.permute.xlu0 0
    %1052 = vperm.xlu0 %1051, %v492
    %v1053 = vpop.permute.xlu0 %1052
    %1056 = vset.pattern.permute.xlu0 0
    %1057 = vperm.xlu0 %1056, %v493
    %v1058 = vpop.permute.xlu0 %1057
    %1061 = vset.pattern.permute.xlu0 0
    %1062 = vperm.xlu0 %1061, %v494
    %v1063 = vpop.permute.xlu0 %1062
    %1066 = vset.pattern.permute.xlu0 0
    %1067 = vperm.xlu0 %1066, %v495
    %v1068 = vpop.permute.xlu0 %1067
    %1071 = vset.pattern.permute.xlu0 0
    %1072 = vperm.xlu0 %1071, %v496
    %v1073 = vpop.permute.xlu0 %1072
    %1076 = vset.pattern.permute.xlu0 0
    %1077 = vperm.xlu0 %1076, %v497
    %v1078 = vpop.permute.xlu0 %1077
    %1081 = vset.pattern.permute.xlu0 0
    %1082 = vperm.xlu0 %1081, %v498
    %v1083 = vpop.permute.xlu0 %1082
    %1086 = vset.pattern.permute.xlu0 0
    %1087 = vperm.xlu0 %1086, %v499
    %v1088 = vpop.permute.xlu0 %1087
    %1091 = vset.pattern.permute.xlu0 0
    %1092 = vperm.xlu0 %1091, %v500
    %v1093 = vpop.permute.xlu0 %1092
    %1096 = vset.pattern.permute.xlu0 0
    %1097 = vperm.xlu0 %1096, %v501
    %v1098 = vpop.permute.xlu0 %1097
    %1101 = vset.pattern.permute.xlu0 0
    %1102 = vperm.xlu0 %1101, %v502
    %v1103 = vpop.permute.xlu0 %1102
    %1106 = vset.pattern.permute.xlu0 0
    %1107 = vperm.xlu0 %1106, %v503
    %v1108 = vpop.permute.xlu0 %1107
    %1111 = vset.pattern.permute.xlu0 0
    %1112 = vperm.xlu0 %1111, %v504
    %v1113 = vpop.permute.xlu0 %1112
    %1116 = vset.pattern.permute.xlu0 0
    %1117 = vperm.xlu0 %1116, %v505
    %v1118 = vpop.permute.xlu0 %1117
    %1121 = vset.pattern.permute.xlu0 0
    %1122 = vperm.xlu0 %1121, %v506
    %v1123 = vpop.permute.xlu0 %1122
    %1126 = vset.pattern.permute.xlu0 0
    %1127 = vperm.xlu0 %1126, %v507
    %v1128 = vpop.permute.xlu0 %1127
    %1131 = vset.pattern.permute.xlu0 0
    %1132 = vperm.xlu0 %1131, %v508
    %v1133 = vpop.permute.xlu0 %1132
    %1136 = vset.pattern.permute.xlu0 0
    %1137 = vperm.xlu0 %1136, %v509
    %v1138 = vpop.permute.xlu0 %1137
    %1141 = vset.pattern.permute.xlu0 0
    %1142 = vperm.xlu0 %1141, %v510
    %v1143 = vpop.permute.xlu0 %1142
    %1146 = vset.pattern.permute.xlu0 0
    %1147 = vperm.xlu0 %1146, %v511
    %v1148 = vpop.permute.xlu0 %1147
    %1151 = vset.pattern.permute.xlu0 0
    %1152 = vperm.xlu0 %1151, %v512
    %v1153 = vpop.permute.xlu0 %1152
    %1156 = vset.pattern.permute.xlu0 0
    %1157 = vperm.xlu0 %1156, %v513
    %v1158 = vpop.permute.xlu0 %1157
    %1161 = vset.pattern.permute.xlu0 0
    %1162 = vperm.xlu0 %1161, %v514
    %v1163 = vpop.permute.xlu0 %1162
    %1166 = vset.pattern.permute.xlu0 0
    %1167 = vperm.xlu0 %1166, %v515
    %v1168 = vpop.permute.xlu0 %1167
    %1171 = vset.pattern.permute.xlu0 0
    %1172 = vperm.xlu0 %1171, %v516
    %v1173 = vpop.permute.xlu0 %1172
    %1176 = vset.pattern.permute.xlu0 0
    %1177 = vperm.xlu0 %1176, %v517
    %v1178 = vpop.permute.xlu0 %1177
    %1181 = vset.pattern.permute.xlu0 0
    %1182 = vperm.xlu0 %1181, %v518
    %v1183 = vpop.permute.xlu0 %1182
    %1186 = vset.pattern.permute.xlu0 0
    %1187 = vperm.xlu0 %1186, %v519
    %v1188 = vpop.permute.xlu0 %1187
    %1191 = vset.pattern.permute.xlu0 0
    %1192 = vperm.xlu0 %1191, %v520
    %v1193 = vpop.permute.xlu0 %1192
    %1196 = vset.pattern.permute.xlu0 0
    %1197 = vperm.xlu0 %1196, %v521
    %v1198 = vpop.permute.xlu0 %1197
    %1201 = vset.pattern.permute.xlu0 0
    %1202 = vperm.xlu0 %1201, %v522
    %v1203 = vpop.permute.xlu0 %1202
    %v1205 = vperm.slane %v98, 2
    %v1206 = vmul.f32 %v1008, %v1205
    %v1207 = vmul.f32 %v1013, %v1205
    %v1208 = vmul.f32 %v1018, %v1205
    %v1209 = vmul.f32 %v1023, %v1205
    %v1210 = vmul.f32 %v1028, %v1205
    %v1211 = vmul.f32 %v1033, %v1205
    %v1212 = vmul.f32 %v1038, %v1205
    %v1213 = vmul.f32 %v1043, %v1205
    %v1214 = vmul.f32 %v1048, %v1205
    %v1215 = vmul.f32 %v1053, %v1205
    %v1216 = vmul.f32 %v1058, %v1205
    %v1217 = vmul.f32 %v1063, %v1205
    %v1218 = vmul.f32 %v1068, %v1205
    %v1219 = vmul.f32 %v1073, %v1205
    %v1220 = vmul.f32 %v1078, %v1205
    %v1221 = vmul.f32 %v1083, %v1205
    %v1222 = vmul.f32 %v1088, %v1205
    %v1223 = vmul.f32 %v1093, %v1205
    %v1224 = vmul.f32 %v1098, %v1205
    %v1225 = vmul.f32 %v1103, %v1205
    %v1226 = vmul.f32 %v1108, %v1205
    %v1227 = vmul.f32 %v1113, %v1205
    %v1228 = vmul.f32 %v1118, %v1205
    %v1229 = vmul.f32 %v1123, %v1205
    %v1230 = vmul.f32 %v1128, %v1205
    %v1231 = vmul.f32 %v1133, %v1205
    %v1232 = vmul.f32 %v1138, %v1205
    %v1233 = vmul.f32 %v1143, %v1205
    %v1234 = vmul.f32 %v1148, %v1205
    %v1235 = vmul.f32 %v1153, %v1205
    %v1236 = vmul.f32 %v1158, %v1205
    %v1237 = vmul.f32 %v1163, %v1205
    %v1238 = vmul.f32 %v1168, %v1205
    %v1239 = vmul.f32 %v1173, %v1205
    %v1240 = vmul.f32 %v1178, %v1205
    %v1241 = vmul.f32 %v1183, %v1205
    %v1242 = vmul.f32 %v1188, %v1205
    %v1243 = vmul.f32 %v1193, %v1205
    %v1244 = vmul.f32 %v1198, %v1205
    %v1245 = vmul.f32 %v1203, %v1205
    %v1246 = vadd.f32 %v965, %v1206
    %v1247 = vadd.f32 %v966, %v1207
    %v1248 = vadd.f32 %v967, %v1208
    %v1249 = vadd.f32 %v968, %v1209
    %v1250 = vadd.f32 %v969, %v1210
    %v1251 = vadd.f32 %v970, %v1211
    %v1252 = vadd.f32 %v971, %v1212
    %v1253 = vadd.f32 %v972, %v1213
    %v1254 = vadd.f32 %v973, %v1214
    %v1255 = vadd.f32 %v974, %v1215
    %v1256 = vadd.f32 %v975, %v1216
    %v1257 = vadd.f32 %v976, %v1217
    %v1258 = vadd.f32 %v977, %v1218
    %v1259 = vadd.f32 %v978, %v1219
    %v1260 = vadd.f32 %v979, %v1220
    %v1261 = vadd.f32 %v980, %v1221
    %v1262 = vadd.f32 %v981, %v1222
    %v1263 = vadd.f32 %v982, %v1223
    %v1264 = vadd.f32 %v983, %v1224
    %v1265 = vadd.f32 %v984, %v1225
    %v1266 = vadd.f32 %v985, %v1226
    %v1267 = vadd.f32 %v986, %v1227
    %v1268 = vadd.f32 %v987, %v1228
    %v1269 = vadd.f32 %v988, %v1229
    %v1270 = vadd.f32 %v989, %v1230
    %v1271 = vadd.f32 %v990, %v1231
    %v1272 = vadd.f32 %v991, %v1232
    %v1273 = vadd.f32 %v992, %v1233
    %v1274 = vadd.f32 %v993, %v1234
    %v1275 = vadd.f32 %v994, %v1235
    %v1276 = vadd.f32 %v995, %v1236
    %v1277 = vadd.f32 %v996, %v1237
    %v1278 = vadd.f32 %v997, %v1238
    %v1279 = vadd.f32 %v998, %v1239
    %v1280 = vadd.f32 %v999, %v1240
    %v1281 = vadd.f32 %v1000, %v1241
    %v1282 = vadd.f32 %v1001, %v1242
    %v1283 = vadd.f32 %v1002, %v1243
    %v1284 = vadd.f32 %v1003, %v1244
    %v1285 = vadd.f32 %v1004, %v1245
    %v1287 = vperm.slane %v99, 0
    %v1289 = vadd.f32 %v1246, %v1287
    %v1290 = vadd.f32 %v1247, %v1287
    %v1291 = vadd.f32 %v1248, %v1287
    %v1292 = vadd.f32 %v1249, %v1287
    %v1293 = vadd.f32 %v1250, %v1287
    %v1294 = vadd.f32 %v1251, %v1287
    %v1295 = vadd.f32 %v1252, %v1287
    %v1296 = vadd.f32 %v1253, %v1287
    %v1297 = vadd.f32 %v1254, %v1287
    %v1298 = vadd.f32 %v1255, %v1287
    %v1299 = vadd.f32 %v1256, %v1287
    %v1300 = vadd.f32 %v1257, %v1287
    %v1301 = vadd.f32 %v1258, %v1287
    %v1302 = vadd.f32 %v1259, %v1287
    %v1303 = vadd.f32 %v1260, %v1287
    %v1304 = vadd.f32 %v1261, %v1287
    %v1305 = vadd.f32 %v1262, %v1287
    %v1306 = vadd.f32 %v1263, %v1287
    %v1307 = vadd.f32 %v1264, %v1287
    %v1308 = vadd.f32 %v1265, %v1287
    %v1309 = vadd.f32 %v1266, %v1287
    %v1310 = vadd.f32 %v1267, %v1287
    %v1311 = vadd.f32 %v1268, %v1287
    %v1312 = vadd.f32 %v1269, %v1287
    %v1313 = vadd.f32 %v1270, %v1287
    %v1314 = vadd.f32 %v1271, %v1287
    %v1315 = vadd.f32 %v1272, %v1287
    %v1316 = vadd.f32 %v1273, %v1287
    %v1317 = vadd.f32 %v1274, %v1287
    %v1318 = vadd.f32 %v1275, %v1287
    %v1319 = vadd.f32 %v1276, %v1287
    %v1320 = vadd.f32 %v1277, %v1287
    %v1321 = vadd.f32 %v1278, %v1287
    %v1322 = vadd.f32 %v1279, %v1287
    %v1323 = vadd.f32 %v1280, %v1287
    %v1324 = vadd.f32 %v1281, %v1287
    %v1325 = vadd.f32 %v1282, %v1287
    %v1326 = vadd.f32 %v1283, %v1287
    %v1327 = vadd.f32 %v1284, %v1287
    %v1328 = vadd.f32 %v1285, %v1287
    %v1329 = vmax.f32 %v1289, 0.0
    %v1330 = vmax.f32 %v1290, 0.0
    %v1331 = vmax.f32 %v1291, 0.0
    %v1332 = vmax.f32 %v1292, 0.0
    %v1333 = vmax.f32 %v1293, 0.0
    %v1334 = vmax.f32 %v1294, 0.0
    %v1335 = vmax.f32 %v1295, 0.0
    %v1336 = vmax.f32 %v1296, 0.0
    %v1337 = vmax.f32 %v1297, 0.0
    %v1338 = vmax.f32 %v1298, 0.0
    %v1339 = vmax.f32 %v1299, 0.0
    %v1340 = vmax.f32 %v1300, 0.0
    %v1341 = vmax.f32 %v1301, 0.0
    %v1342 = vmax.f32 %v1302, 0.0
    %v1343 = vmax.f32 %v1303, 0.0
    %v1344 = vmax.f32 %v1304, 0.0
    %v1345 = vmax.f32 %v1305, 0.0
    %v1346 = vmax.f32 %v1306, 0.0
    %v1347 = vmax.f32 %v1307, 0.0
    %v1348 = vmax.f32 %v1308, 0.0
    %v1349 = vmax.f32 %v1309, 0.0
    %v1350 = vmax.f32 %v1310, 0.0
    %v1351 = vmax.f32 %v1311, 0.0
    %v1352 = vmax.f32 %v1312, 0.0
    %v1353 = vmax.f32 %v1313, 0.0
    %v1354 = vmax.f32 %v1314, 0.0
    %v1355 = vmax.f32 %v1315, 0.0
    %v1356 = vmax.f32 %v1316, 0.0
    %v1357 = vmax.f32 %v1317, 0.0
    %v1358 = vmax.f32 %v1318, 0.0
    %v1359 = vmax.f32 %v1319, 0.0
    %v1360 = vmax.f32 %v1320, 0.0
    %v1361 = vmax.f32 %v1321, 0.0
    %v1362 = vmax.f32 %v1322, 0.0
    %v1363 = vmax.f32 %v1323, 0.0
    %v1364 = vmax.f32 %v1324, 0.0
    %v1365 = vmax.f32 %v1325, 0.0
    %v1366 = vmax.f32 %v1326, 0.0
    %v1367 = vmax.f32 %v1327, 0.0
    %v1368 = vmax.f32 %v1328, 0.0
    %v1369 = vld [vmem:[%s3] sm:$0xf]
    %v1370 = vld [vmem:[%s3 + $0x4] sm:$0xf]
    %v1371 = vld [vmem:[%s3 + $0x8] sm:$0xf]
    %v1372 = vld [vmem:[%s4] sm:$0x1]
    %v1413 = vrot.slane %v1329, 7
    %v1414 = vrot.slane %v1330, 7
    %v1415 = vsel %vm201, %v1413, %v1414
    %v1416 = vrot.slane %v1331, 7
    %v1417 = vsel %vm201, %v1414, %v1416
    %v1418 = vrot.slane %v1332, 7
    %v1419 = vsel %vm201, %v1416, %v1418
    %v1420 = vrot.slane %v1333, 7
    %v1421 = vsel %vm201, %v1418, %v1420
    %v1422 = vrot.slane %v1334, 7
    %v1423 = vsel %vm201, %v1420, %v1422
    %v1424 = vrot.slane %v1335, 7
    %v1425 = vsel %vm201, %v1422, %v1424
    %v1426 = vrot.slane %v1336, 7
    %v1427 = vsel %vm201, %v1424, %v1426
    %v1428 = vrot.slane %v1337, 7
    %v1429 = vsel %vm201, %v1426, %v1428
    %v1430 = vrot.slane %v1338, 7
    %v1431 = vsel %vm201, %v1428, %v1430
    %v1432 = vrot.slane %v1339, 7
    %v1433 = vsel %vm201, %v1430, %v1432
    %v1434 = vrot.slane %v1340, 7
    %v1435 = vsel %vm201, %v1432, %v1434
    %v1436 = vrot.slane %v1341, 7
    %v1437 = vsel %vm201, %v1434, %v1436
    %v1438 = vrot.slane %v1342, 7
    %v1439 = vsel %vm201, %v1436, %v1438
    %v1440 = vrot.slane %v1343, 7
    %v1441 = vsel %vm201, %v1438, %v1440
    %v1442 = vrot.slane %v1344, 7
    %v1443 = vsel %vm201, %v1440, %v1442
    %v1444 = vrot.slane %v1345, 7
    %v1445 = vsel %vm201, %v1442, %v1444
    %v1446 = vrot.slane %v1346, 7
    %v1447 = vsel %vm201, %v1444, %v1446
    %v1448 = vrot.slane %v1347, 7
    %v1449 = vsel %vm201, %v1446, %v1448
    %v1450 = vrot.slane %v1348, 7
    %v1451 = vsel %vm201, %v1448, %v1450
    %v1452 = vrot.slane %v1349, 7
    %v1453 = vsel %vm201, %v1450, %v1452
    %v1454 = vrot.slane %v1350, 7
    %v1455 = vsel %vm201, %v1452, %v1454
    %v1456 = vrot.slane %v1351, 7
    %v1457 = vsel %vm201, %v1454, %v1456
    %v1458 = vrot.slane %v1352, 7
    %v1459 = vsel %vm201, %v1456, %v1458
    %v1460 = vrot.slane %v1353, 7
    %v1461 = vsel %vm201, %v1458, %v1460
    %v1462 = vrot.slane %v1354, 7
    %v1463 = vsel %vm201, %v1460, %v1462
    %v1464 = vrot.slane %v1355, 7
    %v1465 = vsel %vm201, %v1462, %v1464
    %v1466 = vrot.slane %v1356, 7
    %v1467 = vsel %vm201, %v1464, %v1466
    %v1468 = vrot.slane %v1357, 7
    %v1469 = vsel %vm201, %v1466, %v1468
    %v1470 = vrot.slane %v1358, 7
    %v1471 = vsel %vm201, %v1468, %v1470
    %v1472 = vrot.slane %v1359, 7
    %v1473 = vsel %vm201, %v1470, %v1472
    %v1474 = vrot.slane %v1360, 7
    %v1475 = vsel %vm201, %v1472, %v1474
    %v1476 = vrot.slane %v1361, 7
    %v1477 = vsel %vm201, %v1474, %v1476
    %v1478 = vrot.slane %v1362, 7
    %v1479 = vsel %vm201, %v1476, %v1478
    %v1480 = vrot.slane %v1363, 7
    %v1481 = vsel %vm201, %v1478, %v1480
    %v1482 = vrot.slane %v1364, 7
    %v1483 = vsel %vm201, %v1480, %v1482
    %v1484 = vrot.slane %v1365, 7
    %v1485 = vsel %vm201, %v1482, %v1484
    %v1486 = vrot.slane %v1366, 7
    %v1487 = vsel %vm201, %v1484, %v1486
    %v1488 = vrot.slane %v1367, 7
    %v1489 = vsel %vm201, %v1486, %v1488
    %v1490 = vrot.slane %v1368, 7
    %v1491 = vsel %vm201, %v1488, %v1490
    %v1532 = vsel %vm201, 0.0, %v1413
    %v1533 = vsel %vm121, 1, 0
    %v1534 = vsel %vm122, 1, 0
    %v1535 = vsel %vm123, 1, 0
    %v1536 = vsel %vm124, 1, 0
    %v1537 = vsel %vm125, 1, 0
    %v1538 = vsel %vm126, 1, 0
    %v1539 = vsel %vm127, 1, 0
    %v1540 = vsel %vm128, 1, 0
    %v1541 = vsel %vm129, 1, 0
    %v1542 = vsel %vm130, 1, 0
    %v1543 = vsel %vm131, 1, 0
    %v1544 = vsel %vm132, 1, 0
    %v1545 = vsel %vm133, 1, 0
    %v1546 = vsel %vm134, 1, 0
    %v1547 = vsel %vm135, 1, 0
    %v1548 = vsel %vm136, 1, 0
    %v1549 = vsel %vm137, 1, 0
    %v1550 = vsel %vm138, 1, 0
    %v1551 = vsel %vm139, 1, 0
    %v1552 = vsel %vm140, 1, 0
    %vm1553 = vcmp.eq.s32.totalorder %v1533, 1
    %vm1554 = vcmp.eq.s32.totalorder %v1534, 1
    %vm1555 = vcmp.eq.s32.totalorder %v1535, 1
    %vm1556 = vcmp.eq.s32.totalorder %v1536, 1
    %vm1557 = vcmp.eq.s32.totalorder %v1537, 1
    %vm1558 = vcmp.eq.s32.totalorder %v1538, 1
    %vm1559 = vcmp.eq.s32.totalorder %v1539, 1
    %vm1560 = vcmp.eq.s32.totalorder %v1540, 1
    %vm1561 = vcmp.eq.s32.totalorder %v1541, 1
    %vm1562 = vcmp.eq.s32.totalorder %v1542, 1
    %vm1563 = vcmp.eq.s32.totalorder %v1543, 1
    %vm1564 = vcmp.eq.s32.totalorder %v1544, 1
    %vm1565 = vcmp.eq.s32.totalorder %v1545, 1
    %vm1566 = vcmp.eq.s32.totalorder %v1546, 1
    %vm1567 = vcmp.eq.s32.totalorder %v1547, 1
    %vm1568 = vcmp.eq.s32.totalorder %v1548, 1
    %vm1569 = vcmp.eq.s32.totalorder %v1549, 1
    %vm1570 = vcmp.eq.s32.totalorder %v1550, 1
    %vm1571 = vcmp.eq.s32.totalorder %v1551, 1
    %vm1572 = vcmp.eq.s32.totalorder %v1552, 1
    %v1573 = vsel %vm1553, 0.0, %v1532
    %v1574 = vsel %vm1554, 0.0, %v1415
    %v1575 = vsel %vm1555, 0.0, %v1417
    %v1576 = vsel %vm1556, 0.0, %v1419
    %v1577 = vsel %vm1557, 0.0, %v1421
    %v1578 = vsel %vm1558, 0.0, %v1423
    %v1579 = vsel %vm1559, 0.0, %v1425
    %v1580 = vsel %vm1560, 0.0, %v1427
    %v1581 = vsel %vm1561, 0.0, %v1429
    %v1582 = vsel %vm1562, 0.0, %v1431
    %v1583 = vsel %vm1563, 0.0, %v1433
    %v1584 = vsel %vm1564, 0.0, %v1435
    %v1585 = vsel %vm1565, 0.0, %v1437
    %v1586 = vsel %vm1566, 0.0, %v1439
    %v1587 = vsel %vm1567, 0.0, %v1441
    %v1588 = vsel %vm1568, 0.0, %v1443
    %v1589 = vsel %vm1569, 0.0, %v1445
    %v1590 = vsel %vm1570, 0.0, %v1447
    %v1591 = vsel %vm1571, 0.0, %v1449
    %v1592 = vsel %vm1572, 0.0, %v1451
    %v1593 = vsel %vm1553, 0.0, %v1453
    %v1594 = vsel %vm1554, 0.0, %v1455
    %v1595 = vsel %vm1555, 0.0, %v1457
    %v1596 = vsel %vm1556, 0.0, %v1459
    %v1597 = vsel %vm1557, 0.0, %v1461
    %v1598 = vsel %vm1558, 0.0, %v1463
    %v1599 = vsel %vm1559, 0.0, %v1465
    %v1600 = vsel %vm1560, 0.0, %v1467
    %v1601 = vsel %vm1561, 0.0, %v1469
    %v1602 = vsel %vm1562, 0.0, %v1471
    %v1603 = vsel %vm1563, 0.0, %v1473
    %v1604 = vsel %vm1564, 0.0, %v1475
    %v1605 = vsel %vm1565, 0.0, %v1477
    %v1606 = vsel %vm1566, 0.0, %v1479
    %v1607 = vsel %vm1567, 0.0, %v1481
    %v1608 = vsel %vm1568, 0.0, %v1483
    %v1609 = vsel %vm1569, 0.0, %v1485
    %v1610 = vsel %vm1570, 0.0, %v1487
    %v1611 = vsel %vm1571, 0.0, %v1489
    %v1612 = vsel %vm1572, 0.0, %v1491
    %v1613 = vrot.slane %v1329, 1
    %v1614 = vrot.slane %v1330, 1
    %v1615 = vsel %vm362, %v1613, %v1614
    %v1616 = vrot.slane %v1331, 1
    %v1617 = vsel %vm362, %v1614, %v1616
    %v1618 = vrot.slane %v1332, 1
    %v1619 = vsel %vm362, %v1616, %v1618
    %v1620 = vrot.slane %v1333, 1
    %v1621 = vsel %vm362, %v1618, %v1620
    %v1622 = vrot.slane %v1334, 1
    %v1623 = vsel %vm362, %v1620, %v1622
    %v1624 = vrot.slane %v1335, 1
    %v1625 = vsel %vm362, %v1622, %v1624
    %v1626 = vrot.slane %v1336, 1
    %v1627 = vsel %vm362, %v1624, %v1626
    %v1628 = vrot.slane %v1337, 1
    %v1629 = vsel %vm362, %v1626, %v1628
    %v1630 = vrot.slane %v1338, 1
    %v1631 = vsel %vm362, %v1628, %v1630
    %v1632 = vrot.slane %v1339, 1
    %v1633 = vsel %vm362, %v1630, %v1632
    %v1634 = vrot.slane %v1340, 1
    %v1635 = vsel %vm362, %v1632, %v1634
    %v1636 = vrot.slane %v1341, 1
    %v1637 = vsel %vm362, %v1634, %v1636
    %v1638 = vrot.slane %v1342, 1
    %v1639 = vsel %vm362, %v1636, %v1638
    %v1640 = vrot.slane %v1343, 1
    %v1641 = vsel %vm362, %v1638, %v1640
    %v1642 = vrot.slane %v1344, 1
    %v1643 = vsel %vm362, %v1640, %v1642
    %v1644 = vrot.slane %v1345, 1
    %v1645 = vsel %vm362, %v1642, %v1644
    %v1646 = vrot.slane %v1346, 1
    %v1647 = vsel %vm362, %v1644, %v1646
    %v1648 = vrot.slane %v1347, 1
    %v1649 = vsel %vm362, %v1646, %v1648
    %v1650 = vrot.slane %v1348, 1
    %v1651 = vsel %vm362, %v1648, %v1650
    %v1652 = vrot.slane %v1349, 1
    %v1653 = vsel %vm362, %v1650, %v1652
    %v1654 = vrot.slane %v1350, 1
    %v1655 = vsel %vm362, %v1652, %v1654
    %v1656 = vrot.slane %v1351, 1
    %v1657 = vsel %vm362, %v1654, %v1656
    %v1658 = vrot.slane %v1352, 1
    %v1659 = vsel %vm362, %v1656, %v1658
    %v1660 = vrot.slane %v1353, 1
    %v1661 = vsel %vm362, %v1658, %v1660
    %v1662 = vrot.slane %v1354, 1
    %v1663 = vsel %vm362, %v1660, %v1662
    %v1664 = vrot.slane %v1355, 1
    %v1665 = vsel %vm362, %v1662, %v1664
    %v1666 = vrot.slane %v1356, 1
    %v1667 = vsel %vm362, %v1664, %v1666
    %v1668 = vrot.slane %v1357, 1
    %v1669 = vsel %vm362, %v1666, %v1668
    %v1670 = vrot.slane %v1358, 1
    %v1671 = vsel %vm362, %v1668, %v1670
    %v1672 = vrot.slane %v1359, 1
    %v1673 = vsel %vm362, %v1670, %v1672
    %v1674 = vrot.slane %v1360, 1
    %v1675 = vsel %vm362, %v1672, %v1674
    %v1676 = vrot.slane %v1361, 1
    %v1677 = vsel %vm362, %v1674, %v1676
    %v1678 = vrot.slane %v1362, 1
    %v1679 = vsel %vm362, %v1676, %v1678
    %v1680 = vrot.slane %v1363, 1
    %v1681 = vsel %vm362, %v1678, %v1680
    %v1682 = vrot.slane %v1364, 1
    %v1683 = vsel %vm362, %v1680, %v1682
    %v1684 = vrot.slane %v1365, 1
    %v1685 = vsel %vm362, %v1682, %v1684
    %v1686 = vrot.slane %v1366, 1
    %v1687 = vsel %vm362, %v1684, %v1686
    %v1688 = vrot.slane %v1367, 1
    %v1689 = vsel %vm362, %v1686, %v1688
    %v1690 = vrot.slane %v1368, 1
    %v1691 = vsel %vm362, %v1688, %v1690
    %v1732 = vsel %vm362, %v1690, 0.0
    %v1733 = vsel %vm141, 1, 0
    %v1734 = vsel %vm142, 1, 0
    %v1735 = vsel %vm143, 1, 0
    %v1736 = vsel %vm144, 1, 0
    %v1737 = vsel %vm145, 1, 0
    %v1738 = vsel %vm146, 1, 0
    %v1739 = vsel %vm147, 1, 0
    %v1740 = vsel %vm148, 1, 0
    %v1741 = vsel %vm149, 1, 0
    %v1742 = vsel %vm150, 1, 0
    %v1743 = vsel %vm151, 1, 0
    %v1744 = vsel %vm152, 1, 0
    %v1745 = vsel %vm153, 1, 0
    %v1746 = vsel %vm154, 1, 0
    %v1747 = vsel %vm155, 1, 0
    %v1748 = vsel %vm156, 1, 0
    %v1749 = vsel %vm157, 1, 0
    %v1750 = vsel %vm158, 1, 0
    %v1751 = vsel %vm159, 1, 0
    %v1752 = vsel %vm160, 1, 0
    %vm1753 = vcmp.eq.s32.totalorder %v1733, 1
    %vm1754 = vcmp.eq.s32.totalorder %v1734, 1
    %vm1755 = vcmp.eq.s32.totalorder %v1735, 1
    %vm1756 = vcmp.eq.s32.totalorder %v1736, 1
    %vm1757 = vcmp.eq.s32.totalorder %v1737, 1
    %vm1758 = vcmp.eq.s32.totalorder %v1738, 1
    %vm1759 = vcmp.eq.s32.totalorder %v1739, 1
    %vm1760 = vcmp.eq.s32.totalorder %v1740, 1
    %vm1761 = vcmp.eq.s32.totalorder %v1741, 1
    %vm1762 = vcmp.eq.s32.totalorder %v1742, 1
    %vm1763 = vcmp.eq.s32.totalorder %v1743, 1
    %vm1764 = vcmp.eq.s32.totalorder %v1744, 1
    %vm1765 = vcmp.eq.s32.totalorder %v1745, 1
    %vm1766 = vcmp.eq.s32.totalorder %v1746, 1
    %vm1767 = vcmp.eq.s32.totalorder %v1747, 1
    %vm1768 = vcmp.eq.s32.totalorder %v1748, 1
    %vm1769 = vcmp.eq.s32.totalorder %v1749, 1
    %vm1770 = vcmp.eq.s32.totalorder %v1750, 1
    %vm1771 = vcmp.eq.s32.totalorder %v1751, 1
    %vm1772 = vcmp.eq.s32.totalorder %v1752, 1
    %v1773 = vsel %vm1753, 0.0, %v1615
    %v1774 = vsel %vm1754, 0.0, %v1617
    %v1775 = vsel %vm1755, 0.0, %v1619
    %v1776 = vsel %vm1756, 0.0, %v1621
    %v1777 = vsel %vm1757, 0.0, %v1623
    %v1778 = vsel %vm1758, 0.0, %v1625
    %v1779 = vsel %vm1759, 0.0, %v1627
    %v1780 = vsel %vm1760, 0.0, %v1629
    %v1781 = vsel %vm1761, 0.0, %v1631
    %v1782 = vsel %vm1762, 0.0, %v1633
    %v1783 = vsel %vm1763, 0.0, %v1635
    %v1784 = vsel %vm1764, 0.0, %v1637
    %v1785 = vsel %vm1765, 0.0, %v1639
    %v1786 = vsel %vm1766, 0.0, %v1641
    %v1787 = vsel %vm1767, 0.0, %v1643
    %v1788 = vsel %vm1768, 0.0, %v1645
    %v1789 = vsel %vm1769, 0.0, %v1647
    %v1790 = vsel %vm1770, 0.0, %v1649
    %v1791 = vsel %vm1771, 0.0, %v1651
    %v1792 = vsel %vm1772, 0.0, %v1653
    %v1793 = vsel %vm1753, 0.0, %v1655
    %v1794 = vsel %vm1754, 0.0, %v1657
    %v1795 = vsel %vm1755, 0.0, %v1659
    %v1796 = vsel %vm1756, 0.0, %v1661
    %v1797 = vsel %vm1757, 0.0, %v1663
    %v1798 = vsel %vm1758, 0.0, %v1665
    %v1799 = vsel %vm1759, 0.0, %v1667
    %v1800 = vsel %vm1760, 0.0, %v1669
    %v1801 = vsel %vm1761, 0.0, %v1671
    %v1802 = vsel %vm1762, 0.0, %v1673
    %v1803 = vsel %vm1763, 0.0, %v1675
    %v1804 = vsel %vm1764, 0.0, %v1677
    %v1805 = vsel %vm1765, 0.0, %v1679
    %v1806 = vsel %vm1766, 0.0, %v1681
    %v1807 = vsel %vm1767, 0.0, %v1683
    %v1808 = vsel %vm1768, 0.0, %v1685
    %v1809 = vsel %vm1769, 0.0, %v1687
    %v1810 = vsel %vm1770, 0.0, %v1689
    %v1811 = vsel %vm1771, 0.0, %v1691
    %v1812 = vsel %vm1772, 0.0, %v1732
    %1813 = vrot.lane.b32.xlu0 %v1329, 8
    %v1814 = vpop.permute.xlu0 %1813
    %1815 = vrot.lane.b32.xlu0 %v1330, 8
    %v1816 = vpop.permute.xlu0 %1815
    %1817 = vrot.lane.b32.xlu0 %v1331, 8
    %v1818 = vpop.permute.xlu0 %1817
    %1819 = vrot.lane.b32.xlu0 %v1332, 8
    %v1820 = vpop.permute.xlu0 %1819
    %1821 = vrot.lane.b32.xlu0 %v1333, 8
    %v1822 = vpop.permute.xlu0 %1821
    %1823 = vrot.lane.b32.xlu0 %v1334, 8
    %v1824 = vpop.permute.xlu0 %1823
    %1825 = vrot.lane.b32.xlu0 %v1335, 8
    %v1826 = vpop.permute.xlu0 %1825
    %1827 = vrot.lane.b32.xlu0 %v1336, 8
    %v1828 = vpop.permute.xlu0 %1827
    %1829 = vrot.lane.b32.xlu0 %v1337, 8
    %v1830 = vpop.permute.xlu0 %1829
    %1831 = vrot.lane.b32.xlu0 %v1338, 8
    %v1832 = vpop.permute.xlu0 %1831
    %1833 = vrot.lane.b32.xlu0 %v1339, 8
    %v1834 = vpop.permute.xlu0 %1833
    %1835 = vrot.lane.b32.xlu0 %v1340, 8
    %v1836 = vpop.permute.xlu0 %1835
    %1837 = vrot.lane.b32.xlu0 %v1341, 8
    %v1838 = vpop.permute.xlu0 %1837
    %1839 = vrot.lane.b32.xlu0 %v1342, 8
    %v1840 = vpop.permute.xlu0 %1839
    %1841 = vrot.lane.b32.xlu0 %v1343, 8
    %v1842 = vpop.permute.xlu0 %1841
    %1843 = vrot.lane.b32.xlu0 %v1344, 8
    %v1844 = vpop.permute.xlu0 %1843
    %1845 = vrot.lane.b32.xlu0 %v1345, 8
    %v1846 = vpop.permute.xlu0 %1845
    %1847 = vrot.lane.b32.xlu0 %v1346, 8
    %v1848 = vpop.permute.xlu0 %1847
    %1849 = vrot.lane.b32.xlu0 %v1347, 8
    %v1850 = vpop.permute.xlu0 %1849
    %1851 = vrot.lane.b32.xlu0 %v1348, 8
    %v1852 = vpop.permute.xlu0 %1851
    %1853 = vrot.lane.b32.xlu0 %v1349, 8
    %v1854 = vpop.permute.xlu0 %1853
    %1855 = vrot.lane.b32.xlu0 %v1350, 8
    %v1856 = vpop.permute.xlu0 %1855
    %1857 = vrot.lane.b32.xlu0 %v1351, 8
    %v1858 = vpop.permute.xlu0 %1857
    %1859 = vrot.lane.b32.xlu0 %v1352, 8
    %v1860 = vpop.permute.xlu0 %1859
    %1861 = vrot.lane.b32.xlu0 %v1353, 8
    %v1862 = vpop.permute.xlu0 %1861
    %1863 = vrot.lane.b32.xlu0 %v1354, 8
    %v1864 = vpop.permute.xlu0 %1863
    %1865 = vrot.lane.b32.xlu0 %v1355, 8
    %v1866 = vpop.permute.xlu0 %1865
    %1867 = vrot.lane.b32.xlu0 %v1356, 8
    %v1868 = vpop.permute.xlu0 %1867
    %1869 = vrot.lane.b32.xlu0 %v1357, 8
    %v1870 = vpop.permute.xlu0 %1869
    %1871 = vrot.lane.b32.xlu0 %v1358, 8
    %v1872 = vpop.permute.xlu0 %1871
    %1873 = vrot.lane.b32.xlu0 %v1359, 8
    %v1874 = vpop.permute.xlu0 %1873
    %1875 = vrot.lane.b32.xlu0 %v1360, 8
    %v1876 = vpop.permute.xlu0 %1875
    %1877 = vrot.lane.b32.xlu0 %v1361, 8
    %v1878 = vpop.permute.xlu0 %1877
    %1879 = vrot.lane.b32.xlu0 %v1362, 8
    %v1880 = vpop.permute.xlu0 %1879
    %1881 = vrot.lane.b32.xlu0 %v1363, 8
    %v1882 = vpop.permute.xlu0 %1881
    %1883 = vrot.lane.b32.xlu0 %v1364, 8
    %v1884 = vpop.permute.xlu0 %1883
    %1885 = vrot.lane.b32.xlu0 %v1365, 8
    %v1886 = vpop.permute.xlu0 %1885
    %1887 = vrot.lane.b32.xlu0 %v1366, 8
    %v1888 = vpop.permute.xlu0 %1887
    %1889 = vrot.lane.b32.xlu0 %v1367, 8
    %v1890 = vpop.permute.xlu0 %1889
    %1891 = vrot.lane.b32.xlu0 %v1368, 8
    %v1892 = vpop.permute.xlu0 %1891
    %1973 = vrot.lane.b32.xlu0 %v1773, 16
    %v1974 = vpop.permute.xlu0 %1973
    %1975 = vrot.lane.b32.xlu0 %v1774, 16
    %v1976 = vpop.permute.xlu0 %1975
    %1977 = vrot.lane.b32.xlu0 %v1775, 16
    %v1978 = vpop.permute.xlu0 %1977
    %1979 = vrot.lane.b32.xlu0 %v1776, 16
    %v1980 = vpop.permute.xlu0 %1979
    %1981 = vrot.lane.b32.xlu0 %v1777, 16
    %v1982 = vpop.permute.xlu0 %1981
    %1983 = vrot.lane.b32.xlu0 %v1778, 16
    %v1984 = vpop.permute.xlu0 %1983
    %1985 = vrot.lane.b32.xlu0 %v1779, 16
    %v1986 = vpop.permute.xlu0 %1985
    %1987 = vrot.lane.b32.xlu0 %v1780, 16
    %v1988 = vpop.permute.xlu0 %1987
    %1989 = vrot.lane.b32.xlu0 %v1781, 16
    %v1990 = vpop.permute.xlu0 %1989
    %1991 = vrot.lane.b32.xlu0 %v1782, 16
    %v1992 = vpop.permute.xlu0 %1991
    %1993 = vrot.lane.b32.xlu0 %v1783, 16
    %v1994 = vpop.permute.xlu0 %1993
    %1995 = vrot.lane.b32.xlu0 %v1784, 16
    %v1996 = vpop.permute.xlu0 %1995
    %1997 = vrot.lane.b32.xlu0 %v1785, 16
    %v1998 = vpop.permute.xlu0 %1997
    %1999 = vrot.lane.b32.xlu0 %v1786, 16
    %v2000 = vpop.permute.xlu0 %1999
    %2001 = vrot.lane.b32.xlu0 %v1787, 16
    %v2002 = vpop.permute.xlu0 %2001
    %2003 = vrot.lane.b32.xlu0 %v1788, 16
    %v2004 = vpop.permute.xlu0 %2003
    %2005 = vrot.lane.b32.xlu0 %v1789, 16
    %v2006 = vpop.permute.xlu0 %2005
    %2007 = vrot.lane.b32.xlu0 %v1790, 16
    %v2008 = vpop.permute.xlu0 %2007
    %2009 = vrot.lane.b32.xlu0 %v1791, 16
    %v2010 = vpop.permute.xlu0 %2009
    %2011 = vrot.lane.b32.xlu0 %v1792, 16
    %v2012 = vpop.permute.xlu0 %2011
    %2013 = vrot.lane.b32.xlu0 %v1793, 16
    %v2014 = vpop.permute.xlu0 %2013
    %2015 = vrot.lane.b32.xlu0 %v1794, 16
    %v2016 = vpop.permute.xlu0 %2015
    %2017 = vrot.lane.b32.xlu0 %v1795, 16
    %v2018 = vpop.permute.xlu0 %2017
    %2019 = vrot.lane.b32.xlu0 %v1796, 16
    %v2020 = vpop.permute.xlu0 %2019
    %2021 = vrot.lane.b32.xlu0 %v1797, 16
    %v2022 = vpop.permute.xlu0 %2021
    %2023 = vrot.lane.b32.xlu0 %v1798, 16
    %v2024 = vpop.permute.xlu0 %2023
    %2025 = vrot.lane.b32.xlu0 %v1799, 16
    %v2026 = vpop.permute.xlu0 %2025
    %2027 = vrot.lane.b32.xlu0 %v1800, 16
    %v2028 = vpop.permute.xlu0 %2027
    %2029 = vrot.lane.b32.xlu0 %v1801, 16
    %v2030 = vpop.permute.xlu0 %2029
    %2031 = vrot.lane.b32.xlu0 %v1802, 16
    %v2032 = vpop.permute.xlu0 %2031
    %2033 = vrot.lane.b32.xlu0 %v1803, 16
    %v2034 = vpop.permute.xlu0 %2033
    %2035 = vrot.lane.b32.xlu0 %v1804, 16
    %v2036 = vpop.permute.xlu0 %2035
    %2037 = vrot.lane.b32.xlu0 %v1805, 16
    %v2038 = vpop.permute.xlu0 %2037
    %2039 = vrot.lane.b32.xlu0 %v1806, 16
    %v2040 = vpop.permute.xlu0 %2039
    %2041 = vrot.lane.b32.xlu0 %v1807, 16
    %v2042 = vpop.permute.xlu0 %2041
    %2043 = vrot.lane.b32.xlu0 %v1808, 16
    %v2044 = vpop.permute.xlu0 %2043
    %2045 = vrot.lane.b32.xlu0 %v1809, 16
    %v2046 = vpop.permute.xlu0 %2045
    %2047 = vrot.lane.b32.xlu0 %v1810, 16
    %v2048 = vpop.permute.xlu0 %2047
    %2049 = vrot.lane.b32.xlu0 %v1811, 16
    %v2050 = vpop.permute.xlu0 %2049
    %2051 = vrot.lane.b32.xlu0 %v1812, 16
    %v2052 = vpop.permute.xlu0 %2051
    %vm2093 = vcmask 64512
    %v2094 = vsel %vm2093, %v1573, %v1814
    %v2095 = vsel %vm2093, %v1574, %v1816
    %v2096 = vsel %vm2093, %v1575, %v1818
    %v2097 = vsel %vm2093, %v1576, %v1820
    %v2098 = vsel %vm2093, %v1577, %v1822
    %v2099 = vsel %vm2093, %v1578, %v1824
    %v2100 = vsel %vm2093, %v1579, %v1826
    %v2101 = vsel %vm2093, %v1580, %v1828
    %v2102 = vsel %vm2093, %v1581, %v1830
    %v2103 = vsel %vm2093, %v1582, %v1832
    %v2104 = vsel %vm2093, %v1583, %v1834
    %v2105 = vsel %vm2093, %v1584, %v1836
    %v2106 = vsel %vm2093, %v1585, %v1838
    %v2107 = vsel %vm2093, %v1586, %v1840
    %v2108 = vsel %vm2093, %v1587, %v1842
    %v2109 = vsel %vm2093, %v1588, %v1844
    %v2110 = vsel %vm2093, %v1589, %v1846
    %v2111 = vsel %vm2093, %v1590, %v1848
    %v2112 = vsel %vm2093, %v1591, %v1850
    %v2113 = vsel %vm2093, %v1592, %v1852
    %v2114 = vsel %vm2093, %v1593, %v1854
    %v2115 = vsel %vm2093, %v1594, %v1856
    %v2116 = vsel %vm2093, %v1595, %v1858
    %v2117 = vsel %vm2093, %v1596, %v1860
    %v2118 = vsel %vm2093, %v1597, %v1862
    %v2119 = vsel %vm2093, %v1598, %v1864
    %v2120 = vsel %vm2093, %v1599, %v1866
    %v2121 = vsel %vm2093, %v1600, %v1868
    %v2122 = vsel %vm2093, %v1601, %v1870
    %v2123 = vsel %vm2093, %v1602, %v1872
    %v2124 = vsel %vm2093, %v1603, %v1874
    %v2125 = vsel %vm2093, %v1604, %v1876
    %v2126 = vsel %vm2093, %v1605, %v1878
    %v2127 = vsel %vm2093, %v1606, %v1880
    %v2128 = vsel %vm2093, %v1607, %v1882
    %v2129 = vsel %vm2093, %v1608, %v1884
    %v2130 = vsel %vm2093, %v1609, %v1886
    %v2131 = vsel %vm2093, %v1610, %v1888
    %v2132 = vsel %vm2093, %v1611, %v1890
    %v2133 = vsel %vm2093, %v1612, %v1892
    %vm2134 = vcmask 130048
    %v2135 = vsel %vm2134, %v2094, %v1974
    %v2136 = vsel %vm2134, %v2095, %v1976
    %v2137 = vsel %vm2134, %v2096, %v1978
    %v2138 = vsel %vm2134, %v2097, %v1980
    %v2139 = vsel %vm2134, %v2098, %v1982
    %v2140 = vsel %vm2134, %v2099, %v1984
    %v2141 = vsel %vm2134, %v2100, %v1986
    %v2142 = vsel %vm2134, %v2101, %v1988
    %v2143 = vsel %vm2134, %v2102, %v1990
    %v2144 = vsel %vm2134, %v2103, %v1992
    %v2145 = vsel %vm2134, %v2104, %v1994
    %v2146 = vsel %vm2134, %v2105, %v1996
    %v2147 = vsel %vm2134, %v2106, %v1998
    %v2148 = vsel %vm2134, %v2107, %v2000
    %v2149 = vsel %vm2134, %v2108, %v2002
    %v2150 = vsel %vm2134, %v2109, %v2004
    %v2151 = vsel %vm2134, %v2110, %v2006
    %v2152 = vsel %vm2134, %v2111, %v2008
    %v2153 = vsel %vm2134, %v2112, %v2010
    %v2154 = vsel %vm2134, %v2113, %v2012
    %v2155 = vsel %vm2134, %v2114, %v2014
    %v2156 = vsel %vm2134, %v2115, %v2016
    %v2157 = vsel %vm2134, %v2116, %v2018
    %v2158 = vsel %vm2134, %v2117, %v2020
    %v2159 = vsel %vm2134, %v2118, %v2022
    %v2160 = vsel %vm2134, %v2119, %v2024
    %v2161 = vsel %vm2134, %v2120, %v2026
    %v2162 = vsel %vm2134, %v2121, %v2028
    %v2163 = vsel %vm2134, %v2122, %v2030
    %v2164 = vsel %vm2134, %v2123, %v2032
    %v2165 = vsel %vm2134, %v2124, %v2034
    %v2166 = vsel %vm2134, %v2125, %v2036
    %v2167 = vsel %vm2134, %v2126, %v2038
    %v2168 = vsel %vm2134, %v2127, %v2040
    %v2169 = vsel %vm2134, %v2128, %v2042
    %v2170 = vsel %vm2134, %v2129, %v2044
    %v2171 = vsel %vm2134, %v2130, %v2046
    %v2172 = vsel %vm2134, %v2131, %v2048
    %v2173 = vsel %vm2134, %v2132, %v2050
    %v2174 = vsel %vm2134, %v2133, %v2052
    %v2175 = vpack.c.bf16 %v2136, %v2135
    %v2176 = vpack.c.bf16 %v2138, %v2137
    %v2177 = vpack.c.bf16 %v2140, %v2139
    %v2178 = vpack.c.bf16 %v2142, %v2141
    %v2179 = vpack.c.bf16 %v2144, %v2143
    %v2180 = vpack.c.bf16 %v2146, %v2145
    %v2181 = vpack.c.bf16 %v2148, %v2147
    %v2182 = vpack.c.bf16 %v2150, %v2149
    %v2183 = vpack.c.bf16 %v2152, %v2151
    %v2184 = vpack.c.bf16 %v2154, %v2153
    %v2185 = vpack.c.bf16 %v2156, %v2155
    %v2186 = vpack.c.bf16 %v2158, %v2157
    %v2187 = vpack.c.bf16 %v2160, %v2159
    %v2188 = vpack.c.bf16 %v2162, %v2161
    %v2189 = vpack.c.bf16 %v2164, %v2163
    %v2190 = vpack.c.bf16 %v2166, %v2165
    %v2191 = vpack.c.bf16 %v2168, %v2167
    %v2192 = vpack.c.bf16 %v2170, %v2169
    %v2193 = vpack.c.bf16 %v2172, %v2171
    %v2194 = vpack.c.bf16 %v2174, %v2173
    %v2196 = vperm.slane %v1372, 0
    %v2201 = vunpack.c.l.b16 %v1369
    %v2202 = vunpack.c.l.b16 %v1370
    %v2203 = vunpack.c.l.b16 %v1371
    %v2204 = vpack.c.b16 %v2202, %v2201
    %v2205 = vpack.c.b16 %v2203, %v2203
    %vm2207 = vcmask 195584
    %v2209 = vsel %vm2207, %v2175, 0
    %v2212 = vsel %vm2207, %v2176, 0
    %v2215 = vsel %vm2207, %v2177, 0
    %v2218 = vsel %vm2207, %v2178, 0
    %v2221 = vsel %vm2207, %v2179, 0
    %v2224 = vsel %vm2207, %v2180, 0
    %v2227 = vsel %vm2207, %v2181, 0
    %v2230 = vsel %vm2207, %v2182, 0
    %v2233 = vsel %vm2207, %v2183, 0
    %v2236 = vsel %vm2207, %v2184, 0
    %v2239 = vsel %vm2207, %v2185, 0
    %v2242 = vsel %vm2207, %v2186, 0
    %v2245 = vsel %vm2207, %v2187, 0
    %v2248 = vsel %vm2207, %v2188, 0
    %v2251 = vsel %vm2207, %v2189, 0
    %v2254 = vsel %vm2207, %v2190, 0
    %v2257 = vsel %vm2207, %v2191, 0
    %v2260 = vsel %vm2207, %v2192, 0
    %v2263 = vsel %vm2207, %v2193, 0
    %v2266 = vsel %vm2207, %v2194, 0
    %vm2268 = vcmask 1043456
    %v2270 = vsel %vm2268, %v2205, 0
    %2272 = vmatpush.bf16.msra.mxu0 0
    %2273 = vmatpush.bf16.msra.mxu0 0
    %2274 = vmatpush.bf16.msra.mxu0 0
    %2275 = vmatpush.bf16.msra.mxu0 0
    %2276 = vmatpush.bf16.msra.mxu0 0
    %2277 = vmatpush.bf16.msra.mxu0 0
    %2278 = vmatpush.bf16.msra.mxu0 %v2270
    %2279 = vmatpush.bf16.msra.mxu0 %v2204
    %2280 = vmatmul.bf16.gmra.mxu0 %v2209
    %v2281 = vpop.f32.mrf.mxu0
    %v2282 = vadd.f32 %v2196, %v2281
    %v2283 = vpop.f32.mrf.mxu0
    %v2284 = vadd.f32 %v2196, %v2283
    %2285 = vmatmul.bf16.gmra.mxu0 %v2212
    %v2286 = vpop.f32.mrf.mxu0
    %v2287 = vadd.f32 %v2196, %v2286
    %v2288 = vpop.f32.mrf.mxu0
    %v2289 = vadd.f32 %v2196, %v2288
    %2290 = vmatmul.bf16.gmra.mxu0 %v2215
    %v2291 = vpop.f32.mrf.mxu0
    %v2292 = vadd.f32 %v2196, %v2291
    %v2293 = vpop.f32.mrf.mxu0
    %v2294 = vadd.f32 %v2196, %v2293
    %2295 = vmatmul.bf16.gmra.mxu0 %v2218
    %v2296 = vpop.f32.mrf.mxu0
    %v2297 = vadd.f32 %v2196, %v2296
    %v2298 = vpop.f32.mrf.mxu0
    %v2299 = vadd.f32 %v2196, %v2298
    %2300 = vmatmul.bf16.gmra.mxu0 %v2221
    %v2301 = vpop.f32.mrf.mxu0
    %v2302 = vadd.f32 %v2196, %v2301
    %v2303 = vpop.f32.mrf.mxu0
    %v2304 = vadd.f32 %v2196, %v2303
    %2305 = vmatmul.bf16.gmra.mxu0 %v2224
    %v2306 = vpop.f32.mrf.mxu0
    %v2307 = vadd.f32 %v2196, %v2306
    %v2308 = vpop.f32.mrf.mxu0
    %v2309 = vadd.f32 %v2196, %v2308
    %2310 = vmatmul.bf16.gmra.mxu0 %v2227
    %v2311 = vpop.f32.mrf.mxu0
    %v2312 = vadd.f32 %v2196, %v2311
    %v2313 = vpop.f32.mrf.mxu0
    %v2314 = vadd.f32 %v2196, %v2313
    %2315 = vmatmul.bf16.gmra.mxu0 %v2230
    %v2316 = vpop.f32.mrf.mxu0
    %v2317 = vadd.f32 %v2196, %v2316
    %v2318 = vpop.f32.mrf.mxu0
    %v2319 = vadd.f32 %v2196, %v2318
    %2320 = vmatmul.bf16.gmra.mxu0 %v2233
    %v2321 = vpop.f32.mrf.mxu0
    %v2322 = vadd.f32 %v2196, %v2321
    %v2323 = vpop.f32.mrf.mxu0
    %v2324 = vadd.f32 %v2196, %v2323
    %2325 = vmatmul.bf16.gmra.mxu0 %v2236
    %v2326 = vpop.f32.mrf.mxu0
    %v2327 = vadd.f32 %v2196, %v2326
    %v2328 = vpop.f32.mrf.mxu0
    %v2329 = vadd.f32 %v2196, %v2328
    %2330 = vmatmul.bf16.gmra.mxu0 %v2239
    %v2331 = vpop.f32.mrf.mxu0
    %v2332 = vadd.f32 %v2196, %v2331
    %v2333 = vpop.f32.mrf.mxu0
    %v2334 = vadd.f32 %v2196, %v2333
    %2335 = vmatmul.bf16.gmra.mxu0 %v2242
    %v2336 = vpop.f32.mrf.mxu0
    %v2337 = vadd.f32 %v2196, %v2336
    %v2338 = vpop.f32.mrf.mxu0
    %v2339 = vadd.f32 %v2196, %v2338
    %2340 = vmatmul.bf16.gmra.mxu0 %v2245
    %v2341 = vpop.f32.mrf.mxu0
    %v2342 = vadd.f32 %v2196, %v2341
    %v2343 = vpop.f32.mrf.mxu0
    %v2344 = vadd.f32 %v2196, %v2343
    %2345 = vmatmul.bf16.gmra.mxu0 %v2248
    %v2346 = vpop.f32.mrf.mxu0
    %v2347 = vadd.f32 %v2196, %v2346
    %v2348 = vpop.f32.mrf.mxu0
    %v2349 = vadd.f32 %v2196, %v2348
    %2350 = vmatmul.bf16.gmra.mxu0 %v2251
    %v2351 = vpop.f32.mrf.mxu0
    %v2352 = vadd.f32 %v2196, %v2351
    %v2353 = vpop.f32.mrf.mxu0
    %v2354 = vadd.f32 %v2196, %v2353
    %2355 = vmatmul.bf16.gmra.mxu0 %v2254
    %v2356 = vpop.f32.mrf.mxu0
    %v2357 = vadd.f32 %v2196, %v2356
    %v2358 = vpop.f32.mrf.mxu0
    %v2359 = vadd.f32 %v2196, %v2358
    %2360 = vmatmul.bf16.gmra.mxu0 %v2257
    %v2361 = vpop.f32.mrf.mxu0
    %v2362 = vadd.f32 %v2196, %v2361
    %v2363 = vpop.f32.mrf.mxu0
    %v2364 = vadd.f32 %v2196, %v2363
    %2365 = vmatmul.bf16.gmra.mxu0 %v2260
    %v2366 = vpop.f32.mrf.mxu0
    %v2367 = vadd.f32 %v2196, %v2366
    %v2368 = vpop.f32.mrf.mxu0
    %v2369 = vadd.f32 %v2196, %v2368
    %2370 = vmatmul.bf16.gmra.mxu0 %v2263
    %v2371 = vpop.f32.mrf.mxu0
    %v2372 = vadd.f32 %v2196, %v2371
    %v2373 = vpop.f32.mrf.mxu0
    %v2374 = vadd.f32 %v2196, %v2373
    %2375 = vmatmul.bf16.gmra.mxu0 %v2266
    %v2376 = vpop.f32.mrf.mxu0
    %v2377 = vadd.f32 %v2196, %v2376
    %v2378 = vpop.f32.mrf.mxu0
    %v2379 = vadd.f32 %v2196, %v2378
    %2380 = vdwg.mxu0
    %v2381 = vmax.f32 %v2282, 0.0
    %v2382 = vmax.f32 %v2284, 0.0
    %v2383 = vmax.f32 %v2287, 0.0
    %v2384 = vmax.f32 %v2289, 0.0
    %v2385 = vmax.f32 %v2292, 0.0
    %v2386 = vmax.f32 %v2294, 0.0
    %v2387 = vmax.f32 %v2297, 0.0
    %v2388 = vmax.f32 %v2299, 0.0
    %v2389 = vmax.f32 %v2302, 0.0
    %v2390 = vmax.f32 %v2304, 0.0
    %v2391 = vmax.f32 %v2307, 0.0
    %v2392 = vmax.f32 %v2309, 0.0
    %v2393 = vmax.f32 %v2312, 0.0
    %v2394 = vmax.f32 %v2314, 0.0
    %v2395 = vmax.f32 %v2317, 0.0
    %v2396 = vmax.f32 %v2319, 0.0
    %v2397 = vmax.f32 %v2322, 0.0
    %v2398 = vmax.f32 %v2324, 0.0
    %v2399 = vmax.f32 %v2327, 0.0
    %v2400 = vmax.f32 %v2329, 0.0
    %v2401 = vmax.f32 %v2332, 0.0
    %v2402 = vmax.f32 %v2334, 0.0
    %v2403 = vmax.f32 %v2337, 0.0
    %v2404 = vmax.f32 %v2339, 0.0
    %v2405 = vmax.f32 %v2342, 0.0
    %v2406 = vmax.f32 %v2344, 0.0
    %v2407 = vmax.f32 %v2347, 0.0
    %v2408 = vmax.f32 %v2349, 0.0
    %v2409 = vmax.f32 %v2352, 0.0
    %v2410 = vmax.f32 %v2354, 0.0
    %v2411 = vmax.f32 %v2357, 0.0
    %v2412 = vmax.f32 %v2359, 0.0
    %v2413 = vmax.f32 %v2362, 0.0
    %v2414 = vmax.f32 %v2364, 0.0
    %v2415 = vmax.f32 %v2367, 0.0
    %v2416 = vmax.f32 %v2369, 0.0
    %v2417 = vmax.f32 %v2372, 0.0
    %v2418 = vmax.f32 %v2374, 0.0
    %v2419 = vmax.f32 %v2377, 0.0
    %v2420 = vmax.f32 %v2379, 0.0
    %v2461 = vrot.slane %v2381, 2
    %v2462 = vrot.slane %v2381, 4
    %v2463 = vrot.slane %v2381, 6
    %v2464 = vrot.slane %v2382, 2
    %v2465 = vrot.slane %v2382, 4
    %v2466 = vrot.slane %v2382, 6
    %v2467 = vrot.slane %v2383, 2
    %v2468 = vrot.slane %v2383, 4
    %v2469 = vrot.slane %v2383, 6
    %v2470 = vrot.slane %v2384, 2
    %v2471 = vrot.slane %v2384, 4
    %v2472 = vrot.slane %v2384, 6
    %v2473 = vrot.slane %v2385, 2
    %v2474 = vrot.slane %v2385, 4
    %v2475 = vrot.slane %v2385, 6
    %v2476 = vrot.slane %v2386, 2
    %v2477 = vrot.slane %v2386, 4
    %v2478 = vrot.slane %v2386, 6
    %v2479 = vrot.slane %v2387, 2
    %v2480 = vrot.slane %v2387, 4
    %v2481 = vrot.slane %v2387, 6
    %v2482 = vrot.slane %v2388, 2
    %v2483 = vrot.slane %v2388, 4
    %v2484 = vrot.slane %v2388, 6
    %v2485 = vrot.slane %v2389, 2
    %v2486 = vrot.slane %v2389, 4
    %v2487 = vrot.slane %v2389, 6
    %v2488 = vrot.slane %v2390, 2
    %v2489 = vrot.slane %v2390, 4
    %v2490 = vrot.slane %v2390, 6
    %v2491 = vrot.slane %v2391, 2
    %v2492 = vrot.slane %v2391, 4
    %v2493 = vrot.slane %v2391, 6
    %v2494 = vrot.slane %v2392, 2
    %v2495 = vrot.slane %v2392, 4
    %v2496 = vrot.slane %v2392, 6
    %v2497 = vrot.slane %v2393, 2
    %v2498 = vrot.slane %v2393, 4
    %v2499 = vrot.slane %v2393, 6
    %v2500 = vrot.slane %v2394, 2
    %v2501 = vrot.slane %v2394, 4
    %v2502 = vrot.slane %v2394, 6
    %v2503 = vrot.slane %v2395, 2
    %v2504 = vrot.slane %v2395, 4
    %v2505 = vrot.slane %v2395, 6
    %v2506 = vrot.slane %v2396, 2
    %v2507 = vrot.slane %v2396, 4
    %v2508 = vrot.slane %v2396, 6
    %v2509 = vrot.slane %v2397, 2
    %v2510 = vrot.slane %v2397, 4
    %v2511 = vrot.slane %v2397, 6
    %v2512 = vrot.slane %v2398, 2
    %v2513 = vrot.slane %v2398, 4
    %v2514 = vrot.slane %v2398, 6
    %v2515 = vrot.slane %v2399, 2
    %v2516 = vrot.slane %v2399, 4
    %v2517 = vrot.slane %v2399, 6
    %v2518 = vrot.slane %v2400, 2
    %v2519 = vrot.slane %v2400, 4
    %v2520 = vrot.slane %v2400, 6
    %v2521 = vrot.slane %v2401, 2
    %v2522 = vrot.slane %v2401, 4
    %v2523 = vrot.slane %v2401, 6
    %v2524 = vrot.slane %v2402, 2
    %v2525 = vrot.slane %v2402, 4
    %v2526 = vrot.slane %v2402, 6
    %v2527 = vrot.slane %v2403, 2
    %v2528 = vrot.slane %v2403, 4
    %v2529 = vrot.slane %v2403, 6
    %v2530 = vrot.slane %v2404, 2
    %v2531 = vrot.slane %v2404, 4
    %v2532 = vrot.slane %v2404, 6
    %v2533 = vrot.slane %v2405, 2
    %v2534 = vrot.slane %v2405, 4
    %v2535 = vrot.slane %v2405, 6
    %v2536 = vrot.slane %v2406, 2
    %v2537 = vrot.slane %v2406, 4
    %v2538 = vrot.slane %v2406, 6
    %v2539 = vrot.slane %v2407, 2
    %v2540 = vrot.slane %v2407, 4
    %v2541 = vrot.slane %v2407, 6
    %v2542 = vrot.slane %v2408, 2
    %v2543 = vrot.slane %v2408, 4
    %v2544 = vrot.slane %v2408, 6
    %v2545 = vrot.slane %v2409, 2
    %v2546 = vrot.slane %v2409, 4
    %v2547 = vrot.slane %v2409, 6
    %v2548 = vrot.slane %v2410, 2
    %v2549 = vrot.slane %v2410, 4
    %v2550 = vrot.slane %v2410, 6
    %v2551 = vrot.slane %v2411, 2
    %v2552 = vrot.slane %v2411, 4
    %v2553 = vrot.slane %v2411, 6
    %v2554 = vrot.slane %v2412, 2
    %v2555 = vrot.slane %v2412, 4
    %v2556 = vrot.slane %v2412, 6
    %v2557 = vrot.slane %v2413, 2
    %v2558 = vrot.slane %v2413, 4
    %v2559 = vrot.slane %v2413, 6
    %v2560 = vrot.slane %v2414, 2
    %v2561 = vrot.slane %v2414, 4
    %v2562 = vrot.slane %v2414, 6
    %v2563 = vrot.slane %v2415, 2
    %v2564 = vrot.slane %v2415, 4
    %v2565 = vrot.slane %v2415, 6
    %v2566 = vrot.slane %v2416, 2
    %v2567 = vrot.slane %v2416, 4
    %v2568 = vrot.slane %v2416, 6
    %v2569 = vrot.slane %v2417, 2
    %v2570 = vrot.slane %v2417, 4
    %v2571 = vrot.slane %v2417, 6
    %v2572 = vrot.slane %v2418, 2
    %v2573 = vrot.slane %v2418, 4
    %v2574 = vrot.slane %v2418, 6
    %v2575 = vrot.slane %v2419, 2
    %v2576 = vrot.slane %v2419, 4
    %v2577 = vrot.slane %v2419, 6
    %v2578 = vrot.slane %v2420, 2
    %v2579 = vrot.slane %v2420, 4
    %v2580 = vrot.slane %v2420, 6
    %vm2701 = vcmask 58368
    %v2702 = vsel %vm2701, %v2381, -inf
    %v2703 = vrot.slane %v2702, 4
    %v2704 = vmax.f32 %v2702, %v2703
    %v2705 = vrot.slane %v2704, 2
    %v2706 = vmax.f32 %v2704, %v2705
    %v2707 = vrot.slane %v2706, 1
    %v2708 = vmax.f32 %v2706, %v2707
    %v2709 = vsel %vm2701, %v2461, -inf
    %v2710 = vrot.slane %v2709, 4
    %v2711 = vmax.f32 %v2709, %v2710
    %v2712 = vrot.slane %v2711, 2
    %v2713 = vmax.f32 %v2711, %v2712
    %v2714 = vrot.slane %v2713, 1
    %v2715 = vmax.f32 %v2713, %v2714
    %v2716 = vsel %vm2701, %v2462, -inf
    %v2717 = vrot.slane %v2716, 4
    %v2718 = vmax.f32 %v2716, %v2717
    %v2719 = vrot.slane %v2718, 2
    %v2720 = vmax.f32 %v2718, %v2719
    %v2721 = vrot.slane %v2720, 1
    %v2722 = vmax.f32 %v2720, %v2721
    %v2723 = vsel %vm2701, %v2463, -inf
    %v2724 = vrot.slane %v2723, 4
    %v2725 = vmax.f32 %v2723, %v2724
    %v2726 = vrot.slane %v2725, 2
    %v2727 = vmax.f32 %v2725, %v2726
    %v2728 = vrot.slane %v2727, 1
    %v2729 = vmax.f32 %v2727, %v2728
    %v2730 = vsel %vm2701, %v2382, -inf
    %v2731 = vrot.slane %v2730, 4
    %v2732 = vmax.f32 %v2730, %v2731
    %v2733 = vrot.slane %v2732, 2
    %v2734 = vmax.f32 %v2732, %v2733
    %v2735 = vrot.slane %v2734, 1
    %v2736 = vmax.f32 %v2734, %v2735
    %v2737 = vsel %vm2701, %v2464, -inf
    %v2738 = vrot.slane %v2737, 4
    %v2739 = vmax.f32 %v2737, %v2738
    %v2740 = vrot.slane %v2739, 2
    %v2741 = vmax.f32 %v2739, %v2740
    %v2742 = vrot.slane %v2741, 1
    %v2743 = vmax.f32 %v2741, %v2742
    %v2744 = vsel %vm2701, %v2465, -inf
    %v2745 = vrot.slane %v2744, 4
    %v2746 = vmax.f32 %v2744, %v2745
    %v2747 = vrot.slane %v2746, 2
    %v2748 = vmax.f32 %v2746, %v2747
    %v2749 = vrot.slane %v2748, 1
    %v2750 = vmax.f32 %v2748, %v2749
    %v2751 = vsel %vm2701, %v2466, -inf
    %v2752 = vrot.slane %v2751, 4
    %v2753 = vmax.f32 %v2751, %v2752
    %v2754 = vrot.slane %v2753, 2
    %v2755 = vmax.f32 %v2753, %v2754
    %v2756 = vrot.slane %v2755, 1
    %v2757 = vmax.f32 %v2755, %v2756
    %v2758 = vsel %vm2701, %v2383, -inf
    %v2759 = vrot.slane %v2758, 4
    %v2760 = vmax.f32 %v2758, %v2759
    %v2761 = vrot.slane %v2760, 2
    %v2762 = vmax.f32 %v2760, %v2761
    %v2763 = vrot.slane %v2762, 1
    %v2764 = vmax.f32 %v2762, %v2763
    %v2765 = vsel %vm2701, %v2467, -inf
    %v2766 = vrot.slane %v2765, 4
    %v2767 = vmax.f32 %v2765, %v2766
    %v2768 = vrot.slane %v2767, 2
    %v2769 = vmax.f32 %v2767, %v2768
    %v2770 = vrot.slane %v2769, 1
    %v2771 = vmax.f32 %v2769, %v2770
    %v2772 = vsel %vm2701, %v2468, -inf
    %v2773 = vrot.slane %v2772, 4
    %v2774 = vmax.f32 %v2772, %v2773
    %v2775 = vrot.slane %v2774, 2
    %v2776 = vmax.f32 %v2774, %v2775
    %v2777 = vrot.slane %v2776, 1
    %v2778 = vmax.f32 %v2776, %v2777
    %v2779 = vsel %vm2701, %v2469, -inf
    %v2780 = vrot.slane %v2779, 4
    %v2781 = vmax.f32 %v2779, %v2780
    %v2782 = vrot.slane %v2781, 2
    %v2783 = vmax.f32 %v2781, %v2782
    %v2784 = vrot.slane %v2783, 1
    %v2785 = vmax.f32 %v2783, %v2784
    %v2786 = vsel %vm2701, %v2384, -inf
    %v2787 = vrot.slane %v2786, 4
    %v2788 = vmax.f32 %v2786, %v2787
    %v2789 = vrot.slane %v2788, 2
    %v2790 = vmax.f32 %v2788, %v2789
    %v2791 = vrot.slane %v2790, 1
    %v2792 = vmax.f32 %v2790, %v2791
    %v2793 = vsel %vm2701, %v2470, -inf
    %v2794 = vrot.slane %v2793, 4
    %v2795 = vmax.f32 %v2793, %v2794
    %v2796 = vrot.slane %v2795, 2
    %v2797 = vmax.f32 %v2795, %v2796
    %v2798 = vrot.slane %v2797, 1
    %v2799 = vmax.f32 %v2797, %v2798
    %v2800 = vsel %vm2701, %v2471, -inf
    %v2801 = vrot.slane %v2800, 4
    %v2802 = vmax.f32 %v2800, %v2801
    %v2803 = vrot.slane %v2802, 2
    %v2804 = vmax.f32 %v2802, %v2803
    %v2805 = vrot.slane %v2804, 1
    %v2806 = vmax.f32 %v2804, %v2805
    %v2807 = vsel %vm2701, %v2472, -inf
    %v2808 = vrot.slane %v2807, 4
    %v2809 = vmax.f32 %v2807, %v2808
    %v2810 = vrot.slane %v2809, 2
    %v2811 = vmax.f32 %v2809, %v2810
    %v2812 = vrot.slane %v2811, 1
    %v2813 = vmax.f32 %v2811, %v2812
    %v2814 = vsel %vm2701, %v2385, -inf
    %v2815 = vrot.slane %v2814, 4
    %v2816 = vmax.f32 %v2814, %v2815
    %v2817 = vrot.slane %v2816, 2
    %v2818 = vmax.f32 %v2816, %v2817
    %v2819 = vrot.slane %v2818, 1
    %v2820 = vmax.f32 %v2818, %v2819
    %v2821 = vsel %vm2701, %v2473, -inf
    %v2822 = vrot.slane %v2821, 4
    %v2823 = vmax.f32 %v2821, %v2822
    %v2824 = vrot.slane %v2823, 2
    %v2825 = vmax.f32 %v2823, %v2824
    %v2826 = vrot.slane %v2825, 1
    %v2827 = vmax.f32 %v2825, %v2826
    %v2828 = vsel %vm2701, %v2474, -inf
    %v2829 = vrot.slane %v2828, 4
    %v2830 = vmax.f32 %v2828, %v2829
    %v2831 = vrot.slane %v2830, 2
    %v2832 = vmax.f32 %v2830, %v2831
    %v2833 = vrot.slane %v2832, 1
    %v2834 = vmax.f32 %v2832, %v2833
    %v2835 = vsel %vm2701, %v2475, -inf
    %v2836 = vrot.slane %v2835, 4
    %v2837 = vmax.f32 %v2835, %v2836
    %v2838 = vrot.slane %v2837, 2
    %v2839 = vmax.f32 %v2837, %v2838
    %v2840 = vrot.slane %v2839, 1
    %v2841 = vmax.f32 %v2839, %v2840
    %v2842 = vsel %vm2701, %v2386, -inf
    %v2843 = vrot.slane %v2842, 4
    %v2844 = vmax.f32 %v2842, %v2843
    %v2845 = vrot.slane %v2844, 2
    %v2846 = vmax.f32 %v2844, %v2845
    %v2847 = vrot.slane %v2846, 1
    %v2848 = vmax.f32 %v2846, %v2847
    %v2849 = vsel %vm2701, %v2476, -inf
    %v2850 = vrot.slane %v2849, 4
    %v2851 = vmax.f32 %v2849, %v2850
    %v2852 = vrot.slane %v2851, 2
    %v2853 = vmax.f32 %v2851, %v2852
    %v2854 = vrot.slane %v2853, 1
    %v2855 = vmax.f32 %v2853, %v2854
    %v2856 = vsel %vm2701, %v2477, -inf
    %v2857 = vrot.slane %v2856, 4
    %v2858 = vmax.f32 %v2856, %v2857
    %v2859 = vrot.slane %v2858, 2
    %v2860 = vmax.f32 %v2858, %v2859
    %v2861 = vrot.slane %v2860, 1
    %v2862 = vmax.f32 %v2860, %v2861
    %v2863 = vsel %vm2701, %v2478, -inf
    %v2864 = vrot.slane %v2863, 4
    %v2865 = vmax.f32 %v2863, %v2864
    %v2866 = vrot.slane %v2865, 2
    %v2867 = vmax.f32 %v2865, %v2866
    %v2868 = vrot.slane %v2867, 1
    %v2869 = vmax.f32 %v2867, %v2868
    %v2870 = vsel %vm2701, %v2387, -inf
    %v2871 = vrot.slane %v2870, 4
    %v2872 = vmax.f32 %v2870, %v2871
    %v2873 = vrot.slane %v2872, 2
    %v2874 = vmax.f32 %v2872, %v2873
    %v2875 = vrot.slane %v2874, 1
    %v2876 = vmax.f32 %v2874, %v2875
    %v2877 = vsel %vm2701, %v2479, -inf
    %v2878 = vrot.slane %v2877, 4
    %v2879 = vmax.f32 %v2877, %v2878
    %v2880 = vrot.slane %v2879, 2
    %v2881 = vmax.f32 %v2879, %v2880
    %v2882 = vrot.slane %v2881, 1
    %v2883 = vmax.f32 %v2881, %v2882
    %v2884 = vsel %vm2701, %v2480, -inf
    %v2885 = vrot.slane %v2884, 4
    %v2886 = vmax.f32 %v2884, %v2885
    %v2887 = vrot.slane %v2886, 2
    %v2888 = vmax.f32 %v2886, %v2887
    %v2889 = vrot.slane %v2888, 1
    %v2890 = vmax.f32 %v2888, %v2889
    %v2891 = vsel %vm2701, %v2481, -inf
    %v2892 = vrot.slane %v2891, 4
    %v2893 = vmax.f32 %v2891, %v2892
    %v2894 = vrot.slane %v2893, 2
    %v2895 = vmax.f32 %v2893, %v2894
    %v2896 = vrot.slane %v2895, 1
    %v2897 = vmax.f32 %v2895, %v2896
    %v2898 = vsel %vm2701, %v2388, -inf
    %v2899 = vrot.slane %v2898, 4
    %v2900 = vmax.f32 %v2898, %v2899
    %v2901 = vrot.slane %v2900, 2
    %v2902 = vmax.f32 %v2900, %v2901
    %v2903 = vrot.slane %v2902, 1
    %v2904 = vmax.f32 %v2902, %v2903
    %v2905 = vsel %vm2701, %v2482, -inf
    %v2906 = vrot.slane %v2905, 4
    %v2907 = vmax.f32 %v2905, %v2906
    %v2908 = vrot.slane %v2907, 2
    %v2909 = vmax.f32 %v2907, %v2908
    %v2910 = vrot.slane %v2909, 1
    %v2911 = vmax.f32 %v2909, %v2910
    %v2912 = vsel %vm2701, %v2483, -inf
    %v2913 = vrot.slane %v2912, 4
    %v2914 = vmax.f32 %v2912, %v2913
    %v2915 = vrot.slane %v2914, 2
    %v2916 = vmax.f32 %v2914, %v2915
    %v2917 = vrot.slane %v2916, 1
    %v2918 = vmax.f32 %v2916, %v2917
    %v2919 = vsel %vm2701, %v2484, -inf
    %v2920 = vrot.slane %v2919, 4
    %v2921 = vmax.f32 %v2919, %v2920
    %v2922 = vrot.slane %v2921, 2
    %v2923 = vmax.f32 %v2921, %v2922
    %v2924 = vrot.slane %v2923, 1
    %v2925 = vmax.f32 %v2923, %v2924
    %v2926 = vsel %vm2701, %v2389, -inf
    %v2927 = vrot.slane %v2926, 4
    %v2928 = vmax.f32 %v2926, %v2927
    %v2929 = vrot.slane %v2928, 2
    %v2930 = vmax.f32 %v2928, %v2929
    %v2931 = vrot.slane %v2930, 1
    %v2932 = vmax.f32 %v2930, %v2931
    %v2933 = vsel %vm2701, %v2485, -inf
    %v2934 = vrot.slane %v2933, 4
    %v2935 = vmax.f32 %v2933, %v2934
    %v2936 = vrot.slane %v2935, 2
    %v2937 = vmax.f32 %v2935, %v2936
    %v2938 = vrot.slane %v2937, 1
    %v2939 = vmax.f32 %v2937, %v2938
    %v2940 = vsel %vm2701, %v2486, -inf
    %v2941 = vrot.slane %v2940, 4
    %v2942 = vmax.f32 %v2940, %v2941
    %v2943 = vrot.slane %v2942, 2
    %v2944 = vmax.f32 %v2942, %v2943
    %v2945 = vrot.slane %v2944, 1
    %v2946 = vmax.f32 %v2944, %v2945
    %v2947 = vsel %vm2701, %v2487, -inf
    %v2948 = vrot.slane %v2947, 4
    %v2949 = vmax.f32 %v2947, %v2948
    %v2950 = vrot.slane %v2949, 2
    %v2951 = vmax.f32 %v2949, %v2950
    %v2952 = vrot.slane %v2951, 1
    %v2953 = vmax.f32 %v2951, %v2952
    %v2954 = vsel %vm2701, %v2390, -inf
    %v2955 = vrot.slane %v2954, 4
    %v2956 = vmax.f32 %v2954, %v2955
    %v2957 = vrot.slane %v2956, 2
    %v2958 = vmax.f32 %v2956, %v2957
    %v2959 = vrot.slane %v2958, 1
    %v2960 = vmax.f32 %v2958, %v2959
    %v2961 = vsel %vm2701, %v2488, -inf
    %v2962 = vrot.slane %v2961, 4
    %v2963 = vmax.f32 %v2961, %v2962
    %v2964 = vrot.slane %v2963, 2
    %v2965 = vmax.f32 %v2963, %v2964
    %v2966 = vrot.slane %v2965, 1
    %v2967 = vmax.f32 %v2965, %v2966
    %v2968 = vsel %vm2701, %v2489, -inf
    %v2969 = vrot.slane %v2968, 4
    %v2970 = vmax.f32 %v2968, %v2969
    %v2971 = vrot.slane %v2970, 2
    %v2972 = vmax.f32 %v2970, %v2971
    %v2973 = vrot.slane %v2972, 1
    %v2974 = vmax.f32 %v2972, %v2973
    %v2975 = vsel %vm2701, %v2490, -inf
    %v2976 = vrot.slane %v2975, 4
    %v2977 = vmax.f32 %v2975, %v2976
    %v2978 = vrot.slane %v2977, 2
    %v2979 = vmax.f32 %v2977, %v2978
    %v2980 = vrot.slane %v2979, 1
    %v2981 = vmax.f32 %v2979, %v2980
    %v2982 = vsel %vm2701, %v2391, -inf
    %v2983 = vrot.slane %v2982, 4
    %v2984 = vmax.f32 %v2982, %v2983
    %v2985 = vrot.slane %v2984, 2
    %v2986 = vmax.f32 %v2984, %v2985
    %v2987 = vrot.slane %v2986, 1
    %v2988 = vmax.f32 %v2986, %v2987
    %v2989 = vsel %vm2701, %v2491, -inf
    %v2990 = vrot.slane %v2989, 4
    %v2991 = vmax.f32 %v2989, %v2990
    %v2992 = vrot.slane %v2991, 2
    %v2993 = vmax.f32 %v2991, %v2992
    %v2994 = vrot.slane %v2993, 1
    %v2995 = vmax.f32 %v2993, %v2994
    %v2996 = vsel %vm2701, %v2492, -inf
    %v2997 = vrot.slane %v2996, 4
    %v2998 = vmax.f32 %v2996, %v2997
    %v2999 = vrot.slane %v2998, 2
    %v3000 = vmax.f32 %v2998, %v2999
    %v3001 = vrot.slane %v3000, 1
    %v3002 = vmax.f32 %v3000, %v3001
    %v3003 = vsel %vm2701, %v2493, -inf
    %v3004 = vrot.slane %v3003, 4
    %v3005 = vmax.f32 %v3003, %v3004
    %v3006 = vrot.slane %v3005, 2
    %v3007 = vmax.f32 %v3005, %v3006
    %v3008 = vrot.slane %v3007, 1
    %v3009 = vmax.f32 %v3007, %v3008
    %v3010 = vsel %vm2701, %v2392, -inf
    %v3011 = vrot.slane %v3010, 4
    %v3012 = vmax.f32 %v3010, %v3011
    %v3013 = vrot.slane %v3012, 2
    %v3014 = vmax.f32 %v3012, %v3013
    %v3015 = vrot.slane %v3014, 1
    %v3016 = vmax.f32 %v3014, %v3015
    %v3017 = vsel %vm2701, %v2494, -inf
    %v3018 = vrot.slane %v3017, 4
    %v3019 = vmax.f32 %v3017, %v3018
    %v3020 = vrot.slane %v3019, 2
    %v3021 = vmax.f32 %v3019, %v3020
    %v3022 = vrot.slane %v3021, 1
    %v3023 = vmax.f32 %v3021, %v3022
    %v3024 = vsel %vm2701, %v2495, -inf
    %v3025 = vrot.slane %v3024, 4
    %v3026 = vmax.f32 %v3024, %v3025
    %v3027 = vrot.slane %v3026, 2
    %v3028 = vmax.f32 %v3026, %v3027
    %v3029 = vrot.slane %v3028, 1
    %v3030 = vmax.f32 %v3028, %v3029
    %v3031 = vsel %vm2701, %v2496, -inf
    %v3032 = vrot.slane %v3031, 4
    %v3033 = vmax.f32 %v3031, %v3032
    %v3034 = vrot.slane %v3033, 2
    %v3035 = vmax.f32 %v3033, %v3034
    %v3036 = vrot.slane %v3035, 1
    %v3037 = vmax.f32 %v3035, %v3036
    %v3038 = vsel %vm2701, %v2393, -inf
    %v3039 = vrot.slane %v3038, 4
    %v3040 = vmax.f32 %v3038, %v3039
    %v3041 = vrot.slane %v3040, 2
    %v3042 = vmax.f32 %v3040, %v3041
    %v3043 = vrot.slane %v3042, 1
    %v3044 = vmax.f32 %v3042, %v3043
    %v3045 = vsel %vm2701, %v2497, -inf
    %v3046 = vrot.slane %v3045, 4
    %v3047 = vmax.f32 %v3045, %v3046
    %v3048 = vrot.slane %v3047, 2
    %v3049 = vmax.f32 %v3047, %v3048
    %v3050 = vrot.slane %v3049, 1
    %v3051 = vmax.f32 %v3049, %v3050
    %v3052 = vsel %vm2701, %v2498, -inf
    %v3053 = vrot.slane %v3052, 4
    %v3054 = vmax.f32 %v3052, %v3053
    %v3055 = vrot.slane %v3054, 2
    %v3056 = vmax.f32 %v3054, %v3055
    %v3057 = vrot.slane %v3056, 1
    %v3058 = vmax.f32 %v3056, %v3057
    %v3059 = vsel %vm2701, %v2499, -inf
    %v3060 = vrot.slane %v3059, 4
    %v3061 = vmax.f32 %v3059, %v3060
    %v3062 = vrot.slane %v3061, 2
    %v3063 = vmax.f32 %v3061, %v3062
    %v3064 = vrot.slane %v3063, 1
    %v3065 = vmax.f32 %v3063, %v3064
    %v3066 = vsel %vm2701, %v2394, -inf
    %v3067 = vrot.slane %v3066, 4
    %v3068 = vmax.f32 %v3066, %v3067
    %v3069 = vrot.slane %v3068, 2
    %v3070 = vmax.f32 %v3068, %v3069
    %v3071 = vrot.slane %v3070, 1
    %v3072 = vmax.f32 %v3070, %v3071
    %v3073 = vsel %vm2701, %v2500, -inf
    %v3074 = vrot.slane %v3073, 4
    %v3075 = vmax.f32 %v3073, %v3074
    %v3076 = vrot.slane %v3075, 2
    %v3077 = vmax.f32 %v3075, %v3076
    %v3078 = vrot.slane %v3077, 1
    %v3079 = vmax.f32 %v3077, %v3078
    %v3080 = vsel %vm2701, %v2501, -inf
    %v3081 = vrot.slane %v3080, 4
    %v3082 = vmax.f32 %v3080, %v3081
    %v3083 = vrot.slane %v3082, 2
    %v3084 = vmax.f32 %v3082, %v3083
    %v3085 = vrot.slane %v3084, 1
    %v3086 = vmax.f32 %v3084, %v3085
    %v3087 = vsel %vm2701, %v2502, -inf
    %v3088 = vrot.slane %v3087, 4
    %v3089 = vmax.f32 %v3087, %v3088
    %v3090 = vrot.slane %v3089, 2
    %v3091 = vmax.f32 %v3089, %v3090
    %v3092 = vrot.slane %v3091, 1
    %v3093 = vmax.f32 %v3091, %v3092
    %v3094 = vsel %vm2701, %v2395, -inf
    %v3095 = vrot.slane %v3094, 4
    %v3096 = vmax.f32 %v3094, %v3095
    %v3097 = vrot.slane %v3096, 2
    %v3098 = vmax.f32 %v3096, %v3097
    %v3099 = vrot.slane %v3098, 1
    %v3100 = vmax.f32 %v3098, %v3099
    %v3101 = vsel %vm2701, %v2503, -inf
    %v3102 = vrot.slane %v3101, 4
    %v3103 = vmax.f32 %v3101, %v3102
    %v3104 = vrot.slane %v3103, 2
    %v3105 = vmax.f32 %v3103, %v3104
    %v3106 = vrot.slane %v3105, 1
    %v3107 = vmax.f32 %v3105, %v3106
    %v3108 = vsel %vm2701, %v2504, -inf
    %v3109 = vrot.slane %v3108, 4
    %v3110 = vmax.f32 %v3108, %v3109
    %v3111 = vrot.slane %v3110, 2
    %v3112 = vmax.f32 %v3110, %v3111
    %v3113 = vrot.slane %v3112, 1
    %v3114 = vmax.f32 %v3112, %v3113
    %v3115 = vsel %vm2701, %v2505, -inf
    %v3116 = vrot.slane %v3115, 4
    %v3117 = vmax.f32 %v3115, %v3116
    %v3118 = vrot.slane %v3117, 2
    %v3119 = vmax.f32 %v3117, %v3118
    %v3120 = vrot.slane %v3119, 1
    %v3121 = vmax.f32 %v3119, %v3120
    %v3122 = vsel %vm2701, %v2396, -inf
    %v3123 = vrot.slane %v3122, 4
    %v3124 = vmax.f32 %v3122, %v3123
    %v3125 = vrot.slane %v3124, 2
    %v3126 = vmax.f32 %v3124, %v3125
    %v3127 = vrot.slane %v3126, 1
    %v3128 = vmax.f32 %v3126, %v3127
    %v3129 = vsel %vm2701, %v2506, -inf
    %v3130 = vrot.slane %v3129, 4
    %v3131 = vmax.f32 %v3129, %v3130
    %v3132 = vrot.slane %v3131, 2
    %v3133 = vmax.f32 %v3131, %v3132
    %v3134 = vrot.slane %v3133, 1
    %v3135 = vmax.f32 %v3133, %v3134
    %v3136 = vsel %vm2701, %v2507, -inf
    %v3137 = vrot.slane %v3136, 4
    %v3138 = vmax.f32 %v3136, %v3137
    %v3139 = vrot.slane %v3138, 2
    %v3140 = vmax.f32 %v3138, %v3139
    %v3141 = vrot.slane %v3140, 1
    %v3142 = vmax.f32 %v3140, %v3141
    %v3143 = vsel %vm2701, %v2508, -inf
    %v3144 = vrot.slane %v3143, 4
    %v3145 = vmax.f32 %v3143, %v3144
    %v3146 = vrot.slane %v3145, 2
    %v3147 = vmax.f32 %v3145, %v3146
    %v3148 = vrot.slane %v3147, 1
    %v3149 = vmax.f32 %v3147, %v3148
    %v3150 = vsel %vm2701, %v2397, -inf
    %v3151 = vrot.slane %v3150, 4
    %v3152 = vmax.f32 %v3150, %v3151
    %v3153 = vrot.slane %v3152, 2
    %v3154 = vmax.f32 %v3152, %v3153
    %v3155 = vrot.slane %v3154, 1
    %v3156 = vmax.f32 %v3154, %v3155
    %v3157 = vsel %vm2701, %v2509, -inf
    %v3158 = vrot.slane %v3157, 4
    %v3159 = vmax.f32 %v3157, %v3158
    %v3160 = vrot.slane %v3159, 2
    %v3161 = vmax.f32 %v3159, %v3160
    %v3162 = vrot.slane %v3161, 1
    %v3163 = vmax.f32 %v3161, %v3162
    %v3164 = vsel %vm2701, %v2510, -inf
    %v3165 = vrot.slane %v3164, 4
    %v3166 = vmax.f32 %v3164, %v3165
    %v3167 = vrot.slane %v3166, 2
    %v3168 = vmax.f32 %v3166, %v3167
    %v3169 = vrot.slane %v3168, 1
    %v3170 = vmax.f32 %v3168, %v3169
    %v3171 = vsel %vm2701, %v2511, -inf
    %v3172 = vrot.slane %v3171, 4
    %v3173 = vmax.f32 %v3171, %v3172
    %v3174 = vrot.slane %v3173, 2
    %v3175 = vmax.f32 %v3173, %v3174
    %v3176 = vrot.slane %v3175, 1
    %v3177 = vmax.f32 %v3175, %v3176
    %v3178 = vsel %vm2701, %v2398, -inf
    %v3179 = vrot.slane %v3178, 4
    %v3180 = vmax.f32 %v3178, %v3179
    %v3181 = vrot.slane %v3180, 2
    %v3182 = vmax.f32 %v3180, %v3181
    %v3183 = vrot.slane %v3182, 1
    %v3184 = vmax.f32 %v3182, %v3183
    %v3185 = vsel %vm2701, %v2512, -inf
    %v3186 = vrot.slane %v3185, 4
    %v3187 = vmax.f32 %v3185, %v3186
    %v3188 = vrot.slane %v3187, 2
    %v3189 = vmax.f32 %v3187, %v3188
    %v3190 = vrot.slane %v3189, 1
    %v3191 = vmax.f32 %v3189, %v3190
    %v3192 = vsel %vm2701, %v2513, -inf
    %v3193 = vrot.slane %v3192, 4
    %v3194 = vmax.f32 %v3192, %v3193
    %v3195 = vrot.slane %v3194, 2
    %v3196 = vmax.f32 %v3194, %v3195
    %v3197 = vrot.slane %v3196, 1
    %v3198 = vmax.f32 %v3196, %v3197
    %v3199 = vsel %vm2701, %v2514, -inf
    %v3200 = vrot.slane %v3199, 4
    %v3201 = vmax.f32 %v3199, %v3200
    %v3202 = vrot.slane %v3201, 2
    %v3203 = vmax.f32 %v3201, %v3202
    %v3204 = vrot.slane %v3203, 1
    %v3205 = vmax.f32 %v3203, %v3204
    %v3206 = vsel %vm2701, %v2399, -inf
    %v3207 = vrot.slane %v3206, 4
    %v3208 = vmax.f32 %v3206, %v3207
    %v3209 = vrot.slane %v3208, 2
    %v3210 = vmax.f32 %v3208, %v3209
    %v3211 = vrot.slane %v3210, 1
    %v3212 = vmax.f32 %v3210, %v3211
    %v3213 = vsel %vm2701, %v2515, -inf
    %v3214 = vrot.slane %v3213, 4
    %v3215 = vmax.f32 %v3213, %v3214
    %v3216 = vrot.slane %v3215, 2
    %v3217 = vmax.f32 %v3215, %v3216
    %v3218 = vrot.slane %v3217, 1
    %v3219 = vmax.f32 %v3217, %v3218
    %v3220 = vsel %vm2701, %v2516, -inf
    %v3221 = vrot.slane %v3220, 4
    %v3222 = vmax.f32 %v3220, %v3221
    %v3223 = vrot.slane %v3222, 2
    %v3224 = vmax.f32 %v3222, %v3223
    %v3225 = vrot.slane %v3224, 1
    %v3226 = vmax.f32 %v3224, %v3225
    %v3227 = vsel %vm2701, %v2517, -inf
    %v3228 = vrot.slane %v3227, 4
    %v3229 = vmax.f32 %v3227, %v3228
    %v3230 = vrot.slane %v3229, 2
    %v3231 = vmax.f32 %v3229, %v3230
    %v3232 = vrot.slane %v3231, 1
    %v3233 = vmax.f32 %v3231, %v3232
    %v3234 = vsel %vm2701, %v2400, -inf
    %v3235 = vrot.slane %v3234, 4
    %v3236 = vmax.f32 %v3234, %v3235
    %v3237 = vrot.slane %v3236, 2
    %v3238 = vmax.f32 %v3236, %v3237
    %v3239 = vrot.slane %v3238, 1
    %v3240 = vmax.f32 %v3238, %v3239
    %v3241 = vsel %vm2701, %v2518, -inf
    %v3242 = vrot.slane %v3241, 4
    %v3243 = vmax.f32 %v3241, %v3242
    %v3244 = vrot.slane %v3243, 2
    %v3245 = vmax.f32 %v3243, %v3244
    %v3246 = vrot.slane %v3245, 1
    %v3247 = vmax.f32 %v3245, %v3246
    %v3248 = vsel %vm2701, %v2519, -inf
    %v3249 = vrot.slane %v3248, 4
    %v3250 = vmax.f32 %v3248, %v3249
    %v3251 = vrot.slane %v3250, 2
    %v3252 = vmax.f32 %v3250, %v3251
    %v3253 = vrot.slane %v3252, 1
    %v3254 = vmax.f32 %v3252, %v3253
    %v3255 = vsel %vm2701, %v2520, -inf
    %v3256 = vrot.slane %v3255, 4
    %v3257 = vmax.f32 %v3255, %v3256
    %v3258 = vrot.slane %v3257, 2
    %v3259 = vmax.f32 %v3257, %v3258
    %v3260 = vrot.slane %v3259, 1
    %v3261 = vmax.f32 %v3259, %v3260
    %v3262 = vsel %vm2701, %v2401, -inf
    %v3263 = vrot.slane %v3262, 4
    %v3264 = vmax.f32 %v3262, %v3263
    %v3265 = vrot.slane %v3264, 2
    %v3266 = vmax.f32 %v3264, %v3265
    %v3267 = vrot.slane %v3266, 1
    %v3268 = vmax.f32 %v3266, %v3267
    %v3269 = vsel %vm2701, %v2521, -inf
    %v3270 = vrot.slane %v3269, 4
    %v3271 = vmax.f32 %v3269, %v3270
    %v3272 = vrot.slane %v3271, 2
    %v3273 = vmax.f32 %v3271, %v3272
    %v3274 = vrot.slane %v3273, 1
    %v3275 = vmax.f32 %v3273, %v3274
    %v3276 = vsel %vm2701, %v2522, -inf
    %v3277 = vrot.slane %v3276, 4
    %v3278 = vmax.f32 %v3276, %v3277
    %v3279 = vrot.slane %v3278, 2
    %v3280 = vmax.f32 %v3278, %v3279
    %v3281 = vrot.slane %v3280, 1
    %v3282 = vmax.f32 %v3280, %v3281
    %v3283 = vsel %vm2701, %v2523, -inf
    %v3284 = vrot.slane %v3283, 4
    %v3285 = vmax.f32 %v3283, %v3284
    %v3286 = vrot.slane %v3285, 2
    %v3287 = vmax.f32 %v3285, %v3286
    %v3288 = vrot.slane %v3287, 1
    %v3289 = vmax.f32 %v3287, %v3288
    %v3290 = vsel %vm2701, %v2402, -inf
    %v3291 = vrot.slane %v3290, 4
    %v3292 = vmax.f32 %v3290, %v3291
    %v3293 = vrot.slane %v3292, 2
    %v3294 = vmax.f32 %v3292, %v3293
    %v3295 = vrot.slane %v3294, 1
    %v3296 = vmax.f32 %v3294, %v3295
    %v3297 = vsel %vm2701, %v2524, -inf
    %v3298 = vrot.slane %v3297, 4
    %v3299 = vmax.f32 %v3297, %v3298
    %v3300 = vrot.slane %v3299, 2
    %v3301 = vmax.f32 %v3299, %v3300
    %v3302 = vrot.slane %v3301, 1
    %v3303 = vmax.f32 %v3301, %v3302
    %v3304 = vsel %vm2701, %v2525, -inf
    %v3305 = vrot.slane %v3304, 4
    %v3306 = vmax.f32 %v3304, %v3305
    %v3307 = vrot.slane %v3306, 2
    %v3308 = vmax.f32 %v3306, %v3307
    %v3309 = vrot.slane %v3308, 1
    %v3310 = vmax.f32 %v3308, %v3309
    %v3311 = vsel %vm2701, %v2526, -inf
    %v3312 = vrot.slane %v3311, 4
    %v3313 = vmax.f32 %v3311, %v3312
    %v3314 = vrot.slane %v3313, 2
    %v3315 = vmax.f32 %v3313, %v3314
    %v3316 = vrot.slane %v3315, 1
    %v3317 = vmax.f32 %v3315, %v3316
    %v3318 = vsel %vm2701, %v2403, -inf
    %v3319 = vrot.slane %v3318, 4
    %v3320 = vmax.f32 %v3318, %v3319
    %v3321 = vrot.slane %v3320, 2
    %v3322 = vmax.f32 %v3320, %v3321
    %v3323 = vrot.slane %v3322, 1
    %v3324 = vmax.f32 %v3322, %v3323
    %v3325 = vsel %vm2701, %v2527, -inf
    %v3326 = vrot.slane %v3325, 4
    %v3327 = vmax.f32 %v3325, %v3326
    %v3328 = vrot.slane %v3327, 2
    %v3329 = vmax.f32 %v3327, %v3328
    %v3330 = vrot.slane %v3329, 1
    %v3331 = vmax.f32 %v3329, %v3330
    %v3332 = vsel %vm2701, %v2528, -inf
    %v3333 = vrot.slane %v3332, 4
    %v3334 = vmax.f32 %v3332, %v3333
    %v3335 = vrot.slane %v3334, 2
    %v3336 = vmax.f32 %v3334, %v3335
    %v3337 = vrot.slane %v3336, 1
    %v3338 = vmax.f32 %v3336, %v3337
    %v3339 = vsel %vm2701, %v2529, -inf
    %v3340 = vrot.slane %v3339, 4
    %v3341 = vmax.f32 %v3339, %v3340
    %v3342 = vrot.slane %v3341, 2
    %v3343 = vmax.f32 %v3341, %v3342
    %v3344 = vrot.slane %v3343, 1
    %v3345 = vmax.f32 %v3343, %v3344
    %v3346 = vsel %vm2701, %v2404, -inf
    %v3347 = vrot.slane %v3346, 4
    %v3348 = vmax.f32 %v3346, %v3347
    %v3349 = vrot.slane %v3348, 2
    %v3350 = vmax.f32 %v3348, %v3349
    %v3351 = vrot.slane %v3350, 1
    %v3352 = vmax.f32 %v3350, %v3351
    %v3353 = vsel %vm2701, %v2530, -inf
    %v3354 = vrot.slane %v3353, 4
    %v3355 = vmax.f32 %v3353, %v3354
    %v3356 = vrot.slane %v3355, 2
    %v3357 = vmax.f32 %v3355, %v3356
    %v3358 = vrot.slane %v3357, 1
    %v3359 = vmax.f32 %v3357, %v3358
    %v3360 = vsel %vm2701, %v2531, -inf
    %v3361 = vrot.slane %v3360, 4
    %v3362 = vmax.f32 %v3360, %v3361
    %v3363 = vrot.slane %v3362, 2
    %v3364 = vmax.f32 %v3362, %v3363
    %v3365 = vrot.slane %v3364, 1
    %v3366 = vmax.f32 %v3364, %v3365
    %v3367 = vsel %vm2701, %v2532, -inf
    %v3368 = vrot.slane %v3367, 4
    %v3369 = vmax.f32 %v3367, %v3368
    %v3370 = vrot.slane %v3369, 2
    %v3371 = vmax.f32 %v3369, %v3370
    %v3372 = vrot.slane %v3371, 1
    %v3373 = vmax.f32 %v3371, %v3372
    %v3374 = vsel %vm2701, %v2405, -inf
    %v3375 = vrot.slane %v3374, 4
    %v3376 = vmax.f32 %v3374, %v3375
    %v3377 = vrot.slane %v3376, 2
    %v3378 = vmax.f32 %v3376, %v3377
    %v3379 = vrot.slane %v3378, 1
    %v3380 = vmax.f32 %v3378, %v3379
    %v3381 = vsel %vm2701, %v2533, -inf
    %v3382 = vrot.slane %v3381, 4
    %v3383 = vmax.f32 %v3381, %v3382
    %v3384 = vrot.slane %v3383, 2
    %v3385 = vmax.f32 %v3383, %v3384
    %v3386 = vrot.slane %v3385, 1
    %v3387 = vmax.f32 %v3385, %v3386
    %v3388 = vsel %vm2701, %v2534, -inf
    %v3389 = vrot.slane %v3388, 4
    %v3390 = vmax.f32 %v3388, %v3389
    %v3391 = vrot.slane %v3390, 2
    %v3392 = vmax.f32 %v3390, %v3391
    %v3393 = vrot.slane %v3392, 1
    %v3394 = vmax.f32 %v3392, %v3393
    %v3395 = vsel %vm2701, %v2535, -inf
    %v3396 = vrot.slane %v3395, 4
    %v3397 = vmax.f32 %v3395, %v3396
    %v3398 = vrot.slane %v3397, 2
    %v3399 = vmax.f32 %v3397, %v3398
    %v3400 = vrot.slane %v3399, 1
    %v3401 = vmax.f32 %v3399, %v3400
    %v3402 = vsel %vm2701, %v2406, -inf
    %v3403 = vrot.slane %v3402, 4
    %v3404 = vmax.f32 %v3402, %v3403
    %v3405 = vrot.slane %v3404, 2
    %v3406 = vmax.f32 %v3404, %v3405
    %v3407 = vrot.slane %v3406, 1
    %v3408 = vmax.f32 %v3406, %v3407
    %v3409 = vsel %vm2701, %v2536, -inf
    %v3410 = vrot.slane %v3409, 4
    %v3411 = vmax.f32 %v3409, %v3410
    %v3412 = vrot.slane %v3411, 2
    %v3413 = vmax.f32 %v3411, %v3412
    %v3414 = vrot.slane %v3413, 1
    %v3415 = vmax.f32 %v3413, %v3414
    %v3416 = vsel %vm2701, %v2537, -inf
    %v3417 = vrot.slane %v3416, 4
    %v3418 = vmax.f32 %v3416, %v3417
    %v3419 = vrot.slane %v3418, 2
    %v3420 = vmax.f32 %v3418, %v3419
    %v3421 = vrot.slane %v3420, 1
    %v3422 = vmax.f32 %v3420, %v3421
    %v3423 = vsel %vm2701, %v2538, -inf
    %v3424 = vrot.slane %v3423, 4
    %v3425 = vmax.f32 %v3423, %v3424
    %v3426 = vrot.slane %v3425, 2
    %v3427 = vmax.f32 %v3425, %v3426
    %v3428 = vrot.slane %v3427, 1
    %v3429 = vmax.f32 %v3427, %v3428
    %v3430 = vsel %vm2701, %v2407, -inf
    %v3431 = vrot.slane %v3430, 4
    %v3432 = vmax.f32 %v3430, %v3431
    %v3433 = vrot.slane %v3432, 2
    %v3434 = vmax.f32 %v3432, %v3433
    %v3435 = vrot.slane %v3434, 1
    %v3436 = vmax.f32 %v3434, %v3435
    %v3437 = vsel %vm2701, %v2539, -inf
    %v3438 = vrot.slane %v3437, 4
    %v3439 = vmax.f32 %v3437, %v3438
    %v3440 = vrot.slane %v3439, 2
    %v3441 = vmax.f32 %v3439, %v3440
    %v3442 = vrot.slane %v3441, 1
    %v3443 = vmax.f32 %v3441, %v3442
    %v3444 = vsel %vm2701, %v2540, -inf
    %v3445 = vrot.slane %v3444, 4
    %v3446 = vmax.f32 %v3444, %v3445
    %v3447 = vrot.slane %v3446, 2
    %v3448 = vmax.f32 %v3446, %v3447
    %v3449 = vrot.slane %v3448, 1
    %v3450 = vmax.f32 %v3448, %v3449
    %v3451 = vsel %vm2701, %v2541, -inf
    %v3452 = vrot.slane %v3451, 4
    %v3453 = vmax.f32 %v3451, %v3452
    %v3454 = vrot.slane %v3453, 2
    %v3455 = vmax.f32 %v3453, %v3454
    %v3456 = vrot.slane %v3455, 1
    %v3457 = vmax.f32 %v3455, %v3456
    %v3458 = vsel %vm2701, %v2408, -inf
    %v3459 = vrot.slane %v3458, 4
    %v3460 = vmax.f32 %v3458, %v3459
    %v3461 = vrot.slane %v3460, 2
    %v3462 = vmax.f32 %v3460, %v3461
    %v3463 = vrot.slane %v3462, 1
    %v3464 = vmax.f32 %v3462, %v3463
    %v3465 = vsel %vm2701, %v2542, -inf
    %v3466 = vrot.slane %v3465, 4
    %v3467 = vmax.f32 %v3465, %v3466
    %v3468 = vrot.slane %v3467, 2
    %v3469 = vmax.f32 %v3467, %v3468
    %v3470 = vrot.slane %v3469, 1
    %v3471 = vmax.f32 %v3469, %v3470
    %v3472 = vsel %vm2701, %v2543, -inf
    %v3473 = vrot.slane %v3472, 4
    %v3474 = vmax.f32 %v3472, %v3473
    %v3475 = vrot.slane %v3474, 2
    %v3476 = vmax.f32 %v3474, %v3475
    %v3477 = vrot.slane %v3476, 1
    %v3478 = vmax.f32 %v3476, %v3477
    %v3479 = vsel %vm2701, %v2544, -inf
    %v3480 = vrot.slane %v3479, 4
    %v3481 = vmax.f32 %v3479, %v3480
    %v3482 = vrot.slane %v3481, 2
    %v3483 = vmax.f32 %v3481, %v3482
    %v3484 = vrot.slane %v3483, 1
    %v3485 = vmax.f32 %v3483, %v3484
    %v3486 = vsel %vm2701, %v2409, -inf
    %v3487 = vrot.slane %v3486, 4
    %v3488 = vmax.f32 %v3486, %v3487
    %v3489 = vrot.slane %v3488, 2
    %v3490 = vmax.f32 %v3488, %v3489
    %v3491 = vrot.slane %v3490, 1
    %v3492 = vmax.f32 %v3490, %v3491
    %v3493 = vsel %vm2701, %v2545, -inf
    %v3494 = vrot.slane %v3493, 4
    %v3495 = vmax.f32 %v3493, %v3494
    %v3496 = vrot.slane %v3495, 2
    %v3497 = vmax.f32 %v3495, %v3496
    %v3498 = vrot.slane %v3497, 1
    %v3499 = vmax.f32 %v3497, %v3498
    %v3500 = vsel %vm2701, %v2546, -inf
    %v3501 = vrot.slane %v3500, 4
    %v3502 = vmax.f32 %v3500, %v3501
    %v3503 = vrot.slane %v3502, 2
    %v3504 = vmax.f32 %v3502, %v3503
    %v3505 = vrot.slane %v3504, 1
    %v3506 = vmax.f32 %v3504, %v3505
    %v3507 = vsel %vm2701, %v2547, -inf
    %v3508 = vrot.slane %v3507, 4
    %v3509 = vmax.f32 %v3507, %v3508
    %v3510 = vrot.slane %v3509, 2
    %v3511 = vmax.f32 %v3509, %v3510
    %v3512 = vrot.slane %v3511, 1
    %v3513 = vmax.f32 %v3511, %v3512
    %v3514 = vsel %vm2701, %v2410, -inf
    %v3515 = vrot.slane %v3514, 4
    %v3516 = vmax.f32 %v3514, %v3515
    %v3517 = vrot.slane %v3516, 2
    %v3518 = vmax.f32 %v3516, %v3517
    %v3519 = vrot.slane %v3518, 1
    %v3520 = vmax.f32 %v3518, %v3519
    %v3521 = vsel %vm2701, %v2548, -inf
    %v3522 = vrot.slane %v3521, 4
    %v3523 = vmax.f32 %v3521, %v3522
    %v3524 = vrot.slane %v3523, 2
    %v3525 = vmax.f32 %v3523, %v3524
    %v3526 = vrot.slane %v3525, 1
    %v3527 = vmax.f32 %v3525, %v3526
    %v3528 = vsel %vm2701, %v2549, -inf
    %v3529 = vrot.slane %v3528, 4
    %v3530 = vmax.f32 %v3528, %v3529
    %v3531 = vrot.slane %v3530, 2
    %v3532 = vmax.f32 %v3530, %v3531
    %v3533 = vrot.slane %v3532, 1
    %v3534 = vmax.f32 %v3532, %v3533
    %v3535 = vsel %vm2701, %v2550, -inf
    %v3536 = vrot.slane %v3535, 4
    %v3537 = vmax.f32 %v3535, %v3536
    %v3538 = vrot.slane %v3537, 2
    %v3539 = vmax.f32 %v3537, %v3538
    %v3540 = vrot.slane %v3539, 1
    %v3541 = vmax.f32 %v3539, %v3540
    %v3542 = vsel %vm2701, %v2411, -inf
    %v3543 = vrot.slane %v3542, 4
    %v3544 = vmax.f32 %v3542, %v3543
    %v3545 = vrot.slane %v3544, 2
    %v3546 = vmax.f32 %v3544, %v3545
    %v3547 = vrot.slane %v3546, 1
    %v3548 = vmax.f32 %v3546, %v3547
    %v3549 = vsel %vm2701, %v2551, -inf
    %v3550 = vrot.slane %v3549, 4
    %v3551 = vmax.f32 %v3549, %v3550
    %v3552 = vrot.slane %v3551, 2
    %v3553 = vmax.f32 %v3551, %v3552
    %v3554 = vrot.slane %v3553, 1
    %v3555 = vmax.f32 %v3553, %v3554
    %v3556 = vsel %vm2701, %v2552, -inf
    %v3557 = vrot.slane %v3556, 4
    %v3558 = vmax.f32 %v3556, %v3557
    %v3559 = vrot.slane %v3558, 2
    %v3560 = vmax.f32 %v3558, %v3559
    %v3561 = vrot.slane %v3560, 1
    %v3562 = vmax.f32 %v3560, %v3561
    %v3563 = vsel %vm2701, %v2553, -inf
    %v3564 = vrot.slane %v3563, 4
    %v3565 = vmax.f32 %v3563, %v3564
    %v3566 = vrot.slane %v3565, 2
    %v3567 = vmax.f32 %v3565, %v3566
    %v3568 = vrot.slane %v3567, 1
    %v3569 = vmax.f32 %v3567, %v3568
    %v3570 = vsel %vm2701, %v2412, -inf
    %v3571 = vrot.slane %v3570, 4
    %v3572 = vmax.f32 %v3570, %v3571
    %v3573 = vrot.slane %v3572, 2
    %v3574 = vmax.f32 %v3572, %v3573
    %v3575 = vrot.slane %v3574, 1
    %v3576 = vmax.f32 %v3574, %v3575
    %v3577 = vsel %vm2701, %v2554, -inf
    %v3578 = vrot.slane %v3577, 4
    %v3579 = vmax.f32 %v3577, %v3578
    %v3580 = vrot.slane %v3579, 2
    %v3581 = vmax.f32 %v3579, %v3580
    %v3582 = vrot.slane %v3581, 1
    %v3583 = vmax.f32 %v3581, %v3582
    %v3584 = vsel %vm2701, %v2555, -inf
    %v3585 = vrot.slane %v3584, 4
    %v3586 = vmax.f32 %v3584, %v3585
    %v3587 = vrot.slane %v3586, 2
    %v3588 = vmax.f32 %v3586, %v3587
    %v3589 = vrot.slane %v3588, 1
    %v3590 = vmax.f32 %v3588, %v3589
    %v3591 = vsel %vm2701, %v2556, -inf
    %v3592 = vrot.slane %v3591, 4
    %v3593 = vmax.f32 %v3591, %v3592
    %v3594 = vrot.slane %v3593, 2
    %v3595 = vmax.f32 %v3593, %v3594
    %v3596 = vrot.slane %v3595, 1
    %v3597 = vmax.f32 %v3595, %v3596
    %v3598 = vsel %vm2701, %v2413, -inf
    %v3599 = vrot.slane %v3598, 4
    %v3600 = vmax.f32 %v3598, %v3599
    %v3601 = vrot.slane %v3600, 2
    %v3602 = vmax.f32 %v3600, %v3601
    %v3603 = vrot.slane %v3602, 1
    %v3604 = vmax.f32 %v3602, %v3603
    %v3605 = vsel %vm2701, %v2557, -inf
    %v3606 = vrot.slane %v3605, 4
    %v3607 = vmax.f32 %v3605, %v3606
    %v3608 = vrot.slane %v3607, 2
    %v3609 = vmax.f32 %v3607, %v3608
    %v3610 = vrot.slane %v3609, 1
    %v3611 = vmax.f32 %v3609, %v3610
    %v3612 = vsel %vm2701, %v2558, -inf
    %v3613 = vrot.slane %v3612, 4
    %v3614 = vmax.f32 %v3612, %v3613
    %v3615 = vrot.slane %v3614, 2
    %v3616 = vmax.f32 %v3614, %v3615
    %v3617 = vrot.slane %v3616, 1
    %v3618 = vmax.f32 %v3616, %v3617
    %v3619 = vsel %vm2701, %v2559, -inf
    %v3620 = vrot.slane %v3619, 4
    %v3621 = vmax.f32 %v3619, %v3620
    %v3622 = vrot.slane %v3621, 2
    %v3623 = vmax.f32 %v3621, %v3622
    %v3624 = vrot.slane %v3623, 1
    %v3625 = vmax.f32 %v3623, %v3624
    %v3626 = vsel %vm2701, %v2414, -inf
    %v3627 = vrot.slane %v3626, 4
    %v3628 = vmax.f32 %v3626, %v3627
    %v3629 = vrot.slane %v3628, 2
    %v3630 = vmax.f32 %v3628, %v3629
    %v3631 = vrot.slane %v3630, 1
    %v3632 = vmax.f32 %v3630, %v3631
    %v3633 = vsel %vm2701, %v2560, -inf
    %v3634 = vrot.slane %v3633, 4
    %v3635 = vmax.f32 %v3633, %v3634
    %v3636 = vrot.slane %v3635, 2
    %v3637 = vmax.f32 %v3635, %v3636
    %v3638 = vrot.slane %v3637, 1
    %v3639 = vmax.f32 %v3637, %v3638
    %v3640 = vsel %vm2701, %v2561, -inf
    %v3641 = vrot.slane %v3640, 4
    %v3642 = vmax.f32 %v3640, %v3641
    %v3643 = vrot.slane %v3642, 2
    %v3644 = vmax.f32 %v3642, %v3643
    %v3645 = vrot.slane %v3644, 1
    %v3646 = vmax.f32 %v3644, %v3645
    %v3647 = vsel %vm2701, %v2562, -inf
    %v3648 = vrot.slane %v3647, 4
    %v3649 = vmax.f32 %v3647, %v3648
    %v3650 = vrot.slane %v3649, 2
    %v3651 = vmax.f32 %v3649, %v3650
    %v3652 = vrot.slane %v3651, 1
    %v3653 = vmax.f32 %v3651, %v3652
    %v3654 = vsel %vm2701, %v2415, -inf
    %v3655 = vrot.slane %v3654, 4
    %v3656 = vmax.f32 %v3654, %v3655
    %v3657 = vrot.slane %v3656, 2
    %v3658 = vmax.f32 %v3656, %v3657
    %v3659 = vrot.slane %v3658, 1
    %v3660 = vmax.f32 %v3658, %v3659
    %v3661 = vsel %vm2701, %v2563, -inf
    %v3662 = vrot.slane %v3661, 4
    %v3663 = vmax.f32 %v3661, %v3662
    %v3664 = vrot.slane %v3663, 2
    %v3665 = vmax.f32 %v3663, %v3664
    %v3666 = vrot.slane %v3665, 1
    %v3667 = vmax.f32 %v3665, %v3666
    %v3668 = vsel %vm2701, %v2564, -inf
    %v3669 = vrot.slane %v3668, 4
    %v3670 = vmax.f32 %v3668, %v3669
    %v3671 = vrot.slane %v3670, 2
    %v3672 = vmax.f32 %v3670, %v3671
    %v3673 = vrot.slane %v3672, 1
    %v3674 = vmax.f32 %v3672, %v3673
    %v3675 = vsel %vm2701, %v2565, -inf
    %v3676 = vrot.slane %v3675, 4
    %v3677 = vmax.f32 %v3675, %v3676
    %v3678 = vrot.slane %v3677, 2
    %v3679 = vmax.f32 %v3677, %v3678
    %v3680 = vrot.slane %v3679, 1
    %v3681 = vmax.f32 %v3679, %v3680
    %v3682 = vsel %vm2701, %v2416, -inf
    %v3683 = vrot.slane %v3682, 4
    %v3684 = vmax.f32 %v3682, %v3683
    %v3685 = vrot.slane %v3684, 2
    %v3686 = vmax.f32 %v3684, %v3685
    %v3687 = vrot.slane %v3686, 1
    %v3688 = vmax.f32 %v3686, %v3687
    %v3689 = vsel %vm2701, %v2566, -inf
    %v3690 = vrot.slane %v3689, 4
    %v3691 = vmax.f32 %v3689, %v3690
    %v3692 = vrot.slane %v3691, 2
    %v3693 = vmax.f32 %v3691, %v3692
    %v3694 = vrot.slane %v3693, 1
    %v3695 = vmax.f32 %v3693, %v3694
    %v3696 = vsel %vm2701, %v2567, -inf
    %v3697 = vrot.slane %v3696, 4
    %v3698 = vmax.f32 %v3696, %v3697
    %v3699 = vrot.slane %v3698, 2
    %v3700 = vmax.f32 %v3698, %v3699
    %v3701 = vrot.slane %v3700, 1
    %v3702 = vmax.f32 %v3700, %v3701
    %v3703 = vsel %vm2701, %v2568, -inf
    %v3704 = vrot.slane %v3703, 4
    %v3705 = vmax.f32 %v3703, %v3704
    %v3706 = vrot.slane %v3705, 2
    %v3707 = vmax.f32 %v3705, %v3706
    %v3708 = vrot.slane %v3707, 1
    %v3709 = vmax.f32 %v3707, %v3708
    %v3710 = vsel %vm2701, %v2417, -inf
    %v3711 = vrot.slane %v3710, 4
    %v3712 = vmax.f32 %v3710, %v3711
    %v3713 = vrot.slane %v3712, 2
    %v3714 = vmax.f32 %v3712, %v3713
    %v3715 = vrot.slane %v3714, 1
    %v3716 = vmax.f32 %v3714, %v3715
    %v3717 = vsel %vm2701, %v2569, -inf
    %v3718 = vrot.slane %v3717, 4
    %v3719 = vmax.f32 %v3717, %v3718
    %v3720 = vrot.slane %v3719, 2
    %v3721 = vmax.f32 %v3719, %v3720
    %v3722 = vrot.slane %v3721, 1
    %v3723 = vmax.f32 %v3721, %v3722
    %v3724 = vsel %vm2701, %v2570, -inf
    %v3725 = vrot.slane %v3724, 4
    %v3726 = vmax.f32 %v3724, %v3725
    %v3727 = vrot.slane %v3726, 2
    %v3728 = vmax.f32 %v3726, %v3727
    %v3729 = vrot.slane %v3728, 1
    %v3730 = vmax.f32 %v3728, %v3729
    %v3731 = vsel %vm2701, %v2571, -inf
    %v3732 = vrot.slane %v3731, 4
    %v3733 = vmax.f32 %v3731, %v3732
    %v3734 = vrot.slane %v3733, 2
    %v3735 = vmax.f32 %v3733, %v3734
    %v3736 = vrot.slane %v3735, 1
    %v3737 = vmax.f32 %v3735, %v3736
    %v3738 = vsel %vm2701, %v2418, -inf
    %v3739 = vrot.slane %v3738, 4
    %v3740 = vmax.f32 %v3738, %v3739
    %v3741 = vrot.slane %v3740, 2
    %v3742 = vmax.f32 %v3740, %v3741
    %v3743 = vrot.slane %v3742, 1
    %v3744 = vmax.f32 %v3742, %v3743
    %v3745 = vsel %vm2701, %v2572, -inf
    %v3746 = vrot.slane %v3745, 4
    %v3747 = vmax.f32 %v3745, %v3746
    %v3748 = vrot.slane %v3747, 2
    %v3749 = vmax.f32 %v3747, %v3748
    %v3750 = vrot.slane %v3749, 1
    %v3751 = vmax.f32 %v3749, %v3750
    %v3752 = vsel %vm2701, %v2573, -inf
    %v3753 = vrot.slane %v3752, 4
    %v3754 = vmax.f32 %v3752, %v3753
    %v3755 = vrot.slane %v3754, 2
    %v3756 = vmax.f32 %v3754, %v3755
    %v3757 = vrot.slane %v3756, 1
    %v3758 = vmax.f32 %v3756, %v3757
    %v3759 = vsel %vm2701, %v2574, -inf
    %v3760 = vrot.slane %v3759, 4
    %v3761 = vmax.f32 %v3759, %v3760
    %v3762 = vrot.slane %v3761, 2
    %v3763 = vmax.f32 %v3761, %v3762
    %v3764 = vrot.slane %v3763, 1
    %v3765 = vmax.f32 %v3763, %v3764
    %v3766 = vsel %vm2701, %v2419, -inf
    %v3767 = vrot.slane %v3766, 4
    %v3768 = vmax.f32 %v3766, %v3767
    %v3769 = vrot.slane %v3768, 2
    %v3770 = vmax.f32 %v3768, %v3769
    %v3771 = vrot.slane %v3770, 1
    %v3772 = vmax.f32 %v3770, %v3771
    %v3773 = vsel %vm2701, %v2575, -inf
    %v3774 = vrot.slane %v3773, 4
    %v3775 = vmax.f32 %v3773, %v3774
    %v3776 = vrot.slane %v3775, 2
    %v3777 = vmax.f32 %v3775, %v3776
    %v3778 = vrot.slane %v3777, 1
    %v3779 = vmax.f32 %v3777, %v3778
    %v3780 = vsel %vm2701, %v2576, -inf
    %v3781 = vrot.slane %v3780, 4
    %v3782 = vmax.f32 %v3780, %v3781
    %v3783 = vrot.slane %v3782, 2
    %v3784 = vmax.f32 %v3782, %v3783
    %v3785 = vrot.slane %v3784, 1
    %v3786 = vmax.f32 %v3784, %v3785
    %v3787 = vsel %vm2701, %v2577, -inf
    %v3788 = vrot.slane %v3787, 4
    %v3789 = vmax.f32 %v3787, %v3788
    %v3790 = vrot.slane %v3789, 2
    %v3791 = vmax.f32 %v3789, %v3790
    %v3792 = vrot.slane %v3791, 1
    %v3793 = vmax.f32 %v3791, %v3792
    %v3794 = vsel %vm2701, %v2420, -inf
    %v3795 = vrot.slane %v3794, 4
    %v3796 = vmax.f32 %v3794, %v3795
    %v3797 = vrot.slane %v3796, 2
    %v3798 = vmax.f32 %v3796, %v3797
    %v3799 = vrot.slane %v3798, 1
    %v3800 = vmax.f32 %v3798, %v3799
    %v3801 = vsel %vm2701, %v2578, -inf
    %v3802 = vrot.slane %v3801, 4
    %v3803 = vmax.f32 %v3801, %v3802
    %v3804 = vrot.slane %v3803, 2
    %v3805 = vmax.f32 %v3803, %v3804
    %v3806 = vrot.slane %v3805, 1
    %v3807 = vmax.f32 %v3805, %v3806
    %v3808 = vsel %vm2701, %v2579, -inf
    %v3809 = vrot.slane %v3808, 4
    %v3810 = vmax.f32 %v3808, %v3809
    %v3811 = vrot.slane %v3810, 2
    %v3812 = vmax.f32 %v3810, %v3811
    %v3813 = vrot.slane %v3812, 1
    %v3814 = vmax.f32 %v3812, %v3813
    %v3815 = vsel %vm2701, %v2580, -inf
    %v3816 = vrot.slane %v3815, 4
    %v3817 = vmax.f32 %v3815, %v3816
    %v3818 = vrot.slane %v3817, 2
    %v3819 = vmax.f32 %v3817, %v3818
    %v3820 = vrot.slane %v3819, 1
    %v3821 = vmax.f32 %v3819, %v3820
    %v3822 = vld [vmem:[%s5] sm:$0xf]
    %v3823 = vld [vmem:[%s5 + $0x4] sm:$0xf]
    %v3824 = vld [vmem:[%s5 + $0x8] sm:$0xf]
    %v3825 = vld [vmem:[%s6] sm:$0x1]
    %vm3826 = vcmp.eq.s32.totalorder %v101, 79
    %vm3827 = vcmp.eq.s32.totalorder %v102, 79
    %vm3828 = vcmp.eq.s32.totalorder %v103, 79
    %vm3829 = vcmp.eq.s32.totalorder %v104, 79
    %vm3830 = vcmp.eq.s32.totalorder %v105, 79
    %vm3831 = vcmp.eq.s32.totalorder %v106, 79
    %vm3832 = vcmp.eq.s32.totalorder %v107, 79
    %vm3833 = vcmp.eq.s32.totalorder %v108, 79
    %vm3834 = vcmp.eq.s32.totalorder %v109, 79
    %vm3835 = vcmp.eq.s32.totalorder %v110, 79
    %vm3995 = vcmask 1042434
    %v3996 = vsel %vm3995, %v2715, %v2708
    %vm3997 = vcmask 1043459
    %v3998 = vsel %vm3997, %v2722, %v3996
    %vm3999 = vcmask 1044484
    %v4000 = vsel %vm3999, %v2729, %v3998
    %vm4001 = vcmask 1045509
    %v4002 = vsel %vm4001, %v2736, %v4000
    %vm4003 = vcmask 1046534
    %v4004 = vsel %vm4003, %v2743, %v4002
    %vm4005 = vcmask 1047559
    %v4006 = vsel %vm4005, %v2750, %v4004
    %vm4007 = vcmask 1041409
    %v4008 = vsel %vm4007, %v2764, %v2757
    %v4009 = vsel %vm3995, %v2771, %v4008
    %v4010 = vsel %vm3997, %v2778, %v4009
    %v4011 = vsel %vm3999, %v2785, %v4010
    %v4012 = vsel %vm4001, %v2792, %v4011
    %v4013 = vsel %vm4003, %v2799, %v4012
    %v4014 = vsel %vm4005, %v2806, %v4013
    %v4015 = vsel %vm4007, %v2820, %v2813
    %v4016 = vsel %vm3995, %v2827, %v4015
    %v4017 = vsel %vm3997, %v2834, %v4016
    %v4018 = vsel %vm3999, %v2841, %v4017
    %v4019 = vsel %vm4001, %v2848, %v4018
    %v4020 = vsel %vm4003, %v2855, %v4019
    %v4021 = vsel %vm4005, %v2862, %v4020
    %v4022 = vsel %vm4007, %v2876, %v2869
    %v4023 = vsel %vm3995, %v2883, %v4022
    %v4024 = vsel %vm3997, %v2890, %v4023
    %v4025 = vsel %vm3999, %v2897, %v4024
    %v4026 = vsel %vm4001, %v2904, %v4025
    %v4027 = vsel %vm4003, %v2911, %v4026
    %v4028 = vsel %vm4005, %v2918, %v4027
    %v4029 = vsel %vm4007, %v2932, %v2925
    %v4030 = vsel %vm3995, %v2939, %v4029
    %v4031 = vsel %vm3997, %v2946, %v4030
    %v4032 = vsel %vm3999, %v2953, %v4031
    %v4033 = vsel %vm4001, %v2960, %v4032
    %v4034 = vsel %vm4003, %v2967, %v4033
    %v4035 = vsel %vm4005, %v2974, %v4034
    %v4036 = vsel %vm4007, %v2988, %v2981
    %v4037 = vsel %vm3995, %v2995, %v4036
    %v4038 = vsel %vm3997, %v3002, %v4037
    %v4039 = vsel %vm3999, %v3009, %v4038
    %v4040 = vsel %vm4001, %v3016, %v4039
    %v4041 = vsel %vm4003, %v3023, %v4040
    %v4042 = vsel %vm4005, %v3030, %v4041
    %v4043 = vsel %vm4007, %v3044, %v3037
    %v4044 = vsel %vm3995, %v3051, %v4043
    %v4045 = vsel %vm3997, %v3058, %v4044
    %v4046 = vsel %vm3999, %v3065, %v4045
    %v4047 = vsel %vm4001, %v3072, %v4046
    %v4048 = vsel %vm4003, %v3079, %v4047
    %v4049 = vsel %vm4005, %v3086, %v4048
    %v4050 = vsel %vm4007, %v3100, %v3093
    %v4051 = vsel %vm3995, %v3107, %v4050
    %v4052 = vsel %vm3997, %v3114, %v4051
    %v4053 = vsel %vm3999, %v3121, %v4052
    %v4054 = vsel %vm4001, %v3128, %v4053
    %v4055 = vsel %vm4003, %v3135, %v4054
    %v4056 = vsel %vm4005, %v3142, %v4055
    %v4057 = vsel %vm4007, %v3156, %v3149
    %v4058 = vsel %vm3995, %v3163, %v4057
    %v4059 = vsel %vm3997, %v3170, %v4058
    %v4060 = vsel %vm3999, %v3177, %v4059
    %v4061 = vsel %vm4001, %v3184, %v4060
    %v4062 = vsel %vm4003, %v3191, %v4061
    %v4063 = vsel %vm4005, %v3198, %v4062
    %v4064 = vsel %vm4007, %v3212, %v3205
    %v4065 = vsel %vm3995, %v3219, %v4064
    %v4066 = vsel %vm3997, %v3226, %v4065
    %v4067 = vsel %vm3999, %v3233, %v4066
    %v4068 = vsel %vm4001, %v3240, %v4067
    %v4069 = vsel %vm4003, %v3247, %v4068
    %v4070 = vsel %vm4005, %v3254, %v4069
    %v4071 = vsel %vm4007, %v3268, %v3261
    %v4072 = vsel %vm3995, %v3275, %v4071
    %v4073 = vsel %vm3997, %v3282, %v4072
    %v4074 = vsel %vm3999, %v3289, %v4073
    %v4075 = vsel %vm4001, %v3296, %v4074
    %v4076 = vsel %vm4003, %v3303, %v4075
    %v4077 = vsel %vm4005, %v3310, %v4076
    %v4078 = vsel %vm4007, %v3324, %v3317
    %v4079 = vsel %vm3995, %v3331, %v4078
    %v4080 = vsel %vm3997, %v3338, %v4079
    %v4081 = vsel %vm3999, %v3345, %v4080
    %v4082 = vsel %vm4001, %v3352, %v4081
    %v4083 = vsel %vm4003, %v3359, %v4082
    %v4084 = vsel %vm4005, %v3366, %v4083
    %v4085 = vsel %vm4007, %v3380, %v3373
    %v4086 = vsel %vm3995, %v3387, %v4085
    %v4087 = vsel %vm3997, %v3394, %v4086
    %v4088 = vsel %vm3999, %v3401, %v4087
    %v4089 = vsel %vm4001, %v3408, %v4088
    %v4090 = vsel %vm4003, %v3415, %v4089
    %v4091 = vsel %vm4005, %v3422, %v4090
    %v4092 = vsel %vm4007, %v3436, %v3429
    %v4093 = vsel %vm3995, %v3443, %v4092
    %v4094 = vsel %vm3997, %v3450, %v4093
    %v4095 = vsel %vm3999, %v3457, %v4094
    %v4096 = vsel %vm4001, %v3464, %v4095
    %v4097 = vsel %vm4003, %v3471, %v4096
    %v4098 = vsel %vm4005, %v3478, %v4097
    %v4099 = vsel %vm4007, %v3492, %v3485
    %v4100 = vsel %vm3995, %v3499, %v4099
    %v4101 = vsel %vm3997, %v3506, %v4100
    %v4102 = vsel %vm3999, %v3513, %v4101
    %v4103 = vsel %vm4001, %v3520, %v4102
    %v4104 = vsel %vm4003, %v3527, %v4103
    %v4105 = vsel %vm4005, %v3534, %v4104
    %v4106 = vsel %vm4007, %v3548, %v3541
    %v4107 = vsel %vm3995, %v3555, %v4106
    %v4108 = vsel %vm3997, %v3562, %v4107
    %v4109 = vsel %vm3999, %v3569, %v4108
    %v4110 = vsel %vm4001, %v3576, %v4109
    %v4111 = vsel %vm4003, %v3583, %v4110
    %v4112 = vsel %vm4005, %v3590, %v4111
    %v4113 = vsel %vm4007, %v3604, %v3597
    %v4114 = vsel %vm3995, %v3611, %v4113
    %v4115 = vsel %vm3997, %v3618, %v4114
    %v4116 = vsel %vm3999, %v3625, %v4115
    %v4117 = vsel %vm4001, %v3632, %v4116
    %v4118 = vsel %vm4003, %v3639, %v4117
    %v4119 = vsel %vm4005, %v3646, %v4118
    %v4120 = vsel %vm4007, %v3660, %v3653
    %v4121 = vsel %vm3995, %v3667, %v4120
    %v4122 = vsel %vm3997, %v3674, %v4121
    %v4123 = vsel %vm3999, %v3681, %v4122
    %v4124 = vsel %vm4001, %v3688, %v4123
    %v4125 = vsel %vm4003, %v3695, %v4124
    %v4126 = vsel %vm4005, %v3702, %v4125
    %v4127 = vsel %vm4007, %v3716, %v3709
    %v4128 = vsel %vm3995, %v3723, %v4127
    %v4129 = vsel %vm3997, %v3730, %v4128
    %v4130 = vsel %vm3999, %v3737, %v4129
    %v4131 = vsel %vm4001, %v3744, %v4130
    %v4132 = vsel %vm4003, %v3751, %v4131
    %v4133 = vsel %vm4005, %v3758, %v4132
    %v4134 = vsel %vm4007, %v3772, %v3765
    %v4135 = vsel %vm3995, %v3779, %v4134
    %v4136 = vsel %vm3997, %v3786, %v4135
    %v4137 = vsel %vm3999, %v3793, %v4136
    %v4138 = vsel %vm4001, %v3800, %v4137
    %v4139 = vsel %vm4003, %v3807, %v4138
    %v4140 = vsel %vm4005, %v3814, %v4139
    %v4161 = vsel %vm201, 0.0, %v4006
    %v4162 = vsel %vm1553, 0.0, %v4161
    %v4163 = vsel %vm1554, 0.0, %v4014
    %v4164 = vsel %vm1555, 0.0, %v4021
    %v4165 = vsel %vm1556, 0.0, %v4028
    %v4166 = vsel %vm1557, 0.0, %v4035
    %v4167 = vsel %vm1558, 0.0, %v4042
    %v4168 = vsel %vm1559, 0.0, %v4049
    %v4169 = vsel %vm1560, 0.0, %v4056
    %v4170 = vsel %vm1561, 0.0, %v4063
    %v4171 = vsel %vm1562, 0.0, %v4070
    %v4172 = vsel %vm1553, 0.0, %v4077
    %v4173 = vsel %vm1554, 0.0, %v4084
    %v4174 = vsel %vm1555, 0.0, %v4091
    %v4175 = vsel %vm1556, 0.0, %v4098
    %v4176 = vsel %vm1557, 0.0, %v4105
    %v4177 = vsel %vm1558, 0.0, %v4112
    %v4178 = vsel %vm1559, 0.0, %v4119
    %v4179 = vsel %vm1560, 0.0, %v4126
    %v4180 = vsel %vm1561, 0.0, %v4133
    %v4181 = vsel %vm1562, 0.0, %v4140
    %v4183 = vsel %vm4007, %v2722, %v2715
    %v4184 = vsel %vm3995, %v2729, %v4183
    %v4185 = vsel %vm3997, %v2736, %v4184
    %v4186 = vsel %vm3999, %v2743, %v4185
    %v4187 = vsel %vm4001, %v2750, %v4186
    %v4188 = vsel %vm4003, %v2757, %v4187
    %v4189 = vsel %vm4005, %v2764, %v4188
    %v4190 = vsel %vm4007, %v2778, %v2771
    %v4191 = vsel %vm3995, %v2785, %v4190
    %v4192 = vsel %vm3997, %v2792, %v4191
    %v4193 = vsel %vm3999, %v2799, %v4192
    %v4194 = vsel %vm4001, %v2806, %v4193
    %v4195 = vsel %vm4003, %v2813, %v4194
    %v4196 = vsel %vm4005, %v2820, %v4195
    %v4197 = vsel %vm4007, %v2834, %v2827
    %v4198 = vsel %vm3995, %v2841, %v4197
    %v4199 = vsel %vm3997, %v2848, %v4198
    %v4200 = vsel %vm3999, %v2855, %v4199
    %v4201 = vsel %vm4001, %v2862, %v4200
    %v4202 = vsel %vm4003, %v2869, %v4201
    %v4203 = vsel %vm4005, %v2876, %v4202
    %v4204 = vsel %vm4007, %v2890, %v2883
    %v4205 = vsel %vm3995, %v2897, %v4204
    %v4206 = vsel %vm3997, %v2904, %v4205
    %v4207 = vsel %vm3999, %v2911, %v4206
    %v4208 = vsel %vm4001, %v2918, %v4207
    %v4209 = vsel %vm4003, %v2925, %v4208
    %v4210 = vsel %vm4005, %v2932, %v4209
    %v4211 = vsel %vm4007, %v2946, %v2939
    %v4212 = vsel %vm3995, %v2953, %v4211
    %v4213 = vsel %vm3997, %v2960, %v4212
    %v4214 = vsel %vm3999, %v2967, %v4213
    %v4215 = vsel %vm4001, %v2974, %v4214
    %v4216 = vsel %vm4003, %v2981, %v4215
    %v4217 = vsel %vm4005, %v2988, %v4216
    %v4218 = vsel %vm4007, %v3002, %v2995
    %v4219 = vsel %vm3995, %v3009, %v4218
    %v4220 = vsel %vm3997, %v3016, %v4219
    %v4221 = vsel %vm3999, %v3023, %v4220
    %v4222 = vsel %vm4001, %v3030, %v4221
    %v4223 = vsel %vm4003, %v3037, %v4222
    %v4224 = vsel %vm4005, %v3044, %v4223
    %v4225 = vsel %vm4007, %v3058, %v3051
    %v4226 = vsel %vm3995, %v3065, %v4225
    %v4227 = vsel %vm3997, %v3072, %v4226
    %v4228 = vsel %vm3999, %v3079, %v4227
    %v4229 = vsel %vm4001, %v3086, %v4228
    %v4230 = vsel %vm4003, %v3093, %v4229
    %v4231 = vsel %vm4005, %v3100, %v4230
    %v4232 = vsel %vm4007, %v3114, %v3107
    %v4233 = vsel %vm3995, %v3121, %v4232
    %v4234 = vsel %vm3997, %v3128, %v4233
    %v4235 = vsel %vm3999, %v3135, %v4234
    %v4236 = vsel %vm4001, %v3142, %v4235
    %v4237 = vsel %vm4003, %v3149, %v4236
    %v4238 = vsel %vm4005, %v3156, %v4237
    %v4239 = vsel %vm4007, %v3170, %v3163
    %v4240 = vsel %vm3995, %v3177, %v4239
    %v4241 = vsel %vm3997, %v3184, %v4240
    %v4242 = vsel %vm3999, %v3191, %v4241
    %v4243 = vsel %vm4001, %v3198, %v4242
    %v4244 = vsel %vm4003, %v3205, %v4243
    %v4245 = vsel %vm4005, %v3212, %v4244
    %v4246 = vsel %vm4007, %v3226, %v3219
    %v4247 = vsel %vm3995, %v3233, %v4246
    %v4248 = vsel %vm3997, %v3240, %v4247
    %v4249 = vsel %vm3999, %v3247, %v4248
    %v4250 = vsel %vm4001, %v3254, %v4249
    %v4251 = vsel %vm4003, %v3261, %v4250
    %v4252 = vsel %vm4005, %v3268, %v4251
    %v4253 = vsel %vm4007, %v3282, %v3275
    %v4254 = vsel %vm3995, %v3289, %v4253
    %v4255 = vsel %vm3997, %v3296, %v4254
    %v4256 = vsel %vm3999, %v3303, %v4255
    %v4257 = vsel %vm4001, %v3310, %v4256
    %v4258 = vsel %vm4003, %v3317, %v4257
    %v4259 = vsel %vm4005, %v3324, %v4258
    %v4260 = vsel %vm4007, %v3338, %v3331
    %v4261 = vsel %vm3995, %v3345, %v4260
    %v4262 = vsel %vm3997, %v3352, %v4261
    %v4263 = vsel %vm3999, %v3359, %v4262
    %v4264 = vsel %vm4001, %v3366, %v4263
    %v4265 = vsel %vm4003, %v3373, %v4264
    %v4266 = vsel %vm4005, %v3380, %v4265
    %v4267 = vsel %vm4007, %v3394, %v3387
    %v4268 = vsel %vm3995, %v3401, %v4267
    %v4269 = vsel %vm3997, %v3408, %v4268
    %v4270 = vsel %vm3999, %v3415, %v4269
    %v4271 = vsel %vm4001, %v3422, %v4270
    %v4272 = vsel %vm4003, %v3429, %v4271
    %v4273 = vsel %vm4005, %v3436, %v4272
    %v4274 = vsel %vm4007, %v3450, %v3443
    %v4275 = vsel %vm3995, %v3457, %v4274
    %v4276 = vsel %vm3997, %v3464, %v4275
    %v4277 = vsel %vm3999, %v3471, %v4276
    %v4278 = vsel %vm4001, %v3478, %v4277
    %v4279 = vsel %vm4003, %v3485, %v4278
    %v4280 = vsel %vm4005, %v3492, %v4279
    %v4281 = vsel %vm4007, %v3506, %v3499
    %v4282 = vsel %vm3995, %v3513, %v4281
    %v4283 = vsel %vm3997, %v3520, %v4282
    %v4284 = vsel %vm3999, %v3527, %v4283
    %v4285 = vsel %vm4001, %v3534, %v4284
    %v4286 = vsel %vm4003, %v3541, %v4285
    %v4287 = vsel %vm4005, %v3548, %v4286
    %v4288 = vsel %vm4007, %v3562, %v3555
    %v4289 = vsel %vm3995, %v3569, %v4288
    %v4290 = vsel %vm3997, %v3576, %v4289
    %v4291 = vsel %vm3999, %v3583, %v4290
    %v4292 = vsel %vm4001, %v3590, %v4291
    %v4293 = vsel %vm4003, %v3597, %v4292
    %v4294 = vsel %vm4005, %v3604, %v4293
    %v4295 = vsel %vm4007, %v3618, %v3611
    %v4296 = vsel %vm3995, %v3625, %v4295
    %v4297 = vsel %vm3997, %v3632, %v4296
    %v4298 = vsel %vm3999, %v3639, %v4297
    %v4299 = vsel %vm4001, %v3646, %v4298
    %v4300 = vsel %vm4003, %v3653, %v4299
    %v4301 = vsel %vm4005, %v3660, %v4300
    %v4302 = vsel %vm4007, %v3674, %v3667
    %v4303 = vsel %vm3995, %v3681, %v4302
    %v4304 = vsel %vm3997, %v3688, %v4303
    %v4305 = vsel %vm3999, %v3695, %v4304
    %v4306 = vsel %vm4001, %v3702, %v4305
    %v4307 = vsel %vm4003, %v3709, %v4306
    %v4308 = vsel %vm4005, %v3716, %v4307
    %v4309 = vsel %vm4007, %v3730, %v3723
    %v4310 = vsel %vm3995, %v3737, %v4309
    %v4311 = vsel %vm3997, %v3744, %v4310
    %v4312 = vsel %vm3999, %v3751, %v4311
    %v4313 = vsel %vm4001, %v3758, %v4312
    %v4314 = vsel %vm4003, %v3765, %v4313
    %v4315 = vsel %vm4005, %v3772, %v4314
    %v4316 = vsel %vm4007, %v3786, %v3779
    %v4317 = vsel %vm3995, %v3793, %v4316
    %v4318 = vsel %vm3997, %v3800, %v4317
    %v4319 = vsel %vm3999, %v3807, %v4318
    %v4320 = vsel %vm4001, %v3814, %v4319
    %v4321 = vsel %vm4003, %v3821, %v4320
    %v4342 = vsel %vm362, %v4321, 0.0
    %v4343 = vsel %vm3826, 1, 0
    %v4344 = vsel %vm3827, 1, 0
    %v4345 = vsel %vm3828, 1, 0
    %v4346 = vsel %vm3829, 1, 0
    %v4347 = vsel %vm3830, 1, 0
    %v4348 = vsel %vm3831, 1, 0
    %v4349 = vsel %vm3832, 1, 0
    %v4350 = vsel %vm3833, 1, 0
    %v4351 = vsel %vm3834, 1, 0
    %v4352 = vsel %vm3835, 1, 0
    %vm4353 = vcmp.eq.s32.totalorder %v4343, 1
    %vm4354 = vcmp.eq.s32.totalorder %v4344, 1
    %vm4355 = vcmp.eq.s32.totalorder %v4345, 1
    %vm4356 = vcmp.eq.s32.totalorder %v4346, 1
    %vm4357 = vcmp.eq.s32.totalorder %v4347, 1
    %vm4358 = vcmp.eq.s32.totalorder %v4348, 1
    %vm4359 = vcmp.eq.s32.totalorder %v4349, 1
    %vm4360 = vcmp.eq.s32.totalorder %v4350, 1
    %vm4361 = vcmp.eq.s32.totalorder %v4351, 1
    %vm4362 = vcmp.eq.s32.totalorder %v4352, 1
    %v4363 = vsel %vm4353, 0.0, %v4189
    %v4364 = vsel %vm4354, 0.0, %v4196
    %v4365 = vsel %vm4355, 0.0, %v4203
    %v4366 = vsel %vm4356, 0.0, %v4210
    %v4367 = vsel %vm4357, 0.0, %v4217
    %v4368 = vsel %vm4358, 0.0, %v4224
    %v4369 = vsel %vm4359, 0.0, %v4231
    %v4370 = vsel %vm4360, 0.0, %v4238
    %v4371 = vsel %vm4361, 0.0, %v4245
    %v4372 = vsel %vm4362, 0.0, %v4252
    %v4373 = vsel %vm4353, 0.0, %v4259
    %v4374 = vsel %vm4354, 0.0, %v4266
    %v4375 = vsel %vm4355, 0.0, %v4273
    %v4376 = vsel %vm4356, 0.0, %v4280
    %v4377 = vsel %vm4357, 0.0, %v4287
    %v4378 = vsel %vm4358, 0.0, %v4294
    %v4379 = vsel %vm4359, 0.0, %v4301
    %v4380 = vsel %vm4360, 0.0, %v4308
    %v4381 = vsel %vm4361, 0.0, %v4315
    %v4382 = vsel %vm4362, 0.0, %v4342
    %v4383 = vsel %vm4007, %v2715, %v2708
    %v4384 = vsel %vm3995, %v2722, %v4383
    %v4385 = vsel %vm3997, %v2729, %v4384
    %v4386 = vsel %vm3999, %v2736, %v4385
    %v4387 = vsel %vm4001, %v2743, %v4386
    %v4388 = vsel %vm4003, %v2750, %v4387
    %v4389 = vsel %vm4005, %v2757, %v4388
    %v4390 = vsel %vm4007, %v2771, %v2764
    %v4391 = vsel %vm3995, %v2778, %v4390
    %v4392 = vsel %vm3997, %v2785, %v4391
    %v4393 = vsel %vm3999, %v2792, %v4392
    %v4394 = vsel %vm4001, %v2799, %v4393
    %v4395 = vsel %vm4003, %v2806, %v4394
    %v4396 = vsel %vm4005, %v2813, %v4395
    %v4397 = vsel %vm4007, %v2827, %v2820
    %v4398 = vsel %vm3995, %v2834, %v4397
    %v4399 = vsel %vm3997, %v2841, %v4398
    %v4400 = vsel %vm3999, %v2848, %v4399
    %v4401 = vsel %vm4001, %v2855, %v4400
    %v4402 = vsel %vm4003, %v2862, %v4401
    %v4403 = vsel %vm4005, %v2869, %v4402
    %v4404 = vsel %vm4007, %v2883, %v2876
    %v4405 = vsel %vm3995, %v2890, %v4404
    %v4406 = vsel %vm3997, %v2897, %v4405
    %v4407 = vsel %vm3999, %v2904, %v4406
    %v4408 = vsel %vm4001, %v2911, %v4407
    %v4409 = vsel %vm4003, %v2918, %v4408
    %v4410 = vsel %vm4005, %v2925, %v4409
    %v4411 = vsel %vm4007, %v2939, %v2932
    %v4412 = vsel %vm3995, %v2946, %v4411
    %v4413 = vsel %vm3997, %v2953, %v4412
    %v4414 = vsel %vm3999, %v2960, %v4413
    %v4415 = vsel %vm4001, %v2967, %v4414
    %v4416 = vsel %vm4003, %v2974, %v4415
    %v4417 = vsel %vm4005, %v2981, %v4416
    %v4418 = vsel %vm4007, %v2995, %v2988
    %v4419 = vsel %vm3995, %v3002, %v4418
    %v4420 = vsel %vm3997, %v3009, %v4419
    %v4421 = vsel %vm3999, %v3016, %v4420
    %v4422 = vsel %vm4001, %v3023, %v4421
    %v4423 = vsel %vm4003, %v3030, %v4422
    %v4424 = vsel %vm4005, %v3037, %v4423
    %v4425 = vsel %vm4007, %v3051, %v3044
    %v4426 = vsel %vm3995, %v3058, %v4425
    %v4427 = vsel %vm3997, %v3065, %v4426
    %v4428 = vsel %vm3999, %v3072, %v4427
    %v4429 = vsel %vm4001, %v3079, %v4428
    %v4430 = vsel %vm4003, %v3086, %v4429
    %v4431 = vsel %vm4005, %v3093, %v4430
    %v4432 = vsel %vm4007, %v3107, %v3100
    %v4433 = vsel %vm3995, %v3114, %v4432
    %v4434 = vsel %vm3997, %v3121, %v4433
    %v4435 = vsel %vm3999, %v3128, %v4434
    %v4436 = vsel %vm4001, %v3135, %v4435
    %v4437 = vsel %vm4003, %v3142, %v4436
    %v4438 = vsel %vm4005, %v3149, %v4437
    %v4439 = vsel %vm4007, %v3163, %v3156
    %v4440 = vsel %vm3995, %v3170, %v4439
    %v4441 = vsel %vm3997, %v3177, %v4440
    %v4442 = vsel %vm3999, %v3184, %v4441
    %v4443 = vsel %vm4001, %v3191, %v4442
    %v4444 = vsel %vm4003, %v3198, %v4443
    %v4445 = vsel %vm4005, %v3205, %v4444
    %v4446 = vsel %vm4007, %v3219, %v3212
    %v4447 = vsel %vm3995, %v3226, %v4446
    %v4448 = vsel %vm3997, %v3233, %v4447
    %v4449 = vsel %vm3999, %v3240, %v4448
    %v4450 = vsel %vm4001, %v3247, %v4449
    %v4451 = vsel %vm4003, %v3254, %v4450
    %v4452 = vsel %vm4005, %v3261, %v4451
    %v4453 = vsel %vm4007, %v3275, %v3268
    %v4454 = vsel %vm3995, %v3282, %v4453
    %v4455 = vsel %vm3997, %v3289, %v4454
    %v4456 = vsel %vm3999, %v3296, %v4455
    %v4457 = vsel %vm4001, %v3303, %v4456
    %v4458 = vsel %vm4003, %v3310, %v4457
    %v4459 = vsel %vm4005, %v3317, %v4458
    %v4460 = vsel %vm4007, %v3331, %v3324
    %v4461 = vsel %vm3995, %v3338, %v4460
    %v4462 = vsel %vm3997, %v3345, %v4461
    %v4463 = vsel %vm3999, %v3352, %v4462
    %v4464 = vsel %vm4001, %v3359, %v4463
    %v4465 = vsel %vm4003, %v3366, %v4464
    %v4466 = vsel %vm4005, %v3373, %v4465
    %v4467 = vsel %vm4007, %v3387, %v3380
    %v4468 = vsel %vm3995, %v3394, %v4467
    %v4469 = vsel %vm3997, %v3401, %v4468
    %v4470 = vsel %vm3999, %v3408, %v4469
    %v4471 = vsel %vm4001, %v3415, %v4470
    %v4472 = vsel %vm4003, %v3422, %v4471
    %v4473 = vsel %vm4005, %v3429, %v4472
    %v4474 = vsel %vm4007, %v3443, %v3436
    %v4475 = vsel %vm3995, %v3450, %v4474
    %v4476 = vsel %vm3997, %v3457, %v4475
    %v4477 = vsel %vm3999, %v3464, %v4476
    %v4478 = vsel %vm4001, %v3471, %v4477
    %v4479 = vsel %vm4003, %v3478, %v4478
    %v4480 = vsel %vm4005, %v3485, %v4479
    %v4481 = vsel %vm4007, %v3499, %v3492
    %v4482 = vsel %vm3995, %v3506, %v4481
    %v4483 = vsel %vm3997, %v3513, %v4482
    %v4484 = vsel %vm3999, %v3520, %v4483
    %v4485 = vsel %vm4001, %v3527, %v4484
    %v4486 = vsel %vm4003, %v3534, %v4485
    %v4487 = vsel %vm4005, %v3541, %v4486
    %v4488 = vsel %vm4007, %v3555, %v3548
    %v4489 = vsel %vm3995, %v3562, %v4488
    %v4490 = vsel %vm3997, %v3569, %v4489
    %v4491 = vsel %vm3999, %v3576, %v4490
    %v4492 = vsel %vm4001, %v3583, %v4491
    %v4493 = vsel %vm4003, %v3590, %v4492
    %v4494 = vsel %vm4005, %v3597, %v4493
    %v4495 = vsel %vm4007, %v3611, %v3604
    %v4496 = vsel %vm3995, %v3618, %v4495
    %v4497 = vsel %vm3997, %v3625, %v4496
    %v4498 = vsel %vm3999, %v3632, %v4497
    %v4499 = vsel %vm4001, %v3639, %v4498
    %v4500 = vsel %vm4003, %v3646, %v4499
    %v4501 = vsel %vm4005, %v3653, %v4500
    %v4502 = vsel %vm4007, %v3667, %v3660
    %v4503 = vsel %vm3995, %v3674, %v4502
    %v4504 = vsel %vm3997, %v3681, %v4503
    %v4505 = vsel %vm3999, %v3688, %v4504
    %v4506 = vsel %vm4001, %v3695, %v4505
    %v4507 = vsel %vm4003, %v3702, %v4506
    %v4508 = vsel %vm4005, %v3709, %v4507
    %v4509 = vsel %vm4007, %v3723, %v3716
    %v4510 = vsel %vm3995, %v3730, %v4509
    %v4511 = vsel %vm3997, %v3737, %v4510
    %v4512 = vsel %vm3999, %v3744, %v4511
    %v4513 = vsel %vm4001, %v3751, %v4512
    %v4514 = vsel %vm4003, %v3758, %v4513
    %v4515 = vsel %vm4005, %v3765, %v4514
    %v4516 = vsel %vm4007, %v3779, %v3772
    %v4517 = vsel %vm3995, %v3786, %v4516
    %v4518 = vsel %vm3997, %v3793, %v4517
    %v4519 = vsel %vm3999, %v3800, %v4518
    %v4520 = vsel %vm4001, %v3807, %v4519
    %v4521 = vsel %vm4003, %v3814, %v4520
    %v4522 = vsel %vm4005, %v3821, %v4521
    %4523 = vrot.lane.b32.xlu0 %v4389, 8
    %v4524 = vpop.permute.xlu0 %4523
    %4525 = vrot.lane.b32.xlu0 %v4396, 8
    %v4526 = vpop.permute.xlu0 %4525
    %4527 = vrot.lane.b32.xlu0 %v4403, 8
    %v4528 = vpop.permute.xlu0 %4527
    %4529 = vrot.lane.b32.xlu0 %v4410, 8
    %v4530 = vpop.permute.xlu0 %4529
    %4531 = vrot.lane.b32.xlu0 %v4417, 8
    %v4532 = vpop.permute.xlu0 %4531
    %4533 = vrot.lane.b32.xlu0 %v4424, 8
    %v4534 = vpop.permute.xlu0 %4533
    %4535 = vrot.lane.b32.xlu0 %v4431, 8
    %v4536 = vpop.permute.xlu0 %4535
    %4537 = vrot.lane.b32.xlu0 %v4438, 8
    %v4538 = vpop.permute.xlu0 %4537
    %4539 = vrot.lane.b32.xlu0 %v4445, 8
    %v4540 = vpop.permute.xlu0 %4539
    %4541 = vrot.lane.b32.xlu0 %v4452, 8
    %v4542 = vpop.permute.xlu0 %4541
    %4543 = vrot.lane.b32.xlu0 %v4459, 8
    %v4544 = vpop.permute.xlu0 %4543
    %4545 = vrot.lane.b32.xlu0 %v4466, 8
    %v4546 = vpop.permute.xlu0 %4545
    %4547 = vrot.lane.b32.xlu0 %v4473, 8
    %v4548 = vpop.permute.xlu0 %4547
    %4549 = vrot.lane.b32.xlu0 %v4480, 8
    %v4550 = vpop.permute.xlu0 %4549
    %4551 = vrot.lane.b32.xlu0 %v4487, 8
    %v4552 = vpop.permute.xlu0 %4551
    %4553 = vrot.lane.b32.xlu0 %v4494, 8
    %v4554 = vpop.permute.xlu0 %4553
    %4555 = vrot.lane.b32.xlu0 %v4501, 8
    %v4556 = vpop.permute.xlu0 %4555
    %4557 = vrot.lane.b32.xlu0 %v4508, 8
    %v4558 = vpop.permute.xlu0 %4557
    %4559 = vrot.lane.b32.xlu0 %v4515, 8
    %v4560 = vpop.permute.xlu0 %4559
    %4561 = vrot.lane.b32.xlu0 %v4522, 8
    %v4562 = vpop.permute.xlu0 %4561
    %4603 = vrot.lane.b32.xlu0 %v4363, 16
    %v4604 = vpop.permute.xlu0 %4603
    %4605 = vrot.lane.b32.xlu0 %v4364, 16
    %v4606 = vpop.permute.xlu0 %4605
    %4607 = vrot.lane.b32.xlu0 %v4365, 16
    %v4608 = vpop.permute.xlu0 %4607
    %4609 = vrot.lane.b32.xlu0 %v4366, 16
    %v4610 = vpop.permute.xlu0 %4609
    %4611 = vrot.lane.b32.xlu0 %v4367, 16
    %v4612 = vpop.permute.xlu0 %4611
    %4613 = vrot.lane.b32.xlu0 %v4368, 16
    %v4614 = vpop.permute.xlu0 %4613
    %4615 = vrot.lane.b32.xlu0 %v4369, 16
    %v4616 = vpop.permute.xlu0 %4615
    %4617 = vrot.lane.b32.xlu0 %v4370, 16
    %v4618 = vpop.permute.xlu0 %4617
    %4619 = vrot.lane.b32.xlu0 %v4371, 16
    %v4620 = vpop.permute.xlu0 %4619
    %4621 = vrot.lane.b32.xlu0 %v4372, 16
    %v4622 = vpop.permute.xlu0 %4621
    %4623 = vrot.lane.b32.xlu0 %v4373, 16
    %v4624 = vpop.permute.xlu0 %4623
    %4625 = vrot.lane.b32.xlu0 %v4374, 16
    %v4626 = vpop.permute.xlu0 %4625
    %4627 = vrot.lane.b32.xlu0 %v4375, 16
    %v4628 = vpop.permute.xlu0 %4627
    %4629 = vrot.lane.b32.xlu0 %v4376, 16
    %v4630 = vpop.permute.xlu0 %4629
    %4631 = vrot.lane.b32.xlu0 %v4377, 16
    %v4632 = vpop.permute.xlu0 %4631
    %4633 = vrot.lane.b32.xlu0 %v4378, 16
    %v4634 = vpop.permute.xlu0 %4633
    %4635 = vrot.lane.b32.xlu0 %v4379, 16
    %v4636 = vpop.permute.xlu0 %4635
    %4637 = vrot.lane.b32.xlu0 %v4380, 16
    %v4638 = vpop.permute.xlu0 %4637
    %4639 = vrot.lane.b32.xlu0 %v4381, 16
    %v4640 = vpop.permute.xlu0 %4639
    %4641 = vrot.lane.b32.xlu0 %v4382, 16
    %v4642 = vpop.permute.xlu0 %4641
    %v4663 = vsel %vm2093, %v4162, %v4524
    %v4664 = vsel %vm2093, %v4163, %v4526
    %v4665 = vsel %vm2093, %v4164, %v4528
    %v4666 = vsel %vm2093, %v4165, %v4530
    %v4667 = vsel %vm2093, %v4166, %v4532
    %v4668 = vsel %vm2093, %v4167, %v4534
    %v4669 = vsel %vm2093, %v4168, %v4536
    %v4670 = vsel %vm2093, %v4169, %v4538
    %v4671 = vsel %vm2093, %v4170, %v4540
    %v4672 = vsel %vm2093, %v4171, %v4542
    %v4673 = vsel %vm2093, %v4172, %v4544
    %v4674 = vsel %vm2093, %v4173, %v4546
    %v4675 = vsel %vm2093, %v4174, %v4548
    %v4676 = vsel %vm2093, %v4175, %v4550
    %v4677 = vsel %vm2093, %v4176, %v4552
    %v4678 = vsel %vm2093, %v4177, %v4554
    %v4679 = vsel %vm2093, %v4178, %v4556
    %v4680 = vsel %vm2093, %v4179, %v4558
    %v4681 = vsel %vm2093, %v4180, %v4560
    %v4682 = vsel %vm2093, %v4181, %v4562
    %v4683 = vsel %vm2134, %v4663, %v4604
    %v4684 = vsel %vm2134, %v4664, %v4606
    %v4685 = vsel %vm2134, %v4665, %v4608
    %v4686 = vsel %vm2134, %v4666, %v4610
    %v4687 = vsel %vm2134, %v4667, %v4612
    %v4688 = vsel %vm2134, %v4668, %v4614
    %v4689 = vsel %vm2134, %v4669, %v4616
    %v4690 = vsel %vm2134, %v4670, %v4618
    %v4691 = vsel %vm2134, %v4671, %v4620
    %v4692 = vsel %vm2134, %v4672, %v4622
    %v4693 = vsel %vm2134, %v4673, %v4624
    %v4694 = vsel %vm2134, %v4674, %v4626
    %v4695 = vsel %vm2134, %v4675, %v4628
    %v4696 = vsel %vm2134, %v4676, %v4630
    %v4697 = vsel %vm2134, %v4677, %v4632
    %v4698 = vsel %vm2134, %v4678, %v4634
    %v4699 = vsel %vm2134, %v4679, %v4636
    %v4700 = vsel %vm2134, %v4680, %v4638
    %v4701 = vsel %vm2134, %v4681, %v4640
    %v4702 = vsel %vm2134, %v4682, %v4642
    %v4703 = vpack.c.bf16 %v4684, %v4683
    %v4704 = vpack.c.bf16 %v4686, %v4685
    %v4705 = vpack.c.bf16 %v4688, %v4687
    %v4706 = vpack.c.bf16 %v4690, %v4689
    %v4707 = vpack.c.bf16 %v4692, %v4691
    %v4708 = vpack.c.bf16 %v4694, %v4693
    %v4709 = vpack.c.bf16 %v4696, %v4695
    %v4710 = vpack.c.bf16 %v4698, %v4697
    %v4711 = vpack.c.bf16 %v4700, %v4699
    %v4712 = vpack.c.bf16 %v4702, %v4701
    %v4714 = vperm.slane %v3825, 0
    %v4719 = vunpack.c.l.b16 %v3822
    %v4720 = vunpack.c.l.b16 %v3823
    %v4721 = vunpack.c.l.b16 %v3824
    %v4722 = vpack.c.b16 %v4720, %v4719
    %v4723 = vpack.c.b16 %v4721, %v4721
    %v4726 = vsel %vm2207, %v4703, 0
    %v4729 = vsel %vm2207, %v4704, 0
    %v4732 = vsel %vm2207, %v4705, 0
    %v4735 = vsel %vm2207, %v4706, 0
    %v4738 = vsel %vm2207, %v4707, 0
    %v4741 = vsel %vm2207, %v4708, 0
    %v4744 = vsel %vm2207, %v4709, 0
    %v4747 = vsel %vm2207, %v4710, 0
    %v4750 = vsel %vm2207, %v4711, 0
    %v4753 = vsel %vm2207, %v4712, 0
    %v4756 = vsel %vm2268, %v4723, 0
    %4758 = vmatpush.bf16.msra.mxu0 0
    %4759 = vmatpush.bf16.msra.mxu0 0
    %4760 = vmatpush.bf16.msra.mxu0 0
    %4761 = vmatpush.bf16.msra.mxu0 0
    %4762 = vmatpush.bf16.msra.mxu0 0
    %4763 = vmatpush.bf16.msra.mxu0 0
    %4764 = vmatpush.bf16.msra.mxu0 %v4756
    %4765 = vmatpush.bf16.msra.mxu0 %v4722
    %4766 = vmatmul.bf16.gmra.mxu0 %v4726
    %v4767 = vpop.f32.mrf.mxu0
    %v4768 = vadd.f32 %v4714, %v4767
    %v4769 = vpop.f32.mrf.mxu0
    %v4770 = vadd.f32 %v4714, %v4769
    %4771 = vmatmul.bf16.gmra.mxu0 %v4729
    %v4772 = vpop.f32.mrf.mxu0
    %v4773 = vadd.f32 %v4714, %v4772
    %v4774 = vpop.f32.mrf.mxu0
    %v4775 = vadd.f32 %v4714, %v4774
    %4776 = vmatmul.bf16.gmra.mxu0 %v4732
    %v4777 = vpop.f32.mrf.mxu0
    %v4778 = vadd.f32 %v4714, %v4777
    %v4779 = vpop.f32.mrf.mxu0
    %v4780 = vadd.f32 %v4714, %v4779
    %4781 = vmatmul.bf16.gmra.mxu0 %v4735
    %v4782 = vpop.f32.mrf.mxu0
    %v4783 = vadd.f32 %v4714, %v4782
    %v4784 = vpop.f32.mrf.mxu0
    %v4785 = vadd.f32 %v4714, %v4784
    %4786 = vmatmul.bf16.gmra.mxu0 %v4738
    %v4787 = vpop.f32.mrf.mxu0
    %v4788 = vadd.f32 %v4714, %v4787
    %v4789 = vpop.f32.mrf.mxu0
    %v4790 = vadd.f32 %v4714, %v4789
    %4791 = vmatmul.bf16.gmra.mxu0 %v4741
    %v4792 = vpop.f32.mrf.mxu0
    %v4793 = vadd.f32 %v4714, %v4792
    %v4794 = vpop.f32.mrf.mxu0
    %v4795 = vadd.f32 %v4714, %v4794
    %4796 = vmatmul.bf16.gmra.mxu0 %v4744
    %v4797 = vpop.f32.mrf.mxu0
    %v4798 = vadd.f32 %v4714, %v4797
    %v4799 = vpop.f32.mrf.mxu0
    %v4800 = vadd.f32 %v4714, %v4799
    %4801 = vmatmul.bf16.gmra.mxu0 %v4747
    %v4802 = vpop.f32.mrf.mxu0
    %v4803 = vadd.f32 %v4714, %v4802
    %v4804 = vpop.f32.mrf.mxu0
    %v4805 = vadd.f32 %v4714, %v4804
    %4806 = vmatmul.bf16.gmra.mxu0 %v4750
    %v4807 = vpop.f32.mrf.mxu0
    %v4808 = vadd.f32 %v4714, %v4807
    %v4809 = vpop.f32.mrf.mxu0
    %v4810 = vadd.f32 %v4714, %v4809
    %4811 = vmatmul.bf16.gmra.mxu0 %v4753
    %v4812 = vpop.f32.mrf.mxu0
    %v4813 = vadd.f32 %v4714, %v4812
    %v4814 = vpop.f32.mrf.mxu0
    %v4815 = vadd.f32 %v4714, %v4814
    %4816 = vdwg.mxu0
    %v4817 = vmax.f32 %v4768, 0.0
    %v4818 = vmax.f32 %v4770, 0.0
    %v4819 = vmax.f32 %v4773, 0.0
    %v4820 = vmax.f32 %v4775, 0.0
    %v4821 = vmax.f32 %v4778, 0.0
    %v4822 = vmax.f32 %v4780, 0.0
    %v4823 = vmax.f32 %v4783, 0.0
    %v4824 = vmax.f32 %v4785, 0.0
    %v4825 = vmax.f32 %v4788, 0.0
    %v4826 = vmax.f32 %v4790, 0.0
    %v4827 = vmax.f32 %v4793, 0.0
    %v4828 = vmax.f32 %v4795, 0.0
    %v4829 = vmax.f32 %v4798, 0.0
    %v4830 = vmax.f32 %v4800, 0.0
    %v4831 = vmax.f32 %v4803, 0.0
    %v4832 = vmax.f32 %v4805, 0.0
    %v4833 = vmax.f32 %v4808, 0.0
    %v4834 = vmax.f32 %v4810, 0.0
    %v4835 = vmax.f32 %v4813, 0.0
    %v4836 = vmax.f32 %v4815, 0.0
    %v4837 = vld [vmem:[%s7] sm:$0xf]
    %v4838 = vld [vmem:[%s7 + $0x4] sm:$0xf]
    %v4839 = vld [vmem:[%s7 + $0x8] sm:$0xf]
    %v4840 = vld [vmem:[%s7 + $0xc] sm:$0xf]
    %v4841 = vld [vmem:[%s7 + $0x10] sm:$0xf]
    %v4842 = vld [vmem:[%s7 + $0x14] sm:$0xf]
    %v4843 = vld [vmem:[%s8] sm:$0x1]
    %v4864 = vrot.slane %v4817, 7
    %v4865 = vrot.slane %v4818, 7
    %v4866 = vsel %vm201, %v4864, %v4865
    %v4867 = vrot.slane %v4819, 7
    %v4868 = vsel %vm201, %v4865, %v4867
    %v4869 = vrot.slane %v4820, 7
    %v4870 = vsel %vm201, %v4867, %v4869
    %v4871 = vrot.slane %v4821, 7
    %v4872 = vsel %vm201, %v4869, %v4871
    %v4873 = vrot.slane %v4822, 7
    %v4874 = vsel %vm201, %v4871, %v4873
    %v4875 = vrot.slane %v4823, 7
    %v4876 = vsel %vm201, %v4873, %v4875
    %v4877 = vrot.slane %v4824, 7
    %v4878 = vsel %vm201, %v4875, %v4877
    %v4879 = vrot.slane %v4825, 7
    %v4880 = vsel %vm201, %v4877, %v4879
    %v4881 = vrot.slane %v4826, 7
    %v4882 = vsel %vm201, %v4879, %v4881
    %v4883 = vrot.slane %v4827, 7
    %v4884 = vsel %vm201, %v4881, %v4883
    %v4885 = vrot.slane %v4828, 7
    %v4886 = vsel %vm201, %v4883, %v4885
    %v4887 = vrot.slane %v4829, 7
    %v4888 = vsel %vm201, %v4885, %v4887
    %v4889 = vrot.slane %v4830, 7
    %v4890 = vsel %vm201, %v4887, %v4889
    %v4891 = vrot.slane %v4831, 7
    %v4892 = vsel %vm201, %v4889, %v4891
    %v4893 = vrot.slane %v4832, 7
    %v4894 = vsel %vm201, %v4891, %v4893
    %v4895 = vrot.slane %v4833, 7
    %v4896 = vsel %vm201, %v4893, %v4895
    %v4897 = vrot.slane %v4834, 7
    %v4898 = vsel %vm201, %v4895, %v4897
    %v4899 = vrot.slane %v4835, 7
    %v4900 = vsel %vm201, %v4897, %v4899
    %v4901 = vrot.slane %v4836, 7
    %v4902 = vsel %vm201, %v4899, %v4901
    %v4923 = vsel %vm201, 0.0, %v4864
    %v4924 = vsel %vm1553, 0.0, %v4923
    %v4925 = vsel %vm1554, 0.0, %v4866
    %v4926 = vsel %vm1555, 0.0, %v4868
    %v4927 = vsel %vm1556, 0.0, %v4870
    %v4928 = vsel %vm1557, 0.0, %v4872
    %v4929 = vsel %vm1558, 0.0, %v4874
    %v4930 = vsel %vm1559, 0.0, %v4876
    %v4931 = vsel %vm1560, 0.0, %v4878
    %v4932 = vsel %vm1561, 0.0, %v4880
    %v4933 = vsel %vm1562, 0.0, %v4882
    %v4934 = vsel %vm1553, 0.0, %v4884
    %v4935 = vsel %vm1554, 0.0, %v4886
    %v4936 = vsel %vm1555, 0.0, %v4888
    %v4937 = vsel %vm1556, 0.0, %v4890
    %v4938 = vsel %vm1557, 0.0, %v4892
    %v4939 = vsel %vm1558, 0.0, %v4894
    %v4940 = vsel %vm1559, 0.0, %v4896
    %v4941 = vsel %vm1560, 0.0, %v4898
    %v4942 = vsel %vm1561, 0.0, %v4900
    %v4943 = vsel %vm1562, 0.0, %v4902
    %v4944 = vrot.slane %v4817, 1
    %v4945 = vrot.slane %v4818, 1
    %v4946 = vsel %vm362, %v4944, %v4945
    %v4947 = vrot.slane %v4819, 1
    %v4948 = vsel %vm362, %v4945, %v4947
    %v4949 = vrot.slane %v4820, 1
    %v4950 = vsel %vm362, %v4947, %v4949
    %v4951 = vrot.slane %v4821, 1
    %v4952 = vsel %vm362, %v4949, %v4951
    %v4953 = vrot.slane %v4822, 1
    %v4954 = vsel %vm362, %v4951, %v4953
    %v4955 = vrot.slane %v4823, 1
    %v4956 = vsel %vm362, %v4953, %v4955
    %v4957 = vrot.slane %v4824, 1
    %v4958 = vsel %vm362, %v4955, %v4957
    %v4959 = vrot.slane %v4825, 1
    %v4960 = vsel %vm362, %v4957, %v4959
    %v4961 = vrot.slane %v4826, 1
    %v4962 = vsel %vm362, %v4959, %v4961
    %v4963 = vrot.slane %v4827, 1
    %v4964 = vsel %vm362, %v4961, %v4963
    %v4965 = vrot.slane %v4828, 1
    %v4966 = vsel %vm362, %v4963, %v4965
    %v4967 = vrot.slane %v4829, 1
    %v4968 = vsel %vm362, %v4965, %v4967
    %v4969 = vrot.slane %v4830, 1
    %v4970 = vsel %vm362, %v4967, %v4969
    %v4971 = vrot.slane %v4831, 1
    %v4972 = vsel %vm362, %v4969, %v4971
    %v4973 = vrot.slane %v4832, 1
    %v4974 = vsel %vm362, %v4971, %v4973
    %v4975 = vrot.slane %v4833, 1
    %v4976 = vsel %vm362, %v4973, %v4975
    %v4977 = vrot.slane %v4834, 1
    %v4978 = vsel %vm362, %v4975, %v4977
    %v4979 = vrot.slane %v4835, 1
    %v4980 = vsel %vm362, %v4977, %v4979
    %v4981 = vrot.slane %v4836, 1
    %v4982 = vsel %vm362, %v4979, %v4981
    %v5003 = vsel %vm362, %v4981, 0.0
    %v5004 = vsel %vm4353, 0.0, %v4946
    %v5005 = vsel %vm4354, 0.0, %v4948
    %v5006 = vsel %vm4355, 0.0, %v4950
    %v5007 = vsel %vm4356, 0.0, %v4952
    %v5008 = vsel %vm4357, 0.0, %v4954
    %v5009 = vsel %vm4358, 0.0, %v4956
    %v5010 = vsel %vm4359, 0.0, %v4958
    %v5011 = vsel %vm4360, 0.0, %v4960
    %v5012 = vsel %vm4361, 0.0, %v4962
    %v5013 = vsel %vm4362, 0.0, %v4964
    %v5014 = vsel %vm4353, 0.0, %v4966
    %v5015 = vsel %vm4354, 0.0, %v4968
    %v5016 = vsel %vm4355, 0.0, %v4970
    %v5017 = vsel %vm4356, 0.0, %v4972
    %v5018 = vsel %vm4357, 0.0, %v4974
    %v5019 = vsel %vm4358, 0.0, %v4976
    %v5020 = vsel %vm4359, 0.0, %v4978
    %v5021 = vsel %vm4360, 0.0, %v4980
    %v5022 = vsel %vm4361, 0.0, %v4982
    %v5023 = vsel %vm4362, 0.0, %v5003
    %5024 = vrot.lane.b32.xlu0 %v4817, 16
    %v5025 = vpop.permute.xlu0 %5024
    %5026 = vrot.lane.b32.xlu0 %v4818, 16
    %v5027 = vpop.permute.xlu0 %5026
    %5028 = vrot.lane.b32.xlu0 %v4819, 16
    %v5029 = vpop.permute.xlu0 %5028
    %5030 = vrot.lane.b32.xlu0 %v4820, 16
    %v5031 = vpop.permute.xlu0 %5030
    %5032 = vrot.lane.b32.xlu0 %v4821, 16
    %v5033 = vpop.permute.xlu0 %5032
    %5034 = vrot.lane.b32.xlu0 %v4822, 16
    %v5035 = vpop.permute.xlu0 %5034
    %5036 = vrot.lane.b32.xlu0 %v4823, 16
    %v5037 = vpop.permute.xlu0 %5036
    %5038 = vrot.lane.b32.xlu0 %v4824, 16
    %v5039 = vpop.permute.xlu0 %5038
    %5040 = vrot.lane.b32.xlu0 %v4825, 16
    %v5041 = vpop.permute.xlu0 %5040
    %5042 = vrot.lane.b32.xlu0 %v4826, 16
    %v5043 = vpop.permute.xlu0 %5042
    %5044 = vrot.lane.b32.xlu0 %v4827, 16
    %v5045 = vpop.permute.xlu0 %5044
    %5046 = vrot.lane.b32.xlu0 %v4828, 16
    %v5047 = vpop.permute.xlu0 %5046
    %5048 = vrot.lane.b32.xlu0 %v4829, 16
    %v5049 = vpop.permute.xlu0 %5048
    %5050 = vrot.lane.b32.xlu0 %v4830, 16
    %v5051 = vpop.permute.xlu0 %5050
    %5052 = vrot.lane.b32.xlu0 %v4831, 16
    %v5053 = vpop.permute.xlu0 %5052
    %5054 = vrot.lane.b32.xlu0 %v4832, 16
    %v5055 = vpop.permute.xlu0 %5054
    %5056 = vrot.lane.b32.xlu0 %v4833, 16
    %v5057 = vpop.permute.xlu0 %5056
    %5058 = vrot.lane.b32.xlu0 %v4834, 16
    %v5059 = vpop.permute.xlu0 %5058
    %5060 = vrot.lane.b32.xlu0 %v4835, 16
    %v5061 = vpop.permute.xlu0 %5060
    %5062 = vrot.lane.b32.xlu0 %v4836, 16
    %v5063 = vpop.permute.xlu0 %5062
    %5104 = vrot.lane.b32.xlu0 %v5004, 32
    %v5105 = vpop.permute.xlu0 %5104
    %5106 = vrot.lane.b32.xlu0 %v5005, 32
    %v5107 = vpop.permute.xlu0 %5106
    %5108 = vrot.lane.b32.xlu0 %v5006, 32
    %v5109 = vpop.permute.xlu0 %5108
    %5110 = vrot.lane.b32.xlu0 %v5007, 32
    %v5111 = vpop.permute.xlu0 %5110
    %5112 = vrot.lane.b32.xlu0 %v5008, 32
    %v5113 = vpop.permute.xlu0 %5112
    %5114 = vrot.lane.b32.xlu0 %v5009, 32
    %v5115 = vpop.permute.xlu0 %5114
    %5116 = vrot.lane.b32.xlu0 %v5010, 32
    %v5117 = vpop.permute.xlu0 %5116
    %5118 = vrot.lane.b32.xlu0 %v5011, 32
    %v5119 = vpop.permute.xlu0 %5118
    %5120 = vrot.lane.b32.xlu0 %v5012, 32
    %v5121 = vpop.permute.xlu0 %5120
    %5122 = vrot.lane.b32.xlu0 %v5013, 32
    %v5123 = vpop.permute.xlu0 %5122
    %5124 = vrot.lane.b32.xlu0 %v5014, 32
    %v5125 = vpop.permute.xlu0 %5124
    %5126 = vrot.lane.b32.xlu0 %v5015, 32
    %v5127 = vpop.permute.xlu0 %5126
    %5128 = vrot.lane.b32.xlu0 %v5016, 32
    %v5129 = vpop.permute.xlu0 %5128
    %5130 = vrot.lane.b32.xlu0 %v5017, 32
    %v5131 = vpop.permute.xlu0 %5130
    %5132 = vrot.lane.b32.xlu0 %v5018, 32
    %v5133 = vpop.permute.xlu0 %5132
    %5134 = vrot.lane.b32.xlu0 %v5019, 32
    %v5135 = vpop.permute.xlu0 %5134
    %5136 = vrot.lane.b32.xlu0 %v5020, 32
    %v5137 = vpop.permute.xlu0 %5136
    %5138 = vrot.lane.b32.xlu0 %v5021, 32
    %v5139 = vpop.permute.xlu0 %5138
    %5140 = vrot.lane.b32.xlu0 %v5022, 32
    %v5141 = vpop.permute.xlu0 %5140
    %5142 = vrot.lane.b32.xlu0 %v5023, 32
    %v5143 = vpop.permute.xlu0 %5142
    %v5164 = vsel %vm2134, %v4924, %v5025
    %v5165 = vsel %vm2134, %v4925, %v5027
    %v5166 = vsel %vm2134, %v4926, %v5029
    %v5167 = vsel %vm2134, %v4927, %v5031
    %v5168 = vsel %vm2134, %v4928, %v5033
    %v5169 = vsel %vm2134, %v4929, %v5035
    %v5170 = vsel %vm2134, %v4930, %v5037
    %v5171 = vsel %vm2134, %v4931, %v5039
    %v5172 = vsel %vm2134, %v4932, %v5041
    %v5173 = vsel %vm2134, %v4933, %v5043
    %v5174 = vsel %vm2134, %v4934, %v5045
    %v5175 = vsel %vm2134, %v4935, %v5047
    %v5176 = vsel %vm2134, %v4936, %v5049
    %v5177 = vsel %vm2134, %v4937, %v5051
    %v5178 = vsel %vm2134, %v4938, %v5053
    %v5179 = vsel %vm2134, %v4939, %v5055
    %v5180 = vsel %vm2134, %v4940, %v5057
    %v5181 = vsel %vm2134, %v4941, %v5059
    %v5182 = vsel %vm2134, %v4942, %v5061
    %v5183 = vsel %vm2134, %v4943, %v5063
    %vm5184 = vcmask 261120
    %v5185 = vsel %vm5184, %v5164, %v5105
    %v5186 = vsel %vm5184, %v5165, %v5107
    %v5187 = vsel %vm5184, %v5166, %v5109
    %v5188 = vsel %vm5184, %v5167, %v5111
    %v5189 = vsel %vm5184, %v5168, %v5113
    %v5190 = vsel %vm5184, %v5169, %v5115
    %v5191 = vsel %vm5184, %v5170, %v5117
    %v5192 = vsel %vm5184, %v5171, %v5119
    %v5193 = vsel %vm5184, %v5172, %v5121
    %v5194 = vsel %vm5184, %v5173, %v5123
    %v5195 = vsel %vm5184, %v5174, %v5125
    %v5196 = vsel %vm5184, %v5175, %v5127
    %v5197 = vsel %vm5184, %v5176, %v5129
    %v5198 = vsel %vm5184, %v5177, %v5131
    %v5199 = vsel %vm5184, %v5178, %v5133
    %v5200 = vsel %vm5184, %v5179, %v5135
    %v5201 = vsel %vm5184, %v5180, %v5137
    %v5202 = vsel %vm5184, %v5181, %v5139
    %v5203 = vsel %vm5184, %v5182, %v5141
    %v5204 = vsel %vm5184, %v5183, %v5143
    %v5205 = vpack.c.bf16 %v5186, %v5185
    %v5206 = vpack.c.bf16 %v5188, %v5187
    %v5207 = vpack.c.bf16 %v5190, %v5189
    %v5208 = vpack.c.bf16 %v5192, %v5191
    %v5209 = vpack.c.bf16 %v5194, %v5193
    %v5210 = vpack.c.bf16 %v5196, %v5195
    %v5211 = vpack.c.bf16 %v5198, %v5197
    %v5212 = vpack.c.bf16 %v5200, %v5199
    %v5213 = vpack.c.bf16 %v5202, %v5201
    %v5214 = vpack.c.bf16 %v5204, %v5203
    %v5216 = vperm.slane %v4843, 0
    %v5224 = vunpack.c.l.b16 %v4837
    %v5225 = vunpack.c.l.b16 %v4838
    %v5226 = vunpack.c.l.b16 %v4839
    %v5227 = vunpack.c.l.b16 %v4840
    %v5228 = vunpack.c.l.b16 %v4841
    %v5229 = vunpack.c.l.b16 %v4842
    %v5230 = vpack.c.b16 %v5225, %v5224
    %v5231 = vpack.c.b16 %v5227, %v5226
    %v5232 = vpack.c.b16 %v5229, %v5228
    %vm5236 = vcmask 392192
    %v5238 = vsel %vm5236, %v5205, 0
    %v5241 = vsel %vm5236, %v5206, 0
    %v5244 = vsel %vm5236, %v5207, 0
    %v5247 = vsel %vm5236, %v5208, 0
    %v5250 = vsel %vm5236, %v5209, 0
    %v5253 = vsel %vm5236, %v5210, 0
    %v5256 = vsel %vm5236, %v5211, 0
    %v5259 = vsel %vm5236, %v5212, 0
    %v5262 = vsel %vm5236, %v5213, 0
    %v5265 = vsel %vm5236, %v5214, 0
    %5267 = vmatpush.bf16.msra.mxu0 0
    %5268 = vmatpush.bf16.msra.mxu0 0
    %5269 = vmatpush.bf16.msra.mxu0 0
    %5270 = vmatpush.bf16.msra.mxu0 0
    %5271 = vmatpush.bf16.msra.mxu0 0
    %5272 = vmatpush.bf16.msra.mxu0 %v5232
    %5273 = vmatpush.bf16.msra.mxu0 %v5231
    %5274 = vmatpush.bf16.msra.mxu0 %v5230
    %5275 = vmatmul.bf16.gmra.mxu0 %v5238
    %v5276 = vpop.f32.mrf.mxu0
    %v5277 = vadd.f32 %v5216, %v5276
    %v5278 = vpop.f32.mrf.mxu0
    %v5279 = vadd.f32 %v5216, %v5278
    %5280 = vmatmul.bf16.gmra.mxu0 %v5241
    %v5281 = vpop.f32.mrf.mxu0
    %v5282 = vadd.f32 %v5216, %v5281
    %v5283 = vpop.f32.mrf.mxu0
    %v5284 = vadd.f32 %v5216, %v5283
    %5285 = vmatmul.bf16.gmra.mxu0 %v5244
    %v5286 = vpop.f32.mrf.mxu0
    %v5287 = vadd.f32 %v5216, %v5286
    %v5288 = vpop.f32.mrf.mxu0
    %v5289 = vadd.f32 %v5216, %v5288
    %5290 = vmatmul.bf16.gmra.mxu0 %v5247
    %v5291 = vpop.f32.mrf.mxu0
    %v5292 = vadd.f32 %v5216, %v5291
    %v5293 = vpop.f32.mrf.mxu0
    %v5294 = vadd.f32 %v5216, %v5293
    %5295 = vmatmul.bf16.gmra.mxu0 %v5250
    %v5296 = vpop.f32.mrf.mxu0
    %v5297 = vadd.f32 %v5216, %v5296
    %v5298 = vpop.f32.mrf.mxu0
    %v5299 = vadd.f32 %v5216, %v5298
    %5300 = vmatmul.bf16.gmra.mxu0 %v5253
    %v5301 = vpop.f32.mrf.mxu0
    %v5302 = vadd.f32 %v5216, %v5301
    %v5303 = vpop.f32.mrf.mxu0
    %v5304 = vadd.f32 %v5216, %v5303
    %5305 = vmatmul.bf16.gmra.mxu0 %v5256
    %v5306 = vpop.f32.mrf.mxu0
    %v5307 = vadd.f32 %v5216, %v5306
    %v5308 = vpop.f32.mrf.mxu0
    %v5309 = vadd.f32 %v5216, %v5308
    %5310 = vmatmul.bf16.gmra.mxu0 %v5259
    %v5311 = vpop.f32.mrf.mxu0
    %v5312 = vadd.f32 %v5216, %v5311
    %v5313 = vpop.f32.mrf.mxu0
    %v5314 = vadd.f32 %v5216, %v5313
    %5315 = vmatmul.bf16.gmra.mxu0 %v5262
    %v5316 = vpop.f32.mrf.mxu0
    %v5317 = vadd.f32 %v5216, %v5316
    %v5318 = vpop.f32.mrf.mxu0
    %v5319 = vadd.f32 %v5216, %v5318
    %5320 = vmatmul.bf16.gmra.mxu0 %v5265
    %v5321 = vpop.f32.mrf.mxu0
    %v5322 = vadd.f32 %v5216, %v5321
    %v5323 = vpop.f32.mrf.mxu0
    %v5324 = vadd.f32 %v5216, %v5323
    %5325 = vdwg.mxu0
    %v5326 = vmax.f32 %v5277, 0.0
    %v5327 = vmax.f32 %v5279, 0.0
    %v5328 = vmax.f32 %v5282, 0.0
    %v5329 = vmax.f32 %v5284, 0.0
    %v5330 = vmax.f32 %v5287, 0.0
    %v5331 = vmax.f32 %v5289, 0.0
    %v5332 = vmax.f32 %v5292, 0.0
    %v5333 = vmax.f32 %v5294, 0.0
    %v5334 = vmax.f32 %v5297, 0.0
    %v5335 = vmax.f32 %v5299, 0.0
    %v5336 = vmax.f32 %v5302, 0.0
    %v5337 = vmax.f32 %v5304, 0.0
    %v5338 = vmax.f32 %v5307, 0.0
    %v5339 = vmax.f32 %v5309, 0.0
    %v5340 = vmax.f32 %v5312, 0.0
    %v5341 = vmax.f32 %v5314, 0.0
    %v5342 = vmax.f32 %v5317, 0.0
    %v5343 = vmax.f32 %v5319, 0.0
    %v5344 = vmax.f32 %v5322, 0.0
    %v5345 = vmax.f32 %v5324, 0.0
    %v5366 = vrot.slane %v5326, 2
    %v5367 = vrot.slane %v5326, 4
    %v5368 = vrot.slane %v5326, 6
    %v5369 = vrot.slane %v5327, 2
    %v5370 = vrot.slane %v5327, 4
    %v5371 = vrot.slane %v5327, 6
    %v5372 = vrot.slane %v5328, 2
    %v5373 = vrot.slane %v5328, 4
    %v5374 = vrot.slane %v5328, 6
    %v5375 = vrot.slane %v5329, 2
    %v5376 = vrot.slane %v5329, 4
    %v5377 = vrot.slane %v5329, 6
    %v5378 = vrot.slane %v5330, 2
    %v5379 = vrot.slane %v5330, 4
    %v5380 = vrot.slane %v5330, 6
    %v5381 = vrot.slane %v5331, 2
    %v5382 = vrot.slane %v5331, 4
    %v5383 = vrot.slane %v5331, 6
    %v5384 = vrot.slane %v5332, 2
    %v5385 = vrot.slane %v5332, 4
    %v5386 = vrot.slane %v5332, 6
    %v5387 = vrot.slane %v5333, 2
    %v5388 = vrot.slane %v5333, 4
    %v5389 = vrot.slane %v5333, 6
    %v5390 = vrot.slane %v5334, 2
    %v5391 = vrot.slane %v5334, 4
    %v5392 = vrot.slane %v5334, 6
    %v5393 = vrot.slane %v5335, 2
    %v5394 = vrot.slane %v5335, 4
    %v5395 = vrot.slane %v5335, 6
    %v5396 = vrot.slane %v5336, 2
    %v5397 = vrot.slane %v5336, 4
    %v5398 = vrot.slane %v5336, 6
    %v5399 = vrot.slane %v5337, 2
    %v5400 = vrot.slane %v5337, 4
    %v5401 = vrot.slane %v5337, 6
    %v5402 = vrot.slane %v5338, 2
    %v5403 = vrot.slane %v5338, 4
    %v5404 = vrot.slane %v5338, 6
    %v5405 = vrot.slane %v5339, 2
    %v5406 = vrot.slane %v5339, 4
    %v5407 = vrot.slane %v5339, 6
    %v5408 = vrot.slane %v5340, 2
    %v5409 = vrot.slane %v5340, 4
    %v5410 = vrot.slane %v5340, 6
    %v5411 = vrot.slane %v5341, 2
    %v5412 = vrot.slane %v5341, 4
    %v5413 = vrot.slane %v5341, 6
    %v5414 = vrot.slane %v5342, 2
    %v5415 = vrot.slane %v5342, 4
    %v5416 = vrot.slane %v5342, 6
    %v5417 = vrot.slane %v5343, 2
    %v5418 = vrot.slane %v5343, 4
    %v5419 = vrot.slane %v5343, 6
    %v5420 = vrot.slane %v5344, 2
    %v5421 = vrot.slane %v5344, 4
    %v5422 = vrot.slane %v5344, 6
    %v5423 = vrot.slane %v5345, 2
    %v5424 = vrot.slane %v5345, 4
    %v5425 = vrot.slane %v5345, 6
    %vm5486 = vcmask 123904
    %v5487 = vsel %vm5486, %v5326, -inf
    %v5488 = vrot.slane %v5487, 4
    %v5489 = vmax.f32 %v5487, %v5488
    %v5490 = vrot.slane %v5489, 2
    %v5491 = vmax.f32 %v5489, %v5490
    %v5492 = vrot.slane %v5491, 1
    %v5493 = vmax.f32 %v5491, %v5492
    %v5494 = vsel %vm5486, %v5366, -inf
    %v5495 = vrot.slane %v5494, 4
    %v5496 = vmax.f32 %v5494, %v5495
    %v5497 = vrot.slane %v5496, 2
    %v5498 = vmax.f32 %v5496, %v5497
    %v5499 = vrot.slane %v5498, 1
    %v5500 = vmax.f32 %v5498, %v5499
    %v5501 = vsel %vm5486, %v5367, -inf
    %v5502 = vrot.slane %v5501, 4
    %v5503 = vmax.f32 %v5501, %v5502
    %v5504 = vrot.slane %v5503, 2
    %v5505 = vmax.f32 %v5503, %v5504
    %v5506 = vrot.slane %v5505, 1
    %v5507 = vmax.f32 %v5505, %v5506
    %v5508 = vsel %vm5486, %v5368, -inf
    %v5509 = vrot.slane %v5508, 4
    %v5510 = vmax.f32 %v5508, %v5509
    %v5511 = vrot.slane %v5510, 2
    %v5512 = vmax.f32 %v5510, %v5511
    %v5513 = vrot.slane %v5512, 1
    %v5514 = vmax.f32 %v5512, %v5513
    %v5515 = vsel %vm5486, %v5327, -inf
    %v5516 = vrot.slane %v5515, 4
    %v5517 = vmax.f32 %v5515, %v5516
    %v5518 = vrot.slane %v5517, 2
    %v5519 = vmax.f32 %v5517, %v5518
    %v5520 = vrot.slane %v5519, 1
    %v5521 = vmax.f32 %v5519, %v5520
    %v5522 = vsel %vm5486, %v5369, -inf
    %v5523 = vrot.slane %v5522, 4
    %v5524 = vmax.f32 %v5522, %v5523
    %v5525 = vrot.slane %v5524, 2
    %v5526 = vmax.f32 %v5524, %v5525
    %v5527 = vrot.slane %v5526, 1
    %v5528 = vmax.f32 %v5526, %v5527
    %v5529 = vsel %vm5486, %v5370, -inf
    %v5530 = vrot.slane %v5529, 4
    %v5531 = vmax.f32 %v5529, %v5530
    %v5532 = vrot.slane %v5531, 2
    %v5533 = vmax.f32 %v5531, %v5532
    %v5534 = vrot.slane %v5533, 1
    %v5535 = vmax.f32 %v5533, %v5534
    %v5536 = vsel %vm5486, %v5371, -inf
    %v5537 = vrot.slane %v5536, 4
    %v5538 = vmax.f32 %v5536, %v5537
    %v5539 = vrot.slane %v5538, 2
    %v5540 = vmax.f32 %v5538, %v5539
    %v5541 = vrot.slane %v5540, 1
    %v5542 = vmax.f32 %v5540, %v5541
    %v5543 = vsel %vm5486, %v5328, -inf
    %v5544 = vrot.slane %v5543, 4
    %v5545 = vmax.f32 %v5543, %v5544
    %v5546 = vrot.slane %v5545, 2
    %v5547 = vmax.f32 %v5545, %v5546
    %v5548 = vrot.slane %v5547, 1
    %v5549 = vmax.f32 %v5547, %v5548
    %v5550 = vsel %vm5486, %v5372, -inf
    %v5551 = vrot.slane %v5550, 4
    %v5552 = vmax.f32 %v5550, %v5551
    %v5553 = vrot.slane %v5552, 2
    %v5554 = vmax.f32 %v5552, %v5553
    %v5555 = vrot.slane %v5554, 1
    %v5556 = vmax.f32 %v5554, %v5555
    %v5557 = vsel %vm5486, %v5373, -inf
    %v5558 = vrot.slane %v5557, 4
    %v5559 = vmax.f32 %v5557, %v5558
    %v5560 = vrot.slane %v5559, 2
    %v5561 = vmax.f32 %v5559, %v5560
    %v5562 = vrot.slane %v5561, 1
    %v5563 = vmax.f32 %v5561, %v5562
    %v5564 = vsel %vm5486, %v5374, -inf
    %v5565 = vrot.slane %v5564, 4
    %v5566 = vmax.f32 %v5564, %v5565
    %v5567 = vrot.slane %v5566, 2
    %v5568 = vmax.f32 %v5566, %v5567
    %v5569 = vrot.slane %v5568, 1
    %v5570 = vmax.f32 %v5568, %v5569
    %v5571 = vsel %vm5486, %v5329, -inf
    %v5572 = vrot.slane %v5571, 4
    %v5573 = vmax.f32 %v5571, %v5572
    %v5574 = vrot.slane %v5573, 2
    %v5575 = vmax.f32 %v5573, %v5574
    %v5576 = vrot.slane %v5575, 1
    %v5577 = vmax.f32 %v5575, %v5576
    %v5578 = vsel %vm5486, %v5375, -inf
    %v5579 = vrot.slane %v5578, 4
    %v5580 = vmax.f32 %v5578, %v5579
    %v5581 = vrot.slane %v5580, 2
    %v5582 = vmax.f32 %v5580, %v5581
    %v5583 = vrot.slane %v5582, 1
    %v5584 = vmax.f32 %v5582, %v5583
    %v5585 = vsel %vm5486, %v5376, -inf
    %v5586 = vrot.slane %v5585, 4
    %v5587 = vmax.f32 %v5585, %v5586
    %v5588 = vrot.slane %v5587, 2
    %v5589 = vmax.f32 %v5587, %v5588
    %v5590 = vrot.slane %v5589, 1
    %v5591 = vmax.f32 %v5589, %v5590
    %v5592 = vsel %vm5486, %v5377, -inf
    %v5593 = vrot.slane %v5592, 4
    %v5594 = vmax.f32 %v5592, %v5593
    %v5595 = vrot.slane %v5594, 2
    %v5596 = vmax.f32 %v5594, %v5595
    %v5597 = vrot.slane %v5596, 1
    %v5598 = vmax.f32 %v5596, %v5597
    %v5599 = vsel %vm5486, %v5330, -inf
    %v5600 = vrot.slane %v5599, 4
    %v5601 = vmax.f32 %v5599, %v5600
    %v5602 = vrot.slane %v5601, 2
    %v5603 = vmax.f32 %v5601, %v5602
    %v5604 = vrot.slane %v5603, 1
    %v5605 = vmax.f32 %v5603, %v5604
    %v5606 = vsel %vm5486, %v5378, -inf
    %v5607 = vrot.slane %v5606, 4
    %v5608 = vmax.f32 %v5606, %v5607
    %v5609 = vrot.slane %v5608, 2
    %v5610 = vmax.f32 %v5608, %v5609
    %v5611 = vrot.slane %v5610, 1
    %v5612 = vmax.f32 %v5610, %v5611
    %v5613 = vsel %vm5486, %v5379, -inf
    %v5614 = vrot.slane %v5613, 4
    %v5615 = vmax.f32 %v5613, %v5614
    %v5616 = vrot.slane %v5615, 2
    %v5617 = vmax.f32 %v5615, %v5616
    %v5618 = vrot.slane %v5617, 1
    %v5619 = vmax.f32 %v5617, %v5618
    %v5620 = vsel %vm5486, %v5380, -inf
    %v5621 = vrot.slane %v5620, 4
    %v5622 = vmax.f32 %v5620, %v5621
    %v5623 = vrot.slane %v5622, 2
    %v5624 = vmax.f32 %v5622, %v5623
    %v5625 = vrot.slane %v5624, 1
    %v5626 = vmax.f32 %v5624, %v5625
    %v5627 = vsel %vm5486, %v5331, -inf
    %v5628 = vrot.slane %v5627, 4
    %v5629 = vmax.f32 %v5627, %v5628
    %v5630 = vrot.slane %v5629, 2
    %v5631 = vmax.f32 %v5629, %v5630
    %v5632 = vrot.slane %v5631, 1
    %v5633 = vmax.f32 %v5631, %v5632
    %v5634 = vsel %vm5486, %v5381, -inf
    %v5635 = vrot.slane %v5634, 4
    %v5636 = vmax.f32 %v5634, %v5635
    %v5637 = vrot.slane %v5636, 2
    %v5638 = vmax.f32 %v5636, %v5637
    %v5639 = vrot.slane %v5638, 1
    %v5640 = vmax.f32 %v5638, %v5639
    %v5641 = vsel %vm5486, %v5382, -inf
    %v5642 = vrot.slane %v5641, 4
    %v5643 = vmax.f32 %v5641, %v5642
    %v5644 = vrot.slane %v5643, 2
    %v5645 = vmax.f32 %v5643, %v5644
    %v5646 = vrot.slane %v5645, 1
    %v5647 = vmax.f32 %v5645, %v5646
    %v5648 = vsel %vm5486, %v5383, -inf
    %v5649 = vrot.slane %v5648, 4
    %v5650 = vmax.f32 %v5648, %v5649
    %v5651 = vrot.slane %v5650, 2
    %v5652 = vmax.f32 %v5650, %v5651
    %v5653 = vrot.slane %v5652, 1
    %v5654 = vmax.f32 %v5652, %v5653
    %v5655 = vsel %vm5486, %v5332, -inf
    %v5656 = vrot.slane %v5655, 4
    %v5657 = vmax.f32 %v5655, %v5656
    %v5658 = vrot.slane %v5657, 2
    %v5659 = vmax.f32 %v5657, %v5658
    %v5660 = vrot.slane %v5659, 1
    %v5661 = vmax.f32 %v5659, %v5660
    %v5662 = vsel %vm5486, %v5384, -inf
    %v5663 = vrot.slane %v5662, 4
    %v5664 = vmax.f32 %v5662, %v5663
    %v5665 = vrot.slane %v5664, 2
    %v5666 = vmax.f32 %v5664, %v5665
    %v5667 = vrot.slane %v5666, 1
    %v5668 = vmax.f32 %v5666, %v5667
    %v5669 = vsel %vm5486, %v5385, -inf
    %v5670 = vrot.slane %v5669, 4
    %v5671 = vmax.f32 %v5669, %v5670
    %v5672 = vrot.slane %v5671, 2
    %v5673 = vmax.f32 %v5671, %v5672
    %v5674 = vrot.slane %v5673, 1
    %v5675 = vmax.f32 %v5673, %v5674
    %v5676 = vsel %vm5486, %v5386, -inf
    %v5677 = vrot.slane %v5676, 4
    %v5678 = vmax.f32 %v5676, %v5677
    %v5679 = vrot.slane %v5678, 2
    %v5680 = vmax.f32 %v5678, %v5679
    %v5681 = vrot.slane %v5680, 1
    %v5682 = vmax.f32 %v5680, %v5681
    %v5683 = vsel %vm5486, %v5333, -inf
    %v5684 = vrot.slane %v5683, 4
    %v5685 = vmax.f32 %v5683, %v5684
    %v5686 = vrot.slane %v5685, 2
    %v5687 = vmax.f32 %v5685, %v5686
    %v5688 = vrot.slane %v5687, 1
    %v5689 = vmax.f32 %v5687, %v5688
    %v5690 = vsel %vm5486, %v5387, -inf
    %v5691 = vrot.slane %v5690, 4
    %v5692 = vmax.f32 %v5690, %v5691
    %v5693 = vrot.slane %v5692, 2
    %v5694 = vmax.f32 %v5692, %v5693
    %v5695 = vrot.slane %v5694, 1
    %v5696 = vmax.f32 %v5694, %v5695
    %v5697 = vsel %vm5486, %v5388, -inf
    %v5698 = vrot.slane %v5697, 4
    %v5699 = vmax.f32 %v5697, %v5698
    %v5700 = vrot.slane %v5699, 2
    %v5701 = vmax.f32 %v5699, %v5700
    %v5702 = vrot.slane %v5701, 1
    %v5703 = vmax.f32 %v5701, %v5702
    %v5704 = vsel %vm5486, %v5389, -inf
    %v5705 = vrot.slane %v5704, 4
    %v5706 = vmax.f32 %v5704, %v5705
    %v5707 = vrot.slane %v5706, 2
    %v5708 = vmax.f32 %v5706, %v5707
    %v5709 = vrot.slane %v5708, 1
    %v5710 = vmax.f32 %v5708, %v5709
    %v5711 = vsel %vm5486, %v5334, -inf
    %v5712 = vrot.slane %v5711, 4
    %v5713 = vmax.f32 %v5711, %v5712
    %v5714 = vrot.slane %v5713, 2
    %v5715 = vmax.f32 %v5713, %v5714
    %v5716 = vrot.slane %v5715, 1
    %v5717 = vmax.f32 %v5715, %v5716
    %v5718 = vsel %vm5486, %v5390, -inf
    %v5719 = vrot.slane %v5718, 4
    %v5720 = vmax.f32 %v5718, %v5719
    %v5721 = vrot.slane %v5720, 2
    %v5722 = vmax.f32 %v5720, %v5721
    %v5723 = vrot.slane %v5722, 1
    %v5724 = vmax.f32 %v5722, %v5723
    %v5725 = vsel %vm5486, %v5391, -inf
    %v5726 = vrot.slane %v5725, 4
    %v5727 = vmax.f32 %v5725, %v5726
    %v5728 = vrot.slane %v5727, 2
    %v5729 = vmax.f32 %v5727, %v5728
    %v5730 = vrot.slane %v5729, 1
    %v5731 = vmax.f32 %v5729, %v5730
    %v5732 = vsel %vm5486, %v5392, -inf
    %v5733 = vrot.slane %v5732, 4
    %v5734 = vmax.f32 %v5732, %v5733
    %v5735 = vrot.slane %v5734, 2
    %v5736 = vmax.f32 %v5734, %v5735
    %v5737 = vrot.slane %v5736, 1
    %v5738 = vmax.f32 %v5736, %v5737
    %v5739 = vsel %vm5486, %v5335, -inf
    %v5740 = vrot.slane %v5739, 4
    %v5741 = vmax.f32 %v5739, %v5740
    %v5742 = vrot.slane %v5741, 2
    %v5743 = vmax.f32 %v5741, %v5742
    %v5744 = vrot.slane %v5743, 1
    %v5745 = vmax.f32 %v5743, %v5744
    %v5746 = vsel %vm5486, %v5393, -inf
    %v5747 = vrot.slane %v5746, 4
    %v5748 = vmax.f32 %v5746, %v5747
    %v5749 = vrot.slane %v5748, 2
    %v5750 = vmax.f32 %v5748, %v5749
    %v5751 = vrot.slane %v5750, 1
    %v5752 = vmax.f32 %v5750, %v5751
    %v5753 = vsel %vm5486, %v5394, -inf
    %v5754 = vrot.slane %v5753, 4
    %v5755 = vmax.f32 %v5753, %v5754
    %v5756 = vrot.slane %v5755, 2
    %v5757 = vmax.f32 %v5755, %v5756
    %v5758 = vrot.slane %v5757, 1
    %v5759 = vmax.f32 %v5757, %v5758
    %v5760 = vsel %vm5486, %v5395, -inf
    %v5761 = vrot.slane %v5760, 4
    %v5762 = vmax.f32 %v5760, %v5761
    %v5763 = vrot.slane %v5762, 2
    %v5764 = vmax.f32 %v5762, %v5763
    %v5765 = vrot.slane %v5764, 1
    %v5766 = vmax.f32 %v5764, %v5765
    %v5767 = vsel %vm5486, %v5336, -inf
    %v5768 = vrot.slane %v5767, 4
    %v5769 = vmax.f32 %v5767, %v5768
    %v5770 = vrot.slane %v5769, 2
    %v5771 = vmax.f32 %v5769, %v5770
    %v5772 = vrot.slane %v5771, 1
    %v5773 = vmax.f32 %v5771, %v5772
    %v5774 = vsel %vm5486, %v5396, -inf
    %v5775 = vrot.slane %v5774, 4
    %v5776 = vmax.f32 %v5774, %v5775
    %v5777 = vrot.slane %v5776, 2
    %v5778 = vmax.f32 %v5776, %v5777
    %v5779 = vrot.slane %v5778, 1
    %v5780 = vmax.f32 %v5778, %v5779
    %v5781 = vsel %vm5486, %v5397, -inf
    %v5782 = vrot.slane %v5781, 4
    %v5783 = vmax.f32 %v5781, %v5782
    %v5784 = vrot.slane %v5783, 2
    %v5785 = vmax.f32 %v5783, %v5784
    %v5786 = vrot.slane %v5785, 1
    %v5787 = vmax.f32 %v5785, %v5786
    %v5788 = vsel %vm5486, %v5398, -inf
    %v5789 = vrot.slane %v5788, 4
    %v5790 = vmax.f32 %v5788, %v5789
    %v5791 = vrot.slane %v5790, 2
    %v5792 = vmax.f32 %v5790, %v5791
    %v5793 = vrot.slane %v5792, 1
    %v5794 = vmax.f32 %v5792, %v5793
    %v5795 = vsel %vm5486, %v5337, -inf
    %v5796 = vrot.slane %v5795, 4
    %v5797 = vmax.f32 %v5795, %v5796
    %v5798 = vrot.slane %v5797, 2
    %v5799 = vmax.f32 %v5797, %v5798
    %v5800 = vrot.slane %v5799, 1
    %v5801 = vmax.f32 %v5799, %v5800
    %v5802 = vsel %vm5486, %v5399, -inf
    %v5803 = vrot.slane %v5802, 4
    %v5804 = vmax.f32 %v5802, %v5803
    %v5805 = vrot.slane %v5804, 2
    %v5806 = vmax.f32 %v5804, %v5805
    %v5807 = vrot.slane %v5806, 1
    %v5808 = vmax.f32 %v5806, %v5807
    %v5809 = vsel %vm5486, %v5400, -inf
    %v5810 = vrot.slane %v5809, 4
    %v5811 = vmax.f32 %v5809, %v5810
    %v5812 = vrot.slane %v5811, 2
    %v5813 = vmax.f32 %v5811, %v5812
    %v5814 = vrot.slane %v5813, 1
    %v5815 = vmax.f32 %v5813, %v5814
    %v5816 = vsel %vm5486, %v5401, -inf
    %v5817 = vrot.slane %v5816, 4
    %v5818 = vmax.f32 %v5816, %v5817
    %v5819 = vrot.slane %v5818, 2
    %v5820 = vmax.f32 %v5818, %v5819
    %v5821 = vrot.slane %v5820, 1
    %v5822 = vmax.f32 %v5820, %v5821
    %v5823 = vsel %vm5486, %v5338, -inf
    %v5824 = vrot.slane %v5823, 4
    %v5825 = vmax.f32 %v5823, %v5824
    %v5826 = vrot.slane %v5825, 2
    %v5827 = vmax.f32 %v5825, %v5826
    %v5828 = vrot.slane %v5827, 1
    %v5829 = vmax.f32 %v5827, %v5828
    %v5830 = vsel %vm5486, %v5402, -inf
    %v5831 = vrot.slane %v5830, 4
    %v5832 = vmax.f32 %v5830, %v5831
    %v5833 = vrot.slane %v5832, 2
    %v5834 = vmax.f32 %v5832, %v5833
    %v5835 = vrot.slane %v5834, 1
    %v5836 = vmax.f32 %v5834, %v5835
    %v5837 = vsel %vm5486, %v5403, -inf
    %v5838 = vrot.slane %v5837, 4
    %v5839 = vmax.f32 %v5837, %v5838
    %v5840 = vrot.slane %v5839, 2
    %v5841 = vmax.f32 %v5839, %v5840
    %v5842 = vrot.slane %v5841, 1
    %v5843 = vmax.f32 %v5841, %v5842
    %v5844 = vsel %vm5486, %v5404, -inf
    %v5845 = vrot.slane %v5844, 4
    %v5846 = vmax.f32 %v5844, %v5845
    %v5847 = vrot.slane %v5846, 2
    %v5848 = vmax.f32 %v5846, %v5847
    %v5849 = vrot.slane %v5848, 1
    %v5850 = vmax.f32 %v5848, %v5849
    %v5851 = vsel %vm5486, %v5339, -inf
    %v5852 = vrot.slane %v5851, 4
    %v5853 = vmax.f32 %v5851, %v5852
    %v5854 = vrot.slane %v5853, 2
    %v5855 = vmax.f32 %v5853, %v5854
    %v5856 = vrot.slane %v5855, 1
    %v5857 = vmax.f32 %v5855, %v5856
    %v5858 = vsel %vm5486, %v5405, -inf
    %v5859 = vrot.slane %v5858, 4
    %v5860 = vmax.f32 %v5858, %v5859
    %v5861 = vrot.slane %v5860, 2
    %v5862 = vmax.f32 %v5860, %v5861
    %v5863 = vrot.slane %v5862, 1
    %v5864 = vmax.f32 %v5862, %v5863
    %v5865 = vsel %vm5486, %v5406, -inf
    %v5866 = vrot.slane %v5865, 4
    %v5867 = vmax.f32 %v5865, %v5866
    %v5868 = vrot.slane %v5867, 2
    %v5869 = vmax.f32 %v5867, %v5868
    %v5870 = vrot.slane %v5869, 1
    %v5871 = vmax.f32 %v5869, %v5870
    %v5872 = vsel %vm5486, %v5407, -inf
    %v5873 = vrot.slane %v5872, 4
    %v5874 = vmax.f32 %v5872, %v5873
    %v5875 = vrot.slane %v5874, 2
    %v5876 = vmax.f32 %v5874, %v5875
    %v5877 = vrot.slane %v5876, 1
    %v5878 = vmax.f32 %v5876, %v5877
    %v5879 = vsel %vm5486, %v5340, -inf
    %v5880 = vrot.slane %v5879, 4
    %v5881 = vmax.f32 %v5879, %v5880
    %v5882 = vrot.slane %v5881, 2
    %v5883 = vmax.f32 %v5881, %v5882
    %v5884 = vrot.slane %v5883, 1
    %v5885 = vmax.f32 %v5883, %v5884
    %v5886 = vsel %vm5486, %v5408, -inf
    %v5887 = vrot.slane %v5886, 4
    %v5888 = vmax.f32 %v5886, %v5887
    %v5889 = vrot.slane %v5888, 2
    %v5890 = vmax.f32 %v5888, %v5889
    %v5891 = vrot.slane %v5890, 1
    %v5892 = vmax.f32 %v5890, %v5891
    %v5893 = vsel %vm5486, %v5409, -inf
    %v5894 = vrot.slane %v5893, 4
    %v5895 = vmax.f32 %v5893, %v5894
    %v5896 = vrot.slane %v5895, 2
    %v5897 = vmax.f32 %v5895, %v5896
    %v5898 = vrot.slane %v5897, 1
    %v5899 = vmax.f32 %v5897, %v5898
    %v5900 = vsel %vm5486, %v5410, -inf
    %v5901 = vrot.slane %v5900, 4
    %v5902 = vmax.f32 %v5900, %v5901
    %v5903 = vrot.slane %v5902, 2
    %v5904 = vmax.f32 %v5902, %v5903
    %v5905 = vrot.slane %v5904, 1
    %v5906 = vmax.f32 %v5904, %v5905
    %v5907 = vsel %vm5486, %v5341, -inf
    %v5908 = vrot.slane %v5907, 4
    %v5909 = vmax.f32 %v5907, %v5908
    %v5910 = vrot.slane %v5909, 2
    %v5911 = vmax.f32 %v5909, %v5910
    %v5912 = vrot.slane %v5911, 1
    %v5913 = vmax.f32 %v5911, %v5912
    %v5914 = vsel %vm5486, %v5411, -inf
    %v5915 = vrot.slane %v5914, 4
    %v5916 = vmax.f32 %v5914, %v5915
    %v5917 = vrot.slane %v5916, 2
    %v5918 = vmax.f32 %v5916, %v5917
    %v5919 = vrot.slane %v5918, 1
    %v5920 = vmax.f32 %v5918, %v5919
    %v5921 = vsel %vm5486, %v5412, -inf
    %v5922 = vrot.slane %v5921, 4
    %v5923 = vmax.f32 %v5921, %v5922
    %v5924 = vrot.slane %v5923, 2
    %v5925 = vmax.f32 %v5923, %v5924
    %v5926 = vrot.slane %v5925, 1
    %v5927 = vmax.f32 %v5925, %v5926
    %v5928 = vsel %vm5486, %v5413, -inf
    %v5929 = vrot.slane %v5928, 4
    %v5930 = vmax.f32 %v5928, %v5929
    %v5931 = vrot.slane %v5930, 2
    %v5932 = vmax.f32 %v5930, %v5931
    %v5933 = vrot.slane %v5932, 1
    %v5934 = vmax.f32 %v5932, %v5933
    %v5935 = vsel %vm5486, %v5342, -inf
    %v5936 = vrot.slane %v5935, 4
    %v5937 = vmax.f32 %v5935, %v5936
    %v5938 = vrot.slane %v5937, 2
    %v5939 = vmax.f32 %v5937, %v5938
    %v5940 = vrot.slane %v5939, 1
    %v5941 = vmax.f32 %v5939, %v5940
    %v5942 = vsel %vm5486, %v5414, -inf
    %v5943 = vrot.slane %v5942, 4
    %v5944 = vmax.f32 %v5942, %v5943
    %v5945 = vrot.slane %v5944, 2
    %v5946 = vmax.f32 %v5944, %v5945
    %v5947 = vrot.slane %v5946, 1
    %v5948 = vmax.f32 %v5946, %v5947
    %v5949 = vsel %vm5486, %v5415, -inf
    %v5950 = vrot.slane %v5949, 4
    %v5951 = vmax.f32 %v5949, %v5950
    %v5952 = vrot.slane %v5951, 2
    %v5953 = vmax.f32 %v5951, %v5952
    %v5954 = vrot.slane %v5953, 1
    %v5955 = vmax.f32 %v5953, %v5954
    %v5956 = vsel %vm5486, %v5416, -inf
    %v5957 = vrot.slane %v5956, 4
    %v5958 = vmax.f32 %v5956, %v5957
    %v5959 = vrot.slane %v5958, 2
    %v5960 = vmax.f32 %v5958, %v5959
    %v5961 = vrot.slane %v5960, 1
    %v5962 = vmax.f32 %v5960, %v5961
    %v5963 = vsel %vm5486, %v5343, -inf
    %v5964 = vrot.slane %v5963, 4
    %v5965 = vmax.f32 %v5963, %v5964
    %v5966 = vrot.slane %v5965, 2
    %v5967 = vmax.f32 %v5965, %v5966
    %v5968 = vrot.slane %v5967, 1
    %v5969 = vmax.f32 %v5967, %v5968
    %v5970 = vsel %vm5486, %v5417, -inf
    %v5971 = vrot.slane %v5970, 4
    %v5972 = vmax.f32 %v5970, %v5971
    %v5973 = vrot.slane %v5972, 2
    %v5974 = vmax.f32 %v5972, %v5973
    %v5975 = vrot.slane %v5974, 1
    %v5976 = vmax.f32 %v5974, %v5975
    %v5977 = vsel %vm5486, %v5418, -inf
    %v5978 = vrot.slane %v5977, 4
    %v5979 = vmax.f32 %v5977, %v5978
    %v5980 = vrot.slane %v5979, 2
    %v5981 = vmax.f32 %v5979, %v5980
    %v5982 = vrot.slane %v5981, 1
    %v5983 = vmax.f32 %v5981, %v5982
    %v5984 = vsel %vm5486, %v5419, -inf
    %v5985 = vrot.slane %v5984, 4
    %v5986 = vmax.f32 %v5984, %v5985
    %v5987 = vrot.slane %v5986, 2
    %v5988 = vmax.f32 %v5986, %v5987
    %v5989 = vrot.slane %v5988, 1
    %v5990 = vmax.f32 %v5988, %v5989
    %v5991 = vsel %vm5486, %v5344, -inf
    %v5992 = vrot.slane %v5991, 4
    %v5993 = vmax.f32 %v5991, %v5992
    %v5994 = vrot.slane %v5993, 2
    %v5995 = vmax.f32 %v5993, %v5994
    %v5996 = vrot.slane %v5995, 1
    %v5997 = vmax.f32 %v5995, %v5996
    %v5998 = vsel %vm5486, %v5420, -inf
    %v5999 = vrot.slane %v5998, 4
    %v6000 = vmax.f32 %v5998, %v5999
    %v6001 = vrot.slane %v6000, 2
    %v6002 = vmax.f32 %v6000, %v6001
    %v6003 = vrot.slane %v6002, 1
    %v6004 = vmax.f32 %v6002, %v6003
    %v6005 = vsel %vm5486, %v5421, -inf
    %v6006 = vrot.slane %v6005, 4
    %v6007 = vmax.f32 %v6005, %v6006
    %v6008 = vrot.slane %v6007, 2
    %v6009 = vmax.f32 %v6007, %v6008
    %v6010 = vrot.slane %v6009, 1
    %v6011 = vmax.f32 %v6009, %v6010
    %v6012 = vsel %vm5486, %v5422, -inf
    %v6013 = vrot.slane %v6012, 4
    %v6014 = vmax.f32 %v6012, %v6013
    %v6015 = vrot.slane %v6014, 2
    %v6016 = vmax.f32 %v6014, %v6015
    %v6017 = vrot.slane %v6016, 1
    %v6018 = vmax.f32 %v6016, %v6017
    %v6019 = vsel %vm5486, %v5345, -inf
    %v6020 = vrot.slane %v6019, 4
    %v6021 = vmax.f32 %v6019, %v6020
    %v6022 = vrot.slane %v6021, 2
    %v6023 = vmax.f32 %v6021, %v6022
    %v6024 = vrot.slane %v6023, 1
    %v6025 = vmax.f32 %v6023, %v6024
    %v6026 = vsel %vm5486, %v5423, -inf
    %v6027 = vrot.slane %v6026, 4
    %v6028 = vmax.f32 %v6026, %v6027
    %v6029 = vrot.slane %v6028, 2
    %v6030 = vmax.f32 %v6028, %v6029
    %v6031 = vrot.slane %v6030, 1
    %v6032 = vmax.f32 %v6030, %v6031
    %v6033 = vsel %vm5486, %v5424, -inf
    %v6034 = vrot.slane %v6033, 4
    %v6035 = vmax.f32 %v6033, %v6034
    %v6036 = vrot.slane %v6035, 2
    %v6037 = vmax.f32 %v6035, %v6036
    %v6038 = vrot.slane %v6037, 1
    %v6039 = vmax.f32 %v6037, %v6038
    %v6040 = vsel %vm5486, %v5425, -inf
    %v6041 = vrot.slane %v6040, 4
    %v6042 = vmax.f32 %v6040, %v6041
    %v6043 = vrot.slane %v6042, 2
    %v6044 = vmax.f32 %v6042, %v6043
    %v6045 = vrot.slane %v6044, 1
    %v6046 = vmax.f32 %v6044, %v6045
    %v6047 = vld [vmem:[%s9] sm:$0xf]
    %v6048 = vld [vmem:[%s9 + $0x4] sm:$0xf]
    %v6049 = vld [vmem:[%s9 + $0x8] sm:$0xf]
    %v6050 = vld [vmem:[%s9 + $0xc] sm:$0xf]
    %v6051 = vld [vmem:[%s9 + $0x10] sm:$0xf]
    %v6052 = vld [vmem:[%s9 + $0x14] sm:$0xf]
    %v6053 = vld [vmem:[%s10] sm:$0x1]
    %vm6054 = vcmp.eq.s32.totalorder %v101, 39
    %vm6055 = vcmp.eq.s32.totalorder %v102, 39
    %vm6056 = vcmp.eq.s32.totalorder %v103, 39
    %vm6057 = vcmp.eq.s32.totalorder %v104, 39
    %vm6058 = vcmp.eq.s32.totalorder %v105, 39
    %v6138 = vsel %vm3995, %v5500, %v5493
    %v6139 = vsel %vm3997, %v5507, %v6138
    %v6140 = vsel %vm3999, %v5514, %v6139
    %v6141 = vsel %vm4001, %v5521, %v6140
    %v6142 = vsel %vm4003, %v5528, %v6141
    %v6143 = vsel %vm4005, %v5535, %v6142
    %v6144 = vsel %vm4007, %v5549, %v5542
    %v6145 = vsel %vm3995, %v5556, %v6144
    %v6146 = vsel %vm3997, %v5563, %v6145
    %v6147 = vsel %vm3999, %v5570, %v6146
    %v6148 = vsel %vm4001, %v5577, %v6147
    %v6149 = vsel %vm4003, %v5584, %v6148
    %v6150 = vsel %vm4005, %v5591, %v6149
    %v6151 = vsel %vm4007, %v5605, %v5598
    %v6152 = vsel %vm3995, %v5612, %v6151
    %v6153 = vsel %vm3997, %v5619, %v6152
    %v6154 = vsel %vm3999, %v5626, %v6153
    %v6155 = vsel %vm4001, %v5633, %v6154
    %v6156 = vsel %vm4003, %v5640, %v6155
    %v6157 = vsel %vm4005, %v5647, %v6156
    %v6158 = vsel %vm4007, %v5661, %v5654
    %v6159 = vsel %vm3995, %v5668, %v6158
    %v6160 = vsel %vm3997, %v5675, %v6159
    %v6161 = vsel %vm3999, %v5682, %v6160
    %v6162 = vsel %vm4001, %v5689, %v6161
    %v6163 = vsel %vm4003, %v5696, %v6162
    %v6164 = vsel %vm4005, %v5703, %v6163
    %v6165 = vsel %vm4007, %v5717, %v5710
    %v6166 = vsel %vm3995, %v5724, %v6165
    %v6167 = vsel %vm3997, %v5731, %v6166
    %v6168 = vsel %vm3999, %v5738, %v6167
    %v6169 = vsel %vm4001, %v5745, %v6168
    %v6170 = vsel %vm4003, %v5752, %v6169
    %v6171 = vsel %vm4005, %v5759, %v6170
    %v6172 = vsel %vm4007, %v5773, %v5766
    %v6173 = vsel %vm3995, %v5780, %v6172
    %v6174 = vsel %vm3997, %v5787, %v6173
    %v6175 = vsel %vm3999, %v5794, %v6174
    %v6176 = vsel %vm4001, %v5801, %v6175
    %v6177 = vsel %vm4003, %v5808, %v6176
    %v6178 = vsel %vm4005, %v5815, %v6177
    %v6179 = vsel %vm4007, %v5829, %v5822
    %v6180 = vsel %vm3995, %v5836, %v6179
    %v6181 = vsel %vm3997, %v5843, %v6180
    %v6182 = vsel %vm3999, %v5850, %v6181
    %v6183 = vsel %vm4001, %v5857, %v6182
    %v6184 = vsel %vm4003, %v5864, %v6183
    %v6185 = vsel %vm4005, %v5871, %v6184
    %v6186 = vsel %vm4007, %v5885, %v5878
    %v6187 = vsel %vm3995, %v5892, %v6186
    %v6188 = vsel %vm3997, %v5899, %v6187
    %v6189 = vsel %vm3999, %v5906, %v6188
    %v6190 = vsel %vm4001, %v5913, %v6189
    %v6191 = vsel %vm4003, %v5920, %v6190
    %v6192 = vsel %vm4005, %v5927, %v6191
    %v6193 = vsel %vm4007, %v5941, %v5934
    %v6194 = vsel %vm3995, %v5948, %v6193
    %v6195 = vsel %vm3997, %v5955, %v6194
    %v6196 = vsel %vm3999, %v5962, %v6195
    %v6197 = vsel %vm4001, %v5969, %v6196
    %v6198 = vsel %vm4003, %v5976, %v6197
    %v6199 = vsel %vm4005, %v5983, %v6198
    %v6200 = vsel %vm4007, %v5997, %v5990
    %v6201 = vsel %vm3995, %v6004, %v6200
    %v6202 = vsel %vm3997, %v6011, %v6201
    %v6203 = vsel %vm3999, %v6018, %v6202
    %v6204 = vsel %vm4001, %v6025, %v6203
    %v6205 = vsel %vm4003, %v6032, %v6204
    %v6206 = vsel %vm4005, %v6039, %v6205
    %v6217 = vsel %vm201, 0.0, %v6143
    %v6218 = vsel %vm1553, 0.0, %v6217
    %v6219 = vsel %vm1554, 0.0, %v6150
    %v6220 = vsel %vm1555, 0.0, %v6157
    %v6221 = vsel %vm1556, 0.0, %v6164
    %v6222 = vsel %vm1557, 0.0, %v6171
    %v6223 = vsel %vm1553, 0.0, %v6178
    %v6224 = vsel %vm1554, 0.0, %v6185
    %v6225 = vsel %vm1555, 0.0, %v6192
    %v6226 = vsel %vm1556, 0.0, %v6199
    %v6227 = vsel %vm1557, 0.0, %v6206
    %v6229 = vsel %vm4007, %v5507, %v5500
    %v6230 = vsel %vm3995, %v5514, %v6229
    %v6231 = vsel %vm3997, %v5521, %v6230
    %v6232 = vsel %vm3999, %v5528, %v6231
    %v6233 = vsel %vm4001, %v5535, %v6232
    %v6234 = vsel %vm4003, %v5542, %v6233
    %v6235 = vsel %vm4005, %v5549, %v6234
    %v6236 = vsel %vm4007, %v5563, %v5556
    %v6237 = vsel %vm3995, %v5570, %v6236
    %v6238 = vsel %vm3997, %v5577, %v6237
    %v6239 = vsel %vm3999, %v5584, %v6238
    %v6240 = vsel %vm4001, %v5591, %v6239
    %v6241 = vsel %vm4003, %v5598, %v6240
    %v6242 = vsel %vm4005, %v5605, %v6241
    %v6243 = vsel %vm4007, %v5619, %v5612
    %v6244 = vsel %vm3995, %v5626, %v6243
    %v6245 = vsel %vm3997, %v5633, %v6244
    %v6246 = vsel %vm3999, %v5640, %v6245
    %v6247 = vsel %vm4001, %v5647, %v6246
    %v6248 = vsel %vm4003, %v5654, %v6247
    %v6249 = vsel %vm4005, %v5661, %v6248
    %v6250 = vsel %vm4007, %v5675, %v5668
    %v6251 = vsel %vm3995, %v5682, %v6250
    %v6252 = vsel %vm3997, %v5689, %v6251
    %v6253 = vsel %vm3999, %v5696, %v6252
    %v6254 = vsel %vm4001, %v5703, %v6253
    %v6255 = vsel %vm4003, %v5710, %v6254
    %v6256 = vsel %vm4005, %v5717, %v6255
    %v6257 = vsel %vm4007, %v5731, %v5724
    %v6258 = vsel %vm3995, %v5738, %v6257
    %v6259 = vsel %vm3997, %v5745, %v6258
    %v6260 = vsel %vm3999, %v5752, %v6259
    %v6261 = vsel %vm4001, %v5759, %v6260
    %v6262 = vsel %vm4003, %v5766, %v6261
    %v6263 = vsel %vm4005, %v5773, %v6262
    %v6264 = vsel %vm4007, %v5787, %v5780
    %v6265 = vsel %vm3995, %v5794, %v6264
    %v6266 = vsel %vm3997, %v5801, %v6265
    %v6267 = vsel %vm3999, %v5808, %v6266
    %v6268 = vsel %vm4001, %v5815, %v6267
    %v6269 = vsel %vm4003, %v5822, %v6268
    %v6270 = vsel %vm4005, %v5829, %v6269
    %v6271 = vsel %vm4007, %v5843, %v5836
    %v6272 = vsel %vm3995, %v5850, %v6271
    %v6273 = vsel %vm3997, %v5857, %v6272
    %v6274 = vsel %vm3999, %v5864, %v6273
    %v6275 = vsel %vm4001, %v5871, %v6274
    %v6276 = vsel %vm4003, %v5878, %v6275
    %v6277 = vsel %vm4005, %v5885, %v6276
    %v6278 = vsel %vm4007, %v5899, %v5892
    %v6279 = vsel %vm3995, %v5906, %v6278
    %v6280 = vsel %vm3997, %v5913, %v6279
    %v6281 = vsel %vm3999, %v5920, %v6280
    %v6282 = vsel %vm4001, %v5927, %v6281
    %v6283 = vsel %vm4003, %v5934, %v6282
    %v6284 = vsel %vm4005, %v5941, %v6283
    %v6285 = vsel %vm4007, %v5955, %v5948
    %v6286 = vsel %vm3995, %v5962, %v6285
    %v6287 = vsel %vm3997, %v5969, %v6286
    %v6288 = vsel %vm3999, %v5976, %v6287
    %v6289 = vsel %vm4001, %v5983, %v6288
    %v6290 = vsel %vm4003, %v5990, %v6289
    %v6291 = vsel %vm4005, %v5997, %v6290
    %v6292 = vsel %vm4007, %v6011, %v6004
    %v6293 = vsel %vm3995, %v6018, %v6292
    %v6294 = vsel %vm3997, %v6025, %v6293
    %v6295 = vsel %vm3999, %v6032, %v6294
    %v6296 = vsel %vm4001, %v6039, %v6295
    %v6297 = vsel %vm4003, %v6046, %v6296
    %v6308 = vsel %vm362, %v6297, 0.0
    %v6309 = vsel %vm6054, 1, 0
    %v6310 = vsel %vm6055, 1, 0
    %v6311 = vsel %vm6056, 1, 0
    %v6312 = vsel %vm6057, 1, 0
    %v6313 = vsel %vm6058, 1, 0
    %vm6314 = vcmp.eq.s32.totalorder %v6309, 1
    %vm6315 = vcmp.eq.s32.totalorder %v6310, 1
    %vm6316 = vcmp.eq.s32.totalorder %v6311, 1
    %vm6317 = vcmp.eq.s32.totalorder %v6312, 1
    %vm6318 = vcmp.eq.s32.totalorder %v6313, 1
    %v6319 = vsel %vm6314, 0.0, %v6235
    %v6320 = vsel %vm6315, 0.0, %v6242
    %v6321 = vsel %vm6316, 0.0, %v6249
    %v6322 = vsel %vm6317, 0.0, %v6256
    %v6323 = vsel %vm6318, 0.0, %v6263
    %v6324 = vsel %vm6314, 0.0, %v6270
    %v6325 = vsel %vm6315, 0.0, %v6277
    %v6326 = vsel %vm6316, 0.0, %v6284
    %v6327 = vsel %vm6317, 0.0, %v6291
    %v6328 = vsel %vm6318, 0.0, %v6308
    %v6329 = vsel %vm4007, %v5500, %v5493
    %v6330 = vsel %vm3995, %v5507, %v6329
    %v6331 = vsel %vm3997, %v5514, %v6330
    %v6332 = vsel %vm3999, %v5521, %v6331
    %v6333 = vsel %vm4001, %v5528, %v6332
    %v6334 = vsel %vm4003, %v5535, %v6333
    %v6335 = vsel %vm4005, %v5542, %v6334
    %v6336 = vsel %vm4007, %v5556, %v5549
    %v6337 = vsel %vm3995, %v5563, %v6336
    %v6338 = vsel %vm3997, %v5570, %v6337
    %v6339 = vsel %vm3999, %v5577, %v6338
    %v6340 = vsel %vm4001, %v5584, %v6339
    %v6341 = vsel %vm4003, %v5591, %v6340
    %v6342 = vsel %vm4005, %v5598, %v6341
    %v6343 = vsel %vm4007, %v5612, %v5605
    %v6344 = vsel %vm3995, %v5619, %v6343
    %v6345 = vsel %vm3997, %v5626, %v6344
    %v6346 = vsel %vm3999, %v5633, %v6345
    %v6347 = vsel %vm4001, %v5640, %v6346
    %v6348 = vsel %vm4003, %v5647, %v6347
    %v6349 = vsel %vm4005, %v5654, %v6348
    %v6350 = vsel %vm4007, %v5668, %v5661
    %v6351 = vsel %vm3995, %v5675, %v6350
    %v6352 = vsel %vm3997, %v5682, %v6351
    %v6353 = vsel %vm3999, %v5689, %v6352
    %v6354 = vsel %vm4001, %v5696, %v6353
    %v6355 = vsel %vm4003, %v5703, %v6354
    %v6356 = vsel %vm4005, %v5710, %v6355
    %v6357 = vsel %vm4007, %v5724, %v5717
    %v6358 = vsel %vm3995, %v5731, %v6357
    %v6359 = vsel %vm3997, %v5738, %v6358
    %v6360 = vsel %vm3999, %v5745, %v6359
    %v6361 = vsel %vm4001, %v5752, %v6360
    %v6362 = vsel %vm4003, %v5759, %v6361
    %v6363 = vsel %vm4005, %v5766, %v6362
    %v6364 = vsel %vm4007, %v5780, %v5773
    %v6365 = vsel %vm3995, %v5787, %v6364
    %v6366 = vsel %vm3997, %v5794, %v6365
    %v6367 = vsel %vm3999, %v5801, %v6366
    %v6368 = vsel %vm4001, %v5808, %v6367
    %v6369 = vsel %vm4003, %v5815, %v6368
    %v6370 = vsel %vm4005, %v5822, %v6369
    %v6371 = vsel %vm4007, %v5836, %v5829
    %v6372 = vsel %vm3995, %v5843, %v6371
    %v6373 = vsel %vm3997, %v5850, %v6372
    %v6374 = vsel %vm3999, %v5857, %v6373
    %v6375 = vsel %vm4001, %v5864, %v6374
    %v6376 = vsel %vm4003, %v5871, %v6375
    %v6377 = vsel %vm4005, %v5878, %v6376
    %v6378 = vsel %vm4007, %v5892, %v5885
    %v6379 = vsel %vm3995, %v5899, %v6378
    %v6380 = vsel %vm3997, %v5906, %v6379
    %v6381 = vsel %vm3999, %v5913, %v6380
    %v6382 = vsel %vm4001, %v5920, %v6381
    %v6383 = vsel %vm4003, %v5927, %v6382
    %v6384 = vsel %vm4005, %v5934, %v6383
    %v6385 = vsel %vm4007, %v5948, %v5941
    %v6386 = vsel %vm3995, %v5955, %v6385
    %v6387 = vsel %vm3997, %v5962, %v6386
    %v6388 = vsel %vm3999, %v5969, %v6387
    %v6389 = vsel %vm4001, %v5976, %v6388
    %v6390 = vsel %vm4003, %v5983, %v6389
    %v6391 = vsel %vm4005, %v5990, %v6390
    %v6392 = vsel %vm4007, %v6004, %v5997
    %v6393 = vsel %vm3995, %v6011, %v6392
    %v6394 = vsel %vm3997, %v6018, %v6393
    %v6395 = vsel %vm3999, %v6025, %v6394
    %v6396 = vsel %vm4001, %v6032, %v6395
    %v6397 = vsel %vm4003, %v6039, %v6396
    %v6398 = vsel %vm4005, %v6046, %v6397
    %6399 = vrot.lane.b32.xlu0 %v6335, 16
    %v6400 = vpop.permute.xlu0 %6399
    %6401 = vrot.lane.b32.xlu0 %v6342, 16
    %v6402 = vpop.permute.xlu0 %6401
    %6403 = vrot.lane.b32.xlu0 %v6349, 16
    %v6404 = vpop.permute.xlu0 %6403
    %6405 = vrot.lane.b32.xlu0 %v6356, 16
    %v6406 = vpop.permute.xlu0 %6405
    %6407 = vrot.lane.b32.xlu0 %v6363, 16
    %v6408 = vpop.permute.xlu0 %6407
    %6409 = vrot.lane.b32.xlu0 %v6370, 16
    %v6410 = vpop.permute.xlu0 %6409
    %6411 = vrot.lane.b32.xlu0 %v6377, 16
    %v6412 = vpop.permute.xlu0 %6411
    %6413 = vrot.lane.b32.xlu0 %v6384, 16
    %v6414 = vpop.permute.xlu0 %6413
    %6415 = vrot.lane.b32.xlu0 %v6391, 16
    %v6416 = vpop.permute.xlu0 %6415
    %6417 = vrot.lane.b32.xlu0 %v6398, 16
    %v6418 = vpop.permute.xlu0 %6417
    %6439 = vrot.lane.b32.xlu0 %v6319, 32
    %v6440 = vpop.permute.xlu0 %6439
    %6441 = vrot.lane.b32.xlu0 %v6320, 32
    %v6442 = vpop.permute.xlu0 %6441
    %6443 = vrot.lane.b32.xlu0 %v6321, 32
    %v6444 = vpop.permute.xlu0 %6443
    %6445 = vrot.lane.b32.xlu0 %v6322, 32
    %v6446 = vpop.permute.xlu0 %6445
    %6447 = vrot.lane.b32.xlu0 %v6323, 32
    %v6448 = vpop.permute.xlu0 %6447
    %6449 = vrot.lane.b32.xlu0 %v6324, 32
    %v6450 = vpop.permute.xlu0 %6449
    %6451 = vrot.lane.b32.xlu0 %v6325, 32
    %v6452 = vpop.permute.xlu0 %6451
    %6453 = vrot.lane.b32.xlu0 %v6326, 32
    %v6454 = vpop.permute.xlu0 %6453
    %6455 = vrot.lane.b32.xlu0 %v6327, 32
    %v6456 = vpop.permute.xlu0 %6455
    %6457 = vrot.lane.b32.xlu0 %v6328, 32
    %v6458 = vpop.permute.xlu0 %6457
    %v6469 = vsel %vm2134, %v6218, %v6400
    %v6470 = vsel %vm2134, %v6219, %v6402
    %v6471 = vsel %vm2134, %v6220, %v6404
    %v6472 = vsel %vm2134, %v6221, %v6406
    %v6473 = vsel %vm2134, %v6222, %v6408
    %v6474 = vsel %vm2134, %v6223, %v6410
    %v6475 = vsel %vm2134, %v6224, %v6412
    %v6476 = vsel %vm2134, %v6225, %v6414
    %v6477 = vsel %vm2134, %v6226, %v6416
    %v6478 = vsel %vm2134, %v6227, %v6418
    %v6479 = vsel %vm5184, %v6469, %v6440
    %v6480 = vsel %vm5184, %v6470, %v6442
    %v6481 = vsel %vm5184, %v6471, %v6444
    %v6482 = vsel %vm5184, %v6472, %v6446
    %v6483 = vsel %vm5184, %v6473, %v6448
    %v6484 = vsel %vm5184, %v6474, %v6450
    %v6485 = vsel %vm5184, %v6475, %v6452
    %v6486 = vsel %vm5184, %v6476, %v6454
    %v6487 = vsel %vm5184, %v6477, %v6456
    %v6488 = vsel %vm5184, %v6478, %v6458
    %v6489 = vpack.c.bf16 %v6480, %v6479
    %v6490 = vpack.c.bf16 %v6482, %v6481
    %v6491 = vpack.c.bf16 %v6484, %v6483
    %v6492 = vpack.c.bf16 %v6486, %v6485
    %v6493 = vpack.c.bf16 %v6488, %v6487
    %v6495 = vperm.slane %v6053, 0
    %v6503 = vunpack.c.l.b16 %v6047
    %v6504 = vunpack.c.l.b16 %v6048
    %v6505 = vunpack.c.l.b16 %v6049
    %v6506 = vunpack.c.l.b16 %v6050
    %v6507 = vunpack.c.l.b16 %v6051
    %v6508 = vunpack.c.l.b16 %v6052
    %v6509 = vpack.c.b16 %v6504, %v6503
    %v6510 = vpack.c.b16 %v6506, %v6505
    %v6511 = vpack.c.b16 %v6508, %v6507
    %v6516 = vsel %vm5236, %v6489, 0
    %v6519 = vsel %vm5236, %v6490, 0
    %v6522 = vsel %vm5236, %v6491, 0
    %v6525 = vsel %vm5236, %v6492, 0
    %v6528 = vsel %vm5236, %v6493, 0
    %6530 = vmatpush.bf16.msra.mxu0 0
    %6531 = vmatpush.bf16.msra.mxu0 0
    %6532 = vmatpush.bf16.msra.mxu0 0
    %6533 = vmatpush.bf16.msra.mxu0 0
    %6534 = vmatpush.bf16.msra.mxu0 0
    %6535 = vmatpush.bf16.msra.mxu0 %v6511
    %6536 = vmatpush.bf16.msra.mxu0 %v6510
    %6537 = vmatpush.bf16.msra.mxu0 %v6509
    %6538 = vmatmul.bf16.gmra.mxu0 %v6516
    %v6539 = vpop.f32.mrf.mxu0
    %v6540 = vadd.f32 %v6495, %v6539
    %v6541 = vpop.f32.mrf.mxu0
    %v6542 = vadd.f32 %v6495, %v6541
    %6543 = vmatmul.bf16.gmra.mxu0 %v6519
    %v6544 = vpop.f32.mrf.mxu0
    %v6545 = vadd.f32 %v6495, %v6544
    %v6546 = vpop.f32.mrf.mxu0
    %v6547 = vadd.f32 %v6495, %v6546
    %6548 = vmatmul.bf16.gmra.mxu0 %v6522
    %v6549 = vpop.f32.mrf.mxu0
    %v6550 = vadd.f32 %v6495, %v6549
    %v6551 = vpop.f32.mrf.mxu0
    %v6552 = vadd.f32 %v6495, %v6551
    %6553 = vmatmul.bf16.gmra.mxu0 %v6525
    %v6554 = vpop.f32.mrf.mxu0
    %v6555 = vadd.f32 %v6495, %v6554
    %v6556 = vpop.f32.mrf.mxu0
    %v6557 = vadd.f32 %v6495, %v6556
    %6558 = vmatmul.bf16.gmra.mxu0 %v6528
    %v6559 = vpop.f32.mrf.mxu0
    %v6560 = vadd.f32 %v6495, %v6559
    %v6561 = vpop.f32.mrf.mxu0
    %v6562 = vadd.f32 %v6495, %v6561
    %6563 = vdwg.mxu0
    %v6564 = vmax.f32 %v6540, 0.0
    %v6565 = vmax.f32 %v6542, 0.0
    %v6566 = vmax.f32 %v6545, 0.0
    %v6567 = vmax.f32 %v6547, 0.0
    %v6568 = vmax.f32 %v6550, 0.0
    %v6569 = vmax.f32 %v6552, 0.0
    %v6570 = vmax.f32 %v6555, 0.0
    %v6571 = vmax.f32 %v6557, 0.0
    %v6572 = vmax.f32 %v6560, 0.0
    %v6573 = vmax.f32 %v6562, 0.0
    %v6574 = vld [vmem:[%s11] sm:$0xf]
    %v6575 = vld [vmem:[%s11 + $0x4] sm:$0xf]
    %v6576 = vld [vmem:[%s11 + $0x8] sm:$0xf]
    %v6577 = vld [vmem:[%s11 + $0xc] sm:$0xf]
    %v6578 = vld [vmem:[%s11 + $0x10] sm:$0xf]
    %v6579 = vld [vmem:[%s11 + $0x14] sm:$0xf]
    %v6580 = vld [vmem:[%s11 + $0x18] sm:$0xf]
    %v6581 = vld [vmem:[%s11 + $0x1c] sm:$0xf]
    %v6582 = vld [vmem:[%s11 + $0x20] sm:$0xf]
    %v6583 = vld [vmem:[%s11 + $0x24] sm:$0xf]
    %v6584 = vld [vmem:[%s11 + $0x28] sm:$0xf]
    %v6585 = vld [vmem:[%s11 + $0x2c] sm:$0xf]
    %v6586 = vld [vmem:[%s12] sm:$0x1]
    %v6597 = vrot.slane %v6564, 7
    %v6598 = vrot.slane %v6565, 7
    %v6599 = vsel %vm201, %v6597, %v6598
    %v6600 = vrot.slane %v6566, 7
    %v6601 = vsel %vm201, %v6598, %v6600
    %v6602 = vrot.slane %v6567, 7
    %v6603 = vsel %vm201, %v6600, %v6602
    %v6604 = vrot.slane %v6568, 7
    %v6605 = vsel %vm201, %v6602, %v6604
    %v6606 = vrot.slane %v6569, 7
    %v6607 = vsel %vm201, %v6604, %v6606
    %v6608 = vrot.slane %v6570, 7
    %v6609 = vsel %vm201, %v6606, %v6608
    %v6610 = vrot.slane %v6571, 7
    %v6611 = vsel %vm201, %v6608, %v6610
    %v6612 = vrot.slane %v6572, 7
    %v6613 = vsel %vm201, %v6610, %v6612
    %v6614 = vrot.slane %v6573, 7
    %v6615 = vsel %vm201, %v6612, %v6614
    %v6626 = vsel %vm201, 0.0, %v6597
    %v6627 = vsel %vm1553, 0.0, %v6626
    %v6628 = vsel %vm1554, 0.0, %v6599
    %v6629 = vsel %vm1555, 0.0, %v6601
    %v6630 = vsel %vm1556, 0.0, %v6603
    %v6631 = vsel %vm1557, 0.0, %v6605
    %v6632 = vsel %vm1553, 0.0, %v6607
    %v6633 = vsel %vm1554, 0.0, %v6609
    %v6634 = vsel %vm1555, 0.0, %v6611
    %v6635 = vsel %vm1556, 0.0, %v6613
    %v6636 = vsel %vm1557, 0.0, %v6615
    %v6637 = vrot.slane %v6564, 1
    %v6638 = vrot.slane %v6565, 1
    %v6639 = vsel %vm362, %v6637, %v6638
    %v6640 = vrot.slane %v6566, 1
    %v6641 = vsel %vm362, %v6638, %v6640
    %v6642 = vrot.slane %v6567, 1
    %v6643 = vsel %vm362, %v6640, %v6642
    %v6644 = vrot.slane %v6568, 1
    %v6645 = vsel %vm362, %v6642, %v6644
    %v6646 = vrot.slane %v6569, 1
    %v6647 = vsel %vm362, %v6644, %v6646
    %v6648 = vrot.slane %v6570, 1
    %v6649 = vsel %vm362, %v6646, %v6648
    %v6650 = vrot.slane %v6571, 1
    %v6651 = vsel %vm362, %v6648, %v6650
    %v6652 = vrot.slane %v6572, 1
    %v6653 = vsel %vm362, %v6650, %v6652
    %v6654 = vrot.slane %v6573, 1
    %v6655 = vsel %vm362, %v6652, %v6654
    %v6666 = vsel %vm362, %v6654, 0.0
    %v6667 = vsel %vm6314, 0.0, %v6639
    %v6668 = vsel %vm6315, 0.0, %v6641
    %v6669 = vsel %vm6316, 0.0, %v6643
    %v6670 = vsel %vm6317, 0.0, %v6645
    %v6671 = vsel %vm6318, 0.0, %v6647
    %v6672 = vsel %vm6314, 0.0, %v6649
    %v6673 = vsel %vm6315, 0.0, %v6651
    %v6674 = vsel %vm6316, 0.0, %v6653
    %v6675 = vsel %vm6317, 0.0, %v6655
    %v6676 = vsel %vm6318, 0.0, %v6666
    %6677 = vrot.lane.b32.xlu0 %v6564, 32
    %v6678 = vpop.permute.xlu0 %6677
    %6679 = vrot.lane.b32.xlu0 %v6565, 32
    %v6680 = vpop.permute.xlu0 %6679
    %6681 = vrot.lane.b32.xlu0 %v6566, 32
    %v6682 = vpop.permute.xlu0 %6681
    %6683 = vrot.lane.b32.xlu0 %v6567, 32
    %v6684 = vpop.permute.xlu0 %6683
    %6685 = vrot.lane.b32.xlu0 %v6568, 32
    %v6686 = vpop.permute.xlu0 %6685
    %6687 = vrot.lane.b32.xlu0 %v6569, 32
    %v6688 = vpop.permute.xlu0 %6687
    %6689 = vrot.lane.b32.xlu0 %v6570, 32
    %v6690 = vpop.permute.xlu0 %6689
    %6691 = vrot.lane.b32.xlu0 %v6571, 32
    %v6692 = vpop.permute.xlu0 %6691
    %6693 = vrot.lane.b32.xlu0 %v6572, 32
    %v6694 = vpop.permute.xlu0 %6693
    %6695 = vrot.lane.b32.xlu0 %v6573, 32
    %v6696 = vpop.permute.xlu0 %6695
    %6717 = vrot.lane.b32.xlu0 %v6667, 64
    %v6718 = vpop.permute.xlu0 %6717
    %6719 = vrot.lane.b32.xlu0 %v6668, 64
    %v6720 = vpop.permute.xlu0 %6719
    %6721 = vrot.lane.b32.xlu0 %v6669, 64
    %v6722 = vpop.permute.xlu0 %6721
    %6723 = vrot.lane.b32.xlu0 %v6670, 64
    %v6724 = vpop.permute.xlu0 %6723
    %6725 = vrot.lane.b32.xlu0 %v6671, 64
    %v6726 = vpop.permute.xlu0 %6725
    %6727 = vrot.lane.b32.xlu0 %v6672, 64
    %v6728 = vpop.permute.xlu0 %6727
    %6729 = vrot.lane.b32.xlu0 %v6673, 64
    %v6730 = vpop.permute.xlu0 %6729
    %6731 = vrot.lane.b32.xlu0 %v6674, 64
    %v6732 = vpop.permute.xlu0 %6731
    %6733 = vrot.lane.b32.xlu0 %v6675, 64
    %v6734 = vpop.permute.xlu0 %6733
    %6735 = vrot.lane.b32.xlu0 %v6676, 64
    %v6736 = vpop.permute.xlu0 %6735
    %v6747 = vsel %vm5184, %v6627, %v6678
    %v6748 = vsel %vm5184, %v6628, %v6680
    %v6749 = vsel %vm5184, %v6629, %v6682
    %v6750 = vsel %vm5184, %v6630, %v6684
    %v6751 = vsel %vm5184, %v6631, %v6686
    %v6752 = vsel %vm5184, %v6632, %v6688
    %v6753 = vsel %vm5184, %v6633, %v6690
    %v6754 = vsel %vm5184, %v6634, %v6692
    %v6755 = vsel %vm5184, %v6635, %v6694
    %v6756 = vsel %vm5184, %v6636, %v6696
    %vm6757 = vcmask 523264
    %v6758 = vsel %vm6757, %v6747, %v6718
    %v6759 = vsel %vm6757, %v6748, %v6720
    %v6760 = vsel %vm6757, %v6749, %v6722
    %v6761 = vsel %vm6757, %v6750, %v6724
    %v6762 = vsel %vm6757, %v6751, %v6726
    %v6763 = vsel %vm6757, %v6752, %v6728
    %v6764 = vsel %vm6757, %v6753, %v6730
    %v6765 = vsel %vm6757, %v6754, %v6732
    %v6766 = vsel %vm6757, %v6755, %v6734
    %v6767 = vsel %vm6757, %v6756, %v6736
    %v6768 = vpack.c.bf16 %v6759, %v6758
    %v6769 = vpack.c.bf16 %v6761, %v6760
    %v6770 = vpack.c.bf16 %v6763, %v6762
    %v6771 = vpack.c.bf16 %v6765, %v6764
    %v6772 = vpack.c.bf16 %v6767, %v6766
    %v6774 = vperm.slane %v6586, 0
    %v6788 = vunpack.c.l.b16 %v6574
    %v6789 = vunpack.c.l.b16 %v6575
    %v6790 = vunpack.c.l.b16 %v6576
    %v6791 = vunpack.c.l.b16 %v6577
    %v6792 = vunpack.c.l.b16 %v6578
    %v6793 = vunpack.c.l.b16 %v6579
    %v6794 = vunpack.c.l.b16 %v6580
    %v6795 = vunpack.c.l.b16 %v6581
    %v6796 = vunpack.c.l.b16 %v6582
    %v6797 = vunpack.c.l.b16 %v6583
    %v6798 = vunpack.c.l.b16 %v6584
    %v6799 = vunpack.c.l.b16 %v6585
    %v6800 = vpack.c.b16 %v6789, %v6788
    %v6801 = vpack.c.b16 %v6791, %v6790
    %v6802 = vpack.c.b16 %v6793, %v6792
    %v6803 = vpack.c.b16 %v6795, %v6794
    %v6804 = vpack.c.b16 %v6797, %v6796
    %v6805 = vpack.c.b16 %v6799, %v6798
    %vm6812 = vcmask 785408
    %v6814 = vsel %vm6812, %v6768, 0
    %v6817 = vsel %vm6812, %v6769, 0
    %v6820 = vsel %vm6812, %v6770, 0
    %v6823 = vsel %vm6812, %v6771, 0
    %v6826 = vsel %vm6812, %v6772, 0
    %6828 = vmatpush.bf16.msra.mxu0 0
    %6829 = vmatpush.bf16.msra.mxu0 0
    %6830 = vmatpush.bf16.msra.mxu0 %v6805
    %6831 = vmatpush.bf16.msra.mxu0 %v6804
    %6832 = vmatpush.bf16.msra.mxu0 %v6803
    %6833 = vmatpush.bf16.msra.mxu0 %v6802
    %6834 = vmatpush.bf16.msra.mxu0 %v6801
    %6835 = vmatpush.bf16.msra.mxu0 %v6800
    %6836 = vmatmul.bf16.gmra.mxu0 %v6814
    %v6837 = vpop.f32.mrf.mxu0
    %v6838 = vadd.f32 %v6774, %v6837
    %v6839 = vpop.f32.mrf.mxu0
    %v6840 = vadd.f32 %v6774, %v6839
    %6841 = vmatmul.bf16.gmra.mxu0 %v6817
    %v6842 = vpop.f32.mrf.mxu0
    %v6843 = vadd.f32 %v6774, %v6842
    %v6844 = vpop.f32.mrf.mxu0
    %v6845 = vadd.f32 %v6774, %v6844
    %6846 = vmatmul.bf16.gmra.mxu0 %v6820
    %v6847 = vpop.f32.mrf.mxu0
    %v6848 = vadd.f32 %v6774, %v6847
    %v6849 = vpop.f32.mrf.mxu0
    %v6850 = vadd.f32 %v6774, %v6849
    %6851 = vmatmul.bf16.gmra.mxu0 %v6823
    %v6852 = vpop.f32.mrf.mxu0
    %v6853 = vadd.f32 %v6774, %v6852
    %v6854 = vpop.f32.mrf.mxu0
    %v6855 = vadd.f32 %v6774, %v6854
    %6856 = vmatmul.bf16.gmra.mxu0 %v6826
    %v6857 = vpop.f32.mrf.mxu0
    %v6858 = vadd.f32 %v6774, %v6857
    %v6859 = vpop.f32.mrf.mxu0
    %v6860 = vadd.f32 %v6774, %v6859
    %6861 = vdwg.mxu0
    %v6862 = vmax.f32 %v6838, 0.0
    %v6863 = vmax.f32 %v6840, 0.0
    %v6864 = vmax.f32 %v6843, 0.0
    %v6865 = vmax.f32 %v6845, 0.0
    %v6866 = vmax.f32 %v6848, 0.0
    %v6867 = vmax.f32 %v6850, 0.0
    %v6868 = vmax.f32 %v6853, 0.0
    %v6869 = vmax.f32 %v6855, 0.0
    %v6870 = vmax.f32 %v6858, 0.0
    %v6871 = vmax.f32 %v6860, 0.0
    %v6882 = vrot.slane %v6862, 2
    %v6883 = vrot.slane %v6862, 4
    %v6884 = vrot.slane %v6862, 6
    %v6885 = vrot.slane %v6863, 2
    %v6886 = vrot.slane %v6863, 4
    %v6887 = vrot.slane %v6863, 6
    %v6888 = vrot.slane %v6864, 2
    %v6889 = vrot.slane %v6864, 4
    %v6890 = vrot.slane %v6864, 6
    %v6891 = vrot.slane %v6865, 2
    %v6892 = vrot.slane %v6865, 4
    %v6893 = vrot.slane %v6865, 6
    %v6894 = vrot.slane %v6866, 2
    %v6895 = vrot.slane %v6866, 4
    %v6896 = vrot.slane %v6866, 6
    %v6897 = vrot.slane %v6867, 2
    %v6898 = vrot.slane %v6867, 4
    %v6899 = vrot.slane %v6867, 6
    %v6900 = vrot.slane %v6868, 2
    %v6901 = vrot.slane %v6868, 4
    %v6902 = vrot.slane %v6868, 6
    %v6903 = vrot.slane %v6869, 2
    %v6904 = vrot.slane %v6869, 4
    %v6905 = vrot.slane %v6869, 6
    %v6906 = vrot.slane %v6870, 2
    %v6907 = vrot.slane %v6870, 4
    %v6908 = vrot.slane %v6870, 6
    %v6909 = vrot.slane %v6871, 2
    %v6910 = vrot.slane %v6871, 4
    %v6911 = vrot.slane %v6871, 6
    %vm6942 = vcmask 254976
    %v6943 = vsel %vm6942, %v6862, -inf
    %v6944 = vrot.slane %v6943, 4
    %v6945 = vmax.f32 %v6943, %v6944
    %v6946 = vrot.slane %v6945, 2
    %v6947 = vmax.f32 %v6945, %v6946
    %v6948 = vrot.slane %v6947, 1
    %v6949 = vmax.f32 %v6947, %v6948
    %v6950 = vsel %vm6942, %v6882, -inf
    %v6951 = vrot.slane %v6950, 4
    %v6952 = vmax.f32 %v6950, %v6951
    %v6953 = vrot.slane %v6952, 2
    %v6954 = vmax.f32 %v6952, %v6953
    %v6955 = vrot.slane %v6954, 1
    %v6956 = vmax.f32 %v6954, %v6955
    %v6957 = vsel %vm6942, %v6883, -inf
    %v6958 = vrot.slane %v6957, 4
    %v6959 = vmax.f32 %v6957, %v6958
    %v6960 = vrot.slane %v6959, 2
    %v6961 = vmax.f32 %v6959, %v6960
    %v6962 = vrot.slane %v6961, 1
    %v6963 = vmax.f32 %v6961, %v6962
    %v6964 = vsel %vm6942, %v6884, -inf
    %v6965 = vrot.slane %v6964, 4
    %v6966 = vmax.f32 %v6964, %v6965
    %v6967 = vrot.slane %v6966, 2
    %v6968 = vmax.f32 %v6966, %v6967
    %v6969 = vrot.slane %v6968, 1
    %v6970 = vmax.f32 %v6968, %v6969
    %v6971 = vsel %vm6942, %v6863, -inf
    %v6972 = vrot.slane %v6971, 4
    %v6973 = vmax.f32 %v6971, %v6972
    %v6974 = vrot.slane %v6973, 2
    %v6975 = vmax.f32 %v6973, %v6974
    %v6976 = vrot.slane %v6975, 1
    %v6977 = vmax.f32 %v6975, %v6976
    %v6978 = vsel %vm6942, %v6885, -inf
    %v6979 = vrot.slane %v6978, 4
    %v6980 = vmax.f32 %v6978, %v6979
    %v6981 = vrot.slane %v6980, 2
    %v6982 = vmax.f32 %v6980, %v6981
    %v6983 = vrot.slane %v6982, 1
    %v6984 = vmax.f32 %v6982, %v6983
    %v6985 = vsel %vm6942, %v6886, -inf
    %v6986 = vrot.slane %v6985, 4
    %v6987 = vmax.f32 %v6985, %v6986
    %v6988 = vrot.slane %v6987, 2
    %v6989 = vmax.f32 %v6987, %v6988
    %v6990 = vrot.slane %v6989, 1
    %v6991 = vmax.f32 %v6989, %v6990
    %v6992 = vsel %vm6942, %v6887, -inf
    %v6993 = vrot.slane %v6992, 4
    %v6994 = vmax.f32 %v6992, %v6993
    %v6995 = vrot.slane %v6994, 2
    %v6996 = vmax.f32 %v6994, %v6995
    %v6997 = vrot.slane %v6996, 1
    %v6998 = vmax.f32 %v6996, %v6997
    %v6999 = vsel %vm6942, %v6864, -inf
    %v7000 = vrot.slane %v6999, 4
    %v7001 = vmax.f32 %v6999, %v7000
    %v7002 = vrot.slane %v7001, 2
    %v7003 = vmax.f32 %v7001, %v7002
    %v7004 = vrot.slane %v7003, 1
    %v7005 = vmax.f32 %v7003, %v7004
    %v7006 = vsel %vm6942, %v6888, -inf
    %v7007 = vrot.slane %v7006, 4
    %v7008 = vmax.f32 %v7006, %v7007
    %v7009 = vrot.slane %v7008, 2
    %v7010 = vmax.f32 %v7008, %v7009
    %v7011 = vrot.slane %v7010, 1
    %v7012 = vmax.f32 %v7010, %v7011
    %v7013 = vsel %vm6942, %v6889, -inf
    %v7014 = vrot.slane %v7013, 4
    %v7015 = vmax.f32 %v7013, %v7014
    %v7016 = vrot.slane %v7015, 2
    %v7017 = vmax.f32 %v7015, %v7016
    %v7018 = vrot.slane %v7017, 1
    %v7019 = vmax.f32 %v7017, %v7018
    %v7020 = vsel %vm6942, %v6890, -inf
    %v7021 = vrot.slane %v7020, 4
    %v7022 = vmax.f32 %v7020, %v7021
    %v7023 = vrot.slane %v7022, 2
    %v7024 = vmax.f32 %v7022, %v7023
    %v7025 = vrot.slane %v7024, 1
    %v7026 = vmax.f32 %v7024, %v7025
    %v7027 = vsel %vm6942, %v6865, -inf
    %v7028 = vrot.slane %v7027, 4
    %v7029 = vmax.f32 %v7027, %v7028
    %v7030 = vrot.slane %v7029, 2
    %v7031 = vmax.f32 %v7029, %v7030
    %v7032 = vrot.slane %v7031, 1
    %v7033 = vmax.f32 %v7031, %v7032
    %v7034 = vsel %vm6942, %v6891, -inf
    %v7035 = vrot.slane %v7034, 4
    %v7036 = vmax.f32 %v7034, %v7035
    %v7037 = vrot.slane %v7036, 2
    %v7038 = vmax.f32 %v7036, %v7037
    %v7039 = vrot.slane %v7038, 1
    %v7040 = vmax.f32 %v7038, %v7039
    %v7041 = vsel %vm6942, %v6892, -inf
    %v7042 = vrot.slane %v7041, 4
    %v7043 = vmax.f32 %v7041, %v7042
    %v7044 = vrot.slane %v7043, 2
    %v7045 = vmax.f32 %v7043, %v7044
    %v7046 = vrot.slane %v7045, 1
    %v7047 = vmax.f32 %v7045, %v7046
    %v7048 = vsel %vm6942, %v6893, -inf
    %v7049 = vrot.slane %v7048, 4
    %v7050 = vmax.f32 %v7048, %v7049
    %v7051 = vrot.slane %v7050, 2
    %v7052 = vmax.f32 %v7050, %v7051
    %v7053 = vrot.slane %v7052, 1
    %v7054 = vmax.f32 %v7052, %v7053
    %v7055 = vsel %vm6942, %v6866, -inf
    %v7056 = vrot.slane %v7055, 4
    %v7057 = vmax.f32 %v7055, %v7056
    %v7058 = vrot.slane %v7057, 2
    %v7059 = vmax.f32 %v7057, %v7058
    %v7060 = vrot.slane %v7059, 1
    %v7061 = vmax.f32 %v7059, %v7060
    %v7062 = vsel %vm6942, %v6894, -inf
    %v7063 = vrot.slane %v7062, 4
    %v7064 = vmax.f32 %v7062, %v7063
    %v7065 = vrot.slane %v7064, 2
    %v7066 = vmax.f32 %v7064, %v7065
    %v7067 = vrot.slane %v7066, 1
    %v7068 = vmax.f32 %v7066, %v7067
    %v7069 = vsel %vm6942, %v6895, -inf
    %v7070 = vrot.slane %v7069, 4
    %v7071 = vmax.f32 %v7069, %v7070
    %v7072 = vrot.slane %v7071, 2
    %v7073 = vmax.f32 %v7071, %v7072
    %v7074 = vrot.slane %v7073, 1
    %v7075 = vmax.f32 %v7073, %v7074
    %v7076 = vsel %vm6942, %v6896, -inf
    %v7077 = vrot.slane %v7076, 4
    %v7078 = vmax.f32 %v7076, %v7077
    %v7079 = vrot.slane %v7078, 2
    %v7080 = vmax.f32 %v7078, %v7079
    %v7081 = vrot.slane %v7080, 1
    %v7082 = vmax.f32 %v7080, %v7081
    %v7083 = vsel %vm6942, %v6867, -inf
    %v7084 = vrot.slane %v7083, 4
    %v7085 = vmax.f32 %v7083, %v7084
    %v7086 = vrot.slane %v7085, 2
    %v7087 = vmax.f32 %v7085, %v7086
    %v7088 = vrot.slane %v7087, 1
    %v7089 = vmax.f32 %v7087, %v7088
    %v7090 = vsel %vm6942, %v6897, -inf
    %v7091 = vrot.slane %v7090, 4
    %v7092 = vmax.f32 %v7090, %v7091
    %v7093 = vrot.slane %v7092, 2
    %v7094 = vmax.f32 %v7092, %v7093
    %v7095 = vrot.slane %v7094, 1
    %v7096 = vmax.f32 %v7094, %v7095
    %v7097 = vsel %vm6942, %v6898, -inf
    %v7098 = vrot.slane %v7097, 4
    %v7099 = vmax.f32 %v7097, %v7098
    %v7100 = vrot.slane %v7099, 2
    %v7101 = vmax.f32 %v7099, %v7100
    %v7102 = vrot.slane %v7101, 1
    %v7103 = vmax.f32 %v7101, %v7102
    %v7104 = vsel %vm6942, %v6899, -inf
    %v7105 = vrot.slane %v7104, 4
    %v7106 = vmax.f32 %v7104, %v7105
    %v7107 = vrot.slane %v7106, 2
    %v7108 = vmax.f32 %v7106, %v7107
    %v7109 = vrot.slane %v7108, 1
    %v7110 = vmax.f32 %v7108, %v7109
    %v7111 = vsel %vm6942, %v6868, -inf
    %v7112 = vrot.slane %v7111, 4
    %v7113 = vmax.f32 %v7111, %v7112
    %v7114 = vrot.slane %v7113, 2
    %v7115 = vmax.f32 %v7113, %v7114
    %v7116 = vrot.slane %v7115, 1
    %v7117 = vmax.f32 %v7115, %v7116
    %v7118 = vsel %vm6942, %v6900, -inf
    %v7119 = vrot.slane %v7118, 4
    %v7120 = vmax.f32 %v7118, %v7119
    %v7121 = vrot.slane %v7120, 2
    %v7122 = vmax.f32 %v7120, %v7121
    %v7123 = vrot.slane %v7122, 1
    %v7124 = vmax.f32 %v7122, %v7123
    %v7125 = vsel %vm6942, %v6901, -inf
    %v7126 = vrot.slane %v7125, 4
    %v7127 = vmax.f32 %v7125, %v7126
    %v7128 = vrot.slane %v7127, 2
    %v7129 = vmax.f32 %v7127, %v7128
    %v7130 = vrot.slane %v7129, 1
    %v7131 = vmax.f32 %v7129, %v7130
    %v7132 = vsel %vm6942, %v6902, -inf
    %v7133 = vrot.slane %v7132, 4
    %v7134 = vmax.f32 %v7132, %v7133
    %v7135 = vrot.slane %v7134, 2
    %v7136 = vmax.f32 %v7134, %v7135
    %v7137 = vrot.slane %v7136, 1
    %v7138 = vmax.f32 %v7136, %v7137
    %v7139 = vsel %vm6942, %v6869, -inf
    %v7140 = vrot.slane %v7139, 4
    %v7141 = vmax.f32 %v7139, %v7140
    %v7142 = vrot.slane %v7141, 2
    %v7143 = vmax.f32 %v7141, %v7142
    %v7144 = vrot.slane %v7143, 1
    %v7145 = vmax.f32 %v7143, %v7144
    %v7146 = vsel %vm6942, %v6903, -inf
    %v7147 = vrot.slane %v7146, 4
    %v7148 = vmax.f32 %v7146, %v7147
    %v7149 = vrot.slane %v7148, 2
    %v7150 = vmax.f32 %v7148, %v7149
    %v7151 = vrot.slane %v7150, 1
    %v7152 = vmax.f32 %v7150, %v7151
    %v7153 = vsel %vm6942, %v6904, -inf
    %v7154 = vrot.slane %v7153, 4
    %v7155 = vmax.f32 %v7153, %v7154
    %v7156 = vrot.slane %v7155, 2
    %v7157 = vmax.f32 %v7155, %v7156
    %v7158 = vrot.slane %v7157, 1
    %v7159 = vmax.f32 %v7157, %v7158
    %v7160 = vsel %vm6942, %v6905, -inf
    %v7161 = vrot.slane %v7160, 4
    %v7162 = vmax.f32 %v7160, %v7161
    %v7163 = vrot.slane %v7162, 2
    %v7164 = vmax.f32 %v7162, %v7163
    %v7165 = vrot.slane %v7164, 1
    %v7166 = vmax.f32 %v7164, %v7165
    %v7167 = vsel %vm6942, %v6870, -inf
    %v7168 = vrot.slane %v7167, 4
    %v7169 = vmax.f32 %v7167, %v7168
    %v7170 = vrot.slane %v7169, 2
    %v7171 = vmax.f32 %v7169, %v7170
    %v7172 = vrot.slane %v7171, 1
    %v7173 = vmax.f32 %v7171, %v7172
    %v7174 = vsel %vm6942, %v6906, -inf
    %v7175 = vrot.slane %v7174, 4
    %v7176 = vmax.f32 %v7174, %v7175
    %v7177 = vrot.slane %v7176, 2
    %v7178 = vmax.f32 %v7176, %v7177
    %v7179 = vrot.slane %v7178, 1
    %v7180 = vmax.f32 %v7178, %v7179
    %v7181 = vsel %vm6942, %v6907, -inf
    %v7182 = vrot.slane %v7181, 4
    %v7183 = vmax.f32 %v7181, %v7182
    %v7184 = vrot.slane %v7183, 2
    %v7185 = vmax.f32 %v7183, %v7184
    %v7186 = vrot.slane %v7185, 1
    %v7187 = vmax.f32 %v7185, %v7186
    %v7188 = vsel %vm6942, %v6908, -inf
    %v7189 = vrot.slane %v7188, 4
    %v7190 = vmax.f32 %v7188, %v7189
    %v7191 = vrot.slane %v7190, 2
    %v7192 = vmax.f32 %v7190, %v7191
    %v7193 = vrot.slane %v7192, 1
    %v7194 = vmax.f32 %v7192, %v7193
    %v7195 = vsel %vm6942, %v6871, -inf
    %v7196 = vrot.slane %v7195, 4
    %v7197 = vmax.f32 %v7195, %v7196
    %v7198 = vrot.slane %v7197, 2
    %v7199 = vmax.f32 %v7197, %v7198
    %v7200 = vrot.slane %v7199, 1
    %v7201 = vmax.f32 %v7199, %v7200
    %v7202 = vsel %vm6942, %v6909, -inf
    %v7203 = vrot.slane %v7202, 4
    %v7204 = vmax.f32 %v7202, %v7203
    %v7205 = vrot.slane %v7204, 2
    %v7206 = vmax.f32 %v7204, %v7205
    %v7207 = vrot.slane %v7206, 1
    %v7208 = vmax.f32 %v7206, %v7207
    %v7209 = vsel %vm6942, %v6910, -inf
    %v7210 = vrot.slane %v7209, 4
    %v7211 = vmax.f32 %v7209, %v7210
    %v7212 = vrot.slane %v7211, 2
    %v7213 = vmax.f32 %v7211, %v7212
    %v7214 = vrot.slane %v7213, 1
    %v7215 = vmax.f32 %v7213, %v7214
    %v7216 = vsel %vm6942, %v6911, -inf
    %v7217 = vrot.slane %v7216, 4
    %v7218 = vmax.f32 %v7216, %v7217
    %v7219 = vrot.slane %v7218, 2
    %v7220 = vmax.f32 %v7218, %v7219
    %v7221 = vrot.slane %v7220, 1
    %v7222 = vmax.f32 %v7220, %v7221
    %7224 = vrot.lane.b32.xlu0 %v6956, 32
    %v7225 = vpop.permute.xlu0 %7224
    %7228 = vrot.lane.b32.xlu0 %v6963, 64
    %v7229 = vpop.permute.xlu0 %7228
    %7232 = vrot.lane.b32.xlu0 %v6970, 96
    %v7233 = vpop.permute.xlu0 %7232
    %7236 = vrot.lane.b32.xlu0 %v6984, 32
    %v7237 = vpop.permute.xlu0 %7236
    %7240 = vrot.lane.b32.xlu0 %v6991, 64
    %v7241 = vpop.permute.xlu0 %7240
    %7244 = vrot.lane.b32.xlu0 %v6998, 96
    %v7245 = vpop.permute.xlu0 %7244
    %7248 = vrot.lane.b32.xlu0 %v7012, 32
    %v7249 = vpop.permute.xlu0 %7248
    %7252 = vrot.lane.b32.xlu0 %v7019, 64
    %v7253 = vpop.permute.xlu0 %7252
    %7256 = vrot.lane.b32.xlu0 %v7026, 96
    %v7257 = vpop.permute.xlu0 %7256
    %7260 = vrot.lane.b32.xlu0 %v7040, 32
    %v7261 = vpop.permute.xlu0 %7260
    %7264 = vrot.lane.b32.xlu0 %v7047, 64
    %v7265 = vpop.permute.xlu0 %7264
    %7268 = vrot.lane.b32.xlu0 %v7054, 96
    %v7269 = vpop.permute.xlu0 %7268
    %v7271 = vsel %vm5184, %v6949, %v7225
    %v7272 = vsel %vm6757, %v7271, %v7229
    %v7273 = vsel %vm6812, %v7272, %v7233
    %v7274 = vsel %vm5184, %v6977, %v7237
    %v7275 = vsel %vm6757, %v7274, %v7241
    %v7276 = vsel %vm6812, %v7275, %v7245
    %v7277 = vsel %vm5184, %v7005, %v7249
    %v7278 = vsel %vm6757, %v7277, %v7253
    %v7279 = vsel %vm6812, %v7278, %v7257
    %v7280 = vsel %vm5184, %v7033, %v7261
    %v7281 = vsel %vm6757, %v7280, %v7265
    %v7282 = vsel %vm6812, %v7281, %v7269
    %7284 = vrot.lane.b32.xlu0 %v7068, 32
    %v7285 = vpop.permute.xlu0 %7284
    %7288 = vrot.lane.b32.xlu0 %v7075, 64
    %v7289 = vpop.permute.xlu0 %7288
    %7292 = vrot.lane.b32.xlu0 %v7082, 96
    %v7293 = vpop.permute.xlu0 %7292
    %v7295 = vsel %vm5184, %v7061, %v7285
    %v7296 = vsel %vm6757, %v7295, %v7289
    %v7297 = vsel %vm6812, %v7296, %v7293
    %7299 = vrot.lane.b32.xlu0 %v7096, 32
    %v7300 = vpop.permute.xlu0 %7299
    %7303 = vrot.lane.b32.xlu0 %v7103, 64
    %v7304 = vpop.permute.xlu0 %7303
    %7307 = vrot.lane.b32.xlu0 %v7110, 96
    %v7308 = vpop.permute.xlu0 %7307
    %7311 = vrot.lane.b32.xlu0 %v7124, 32
    %v7312 = vpop.permute.xlu0 %7311
    %7315 = vrot.lane.b32.xlu0 %v7131, 64
    %v7316 = vpop.permute.xlu0 %7315
    %7319 = vrot.lane.b32.xlu0 %v7138, 96
    %v7320 = vpop.permute.xlu0 %7319
    %7323 = vrot.lane.b32.xlu0 %v7152, 32
    %v7324 = vpop.permute.xlu0 %7323
    %7327 = vrot.lane.b32.xlu0 %v7159, 64
    %v7328 = vpop.permute.xlu0 %7327
    %7331 = vrot.lane.b32.xlu0 %v7166, 96
    %v7332 = vpop.permute.xlu0 %7331
    %7335 = vrot.lane.b32.xlu0 %v7180, 32
    %v7336 = vpop.permute.xlu0 %7335
    %7339 = vrot.lane.b32.xlu0 %v7187, 64
    %v7340 = vpop.permute.xlu0 %7339
    %7343 = vrot.lane.b32.xlu0 %v7194, 96
    %v7344 = vpop.permute.xlu0 %7343
    %v7346 = vsel %vm5184, %v7089, %v7300
    %v7347 = vsel %vm6757, %v7346, %v7304
    %v7348 = vsel %vm6812, %v7347, %v7308
    %v7349 = vsel %vm5184, %v7117, %v7312
    %v7350 = vsel %vm6757, %v7349, %v7316
    %v7351 = vsel %vm6812, %v7350, %v7320
    %v7352 = vsel %vm5184, %v7145, %v7324
    %v7353 = vsel %vm6757, %v7352, %v7328
    %v7354 = vsel %vm6812, %v7353, %v7332
    %v7355 = vsel %vm5184, %v7173, %v7336
    %v7356 = vsel %vm6757, %v7355, %v7340
    %v7357 = vsel %vm6812, %v7356, %v7344
    %7359 = vrot.lane.b32.xlu0 %v7208, 32
    %v7360 = vpop.permute.xlu0 %7359
    %7363 = vrot.lane.b32.xlu0 %v7215, 64
    %v7364 = vpop.permute.xlu0 %7363
    %7367 = vrot.lane.b32.xlu0 %v7222, 96
    %v7368 = vpop.permute.xlu0 %7367
    %v7370 = vsel %vm5184, %v7201, %v7360
    %v7371 = vsel %vm6757, %v7370, %v7364
    %v7372 = vsel %vm6812, %v7371, %v7368
    %v7378 = vrot.slane %v7348, 7
    %v7379 = vrot.slane %v7351, 7
    %v7380 = vrot.slane %v7354, 7
    %v7381 = vrot.slane %v7357, 7
    %v7382 = vrot.slane %v7372, 7
    %v7388 = vsel %vm201, %v7273, %v7378
    %v7389 = vsel %vm201, %v7276, %v7379
    %v7390 = vsel %vm201, %v7279, %v7380
    %v7391 = vsel %vm201, %v7282, %v7381
    %v7392 = vsel %vm201, %v7297, %v7382
    %v7393 = vpack.c.bf16 %v7388, %v7388
    %v7394 = vpack.c.bf16 %v7389, %v7389
    %v7395 = vpack.c.bf16 %v7390, %v7390
    %v7396 = vpack.c.bf16 %v7391, %v7391
    %v7397 = vpack.c.bf16 %v7392, %v7392
    %v7398 = vld [vmem:[%s13] sm:$0xf]
    %v7399 = vld [vmem:[%s13 + $0x4] sm:$0xf]
    %v7400 = vld [vmem:[%s13 + $0x8] sm:$0xf]
    %v7401 = vld [vmem:[%s13 + $0xc] sm:$0xf]
    %v7402 = vld [vmem:[%s13 + $0x10] sm:$0xf]
    %v7403 = vld [vmem:[%s13 + $0x14] sm:$0xf]
    %v7404 = vld [vmem:[%s13 + $0x18] sm:$0xf]
    %v7405 = vld [vmem:[%s13 + $0x1c] sm:$0xf]
    %v7406 = vld [vmem:[%s13 + $0x20] sm:$0xf]
    %v7407 = vld [vmem:[%s13 + $0x24] sm:$0xf]
    %v7408 = vld [vmem:[%s13 + $0x28] sm:$0xf]
    %v7409 = vld [vmem:[%s13 + $0x2c] sm:$0xf]
    %v7410 = vld [vmem:[%s13 + $0x30] sm:$0xf]
    %v7411 = vld [vmem:[%s13 + $0x34] sm:$0xf]
    %v7412 = vld [vmem:[%s13 + $0x38] sm:$0xf]
    %v7413 = vld [vmem:[%s13 + $0x3c] sm:$0xf]
    %v7414 = vld [vmem:[%s13 + $0x40] sm:$0xf]
    %v7415 = vld [vmem:[%s13 + $0x44] sm:$0xf]
    %v7416 = vld [vmem:[%s13 + $0x48] sm:$0xf]
    %v7417 = vld [vmem:[%s13 + $0x4c] sm:$0xf]
    %v7418 = vld [vmem:[%s13 + $0x50] sm:$0xf]
    %v7419 = vld [vmem:[%s13 + $0x54] sm:$0xf]
    %v7420 = vld [vmem:[%s13 + $0x58] sm:$0xf]
    %v7421 = vld [vmem:[%s13 + $0x5c] sm:$0xf]
    %v7422 = vld [vmem:[%s13 + $0x60] sm:$0xf]
    %v7423 = vld [vmem:[%s13 + $0x64] sm:$0xf]
    %v7424 = vld [vmem:[%s13 + $0x68] sm:$0xf]
    %v7425 = vld [vmem:[%s13 + $0x6c] sm:$0xf]
    %v7426 = vld [vmem:[%s13 + $0x70] sm:$0xf]
    %v7427 = vld [vmem:[%s13 + $0x74] sm:$0xf]
    %v7428 = vld [vmem:[%s13 + $0x78] sm:$0xf]
    %v7429 = vld [vmem:[%s13 + $0x7c] sm:$0xf]
    %v7430 = vld [vmem:[%s13 + $0x80] sm:$0xf]
    %v7431 = vld [vmem:[%s13 + $0x84] sm:$0xf]
    %v7432 = vld [vmem:[%s13 + $0x88] sm:$0xf]
    %v7433 = vld [vmem:[%s13 + $0x8c] sm:$0xf]
    %v7434 = vld [vmem:[%s13 + $0x90] sm:$0xf]
    %v7435 = vld [vmem:[%s13 + $0x94] sm:$0xf]
    %v7436 = vld [vmem:[%s13 + $0x98] sm:$0xf]
    %v7437 = vld [vmem:[%s13 + $0x9c] sm:$0xf]
    %v7438 = vld [vmem:[%s13 + $0xa0] sm:$0xf]
    %v7439 = vld [vmem:[%s13 + $0xa4] sm:$0xf]
    %v7440 = vld [vmem:[%s13 + $0xa8] sm:$0xf]
    %v7441 = vld [vmem:[%s13 + $0xac] sm:$0xf]
    %v7442 = vld [vmem:[%s13 + $0xb0] sm:$0xf]
    %v7443 = vld [vmem:[%s13 + $0xb4] sm:$0xf]
    %v7444 = vld [vmem:[%s13 + $0xb8] sm:$0xf]
    %v7445 = vld [vmem:[%s13 + $0xbc] sm:$0xf]
    %v7446 = vld [vmem:[%s13 + $0xc0] sm:$0xf]
    %v7447 = vld [vmem:[%s13 + $0xc4] sm:$0xf]
    %v7448 = vld [vmem:[%s13 + $0xc8] sm:$0xf]
    %v7449 = vld [vmem:[%s13 + $0xcc] sm:$0xf]
    %v7450 = vld [vmem:[%s13 + $0xd0] sm:$0xf]
    %v7451 = vld [vmem:[%s13 + $0xd4] sm:$0xf]
    %v7452 = vld [vmem:[%s13 + $0xd8] sm:$0xf]
    %v7453 = vld [vmem:[%s13 + $0xdc] sm:$0xf]
    %v7454 = vld [vmem:[%s13 + $0xe0] sm:$0xf]
    %v7455 = vld [vmem:[%s13 + $0xe4] sm:$0xf]
    %v7456 = vld [vmem:[%s13 + $0xe8] sm:$0xf]
    %v7457 = vld [vmem:[%s13 + $0xec] sm:$0xf]
    %v7458 = vld [vmem:[%s13 + $0xf0] sm:$0xf]
    %v7459 = vld [vmem:[%s13 + $0xf4] sm:$0xf]
    %v7460 = vld [vmem:[%s13 + $0xf8] sm:$0xf]
    %v7461 = vld [vmem:[%s13 + $0xfc] sm:$0xf]
    %v7462 = vld [vmem:[%s13 + $0x100] sm:$0xf]
    %v7463 = vld [vmem:[%s13 + $0x104] sm:$0xf]
    %v7464 = vld [vmem:[%s13 + $0x108] sm:$0xf]
    %v7465 = vld [vmem:[%s13 + $0x10c] sm:$0xf]
    %v7466 = vld [vmem:[%s13 + $0x110] sm:$0xf]
    %v7467 = vld [vmem:[%s13 + $0x114] sm:$0xf]
    %v7468 = vld [vmem:[%s13 + $0x118] sm:$0xf]
    %v7469 = vld [vmem:[%s13 + $0x11c] sm:$0xf]
    %v7470 = vld [vmem:[%s13 + $0x120] sm:$0xf]
    %v7471 = vld [vmem:[%s13 + $0x124] sm:$0xf]
    %v7472 = vld [vmem:[%s13 + $0x128] sm:$0xf]
    %v7473 = vld [vmem:[%s13 + $0x12c] sm:$0xf]
    %v7474 = vld [vmem:[%s13 + $0x130] sm:$0xf]
    %v7475 = vld [vmem:[%s13 + $0x134] sm:$0xf]
    %v7476 = vld [vmem:[%s13 + $0x138] sm:$0xf]
    %v7477 = vld [vmem:[%s13 + $0x13c] sm:$0xf]
    %v7478 = vld [vmem:[%s14] sm:$0x1]
    %v7480 = vperm.slane %v7478, 0
    %v7562 = vunpack.c.l.b16 %v7398
    %v7563 = vunpack.c.l.b16 %v7399
    %v7564 = vunpack.c.l.b16 %v7400
    %v7565 = vunpack.c.l.b16 %v7401
    %v7566 = vunpack.c.l.b16 %v7402
    %v7567 = vunpack.c.l.b16 %v7403
    %v7568 = vunpack.c.l.b16 %v7404
    %v7569 = vunpack.c.l.b16 %v7405
    %v7570 = vunpack.c.l.b16 %v7406
    %v7571 = vunpack.c.l.b16 %v7407
    %v7572 = vunpack.c.l.b16 %v7408
    %v7573 = vunpack.c.l.b16 %v7409
    %v7574 = vunpack.c.l.b16 %v7410
    %v7575 = vunpack.c.l.b16 %v7411
    %v7576 = vunpack.c.l.b16 %v7412
    %v7577 = vunpack.c.l.b16 %v7413
    %v7578 = vunpack.c.l.b16 %v7414
    %v7579 = vunpack.c.l.b16 %v7415
    %v7580 = vunpack.c.l.b16 %v7416
    %v7581 = vunpack.c.l.b16 %v7417
    %v7582 = vunpack.c.l.b16 %v7418
    %v7583 = vunpack.c.l.b16 %v7419
    %v7584 = vunpack.c.l.b16 %v7420
    %v7585 = vunpack.c.l.b16 %v7421
    %v7586 = vunpack.c.l.b16 %v7422
    %v7587 = vunpack.c.l.b16 %v7423
    %v7588 = vunpack.c.l.b16 %v7424
    %v7589 = vunpack.c.l.b16 %v7425
    %v7590 = vunpack.c.l.b16 %v7426
    %v7591 = vunpack.c.l.b16 %v7427
    %v7592 = vunpack.c.l.b16 %v7428
    %v7593 = vunpack.c.l.b16 %v7429
    %v7594 = vunpack.c.l.b16 %v7430
    %v7595 = vunpack.c.l.b16 %v7431
    %v7596 = vunpack.c.l.b16 %v7432
    %v7597 = vunpack.c.l.b16 %v7433
    %v7598 = vunpack.c.l.b16 %v7434
    %v7599 = vunpack.c.l.b16 %v7435
    %v7600 = vunpack.c.l.b16 %v7436
    %v7601 = vunpack.c.l.b16 %v7437
    %v7602 = vunpack.c.l.b16 %v7438
    %v7603 = vunpack.c.l.b16 %v7439
    %v7604 = vunpack.c.l.b16 %v7440
    %v7605 = vunpack.c.l.b16 %v7441
    %v7606 = vunpack.c.l.b16 %v7442
    %v7607 = vunpack.c.l.b16 %v7443
    %v7608 = vunpack.c.l.b16 %v7444
    %v7609 = vunpack.c.l.b16 %v7445
    %v7610 = vunpack.c.l.b16 %v7446
    %v7611 = vunpack.c.l.b16 %v7447
    %v7612 = vunpack.c.l.b16 %v7448
    %v7613 = vunpack.c.l.b16 %v7449
    %v7614 = vunpack.c.l.b16 %v7450
    %v7615 = vunpack.c.l.b16 %v7451
    %v7616 = vunpack.c.l.b16 %v7452
    %v7617 = vunpack.c.l.b16 %v7453
    %v7618 = vunpack.c.l.b16 %v7454
    %v7619 = vunpack.c.l.b16 %v7455
    %v7620 = vunpack.c.l.b16 %v7456
    %v7621 = vunpack.c.l.b16 %v7457
    %v7622 = vunpack.c.l.b16 %v7458
    %v7623 = vunpack.c.l.b16 %v7459
    %v7624 = vunpack.c.l.b16 %v7460
    %v7625 = vunpack.c.l.b16 %v7461
    %v7626 = vunpack.c.l.b16 %v7462
    %v7627 = vunpack.c.l.b16 %v7463
    %v7628 = vunpack.c.l.b16 %v7464
    %v7629 = vunpack.c.l.b16 %v7465
    %v7630 = vunpack.c.l.b16 %v7466
    %v7631 = vunpack.c.l.b16 %v7467
    %v7632 = vunpack.c.l.b16 %v7468
    %v7633 = vunpack.c.l.b16 %v7469
    %v7634 = vunpack.c.l.b16 %v7470
    %v7635 = vunpack.c.l.b16 %v7471
    %v7636 = vunpack.c.l.b16 %v7472
    %v7637 = vunpack.c.l.b16 %v7473
    %v7638 = vunpack.c.l.b16 %v7474
    %v7639 = vunpack.c.l.b16 %v7475
    %v7640 = vunpack.c.l.b16 %v7476
    %v7641 = vunpack.c.l.b16 %v7477
    %v7642 = vpack.c.b16 %v7563, %v7562
    %v7643 = vpack.c.b16 %v7565, %v7564
    %v7644 = vpack.c.b16 %v7567, %v7566
    %v7645 = vpack.c.b16 %v7569, %v7568
    %v7646 = vpack.c.b16 %v7571, %v7570
    %v7647 = vpack.c.b16 %v7573, %v7572
    %v7648 = vpack.c.b16 %v7575, %v7574
    %v7649 = vpack.c.b16 %v7577, %v7576
    %v7650 = vpack.c.b16 %v7579, %v7578
    %v7651 = vpack.c.b16 %v7581, %v7580
    %v7652 = vpack.c.b16 %v7583, %v7582
    %v7653 = vpack.c.b16 %v7585, %v7584
    %v7654 = vpack.c.b16 %v7587, %v7586
    %v7655 = vpack.c.b16 %v7589, %v7588
    %v7656 = vpack.c.b16 %v7591, %v7590
    %v7657 = vpack.c.b16 %v7593, %v7592
    %v7658 = vpack.c.b16 %v7595, %v7594
    %v7659 = vpack.c.b16 %v7597, %v7596
    %v7660 = vpack.c.b16 %v7599, %v7598
    %v7661 = vpack.c.b16 %v7601, %v7600
    %v7662 = vpack.c.b16 %v7603, %v7602
    %v7663 = vpack.c.b16 %v7605, %v7604
    %v7664 = vpack.c.b16 %v7607, %v7606
    %v7665 = vpack.c.b16 %v7609, %v7608
    %v7666 = vpack.c.b16 %v7611, %v7610
    %v7667 = vpack.c.b16 %v7613, %v7612
    %v7668 = vpack.c.b16 %v7615, %v7614
    %v7669 = vpack.c.b16 %v7617, %v7616
    %v7670 = vpack.c.b16 %v7619, %v7618
    %v7671 = vpack.c.b16 %v7621, %v7620
    %v7672 = vpack.c.b16 %v7623, %v7622
    %v7673 = vpack.c.b16 %v7625, %v7624
    %v7674 = vpack.c.b16 %v7627, %v7626
    %v7675 = vpack.c.b16 %v7629, %v7628
    %v7676 = vpack.c.b16 %v7631, %v7630
    %v7677 = vpack.c.b16 %v7633, %v7632
    %v7678 = vpack.c.b16 %v7635, %v7634
    %v7679 = vpack.c.b16 %v7637, %v7636
    %v7680 = vpack.c.b16 %v7639, %v7638
    %v7681 = vpack.c.b16 %v7641, %v7640
    %7722 = vmatpush.bf16.msra.mxu0 %v7649
    %7723 = vmatpush.bf16.msra.mxu0 %v7648
    %7724 = vmatpush.bf16.msra.mxu0 %v7647
    %7725 = vmatpush.bf16.msra.mxu0 %v7646
    %7726 = vmatpush.bf16.msra.mxu0 %v7645
    %7727 = vmatpush.bf16.msra.mxu0 %v7644
    %7728 = vmatpush.bf16.msra.mxu0 %v7643
    %7729 = vmatpush.bf16.msra.mxu0 %v7642
    %7730 = vmatmul.bf16.gmra.mxu0 %v7393
    %v7731 = vpop.f32.mrf.mxu0
    %v7732 = vadd.f32 %v7480, %v7731
    %v7733 = vpop.f32.mrf.mxu0
    %7734 = vdwg.mxu0
    %7735 = vmatpush.bf16.msra.mxu0 %v7657
    %7736 = vmatpush.bf16.msra.mxu0 %v7656
    %7737 = vmatpush.bf16.msra.mxu0 %v7655
    %7738 = vmatpush.bf16.msra.mxu0 %v7654
    %7739 = vmatpush.bf16.msra.mxu0 %v7653
    %7740 = vmatpush.bf16.msra.mxu0 %v7652
    %7741 = vmatpush.bf16.msra.mxu0 %v7651
    %7742 = vmatpush.bf16.msra.mxu0 %v7650
    %7743 = vmatmul.bf16.gmra.mxu0 %v7394
    %v7744 = vpop.f32.mrf.mxu0
    %v7745 = vadd.f32 %v7732, %v7744
    %v7746 = vpop.f32.mrf.mxu0
    %7747 = vdwg.mxu0
    %7748 = vmatpush.bf16.msra.mxu0 %v7665
    %7749 = vmatpush.bf16.msra.mxu0 %v7664
    %7750 = vmatpush.bf16.msra.mxu0 %v7663
    %7751 = vmatpush.bf16.msra.mxu0 %v7662
    %7752 = vmatpush.bf16.msra.mxu0 %v7661
    %7753 = vmatpush.bf16.msra.mxu0 %v7660
    %7754 = vmatpush.bf16.msra.mxu0 %v7659
    %7755 = vmatpush.bf16.msra.mxu0 %v7658
    %7756 = vmatmul.bf16.gmra.mxu0 %v7395
    %v7757 = vpop.f32.mrf.mxu0
    %v7758 = vadd.f32 %v7745, %v7757
    %v7759 = vpop.f32.mrf.mxu0
    %7760 = vdwg.mxu0
    %7761 = vmatpush.bf16.msra.mxu0 %v7673
    %7762 = vmatpush.bf16.msra.mxu0 %v7672
    %7763 = vmatpush.bf16.msra.mxu0 %v7671
    %7764 = vmatpush.bf16.msra.mxu0 %v7670
    %7765 = vmatpush.bf16.msra.mxu0 %v7669
    %7766 = vmatpush.bf16.msra.mxu0 %v7668
    %7767 = vmatpush.bf16.msra.mxu0 %v7667
    %7768 = vmatpush.bf16.msra.mxu0 %v7666
    %7769 = vmatmul.bf16.gmra.mxu0 %v7396
    %v7770 = vpop.f32.mrf.mxu0
    %v7771 = vadd.f32 %v7758, %v7770
    %v7772 = vpop.f32.mrf.mxu0
    %7773 = vdwg.mxu0
    %7774 = vmatpush.bf16.msra.mxu0 %v7681
    %7775 = vmatpush.bf16.msra.mxu0 %v7680
    %7776 = vmatpush.bf16.msra.mxu0 %v7679
    %7777 = vmatpush.bf16.msra.mxu0 %v7678
    %7778 = vmatpush.bf16.msra.mxu0 %v7677
    %7779 = vmatpush.bf16.msra.mxu0 %v7676
    %7780 = vmatpush.bf16.msra.mxu0 %v7675
    %7781 = vmatpush.bf16.msra.mxu0 %v7674
    %7782 = vmatmul.bf16.gmra.mxu0 %v7397
    %v7783 = vpop.f32.mrf.mxu0
    %v7784 = vadd.f32 %v7771, %v7783
    %v7785 = vpop.f32.mrf.mxu0
    %7786 = vdwg.mxu0
    %v7787 = vmax.f32 %v7784, 0.0
    %v7788 = vpack.c.bf16 %v7787, %v7787
    %v7789 = vld [vmem:[%s15] sm:$0xf]
    %v7790 = vld [vmem:[%s15 + $0x4] sm:$0xf]
    %v7791 = vld [vmem:[%s15 + $0x8] sm:$0xf]
    %v7792 = vld [vmem:[%s15 + $0xc] sm:$0xf]
    %v7793 = vld [vmem:[%s15 + $0x10] sm:$0xf]
    %v7794 = vld [vmem:[%s15 + $0x14] sm:$0xf]
    %v7795 = vld [vmem:[%s15 + $0x18] sm:$0xf]
    %v7796 = vld [vmem:[%s15 + $0x1c] sm:$0xf]
    %v7797 = vld [vmem:[%s16] sm:$0x1]
    %v7799 = vperm.slane %v7797, 0
    %v7809 = vunpack.c.l.b16 %v7789
    %v7810 = vunpack.c.l.b16 %v7790
    %v7811 = vunpack.c.l.b16 %v7791
    %v7812 = vunpack.c.l.b16 %v7792
    %v7813 = vunpack.c.l.b16 %v7793
    %v7814 = vunpack.c.l.b16 %v7794
    %v7815 = vunpack.c.l.b16 %v7795
    %v7816 = vunpack.c.l.b16 %v7796
    %v7817 = vpack.c.b16 %v7810, %v7809
    %v7818 = vpack.c.b16 %v7812, %v7811
    %v7819 = vpack.c.b16 %v7814, %v7813
    %v7820 = vpack.c.b16 %v7816, %v7815
    %v7826 = vsel %vm6757, %v7788, 0
    %7828 = vmatpush.bf16.msra.mxu0 0
    %7829 = vmatpush.bf16.msra.mxu0 0
    %7830 = vmatpush.bf16.msra.mxu0 0
    %7831 = vmatpush.bf16.msra.mxu0 0
    %7832 = vmatpush.bf16.msra.mxu0 %v7820
    %7833 = vmatpush.bf16.msra.mxu0 %v7819
    %7834 = vmatpush.bf16.msra.mxu0 %v7818
    %7835 = vmatpush.bf16.msra.mxu0 %v7817
    %7836 = vmatmul.bf16.gmra.mxu0 %v7826
    %v7837 = vpop.f32.mrf.mxu0
    %v7838 = vadd.f32 %v7799, %v7837
    %v7839 = vpop.f32.mrf.mxu0
    %7840 = vdwg.mxu0
    %7841 = vst.msk [vmem:[#allocation2] sm:$0x3] %vm2701, %v7838
    // Predicated region
    $region70: #{medium_cnn_forward.1} parent=1 // pred_check
      _
    $region71: #{medium_cnn_forward.1} parent=1 // pred_check_branch
      %7843 = sbr.rel (0) target = $region73
    $region72: #{medium_cnn_forward.1} parent=1 // pred_region
      %7845 = vsyncadd [#allocation3], 0
      %s7847 = sshll.u32 [#allocation2], 4
      %s7848 = int_to_ptr.vmem [resolvable:$true] %s7847
      %s7849 = sshll.u32 %s17, 4
      %s7850 = int_to_ptr.hbm [resolvable:$true] %s7849
      %7852 = dma.vmem_to_hbm [thread:$0]  %s7848, 32, %s7850, [#allocation3]
    $region73: #{medium_cnn_forward.1} parent=1 // pred_fallthru
      _
    // Predicated region
    $region74: #{medium_cnn_forward.1} parent=1 // pred_check
      _
    $region75: #{medium_cnn_forward.1} parent=1 // pred_check_branch
      %7854 = sbr.rel (0) target = $region77
    $region76: #{medium_cnn_forward.1} parent=1 // pred_region
      %7856 = dma.done [#allocation3], 32
    $region77: #{medium_cnn_forward.1} parent=1 // pred_fallthru
      _
    %7857 = vsyncpa [#allocation3], 1

</llo_original>
